<compile_context>
chip_gen: v7x
topology: tpu7x:2x2x1
jax: 0.10.0
libtpu: 0.0.40
codegen_flags: <defaults>
</compile_context>

<pallas_src>
import functools
import math

import jax
import jax.numpy as jnp
from jax.experimental import pallas as pl
from jax.experimental.pallas import tpu as pltpu


_VMEM = pl.BlockSpec(memory_space=pltpu.MemorySpace.VMEM)


# ----------------------------------------------------------------------------
# Fused transformer block kernel (whole batch, no grid)
# ----------------------------------------------------------------------------

def _make_block_kernel(batch, n_head, head_size, causal):
    dh_tot = n_head * head_size
    scale = 1.0 / math.sqrt(head_size)

    def kernel(x_ref, g1_ref, be1_ref, wq_ref, bq_ref, wk_ref, bk_ref,
               wv_ref, bv_ref, wo_ref, bo_ref, g2_ref, be2_ref,
               w1_ref, b1_ref, w2_ref, b2_ref, o_ref):
        S = x_ref.shape[1]

        def ln(v, g, b):
            mean = jnp.mean(v, axis=-1, keepdims=True)
            var = jnp.mean((v - mean) ** 2, axis=-1, keepdims=True)
            return (v - mean) * jax.lax.rsqrt(var + 1e-5) * g + b

        def proj(v_bf16, w_r, b_r):
            # bf16 MXU operands, f32 accumulation, f32 bias epilogue.
            return jnp.dot(v_bf16, w_r[...],
                           preferred_element_type=jnp.float32) + b_r[...]

        # Masks built once, shared across batch elements.
        lane = jax.lax.broadcasted_iota(jnp.int32, (1, dh_tot), 1)
        head_masks = [
            ((lane >= h * head_size) & (lane < (h + 1) * head_size)
             ).astype(jnp.bfloat16)
            for h in range(n_head)]
        if causal:
            rows = jax.lax.broadcasted_iota(jnp.int32, (S, S), 0)
            cols = jax.lax.broadcasted_iota(jnp.int32, (S, S), 1)
            keep = rows >= cols

        for b in range(batch):                          # static, small B
            x = x_ref[b].astype(jnp.float32)            # (S, D) f32

            # ---------------- attention ----------------
            xln_bf = ln(x, g1_ref[...], be1_ref[...]).astype(jnp.bfloat16)
            q = proj(xln_bf, wq_ref, bq_ref)             # (S, dh_tot) f32
            k = proj(xln_bf, wk_ref, bk_ref)
            v = proj(xln_bf, wv_ref, bv_ref)
            # Hoisted bf16 operands; scale folded into q before the cast.
            qb = (q * scale).astype(jnp.bfloat16)
            kb = k.astype(jnp.bfloat16)
            vb = v.astype(jnp.bfloat16)

            # Head split via lane masking: (q*m_h) @ k^T == q_h @ k_h^T and
            # p @ (v*m_h) lands each head's output in its own column block,
            # so the head-sum is exactly the concatenation.
            attn = jnp.zeros((S, dh_tot), jnp.float32)
            for m_h in head_masks:
                s = jax.lax.dot_general(
                    qb * m_h, kb, (((1,), (1,)), ((), ())),
                    preferred_element_type=jnp.float32)   # (S, S) f32
                if causal:
                    s = jnp.where(keep, s, -1e30)
                mx = jnp.max(s, axis=-1, keepdims=True)
                p = jnp.exp(s - mx)                        # f32 softmax
                p = p * pl.reciprocal(jnp.sum(p, axis=-1, keepdims=True),
                                      approx=True)
                attn = attn + jnp.dot(p.astype(jnp.bfloat16), vb * m_h,
                                      preferred_element_type=jnp.float32)

            x = x + proj(attn.astype(jnp.bfloat16), wo_ref, bo_ref)  # res 1

            # ---------------- MLP ----------------
            xln2_bf = ln(x, g2_ref[...], be2_ref[...]).astype(jnp.bfloat16)
            h1 = proj(xln2_bf, w1_ref, b1_ref)
            # TODO(synk): tanh-approx GELU (EUP-friendly); torch default is erf.
            h1 = jax.nn.gelu(h1, approximate=True)
            y = proj(h1.astype(jnp.bfloat16), w2_ref, b2_ref)
            o_ref[b] = (x + y).astype(o_ref.dtype)                    # res 2

    return kernel


def transformer_block(x, p, n_head, head_size, causal):
    """x: (B, S, D) bf16 -> (B, S, D) bf16. Single invocation, no grid."""
    B, S, D = x.shape
    a, m = p["attn"], p["mlp"]
    kernel = _make_block_kernel(B, n_head, head_size, causal)
    return pl.pallas_call(
        kernel,
        out_shape=jax.ShapeDtypeStruct((B, S, D), jnp.bfloat16),
        in_specs=[_VMEM] * 17,
        out_specs=_VMEM,
        compiler_params=pltpu.CompilerParams(
            vmem_limit_bytes=64 * 1024 * 1024),
    )(x,
      p["ln1_g"], p["ln1_b"],
      a["wq"], a["bq"], a["wk"], a["bk"], a["wv"], a["bv"], a["wo"], a["bo"],
      p["ln2_g"], p["ln2_b"],
      m["w1"], m["b1"], m["w2"], m["b2"])


# ----------------------------------------------------------------------------
# Patch embedding: Linear + CLS concat + pos-embed add (one kernel)
# ----------------------------------------------------------------------------

def _make_patch_embed_kernel(batch):
    def kernel(p_ref, w_ref, b_ref, cls_ref, pos_ref, o_ref):
        for b in range(batch):
            proj = (jnp.dot(p_ref[b], w_ref[...],
                            preferred_element_type=jnp.float32) + b_ref[...])
            y = jnp.concatenate([cls_ref[...], proj], axis=0) + pos_ref[...]
            o_ref[b] = y.astype(o_ref.dtype)
    return kernel


def patch_embed(patches, p):
    B, nP, Cp = patches.shape
    D = p["patch_w"].shape[1]
    return pl.pallas_call(
        _make_patch_embed_kernel(B),
        out_shape=jax.ShapeDtypeStruct((B, nP + 1, D), jnp.bfloat16),
        in_specs=[_VMEM] * 5,
        out_specs=_VMEM,
    )(patches.astype(jnp.bfloat16), p["patch_w"], p["patch_b"],
      p["cls_token"], p["pos_embed"])


# ----------------------------------------------------------------------------
# Connector: vision final LN + Linear + LN + broadcast-add + decoder pos add
# ----------------------------------------------------------------------------

def _make_connector_kernel(batch):
    def kernel(cls_ref, vg_ref, vb_ref, w_ref, b_ref, g_ref, be_ref,
               txt_ref, pos_ref, o_ref):
        def ln(v, g, b):
            mean = jnp.mean(v, axis=-1, keepdims=True)
            var = jnp.mean((v - mean) ** 2, axis=-1, keepdims=True)
            return (v - mean) * jax.lax.rsqrt(var + 1e-5) * g + b

        # Vision final LayerNorm is row-wise, so applying it only to the CLS
        # rows here is exactly ln_f(x)[:, 0, :].
        c = ln(cls_ref[...].astype(jnp.float32), vg_ref[...], vb_ref[...])
        proj = (jnp.dot(c.astype(jnp.bfloat16), w_ref[...],
                        preferred_element_type=jnp.float32) + b_ref[...])
        proj = ln(proj, g_ref[...], be_ref[...])              # (B, D_txt)
        for b in range(batch):
            o_ref[b] = (txt_ref[b] + pos_ref[...]
                        + proj[b:b + 1, :]).astype(o_ref.dtype)
    return kernel


def connector_and_embed(cls_bf16, text_embeds, pos_emb, vis_p, conn_p):
    B, T, D_txt = text_embeds.shape
    return pl.pallas_call(
        _make_connector_kernel(B),
        out_shape=jax.ShapeDtypeStruct((B, T, D_txt), jnp.bfloat16),
        in_specs=[_VMEM] * 9,
        out_specs=_VMEM,
    )(cls_bf16, vis_p["ln_f_g"], vis_p["ln_f_b"],
      conn_p["w"], conn_p["b"], conn_p["ln_g"], conn_p["ln_b"],
      text_embeds, pos_emb)


# ----------------------------------------------------------------------------
# LM head with fused decoder-final LayerNorm, tiled over the vocab dim
# ----------------------------------------------------------------------------

def _lm_head_kernel(x_ref, g_ref, b_ref, w_ref, bias_ref, o_ref):
    # LN is recomputed per vocab tile (cheap vs the matmul) so the vocab grid
    # axis stays safely "parallel" under any core sharding.
    x = x_ref[...].astype(jnp.float32)
    mean = jnp.mean(x, axis=-1, keepdims=True)
    var = jnp.mean((x - mean) ** 2, axis=-1, keepdims=True)
    xln = (x - mean) * jax.lax.rsqrt(var + 1e-5) * g_ref[...] + b_ref[...]
    o_ref[...] = (jnp.dot(xln.astype(jnp.bfloat16), w_ref[...],
                          preferred_element_type=jnp.float32)
                  + bias_ref[...]).astype(o_ref.dtype)


def lm_head(x, ln_g, ln_b, w, b):
    """Final LN + LM head, lane-dense vocab tiles (256/512 preferred)."""
    B, T, D = x.shape
    V = w.shape[1]
    M = B * T
    tn = next((t for t in (512, 256, 128) if V % t == 0), V)
    out = pl.pallas_call(
        _lm_head_kernel,
        out_shape=jax.ShapeDtypeStruct((M, V), jnp.float32),
        grid=(V // tn,),
        in_specs=[pl.BlockSpec((M, D), lambda j: (0, 0)),
                  pl.BlockSpec((1, D), lambda j: (0, 0)),
                  pl.BlockSpec((1, D), lambda j: (0, 0)),
                  pl.BlockSpec((D, tn), lambda j: (0, j)),
                  pl.BlockSpec((1, tn), lambda j: (0, j))],
        out_specs=pl.BlockSpec((M, tn), lambda j: (0, j)),
        compiler_params=pltpu.CompilerParams(
            dimension_semantics=("parallel",)),
    )(x.reshape(M, D), ln_g, ln_b, w, b)
    return out.reshape(B, T, V)


# ----------------------------------------------------------------------------
# Model components (plain-JAX orchestration around the Pallas kernels)
# ----------------------------------------------------------------------------

def visual_encoder(img, p, cfg):
    # img: (B, C, H, W)  NCHW
    B, C, H, W = img.shape
    ps = cfg["patch_size"]
    nh, nw = H // ps, W // ps
    # patch extraction == Conv2d(kernel=stride=patch) rewritten as matmul
    patches = (img.reshape(B, C, nh, ps, nw, ps)
                  .transpose(0, 2, 4, 1, 3, 5)          # (B, nh, nw, C, ps, ps)
                  .reshape(B, nh * nw, C * ps * ps))
    x = patch_embed(patches, p)                          # (B, nP+1, D) bf16
    for blk in p["blocks"]:
        x = transformer_block(x, blk, cfg["n_head"], cfg["head_size"],
                              causal=False)
    # Vision final LayerNorm is folded into the connector kernel (only the
    # CLS row is consumed downstream, and LayerNorm is row-wise).
    # TODO(synk): returned patch tokens skip the final LN (unused by forward).
    return x[:, 0, :], x[:, 1:, :]


def decoder(multimodal_embed, p, cfg):
    x = multimodal_embed                                 # (B, T, D) bf16
    for blk in p["layers"]:
        x = transformer_block(x, blk, cfg["n_head"], cfg["head_size"],
                              causal=True)
    return lm_head(x, p["ln_f_g"], p["ln_f_b"],
                   p["lm_head_w"], p["lm_head_b"])       # (B, T, vocab) f32


def nanovlm_forward(params, img, text_tokens, cfg):
    cls_embed, _ = visual_encoder(img, params["visual_encoder"], cfg)
    dec = params["decoder"]
    # TODO(synk): embedding gather stays in XLA (no clean Pallas equivalent).
    text_embeds = jnp.take(dec["token_embedding"], text_tokens, axis=0)
    T = text_tokens.shape[1]
    multimodal = connector_and_embed(
        cls_embed, text_embeds, dec["pos_embedding"][:T],
        params["visual_encoder"], params["connector"])
    return decoder(multimodal, dec, cfg)


# ----------------------------------------------------------------------------
# Deterministic parameter initialization — weights are stored in kernel
# layout ONCE (bf16 matrices, (1, N) f32 biases / LN params), so no per-
# forward dtype converts or reshapes are needed.
# ----------------------------------------------------------------------------

def _norm(key, shape, scale=0.02):
    return scale * jax.random.normal(key, shape, jnp.float32)


def _w(key, shape):
    return _norm(key, shape).astype(jnp.bfloat16)


def _zeros(n):
    return jnp.zeros((1, n), jnp.float32)


def _ones(n):
    return jnp.ones((1, n), jnp.float32)


def _init_attn(keys, d_in, n_head, head_size):
    d_h = n_head * head_size
    return {
        "wq": _w(next(keys), (d_in, d_h)), "bq": _zeros(d_h),
        "wk": _w(next(keys), (d_in, d_h)), "bk": _zeros(d_h),
        "wv": _w(next(keys), (d_in, d_h)), "bv": _zeros(d_h),
        "wo": _w(next(keys), (d_h, d_in)), "bo": _zeros(d_in),
    }


def _init_block(keys, d, n_head, head_size):
    return {
        "ln1_g": _ones(d), "ln1_b": _zeros(d),
        "attn": _init_attn(keys, d, n_head, head_size),
        "ln2_g": _ones(d), "ln2_b": _zeros(d),
        "mlp": {
            "w1": _w(next(keys), (d, 4 * d)), "b1": _zeros(4 * d),
            "w2": _w(next(keys), (4 * d, d)), "b2": _zeros(d),
        },
    }


def init_params(key, cfg):
    keys = iter(jax.random.split(key, 512))
    ps, C = cfg["patch_size"], cfg["in_channels"]
    D_img, D_txt = cfg["img_embd_dim"], cfg["n_embd"]
    n_patches = (cfg["img_size"] // ps) ** 2

    visual = {
        "patch_w": _w(next(keys), (C * ps * ps, D_img)),
        "patch_b": _zeros(D_img),
        "cls_token": _norm(next(keys), (1, D_img)),
        "pos_embed": _norm(next(keys), (n_patches + 1, D_img)),
        "blocks": [_init_block(keys, D_img, cfg["n_head"], cfg["head_size"])
                   for _ in range(cfg["n_blks"])],
        "ln_f_g": _ones(D_img),
        "ln_f_b": _zeros(D_img),
    }
    conn = {
        "w": _w(next(keys), (D_img, D_txt)),
        "b": _zeros(D_txt),
        "ln_g": _ones(D_txt),
        "ln_b": _zeros(D_txt),
    }
    dec = {
        "token_embedding": _norm(next(keys), (cfg["vocab_size"], D_txt)),
        "pos_embedding": _norm(next(keys), (cfg["max_seq_length"], D_txt)),
        "layers": [_init_block(keys, D_txt, cfg["n_head"], cfg["head_size"])
                   for _ in range(cfg["n_layer"])],
        "ln_f_g": _ones(D_txt),
        "ln_f_b": _zeros(D_txt),
        "lm_head_w": _w(next(keys), (D_txt, cfg["vocab_size"])),
        "lm_head_b": _zeros(cfg["vocab_size"]),
    }
    return {"visual_encoder": visual, "connector": conn, "decoder": dec}


# ----------------------------------------------------------------------------
# Main
# ----------------------------------------------------------------------------

if __name__ == "__main__":
    # Small but lane-dense test config: D = n_head*head_size = 128, hid = 512,
    # vocab = 512 -> every kernel load/store is a full 128-lane access.
    cfg = dict(
        img_size=32, patch_size=8, in_channels=3, vocab_size=512,
        n_blks=2, n_layer=2, n_head=4, head_size=32, n_embd=128,
        img_embd_dim=128, max_seq_length=64,
    )
    key = jax.random.PRNGKey(0)
    k_img, k_tok, k_par = jax.random.split(key, 3)

    img = jax.random.normal(k_img, (2, cfg["in_channels"],
                                    cfg["img_size"], cfg["img_size"]),
                            jnp.float32)                         # (B, C, H, W)
    text_tokens = jax.random.randint(k_tok, (2, 8), 0, cfg["vocab_size"],
                                     dtype=jnp.int32)            # (B, T)
    params = init_params(k_par, cfg)   # weights already in kernel layout

    fwd = jax.jit(functools.partial(nanovlm_forward, cfg=cfg))
    logits = fwd(params, img, text_tokens)
    jax.block_until_ready(logits)

    assert logits.shape == (2, 8, cfg["vocab_size"]), logits.shape
    assert jnp.all(jnp.isfinite(logits)), "non-finite logits"
    print("KERNEL_OK")
</pallas_src>

<mosaic_0001>
module attributes {stable_mosaic.version = 11 : i64} {
  func.func @kernel(%arg0: memref<2x16x192xbf16, #tpu.memory_space<vmem>>, %arg1: memref<192x128xbf16, #tpu.memory_space<vmem>>, %arg2: memref<1x128xf32, #tpu.memory_space<vmem>>, %arg3: memref<1x128xf32, #tpu.memory_space<vmem>>, %arg4: memref<17x128xf32, #tpu.memory_space<vmem>>, %arg5: memref<2x17x128xbf16, #tpu.memory_space<vmem>>) attributes {dimension_semantics = [], scalar_prefetch = 0 : i64, scratch_operands = 0 : i64, tpu.core_type = #tpu.core_type<tc>} {
    %c0 = arith.constant 0 : index
    %c0_0 = arith.constant 0 : index
    %c0_1 = arith.constant 0 : index
    %0 = vector.load %arg0[%c0, %c0_0, %c0_1] : memref<2x16x192xbf16, #tpu.memory_space<vmem>>, vector<1x16x192xbf16>
    %1 = vector.shape_cast %0 : vector<1x16x192xbf16> to vector<16x192xbf16>
    %c0_2 = arith.constant 0 : index
    %c0_3 = arith.constant 0 : index
    %2 = vector.load %arg1[%c0_2, %c0_3] : memref<192x128xbf16, #tpu.memory_space<vmem>>, vector<192x128xbf16>
    %cst = arith.constant dense<0.000000e+00> : vector<16x128xf32>
    %3 = tpu.matmul %1, %2, %cst {dimension_numbers = #tpu.dot_dimension_numbers<[1], [0], [0], [1], [0, 0, 1, 1], [], []>} : vector<16x192xbf16>, vector<192x128xbf16>, vector<16x128xf32> -> vector<16x128xf32>
    %c0_4 = arith.constant 0 : index
    %c0_5 = arith.constant 0 : index
    %4 = vector.load %arg2[%c0_4, %c0_5] : memref<1x128xf32, #tpu.memory_space<vmem>>, vector<1x128xf32>
    %5 = vector.broadcast %4 : vector<1x128xf32> to vector<16x128xf32>
    %6 = arith.addf %3, %5 : vector<16x128xf32>
    %c0_6 = arith.constant 0 : index
    %c0_7 = arith.constant 0 : index
    %7 = vector.load %arg3[%c0_6, %c0_7] : memref<1x128xf32, #tpu.memory_space<vmem>>, vector<1x128xf32>
    %8 = tpu.concatenate %7, %6 in 0 : vector<1x128xf32>, vector<16x128xf32> -> vector<17x128xf32>
    %c0_8 = arith.constant 0 : index
    %c0_9 = arith.constant 0 : index
    %9 = vector.load %arg4[%c0_8, %c0_9] : memref<17x128xf32, #tpu.memory_space<vmem>>, vector<17x128xf32>
    %10 = arith.addf %8, %9 : vector<17x128xf32>
    %11 = arith.truncf %10 : vector<17x128xf32> to vector<17x128xbf16>
    %c0_10 = arith.constant 0 : index
    %c0_11 = arith.constant 0 : index
    %c0_12 = arith.constant 0 : index
    %12 = vector.load %arg5[%c0_10, %c0_11, %c0_12] : memref<2x17x128xbf16, #tpu.memory_space<vmem>>, vector<1x17x128xbf16>
    %13 = vector.shape_cast %12 : vector<1x17x128xbf16> to vector<17x128xbf16>
    %14 = vector.shape_cast %11 : vector<17x128xbf16> to vector<1x17x128xbf16>
    tpu.vector_store %arg5[%c0_10, %c0_11, %c0_12], %14 {strides = array<i32>} : memref<2x17x128xbf16, #tpu.memory_space<vmem>>, vector<1x17x128xbf16>,
    %c1 = arith.constant 1 : index
    %c0_13 = arith.constant 0 : index
    %c0_14 = arith.constant 0 : index
    %15 = vector.load %arg0[%c1, %c0_13, %c0_14] : memref<2x16x192xbf16, #tpu.memory_space<vmem>>, vector<1x16x192xbf16>
    %16 = vector.shape_cast %15 : vector<1x16x192xbf16> to vector<16x192xbf16>
    %c0_15 = arith.constant 0 : index
    %c0_16 = arith.constant 0 : index
    %17 = vector.load %arg1[%c0_15, %c0_16] : memref<192x128xbf16, #tpu.memory_space<vmem>>, vector<192x128xbf16>
    %cst_17 = arith.constant dense<0.000000e+00> : vector<16x128xf32>
    %18 = tpu.matmul %16, %17, %cst_17 {dimension_numbers = #tpu.dot_dimension_numbers<[1], [0], [0], [1], [0, 0, 1, 1], [], []>} : vector<16x192xbf16>, vector<192x128xbf16>, vector<16x128xf32> -> vector<16x128xf32>
    %c0_18 = arith.constant 0 : index
    %c0_19 = arith.constant 0 : index
    %19 = vector.load %arg2[%c0_18, %c0_19] : memref<1x128xf32, #tpu.memory_space<vmem>>, vector<1x128xf32>
    %20 = vector.broadcast %19 : vector<1x128xf32> to vector<16x128xf32>
    %21 = arith.addf %18, %20 : vector<16x128xf32>
    %c0_20 = arith.constant 0 : index
    %c0_21 = arith.constant 0 : index
    %22 = vector.load %arg3[%c0_20, %c0_21] : memref<1x128xf32, #tpu.memory_space<vmem>>, vector<1x128xf32>
    %23 = tpu.concatenate %22, %21 in 0 : vector<1x128xf32>, vector<16x128xf32> -> vector<17x128xf32>
    %c0_22 = arith.constant 0 : index
    %c0_23 = arith.constant 0 : index
    %24 = vector.load %arg4[%c0_22, %c0_23] : memref<17x128xf32, #tpu.memory_space<vmem>>, vector<17x128xf32>
    %25 = arith.addf %23, %24 : vector<17x128xf32>
    %26 = arith.truncf %25 : vector<17x128xf32> to vector<17x128xbf16>
    %c1_24 = arith.constant 1 : index
    %c0_25 = arith.constant 0 : index
    %c0_26 = arith.constant 0 : index
    %27 = vector.load %arg5[%c1_24, %c0_25, %c0_26] : memref<2x17x128xbf16, #tpu.memory_space<vmem>>, vector<1x17x128xbf16>
    %28 = vector.shape_cast %27 : vector<1x17x128xbf16> to vector<17x128xbf16>
    %29 = vector.shape_cast %26 : vector<17x128xbf16> to vector<1x17x128xbf16>
    tpu.vector_store %arg5[%c1_24, %c0_25, %c0_26], %29 {strides = array<i32>} : memref<2x17x128xbf16, #tpu.memory_space<vmem>>, vector<1x17x128xbf16>,
    return
  }
}

module attributes {stable_mosaic.version = 11 : i64} {
  func.func @kernel(%arg0: memref<2x8x128xbf16, #tpu.memory_space<vmem>>, %arg1: memref<1x128xf32, #tpu.memory_space<vmem>>, %arg2: memref<1x128xf32, #tpu.memory_space<vmem>>, %arg3: memref<128x128xbf16, #tpu.memory_space<vmem>>, %arg4: memref<1x128xf32, #tpu.memory_space<vmem>>, %arg5: memref<128x128xbf16, #tpu.memory_space<vmem>>, %arg6: memref<1x128xf32, #tpu.memory_space<vmem>>, %arg7: memref<128x128xbf16, #tpu.memory_space<vmem>>, %arg8: memref<1x128xf32, #tpu.memory_space<vmem>>, %arg9: memref<128x128xbf16, #tpu.memory_space<vmem>>, %arg10: memref<1x128xf32, #tpu.memory_space<vmem>>, %arg11: memref<1x128xf32, #tpu.memory_space<vmem>>, %arg12: memref<1x128xf32, #tpu.memory_space<vmem>>, %arg13: memref<128x512xbf16, #tpu.memory_space<vmem>>, %arg14: memref<1x512xf32, #tpu.memory_space<vmem>>, %arg15: memref<512x128xbf16, #tpu.memory_space<vmem>>, %arg16: memref<1x128xf32, #tpu.memory_space<vmem>>, %arg17: memref<2x8x128xbf16, #tpu.memory_space<vmem>>) attributes {dimension_semantics = [], scalar_prefetch = 0 : i64, scratch_operands = 0 : i64, tpu.core_type = #tpu.core_type<tc>} {
    %0 = tpu.iota {dimensions = array<i32: 1>} : vector<1x128xi32>
    %c0_i32 = arith.constant 0 : i32
    %1 = vector.broadcast %c0_i32 : i32 to vector<1x128xi32>
    %2 = arith.cmpi sge, %0, %1 : vector<1x128xi32>
    %c32_i32 = arith.constant 32 : i32
    %3 = vector.broadcast %c32_i32 : i32 to vector<1x128xi32>
    %4 = arith.cmpi slt, %0, %3 : vector<1x128xi32>
    %5 = arith.andi %2, %4 : vector<1x128xi1>
    %6 = arith.extui %5 : vector<1x128xi1> to vector<1x128xi32>
    %7 = arith.sitofp %6 : vector<1x128xi32> to vector<1x128xf32>
    %8 = arith.truncf %7 : vector<1x128xf32> to vector<1x128xbf16>
    %c32_i32_0 = arith.constant 32 : i32
    %9 = vector.broadcast %c32_i32_0 : i32 to vector<1x128xi32>
    %10 = arith.cmpi sge, %0, %9 : vector<1x128xi32>
    %c64_i32 = arith.constant 64 : i32
    %11 = vector.broadcast %c64_i32 : i32 to vector<1x128xi32>
    %12 = arith.cmpi slt, %0, %11 : vector<1x128xi32>
    %13 = arith.andi %10, %12 : vector<1x128xi1>
    %14 = arith.extui %13 : vector<1x128xi1> to vector<1x128xi32>
    %15 = arith.sitofp %14 : vector<1x128xi32> to vector<1x128xf32>
    %16 = arith.truncf %15 : vector<1x128xf32> to vector<1x128xbf16>
    %c64_i32_1 = arith.constant 64 : i32
    %17 = vector.broadcast %c64_i32_1 : i32 to vector<1x128xi32>
    %18 = arith.cmpi sge, %0, %17 : vector<1x128xi32>
    %c96_i32 = arith.constant 96 : i32
    %19 = vector.broadcast %c96_i32 : i32 to vector<1x128xi32>
    %20 = arith.cmpi slt, %0, %19 : vector<1x128xi32>
    %21 = arith.andi %18, %20 : vector<1x128xi1>
    %22 = arith.extui %21 : vector<1x128xi1> to vector<1x128xi32>
    %23 = arith.sitofp %22 : vector<1x128xi32> to vector<1x128xf32>
    %24 = arith.truncf %23 : vector<1x128xf32> to vector<1x128xbf16>
    %c96_i32_2 = arith.constant 96 : i32
    %25 = vector.broadcast %c96_i32_2 : i32 to vector<1x128xi32>
    %26 = arith.cmpi sge, %0, %25 : vector<1x128xi32>
    %c128_i32 = arith.constant 128 : i32
    %27 = vector.broadcast %c128_i32 : i32 to vector<1x128xi32>
    %28 = arith.cmpi slt, %0, %27 : vector<1x128xi32>
    %29 = arith.andi %26, %28 : vector<1x128xi1>
    %30 = arith.extui %29 : vector<1x128xi1> to vector<1x128xi32>
    %31 = arith.sitofp %30 : vector<1x128xi32> to vector<1x128xf32>
    %32 = arith.truncf %31 : vector<1x128xf32> to vector<1x128xbf16>
    %33 = tpu.iota {dimensions = array<i32: 0>} : vector<8x8xi32>
    %34 = tpu.iota {dimensions = array<i32: 1>} : vector<8x8xi32>
    %35 = arith.cmpi sge, %33, %34 : vector<8x8xi32>
    %c0 = arith.constant 0 : index
    %c0_3 = arith.constant 0 : index
    %c0_4 = arith.constant 0 : index
    %36 = vector.load %arg0[%c0, %c0_3, %c0_4] : memref<2x8x128xbf16, #tpu.memory_space<vmem>>, vector<1x8x128xbf16>
    %37 = vector.shape_cast %36 : vector<1x8x128xbf16> to vector<8x128xbf16>
    %38 = arith.extf %37 : vector<8x128xbf16> to vector<8x128xf32>
    %c0_5 = arith.constant 0 : index
    %c0_6 = arith.constant 0 : index
    %39 = vector.load %arg1[%c0_5, %c0_6] : memref<1x128xf32, #tpu.memory_space<vmem>>, vector<1x128xf32>
    %c0_7 = arith.constant 0 : index
    %c0_8 = arith.constant 0 : index
    %40 = vector.load %arg2[%c0_7, %c0_8] : memref<1x128xf32, #tpu.memory_space<vmem>>, vector<1x128xf32>
    %cst = arith.constant dense<0.000000e+00> : vector<8xf32>
    %41 = vector.multi_reduction <add>, %38, %cst [1] : vector<8x128xf32> to vector<8xf32>
    %42 = vector.shape_cast %41 : vector<8xf32> to vector<8x1xf32>
    %cst_9 = arith.constant 1.280000e+02 : f32
    %43 = vector.broadcast %cst_9 : f32 to vector<8x1xf32>
    %44 = arith.divf %42, %43 : vector<8x1xf32>
    %45 = vector.broadcast %44 : vector<8x1xf32> to vector<8x128xf32>
    %46 = arith.subf %38, %45 : vector<8x128xf32>
    %47 = arith.mulf %46, %46 : vector<8x128xf32>
    %cst_10 = arith.constant dense<0.000000e+00> : vector<8xf32>
    %48 = vector.multi_reduction <add>, %47, %cst_10 [1] : vector<8x128xf32> to vector<8xf32>
    %49 = vector.shape_cast %48 : vector<8xf32> to vector<8x1xf32>
    %cst_11 = arith.constant 1.280000e+02 : f32
    %50 = vector.broadcast %cst_11 : f32 to vector<8x1xf32>
    %51 = arith.divf %49, %50 : vector<8x1xf32>
    %52 = vector.broadcast %44 : vector<8x1xf32> to vector<8x128xf32>
    %53 = arith.subf %38, %52 : vector<8x128xf32>
    %cst_12 = arith.constant 9.99999974E-6 : f32
    %54 = vector.broadcast %cst_12 : f32 to vector<8x1xf32>
    %55 = arith.addf %51, %54 : vector<8x1xf32>
    %56 = math.rsqrt %55 : vector<8x1xf32>
    %57 = vector.broadcast %56 : vector<8x1xf32> to vector<8x128xf32>
    %58 = arith.mulf %53, %57 : vector<8x128xf32>
    %59 = vector.broadcast %39 : vector<1x128xf32> to vector<8x128xf32>
    %60 = arith.mulf %58, %59 : vector<8x128xf32>
    %61 = vector.broadcast %40 : vector<1x128xf32> to vector<8x128xf32>
    %62 = arith.addf %60, %61 : vector<8x128xf32>
    %63 = arith.truncf %62 : vector<8x128xf32> to vector<8x128xbf16>
    %c0_13 = arith.constant 0 : index
    %c0_14 = arith.constant 0 : index
    %64 = vector.load %arg3[%c0_13, %c0_14] : memref<128x128xbf16, #tpu.memory_space<vmem>>, vector<128x128xbf16>
    %cst_15 = arith.constant dense<0.000000e+00> : vector<8x128xf32>
    %65 = tpu.matmul %63, %64, %cst_15 {dimension_numbers = #tpu.dot_dimension_numbers<[1], [0], [0], [1], [0, 0, 1, 1], [], []>} : vector<8x128xbf16>, vector<128x128xbf16>, vector<8x128xf32> -> vector<8x128xf32>
    %c0_16 = arith.constant 0 : index
    %c0_17 = arith.constant 0 : index
    %66 = vector.load %arg4[%c0_16, %c0_17] : memref<1x128xf32, #tpu.memory_space<vmem>>, vector<1x128xf32>
    %67 = vector.broadcast %66 : vector<1x128xf32> to vector<8x128xf32>
    %68 = arith.addf %65, %67 : vector<8x128xf32>
    %c0_18 = arith.constant 0 : index
    %c0_19 = arith.constant 0 : index
    %69 = vector.load %arg5[%c0_18, %c0_19] : memref<128x128xbf16, #tpu.memory_space<vmem>>, vector<128x128xbf16>
    %cst_20 = arith.constant dense<0.000000e+00> : vector<8x128xf32>
    %70 = tpu.matmul %63, %69, %cst_20 {dimension_numbers = #tpu.dot_dimension_numbers<[1], [0], [0], [1], [0, 0, 1, 1], [], []>} : vector<8x128xbf16>, vector<128x128xbf16>, vector<8x128xf32> -> vector<8x128xf32>
    %c0_21 = arith.constant 0 : index
    %c0_22 = arith.constant 0 : index
    %71 = vector.load %arg6[%c0_21, %c0_22] : memref<1x128xf32, #tpu.memory_space<vmem>>, vector<1x128xf32>
    %72 = vector.broadcast %71 : vector<1x128xf32> to vector<8x128xf32>
    %73 = arith.addf %70, %72 : vector<8x128xf32>
    %c0_23 = arith.constant 0 : index
    %c0_24 = arith.constant 0 : index
    %74 = vector.load %arg7[%c0_23, %c0_24] : memref<128x128xbf16, #tpu.memory_space<vmem>>, vector<128x128xbf16>
    %cst_25 = arith.constant dense<0.000000e+00> : vector<8x128xf32>
    %75 = tpu.matmul %63, %74, %cst_25 {dimension_numbers = #tpu.dot_dimension_numbers<[1], [0], [0], [1], [0, 0, 1, 1], [], []>} : vector<8x128xbf16>, vector<128x128xbf16>, vector<8x128xf32> -> vector<8x128xf32>
    %c0_26 = arith.constant 0 : index
    %c0_27 = arith.constant 0 : index
    %76 = vector.load %arg8[%c0_26, %c0_27] : memref<1x128xf32, #tpu.memory_space<vmem>>, vector<1x128xf32>
    %77 = vector.broadcast %76 : vector<1x128xf32> to vector<8x128xf32>
    %78 = arith.addf %75, %77 : vector<8x128xf32>
    %cst_28 = arith.constant 0.176776692 : f32
    %79 = vector.broadcast %cst_28 : f32 to vector<8x128xf32>
    %80 = arith.mulf %68, %79 : vector<8x128xf32>
    %81 = arith.truncf %80 : vector<8x128xf32> to vector<8x128xbf16>
    %82 = arith.truncf %73 : vector<8x128xf32> to vector<8x128xbf16>
    %83 = arith.truncf %78 : vector<8x128xf32> to vector<8x128xbf16>
    %cst_29 = arith.constant 0.000000e+00 : f32
    %84 = vector.broadcast %cst_29 : f32 to vector<8x128xf32>
    %85 = vector.broadcast %8 : vector<1x128xbf16> to vector<8x128xbf16>
    %86 = arith.mulf %81, %85 : vector<8x128xbf16>
    %cst_30 = arith.constant dense<0.000000e+00> : vector<8x8xf32>
    %87 = tpu.matmul %86, %82, %cst_30 {dimension_numbers = #tpu.dot_dimension_numbers<[1], [1], [0], [0], [0, 0, 1, 0], [], []>} : vector<8x128xbf16>, vector<8x128xbf16>, vector<8x8xf32> -> vector<8x8xf32>
    %cst_31 = arith.constant -1.000000e+30 : f32
    %88 = vector.broadcast %cst_31 : f32 to vector<8x8xf32>
    %89 = arith.select %35, %87, %88 : vector<8x8xi1>, vector<8x8xf32>
    %cst_32 = arith.constant dense<0xFF800000> : vector<8xf32>
    %90 = vector.multi_reduction <maximumf>, %89, %cst_32 [1] : vector<8x8xf32> to vector<8xf32>
    %91 = vector.shape_cast %90 : vector<8xf32> to vector<8x1xf32>
    %92 = vector.broadcast %91 : vector<8x1xf32> to vector<8x8xf32>
    %93 = arith.subf %89, %92 : vector<8x8xf32>
    %94 = math.exp %93 : vector<8x8xf32>
    %cst_33 = arith.constant dense<0.000000e+00> : vector<8xf32>
    %95 = vector.multi_reduction <add>, %94, %cst_33 [1] : vector<8x8xf32> to vector<8xf32>
    %96 = vector.shape_cast %95 : vector<8xf32> to vector<8x1xf32>
    %97 = tpu.reciprocal %96 {approx = true} : vector<8x1xf32> -> vector<8x1xf32>
    %98 = vector.broadcast %97 : vector<8x1xf32> to vector<8x8xf32>
    %99 = arith.mulf %94, %98 : vector<8x8xf32>
    %100 = arith.truncf %99 : vector<8x8xf32> to vector<8x8xbf16>
    %101 = vector.broadcast %8 : vector<1x128xbf16> to vector<8x128xbf16>
    %102 = arith.mulf %83, %101 : vector<8x128xbf16>
    %cst_34 = arith.constant dense<0.000000e+00> : vector<8x128xf32>
    %103 = tpu.matmul %100, %102, %cst_34 {dimension_numbers = #tpu.dot_dimension_numbers<[1], [0], [0], [1], [0, 0, 1, 1], [], []>} : vector<8x8xbf16>, vector<8x128xbf16>, vector<8x128xf32> -> vector<8x128xf32>
    %104 = arith.addf %84, %103 : vector<8x128xf32>
    %105 = vector.broadcast %16 : vector<1x128xbf16> to vector<8x128xbf16>
    %106 = arith.mulf %81, %105 : vector<8x128xbf16>
    %cst_35 = arith.constant dense<0.000000e+00> : vector<8x8xf32>
    %107 = tpu.matmul %106, %82, %cst_35 {dimension_numbers = #tpu.dot_dimension_numbers<[1], [1], [0], [0], [0, 0, 1, 0], [], []>} : vector<8x128xbf16>, vector<8x128xbf16>, vector<8x8xf32> -> vector<8x8xf32>
    %cst_36 = arith.constant -1.000000e+30 : f32
    %108 = vector.broadcast %cst_36 : f32 to vector<8x8xf32>
    %109 = arith.select %35, %107, %108 : vector<8x8xi1>, vector<8x8xf32>
    %cst_37 = arith.constant dense<0xFF800000> : vector<8xf32>
    %110 = vector.multi_reduction <maximumf>, %109, %cst_37 [1] : vector<8x8xf32> to vector<8xf32>
    %111 = vector.shape_cast %110 : vector<8xf32> to vector<8x1xf32>
    %112 = vector.broadcast %111 : vector<8x1xf32> to vector<8x8xf32>
    %113 = arith.subf %109, %112 : vector<8x8xf32>
    %114 = math.exp %113 : vector<8x8xf32>
    %cst_38 = arith.constant dense<0.000000e+00> : vector<8xf32>
    %115 = vector.multi_reduction <add>, %114, %cst_38 [1] : vector<8x8xf32> to vector<8xf32>
    %116 = vector.shape_cast %115 : vector<8xf32> to vector<8x1xf32>
    %117 = tpu.reciprocal %116 {approx = true} : vector<8x1xf32> -> vector<8x1xf32>
    %118 = vector.broadcast %117 : vector<8x1xf32> to vector<8x8xf32>
    %119 = arith.mulf %114, %118 : vector<8x8xf32>
    %120 = arith.truncf %119 : vector<8x8xf32> to vector<8x8xbf16>
    %121 = vector.broadcast %16 : vector<1x128xbf16> to vector<8x128xbf16>
    %122 = arith.mulf %83, %121 : vector<8x128xbf16>
    %cst_39 = arith.constant dense<0.000000e+00> : vector<8x128xf32>
    %123 = tpu.matmul %120, %122, %cst_39 {dimension_numbers = #tpu.dot_dimension_numbers<[1], [0], [0], [1], [0, 0, 1, 1], [], []>} : vector<8x8xbf16>, vector<8x128xbf16>, vector<8x128xf32> -> vector<8x128xf32>
    %124 = arith.addf %104, %123 : vector<8x128xf32>
    %125 = vector.broadcast %24 : vector<1x128xbf16> to vector<8x128xbf16>
    %126 = arith.mulf %81, %125 : vector<8x128xbf16>
    %cst_40 = arith.constant dense<0.000000e+00> : vector<8x8xf32>
    %127 = tpu.matmul %126, %82, %cst_40 {dimension_numbers = #tpu.dot_dimension_numbers<[1], [1], [0], [0], [0, 0, 1, 0], [], []>} : vector<8x128xbf16>, vector<8x128xbf16>, vector<8x8xf32> -> vector<8x8xf32>
    %cst_41 = arith.constant -1.000000e+30 : f32
    %128 = vector.broadcast %cst_41 : f32 to vector<8x8xf32>
    %129 = arith.select %35, %127, %128 : vector<8x8xi1>, vector<8x8xf32>
    %cst_42 = arith.constant dense<0xFF800000> : vector<8xf32>
    %130 = vector.multi_reduction <maximumf>, %129, %cst_42 [1] : vector<8x8xf32> to vector<8xf32>
    %131 = vector.shape_cast %130 : vector<8xf32> to vector<8x1xf32>
    %132 = vector.broadcast %131 : vector<8x1xf32> to vector<8x8xf32>
    %133 = arith.subf %129, %132 : vector<8x8xf32>
    %134 = math.exp %133 : vector<8x8xf32>
    %cst_43 = arith.constant dense<0.000000e+00> : vector<8xf32>
    %135 = vector.multi_reduction <add>, %134, %cst_43 [1] : vector<8x8xf32> to vector<8xf32>
    %136 = vector.shape_cast %135 : vector<8xf32> to vector<8x1xf32>
    %137 = tpu.reciprocal %136 {approx = true} : vector<8x1xf32> -> vector<8x1xf32>
    %138 = vector.broadcast %137 : vector<8x1xf32> to vector<8x8xf32>
    %139 = arith.mulf %134, %138 : vector<8x8xf32>
    %140 = arith.truncf %139 : vector<8x8xf32> to vector<8x8xbf16>
    %141 = vector.broadcast %24 : vector<1x128xbf16> to vector<8x128xbf16>
    %142 = arith.mulf %83, %141 : vector<8x128xbf16>
    %cst_44 = arith.constant dense<0.000000e+00> : vector<8x128xf32>
    %143 = tpu.matmul %140, %142, %cst_44 {dimension_numbers = #tpu.dot_dimension_numbers<[1], [0], [0], [1], [0, 0, 1, 1], [], []>} : vector<8x8xbf16>, vector<8x128xbf16>, vector<8x128xf32> -> vector<8x128xf32>
    %144 = arith.addf %124, %143 : vector<8x128xf32>
    %145 = vector.broadcast %32 : vector<1x128xbf16> to vector<8x128xbf16>
    %146 = arith.mulf %81, %145 : vector<8x128xbf16>
    %cst_45 = arith.constant dense<0.000000e+00> : vector<8x8xf32>
    %147 = tpu.matmul %146, %82, %cst_45 {dimension_numbers = #tpu.dot_dimension_numbers<[1], [1], [0], [0], [0, 0, 1, 0], [], []>} : vector<8x128xbf16>, vector<8x128xbf16>, vector<8x8xf32> -> vector<8x8xf32>
    %cst_46 = arith.constant -1.000000e+30 : f32
    %148 = vector.broadcast %cst_46 : f32 to vector<8x8xf32>
    %149 = arith.select %35, %147, %148 : vector<8x8xi1>, vector<8x8xf32>
    %cst_47 = arith.constant dense<0xFF800000> : vector<8xf32>
    %150 = vector.multi_reduction <maximumf>, %149, %cst_47 [1] : vector<8x8xf32> to vector<8xf32>
    %151 = vector.shape_cast %150 : vector<8xf32> to vector<8x1xf32>
    %152 = vector.broadcast %151 : vector<8x1xf32> to vector<8x8xf32>
    %153 = arith.subf %149, %152 : vector<8x8xf32>
    %154 = math.exp %153 : vector<8x8xf32>
    %cst_48 = arith.constant dense<0.000000e+00> : vector<8xf32>
    %155 = vector.multi_reduction <add>, %154, %cst_48 [1] : vector<8x8xf32> to vector<8xf32>
    %156 = vector.shape_cast %155 : vector<8xf32> to vector<8x1xf32>
    %157 = tpu.reciprocal %156 {approx = true} : vector<8x1xf32> -> vector<8x1xf32>
    %158 = vector.broadcast %157 : vector<8x1xf32> to vector<8x8xf32>
    %159 = arith.mulf %154, %158 : vector<8x8xf32>
    %160 = arith.truncf %159 : vector<8x8xf32> to vector<8x8xbf16>
    %161 = vector.broadcast %32 : vector<1x128xbf16> to vector<8x128xbf16>
    %162 = arith.mulf %83, %161 : vector<8x128xbf16>
    %cst_49 = arith.constant dense<0.000000e+00> : vector<8x128xf32>
    %163 = tpu.matmul %160, %162, %cst_49 {dimension_numbers = #tpu.dot_dimension_numbers<[1], [0], [0], [1], [0, 0, 1, 1], [], []>} : vector<8x8xbf16>, vector<8x128xbf16>, vector<8x128xf32> -> vector<8x128xf32>
    %164 = arith.addf %144, %163 : vector<8x128xf32>
    %165 = arith.truncf %164 : vector<8x128xf32> to vector<8x128xbf16>
    %c0_50 = arith.constant 0 : index
    %c0_51 = arith.constant 0 : index
    %166 = vector.load %arg9[%c0_50, %c0_51] : memref<128x128xbf16, #tpu.memory_space<vmem>>, vector<128x128xbf16>
    %cst_52 = arith.constant dense<0.000000e+00> : vector<8x128xf32>
    %167 = tpu.matmul %165, %166, %cst_52 {dimension_numbers = #tpu.dot_dimension_numbers<[1], [0], [0], [1], [0, 0, 1, 1], [], []>} : vector<8x128xbf16>, vector<128x128xbf16>, vector<8x128xf32> -> vector<8x128xf32>
    %c0_53 = arith.constant 0 : index
    %c0_54 = arith.constant 0 : index
    %168 = vector.load %arg10[%c0_53, %c0_54] : memref<1x128xf32, #tpu.memory_space<vmem>>, vector<1x128xf32>
    %169 = vector.broadcast %168 : vector<1x128xf32> to vector<8x128xf32>
    %170 = arith.addf %167, %169 : vector<8x128xf32>
    %171 = arith.addf %38, %170 : vector<8x128xf32>
    %c0_55 = arith.constant 0 : index
    %c0_56 = arith.constant 0 : index
    %172 = vector.load %arg11[%c0_55, %c0_56] : memref<1x128xf32, #tpu.memory_space<vmem>>, vector<1x128xf32>
    %c0_57 = arith.constant 0 : index
    %c0_58 = arith.constant 0 : index
    %173 = vector.load %arg12[%c0_57, %c0_58] : memref<1x128xf32, #tpu.memory_space<vmem>>, vector<1x128xf32>
    %cst_59 = arith.constant dense<0.000000e+00> : vector<8xf32>
    %174 = vector.multi_reduction <add>, %171, %cst_59 [1] : vector<8x128xf32> to vector<8xf32>
    %175 = vector.shape_cast %174 : vector<8xf32> to vector<8x1xf32>
    %cst_60 = arith.constant 1.280000e+02 : f32
    %176 = vector.broadcast %cst_60 : f32 to vector<8x1xf32>
    %177 = arith.divf %175, %176 : vector<8x1xf32>
    %178 = vector.broadcast %177 : vector<8x1xf32> to vector<8x128xf32>
    %179 = arith.subf %171, %178 : vector<8x128xf32>
    %180 = arith.mulf %179, %179 : vector<8x128xf32>
    %cst_61 = arith.constant dense<0.000000e+00> : vector<8xf32>
    %181 = vector.multi_reduction <add>, %180, %cst_61 [1] : vector<8x128xf32> to vector<8xf32>
    %182 = vector.shape_cast %181 : vector<8xf32> to vector<8x1xf32>
    %cst_62 = arith.constant 1.280000e+02 : f32
    %183 = vector.broadcast %cst_62 : f32 to vector<8x1xf32>
    %184 = arith.divf %182, %183 : vector<8x1xf32>
    %185 = vector.broadcast %177 : vector<8x1xf32> to vector<8x128xf32>
    %186 = arith.subf %171, %185 : vector<8x128xf32>
    %cst_63 = arith.constant 9.99999974E-6 : f32
    %187 = vector.broadcast %cst_63 : f32 to vector<8x1xf32>
    %188 = arith.addf %184, %187 : vector<8x1xf32>
    %189 = math.rsqrt %188 : vector<8x1xf32>
    %190 = vector.broadcast %189 : vector<8x1xf32> to vector<8x128xf32>
    %191 = arith.mulf %186, %190 : vector<8x128xf32>
    %192 = vector.broadcast %172 : vector<1x128xf32> to vector<8x128xf32>
    %193 = arith.mulf %191, %192 : vector<8x128xf32>
    %194 = vector.broadcast %173 : vector<1x128xf32> to vector<8x128xf32>
    %195 = arith.addf %193, %194 : vector<8x128xf32>
    %196 = arith.truncf %195 : vector<8x128xf32> to vector<8x128xbf16>
    %c0_64 = arith.constant 0 : index
    %c0_65 = arith.constant 0 : index
    %197 = vector.load %arg13[%c0_64, %c0_65] : memref<128x512xbf16, #tpu.memory_space<vmem>>, vector<128x512xbf16>
    %cst_66 = arith.constant dense<0.000000e+00> : vector<8x512xf32>
    %198 = tpu.matmul %196, %197, %cst_66 {dimension_numbers = #tpu.dot_dimension_numbers<[1], [0], [0], [1], [0, 0, 1, 1], [], []>} : vector<8x128xbf16>, vector<128x512xbf16>, vector<8x512xf32> -> vector<8x512xf32>
    %c0_67 = arith.constant 0 : index
    %c0_68 = arith.constant 0 : index
    %199 = vector.load %arg14[%c0_67, %c0_68] : memref<1x512xf32, #tpu.memory_space<vmem>>, vector<1x512xf32>
    %200 = vector.broadcast %199 : vector<1x512xf32> to vector<8x512xf32>
    %201 = arith.addf %198, %200 : vector<8x512xf32>
    %202 = arith.mulf %201, %201 : vector<8x512xf32>
    %203 = arith.mulf %201, %202 : vector<8x512xf32>
    %cst_69 = arith.constant 4.471500e-02 : f32
    %204 = vector.broadcast %cst_69 : f32 to vector<8x512xf32>
    %205 = arith.mulf %204, %203 : vector<8x512xf32>
    %206 = arith.addf %201, %205 : vector<8x512xf32>
    %cst_70 = arith.constant 0.797884583 : f32
    %207 = vector.broadcast %cst_70 : f32 to vector<8x512xf32>
    %208 = arith.mulf %207, %206 : vector<8x512xf32>
    %209 = math.tanh %208 : vector<8x512xf32>
    %cst_71 = arith.constant 1.000000e+00 : f32
    %210 = vector.broadcast %cst_71 : f32 to vector<8x512xf32>
    %211 = arith.addf %210, %209 : vector<8x512xf32>
    %cst_72 = arith.constant 5.000000e-01 : f32
    %212 = vector.broadcast %cst_72 : f32 to vector<8x512xf32>
    %213 = arith.mulf %212, %211 : vector<8x512xf32>
    %214 = arith.mulf %201, %213 : vector<8x512xf32>
    %215 = arith.truncf %214 : vector<8x512xf32> to vector<8x512xbf16>
    %c0_73 = arith.constant 0 : index
    %c0_74 = arith.constant 0 : index
    %216 = vector.load %arg15[%c0_73, %c0_74] : memref<512x128xbf16, #tpu.memory_space<vmem>>, vector<512x128xbf16>
    %cst_75 = arith.constant dense<0.000000e+00> : vector<8x128xf32>
    %217 = tpu.matmul %215, %216, %cst_75 {dimension_numbers = #tpu.dot_dimension_numbers<[1], [0], [0], [1], [0, 0, 1, 1], [], []>} : vector<8x512xbf16>, vector<512x128xbf16>, vector<8x128xf32> -> vector<8x128xf32>
    %c0_76 = arith.constant 0 : index
    %c0_77 = arith.constant 0 : index
    %218 = vector.load %arg16[%c0_76, %c0_77] : memref<1x128xf32, #tpu.memory_space<vmem>>, vector<1x128xf32>
    %219 = vector.broadcast %218 : vector<1x128xf32> to vector<8x128xf32>
    %220 = arith.addf %217, %219 : vector<8x128xf32>
    %221 = arith.addf %171, %220 : vector<8x128xf32>
    %222 = arith.truncf %221 : vector<8x128xf32> to vector<8x128xbf16>
    %c0_78 = arith.constant 0 : index
    %c0_79 = arith.constant 0 : index
    %c0_80 = arith.constant 0 : index
    %223 = vector.load %arg17[%c0_78, %c0_79, %c0_80] : memref<2x8x128xbf16, #tpu.memory_space<vmem>>, vector<1x8x128xbf16>
    %224 = vector.shape_cast %223 : vector<1x8x128xbf16> to vector<8x128xbf16>
    %225 = vector.shape_cast %222 : vector<8x128xbf16> to vector<1x8x128xbf16>
    tpu.vector_store %arg17[%c0_78, %c0_79, %c0_80], %225 {strides = array<i32>} : memref<2x8x128xbf16, #tpu.memory_space<vmem>>, vector<1x8x128xbf16>,
    %c1 = arith.constant 1 : index
    %c0_81 = arith.constant 0 : index
    %c0_82 = arith.constant 0 : index
    %226 = vector.load %arg0[%c1, %c0_81, %c0_82] : memref<2x8x128xbf16, #tpu.memory_space<vmem>>, vector<1x8x128xbf16>
    %227 = vector.shape_cast %226 : vector<1x8x128xbf16> to vector<8x128xbf16>
    %228 = arith.extf %227 : vector<8x128xbf16> to vector<8x128xf32>
    %c0_83 = arith.constant 0 : index
    %c0_84 = arith.constant 0 : index
    %229 = vector.load %arg1[%c0_83, %c0_84] : memref<1x128xf32, #tpu.memory_space<vmem>>, vector<1x128xf32>
    %c0_85 = arith.constant 0 : index
    %c0_86 = arith.constant 0 : index
    %230 = vector.load %arg2[%c0_85, %c0_86] : memref<1x128xf32, #tpu.memory_space<vmem>>, vector<1x128xf32>
    %cst_87 = arith.constant dense<0.000000e+00> : vector<8xf32>
    %231 = vector.multi_reduction <add>, %228, %cst_87 [1] : vector<8x128xf32> to vector<8xf32>
    %232 = vector.shape_cast %231 : vector<8xf32> to vector<8x1xf32>
    %cst_88 = arith.constant 1.280000e+02 : f32
    %233 = vector.broadcast %cst_88 : f32 to vector<8x1xf32>
    %234 = arith.divf %232, %233 : vector<8x1xf32>
    %235 = vector.broadcast %234 : vector<8x1xf32> to vector<8x128xf32>
    %236 = arith.subf %228, %235 : vector<8x128xf32>
    %237 = arith.mulf %236, %236 : vector<8x128xf32>
    %cst_89 = arith.constant dense<0.000000e+00> : vector<8xf32>
    %238 = vector.multi_reduction <add>, %237, %cst_89 [1] : vector<8x128xf32> to vector<8xf32>
    %239 = vector.shape_cast %238 : vector<8xf32> to vector<8x1xf32>
    %cst_90 = arith.constant 1.280000e+02 : f32
    %240 = vector.broadcast %cst_90 : f32 to vector<8x1xf32>
    %241 = arith.divf %239, %240 : vector<8x1xf32>
    %242 = vector.broadcast %234 : vector<8x1xf32> to vector<8x128xf32>
    %243 = arith.subf %228, %242 : vector<8x128xf32>
    %cst_91 = arith.constant 9.99999974E-6 : f32
    %244 = vector.broadcast %cst_91 : f32 to vector<8x1xf32>
    %245 = arith.addf %241, %244 : vector<8x1xf32>
    %246 = math.rsqrt %245 : vector<8x1xf32>
    %247 = vector.broadcast %246 : vector<8x1xf32> to vector<8x128xf32>
    %248 = arith.mulf %243, %247 : vector<8x128xf32>
    %249 = vector.broadcast %229 : vector<1x128xf32> to vector<8x128xf32>
    %250 = arith.mulf %248, %249 : vector<8x128xf32>
    %251 = vector.broadcast %230 : vector<1x128xf32> to vector<8x128xf32>
    %252 = arith.addf %250, %251 : vector<8x128xf32>
    %253 = arith.truncf %252 : vector<8x128xf32> to vector<8x128xbf16>
    %c0_92 = arith.constant 0 : index
    %c0_93 = arith.constant 0 : index
    %254 = vector.load %arg3[%c0_92, %c0_93] : memref<128x128xbf16, #tpu.memory_space<vmem>>, vector<128x128xbf16>
    %cst_94 = arith.constant dense<0.000000e+00> : vector<8x128xf32>
    %255 = tpu.matmul %253, %254, %cst_94 {dimension_numbers = #tpu.dot_dimension_numbers<[1], [0], [0], [1], [0, 0, 1, 1], [], []>} : vector<8x128xbf16>, vector<128x128xbf16>, vector<8x128xf32> -> vector<8x128xf32>
    %c0_95 = arith.constant 0 : index
    %c0_96 = arith.constant 0 : index
    %256 = vector.load %arg4[%c0_95, %c0_96] : memref<1x128xf32, #tpu.memory_space<vmem>>, vector<1x128xf32>
    %257 = vector.broadcast %256 : vector<1x128xf32> to vector<8x128xf32>
    %258 = arith.addf %255, %257 : vector<8x128xf32>
    %c0_97 = arith.constant 0 : index
    %c0_98 = arith.constant 0 : index
    %259 = vector.load %arg5[%c0_97, %c0_98] : memref<128x128xbf16, #tpu.memory_space<vmem>>, vector<128x128xbf16>
    %cst_99 = arith.constant dense<0.000000e+00> : vector<8x128xf32>
    %260 = tpu.matmul %253, %259, %cst_99 {dimension_numbers = #tpu.dot_dimension_numbers<[1], [0], [0], [1], [0, 0, 1, 1], [], []>} : vector<8x128xbf16>, vector<128x128xbf16>, vector<8x128xf32> -> vector<8x128xf32>
    %c0_100 = arith.constant 0 : index
    %c0_101 = arith.constant 0 : index
    %261 = vector.load %arg6[%c0_100, %c0_101] : memref<1x128xf32, #tpu.memory_space<vmem>>, vector<1x128xf32>
    %262 = vector.broadcast %261 : vector<1x128xf32> to vector<8x128xf32>
    %263 = arith.addf %260, %262 : vector<8x128xf32>
    %c0_102 = arith.constant 0 : index
    %c0_103 = arith.constant 0 : index
    %264 = vector.load %arg7[%c0_102, %c0_103] : memref<128x128xbf16, #tpu.memory_space<vmem>>, vector<128x128xbf16>
    %cst_104 = arith.constant dense<0.000000e+00> : vector<8x128xf32>
    %265 = tpu.matmul %253, %264, %cst_104 {dimension_numbers = #tpu.dot_dimension_numbers<[1], [0], [0], [1], [0, 0, 1, 1], [], []>} : vector<8x128xbf16>, vector<128x128xbf16>, vector<8x128xf32> -> vector<8x128xf32>
    %c0_105 = arith.constant 0 : index
    %c0_106 = arith.constant 0 : index
    %266 = vector.load %arg8[%c0_105, %c0_106] : memref<1x128xf32, #tpu.memory_space<vmem>>, vector<1x128xf32>
    %267 = vector.broadcast %266 : vector<1x128xf32> to vector<8x128xf32>
    %268 = arith.addf %265, %267 : vector<8x128xf32>
    %cst_107 = arith.constant 0.176776692 : f32
    %269 = vector.broadcast %cst_107 : f32 to vector<8x128xf32>
    %270 = arith.mulf %258, %269 : vector<8x128xf32>
    %271 = arith.truncf %270 : vector<8x128xf32> to vector<8x128xbf16>
    %272 = arith.truncf %263 : vector<8x128xf32> to vector<8x128xbf16>
    %273 = arith.truncf %268 : vector<8x128xf32> to vector<8x128xbf16>
    %cst_108 = arith.constant 0.000000e+00 : f32
    %274 = vector.broadcast %cst_108 : f32 to vector<8x128xf32>
    %275 = vector.broadcast %8 : vector<1x128xbf16> to vector<8x128xbf16>
    %276 = arith.mulf %271, %275 : vector<8x128xbf16>
    %cst_109 = arith.constant dense<0.000000e+00> : vector<8x8xf32>
    %277 = tpu.matmul %276, %272, %cst_109 {dimension_numbers = #tpu.dot_dimension_numbers<[1], [1], [0], [0], [0, 0, 1, 0], [], []>} : vector<8x128xbf16>, vector<8x128xbf16>, vector<8x8xf32> -> vector<8x8xf32>
    %cst_110 = arith.constant -1.000000e+30 : f32
    %278 = vector.broadcast %cst_110 : f32 to vector<8x8xf32>
    %279 = arith.select %35, %277, %278 : vector<8x8xi1>, vector<8x8xf32>
    %cst_111 = arith.constant dense<0xFF800000> : vector<8xf32>
    %280 = vector.multi_reduction <maximumf>, %279, %cst_111 [1] : vector<8x8xf32> to vector<8xf32>
    %281 = vector.shape_cast %280 : vector<8xf32> to vector<8x1xf32>
    %282 = vector.broadcast %281 : vector<8x1xf32> to vector<8x8xf32>
    %283 = arith.subf %279, %282 : vector<8x8xf32>
    %284 = math.exp %283 : vector<8x8xf32>
    %cst_112 = arith.constant dense<0.000000e+00> : vector<8xf32>
    %285 = vector.multi_reduction <add>, %284, %cst_112 [1] : vector<8x8xf32> to vector<8xf32>
    %286 = vector.shape_cast %285 : vector<8xf32> to vector<8x1xf32>
    %287 = tpu.reciprocal %286 {approx = true} : vector<8x1xf32> -> vector<8x1xf32>
    %288 = vector.broadcast %287 : vector<8x1xf32> to vector<8x8xf32>
    %289 = arith.mulf %284, %288 : vector<8x8xf32>
    %290 = arith.truncf %289 : vector<8x8xf32> to vector<8x8xbf16>
    %291 = vector.broadcast %8 : vector<1x128xbf16> to vector<8x128xbf16>
    %292 = arith.mulf %273, %291 : vector<8x128xbf16>
    %cst_113 = arith.constant dense<0.000000e+00> : vector<8x128xf32>
    %293 = tpu.matmul %290, %292, %cst_113 {dimension_numbers = #tpu.dot_dimension_numbers<[1], [0], [0], [1], [0, 0, 1, 1], [], []>} : vector<8x8xbf16>, vector<8x128xbf16>, vector<8x128xf32> -> vector<8x128xf32>
    %294 = arith.addf %274, %293 : vector<8x128xf32>
    %295 = vector.broadcast %16 : vector<1x128xbf16> to vector<8x128xbf16>
    %296 = arith.mulf %271, %295 : vector<8x128xbf16>
    %cst_114 = arith.constant dense<0.000000e+00> : vector<8x8xf32>
    %297 = tpu.matmul %296, %272, %cst_114 {dimension_numbers = #tpu.dot_dimension_numbers<[1], [1], [0], [0], [0, 0, 1, 0], [], []>} : vector<8x128xbf16>, vector<8x128xbf16>, vector<8x8xf32> -> vector<8x8xf32>
    %cst_115 = arith.constant -1.000000e+30 : f32
    %298 = vector.broadcast %cst_115 : f32 to vector<8x8xf32>
    %299 = arith.select %35, %297, %298 : vector<8x8xi1>, vector<8x8xf32>
    %cst_116 = arith.constant dense<0xFF800000> : vector<8xf32>
    %300 = vector.multi_reduction <maximumf>, %299, %cst_116 [1] : vector<8x8xf32> to vector<8xf32>
    %301 = vector.shape_cast %300 : vector<8xf32> to vector<8x1xf32>
    %302 = vector.broadcast %301 : vector<8x1xf32> to vector<8x8xf32>
    %303 = arith.subf %299, %302 : vector<8x8xf32>
    %304 = math.exp %303 : vector<8x8xf32>
    %cst_117 = arith.constant dense<0.000000e+00> : vector<8xf32>
    %305 = vector.multi_reduction <add>, %304, %cst_117 [1] : vector<8x8xf32> to vector<8xf32>
    %306 = vector.shape_cast %305 : vector<8xf32> to vector<8x1xf32>
    %307 = tpu.reciprocal %306 {approx = true} : vector<8x1xf32> -> vector<8x1xf32>
    %308 = vector.broadcast %307 : vector<8x1xf32> to vector<8x8xf32>
    %309 = arith.mulf %304, %308 : vector<8x8xf32>
    %310 = arith.truncf %309 : vector<8x8xf32> to vector<8x8xbf16>
    %311 = vector.broadcast %16 : vector<1x128xbf16> to vector<8x128xbf16>
    %312 = arith.mulf %273, %311 : vector<8x128xbf16>
    %cst_118 = arith.constant dense<0.000000e+00> : vector<8x128xf32>
    %313 = tpu.matmul %310, %312, %cst_118 {dimension_numbers = #tpu.dot_dimension_numbers<[1], [0], [0], [1], [0, 0, 1, 1], [], []>} : vector<8x8xbf16>, vector<8x128xbf16>, vector<8x128xf32> -> vector<8x128xf32>
    %314 = arith.addf %294, %313 : vector<8x128xf32>
    %315 = vector.broadcast %24 : vector<1x128xbf16> to vector<8x128xbf16>
    %316 = arith.mulf %271, %315 : vector<8x128xbf16>
    %cst_119 = arith.constant dense<0.000000e+00> : vector<8x8xf32>
    %317 = tpu.matmul %316, %272, %cst_119 {dimension_numbers = #tpu.dot_dimension_numbers<[1], [1], [0], [0], [0, 0, 1, 0], [], []>} : vector<8x128xbf16>, vector<8x128xbf16>, vector<8x8xf32> -> vector<8x8xf32>
    %cst_120 = arith.constant -1.000000e+30 : f32
    %318 = vector.broadcast %cst_120 : f32 to vector<8x8xf32>
    %319 = arith.select %35, %317, %318 : vector<8x8xi1>, vector<8x8xf32>
    %cst_121 = arith.constant dense<0xFF800000> : vector<8xf32>
    %320 = vector.multi_reduction <maximumf>, %319, %cst_121 [1] : vector<8x8xf32> to vector<8xf32>
    %321 = vector.shape_cast %320 : vector<8xf32> to vector<8x1xf32>
    %322 = vector.broadcast %321 : vector<8x1xf32> to vector<8x8xf32>
    %323 = arith.subf %319, %322 : vector<8x8xf32>
    %324 = math.exp %323 : vector<8x8xf32>
    %cst_122 = arith.constant dense<0.000000e+00> : vector<8xf32>
    %325 = vector.multi_reduction <add>, %324, %cst_122 [1] : vector<8x8xf32> to vector<8xf32>
    %326 = vector.shape_cast %325 : vector<8xf32> to vector<8x1xf32>
    %327 = tpu.reciprocal %326 {approx = true} : vector<8x1xf32> -> vector<8x1xf32>
    %328 = vector.broadcast %327 : vector<8x1xf32> to vector<8x8xf32>
    %329 = arith.mulf %324, %328 : vector<8x8xf32>
    %330 = arith.truncf %329 : vector<8x8xf32> to vector<8x8xbf16>
    %331 = vector.broadcast %24 : vector<1x128xbf16> to vector<8x128xbf16>
    %332 = arith.mulf %273, %331 : vector<8x128xbf16>
    %cst_123 = arith.constant dense<0.000000e+00> : vector<8x128xf32>
    %333 = tpu.matmul %330, %332, %cst_123 {dimension_numbers = #tpu.dot_dimension_numbers<[1], [0], [0], [1], [0, 0, 1, 1], [], []>} : vector<8x8xbf16>, vector<8x128xbf16>, vector<8x128xf32> -> vector<8x128xf32>
    %334 = arith.addf %314, %333 : vector<8x128xf32>
    %335 = vector.broadcast %32 : vector<1x128xbf16> to vector<8x128xbf16>
    %336 = arith.mulf %271, %335 : vector<8x128xbf16>
    %cst_124 = arith.constant dense<0.000000e+00> : vector<8x8xf32>
    %337 = tpu.matmul %336, %272, %cst_124 {dimension_numbers = #tpu.dot_dimension_numbers<[1], [1], [0], [0], [0, 0, 1, 0], [], []>} : vector<8x128xbf16>, vector<8x128xbf16>, vector<8x8xf32> -> vector<8x8xf32>
    %cst_125 = arith.constant -1.000000e+30 : f32
    %338 = vector.broadcast %cst_125 : f32 to vector<8x8xf32>
    %339 = arith.select %35, %337, %338 : vector<8x8xi1>, vector<8x8xf32>
    %cst_126 = arith.constant dense<0xFF800000> : vector<8xf32>
    %340 = vector.multi_reduction <maximumf>, %339, %cst_126 [1] : vector<8x8xf32> to vector<8xf32>
    %341 = vector.shape_cast %340 : vector<8xf32> to vector<8x1xf32>
    %342 = vector.broadcast %341 : vector<8x1xf32> to vector<8x8xf32>
    %343 = arith.subf %339, %342 : vector<8x8xf32>
    %344 = math.exp %343 : vector<8x8xf32>
    %cst_127 = arith.constant dense<0.000000e+00> : vector<8xf32>
    %345 = vector.multi_reduction <add>, %344, %cst_127 [1] : vector<8x8xf32> to vector<8xf32>
    %346 = vector.shape_cast %345 : vector<8xf32> to vector<8x1xf32>
    %347 = tpu.reciprocal %346 {approx = true} : vector<8x1xf32> -> vector<8x1xf32>
    %348 = vector.broadcast %347 : vector<8x1xf32> to vector<8x8xf32>
    %349 = arith.mulf %344, %348 : vector<8x8xf32>
    %350 = arith.truncf %349 : vector<8x8xf32> to vector<8x8xbf16>
    %351 = vector.broadcast %32 : vector<1x128xbf16> to vector<8x128xbf16>
    %352 = arith.mulf %273, %351 : vector<8x128xbf16>
    %cst_128 = arith.constant dense<0.000000e+00> : vector<8x128xf32>
    %353 = tpu.matmul %350, %352, %cst_128 {dimension_numbers = #tpu.dot_dimension_numbers<[1], [0], [0], [1], [0, 0, 1, 1], [], []>} : vector<8x8xbf16>, vector<8x128xbf16>, vector<8x128xf32> -> vector<8x128xf32>
    %354 = arith.addf %334, %353 : vector<8x128xf32>
    %355 = arith.truncf %354 : vector<8x128xf32> to vector<8x128xbf16>
    %c0_129 = arith.constant 0 : index
    %c0_130 = arith.constant 0 : index
    %356 = vector.load %arg9[%c0_129, %c0_130] : memref<128x128xbf16, #tpu.memory_space<vmem>>, vector<128x128xbf16>
    %cst_131 = arith.constant dense<0.000000e+00> : vector<8x128xf32>
    %357 = tpu.matmul %355, %356, %cst_131 {dimension_numbers = #tpu.dot_dimension_numbers<[1], [0], [0], [1], [0, 0, 1, 1], [], []>} : vector<8x128xbf16>, vector<128x128xbf16>, vector<8x128xf32> -> vector<8x128xf32>
    %c0_132 = arith.constant 0 : index
    %c0_133 = arith.constant 0 : index
    %358 = vector.load %arg10[%c0_132, %c0_133] : memref<1x128xf32, #tpu.memory_space<vmem>>, vector<1x128xf32>
    %359 = vector.broadcast %358 : vector<1x128xf32> to vector<8x128xf32>
    %360 = arith.addf %357, %359 : vector<8x128xf32>
    %361 = arith.addf %228, %360 : vector<8x128xf32>
    %c0_134 = arith.constant 0 : index
    %c0_135 = arith.constant 0 : index
    %362 = vector.load %arg11[%c0_134, %c0_135] : memref<1x128xf32, #tpu.memory_space<vmem>>, vector<1x128xf32>
    %c0_136 = arith.constant 0 : index
    %c0_137 = arith.constant 0 : index
    %363 = vector.load %arg12[%c0_136, %c0_137] : memref<1x128xf32, #tpu.memory_space<vmem>>, vector<1x128xf32>
    %cst_138 = arith.constant dense<0.000000e+00> : vector<8xf32>
    %364 = vector.multi_reduction <add>, %361, %cst_138 [1] : vector<8x128xf32> to vector<8xf32>
    %365 = vector.shape_cast %364 : vector<8xf32> to vector<8x1xf32>
    %cst_139 = arith.constant 1.280000e+02 : f32
    %366 = vector.broadcast %cst_139 : f32 to vector<8x1xf32>
    %367 = arith.divf %365, %366 : vector<8x1xf32>
    %368 = vector.broadcast %367 : vector<8x1xf32> to vector<8x128xf32>
    %369 = arith.subf %361, %368 : vector<8x128xf32>
    %370 = arith.mulf %369, %369 : vector<8x128xf32>
    %cst_140 = arith.constant dense<0.000000e+00> : vector<8xf32>
    %371 = vector.multi_reduction <add>, %370, %cst_140 [1] : vector<8x128xf32> to vector<8xf32>
    %372 = vector.shape_cast %371 : vector<8xf32> to vector<8x1xf32>
    %cst_141 = arith.constant 1.280000e+02 : f32
    %373 = vector.broadcast %cst_141 : f32 to vector<8x1xf32>
    %374 = arith.divf %372, %373 : vector<8x1xf32>
    %375 = vector.broadcast %367 : vector<8x1xf32> to vector<8x128xf32>
    %376 = arith.subf %361, %375 : vector<8x128xf32>
    %cst_142 = arith.constant 9.99999974E-6 : f32
    %377 = vector.broadcast %cst_142 : f32 to vector<8x1xf32>
    %378 = arith.addf %374, %377 : vector<8x1xf32>
    %379 = math.rsqrt %378 : vector<8x1xf32>
    %380 = vector.broadcast %379 : vector<8x1xf32> to vector<8x128xf32>
    %381 = arith.mulf %376, %380 : vector<8x128xf32>
    %382 = vector.broadcast %362 : vector<1x128xf32> to vector<8x128xf32>
    %383 = arith.mulf %381, %382 : vector<8x128xf32>
    %384 = vector.broadcast %363 : vector<1x128xf32> to vector<8x128xf32>
    %385 = arith.addf %383, %384 : vector<8x128xf32>
    %386 = arith.truncf %385 : vector<8x128xf32> to vector<8x128xbf16>
    %c0_143 = arith.constant 0 : index
    %c0_144 = arith.constant 0 : index
    %387 = vector.load %arg13[%c0_143, %c0_144] : memref<128x512xbf16, #tpu.memory_space<vmem>>, vector<128x512xbf16>
    %cst_145 = arith.constant dense<0.000000e+00> : vector<8x512xf32>
    %388 = tpu.matmul %386, %387, %cst_145 {dimension_numbers = #tpu.dot_dimension_numbers<[1], [0], [0], [1], [0, 0, 1, 1], [], []>} : vector<8x128xbf16>, vector<128x512xbf16>, vector<8x512xf32> -> vector<8x512xf32>
    %c0_146 = arith.constant 0 : index
    %c0_147 = arith.constant 0 : index
    %389 = vector.load %arg14[%c0_146, %c0_147] : memref<1x512xf32, #tpu.memory_space<vmem>>, vector<1x512xf32>
    %390 = vector.broadcast %389 : vector<1x512xf32> to vector<8x512xf32>
    %391 = arith.addf %388, %390 : vector<8x512xf32>
    %392 = arith.mulf %391, %391 : vector<8x512xf32>
    %393 = arith.mulf %391, %392 : vector<8x512xf32>
    %cst_148 = arith.constant 4.471500e-02 : f32
    %394 = vector.broadcast %cst_148 : f32 to vector<8x512xf32>
    %395 = arith.mulf %394, %393 : vector<8x512xf32>
    %396 = arith.addf %391, %395 : vector<8x512xf32>
    %cst_149 = arith.constant 0.797884583 : f32
    %397 = vector.broadcast %cst_149 : f32 to vector<8x512xf32>
    %398 = arith.mulf %397, %396 : vector<8x512xf32>
    %399 = math.tanh %398 : vector<8x512xf32>
    %cst_150 = arith.constant 1.000000e+00 : f32
    %400 = vector.broadcast %cst_150 : f32 to vector<8x512xf32>
    %401 = arith.addf %400, %399 : vector<8x512xf32>
    %cst_151 = arith.constant 5.000000e-01 : f32
    %402 = vector.broadcast %cst_151 : f32 to vector<8x512xf32>
    %403 = arith.mulf %402, %401 : vector<8x512xf32>
    %404 = arith.mulf %391, %403 : vector<8x512xf32>
    %405 = arith.truncf %404 : vector<8x512xf32> to vector<8x512xbf16>
    %c0_152 = arith.constant 0 : index
    %c0_153 = arith.constant 0 : index
    %406 = vector.load %arg15[%c0_152, %c0_153] : memref<512x128xbf16, #tpu.memory_space<vmem>>, vector<512x128xbf16>
    %cst_154 = arith.constant dense<0.000000e+00> : vector<8x128xf32>
    %407 = tpu.matmul %405, %406, %cst_154 {dimension_numbers = #tpu.dot_dimension_numbers<[1], [0], [0], [1], [0, 0, 1, 1], [], []>} : vector<8x512xbf16>, vector<512x128xbf16>, vector<8x128xf32> -> vector<8x128xf32>
    %c0_155 = arith.constant 0 : index
    %c0_156 = arith.constant 0 : index
    %408 = vector.load %arg16[%c0_155, %c0_156] : memref<1x128xf32, #tpu.memory_space<vmem>>, vector<1x128xf32>
    %409 = vector.broadcast %408 : vector<1x128xf32> to vector<8x128xf32>
    %410 = arith.addf %407, %409 : vector<8x128xf32>
    %411 = arith.addf %361, %410 : vector<8x128xf32>
    %412 = arith.truncf %411 : vector<8x128xf32> to vector<8x128xbf16>
    %c1_157 = arith.constant 1 : index
    %c0_158 = arith.constant 0 : index
    %c0_159 = arith.constant 0 : index
    %413 = vector.load %arg17[%c1_157, %c0_158, %c0_159] : memref<2x8x128xbf16, #tpu.memory_space<vmem>>, vector<1x8x128xbf16>
    %414 = vector.shape_cast %413 : vector<1x8x128xbf16> to vector<8x128xbf16>
    %415 = vector.shape_cast %412 : vector<8x128xbf16> to vector<1x8x128xbf16>
    tpu.vector_store %arg17[%c1_157, %c0_158, %c0_159], %415 {strides = array<i32>} : memref<2x8x128xbf16, #tpu.memory_space<vmem>>, vector<1x8x128xbf16>,
    return
  }
}

module attributes {stable_mosaic.version = 11 : i64} {
  func.func @kernel(%arg0: memref<2x128xbf16, #tpu.memory_space<vmem>>, %arg1: memref<1x128xf32, #tpu.memory_space<vmem>>, %arg2: memref<1x128xf32, #tpu.memory_space<vmem>>, %arg3: memref<128x128xbf16, #tpu.memory_space<vmem>>, %arg4: memref<1x128xf32, #tpu.memory_space<vmem>>, %arg5: memref<1x128xf32, #tpu.memory_space<vmem>>, %arg6: memref<1x128xf32, #tpu.memory_space<vmem>>, %arg7: memref<2x8x128xf32, #tpu.memory_space<vmem>>, %arg8: memref<8x128xf32, #tpu.memory_space<vmem>>, %arg9: memref<2x8x128xbf16, #tpu.memory_space<vmem>>) attributes {dimension_semantics = [], scalar_prefetch = 0 : i64, scratch_operands = 0 : i64, tpu.core_type = #tpu.core_type<tc>} {
    %c0 = arith.constant 0 : index
    %c0_0 = arith.constant 0 : index
    %0 = vector.load %arg0[%c0, %c0_0] : memref<2x128xbf16, #tpu.memory_space<vmem>>, vector<2x128xbf16>
    %1 = arith.extf %0 : vector<2x128xbf16> to vector<2x128xf32>
    %c0_1 = arith.constant 0 : index
    %c0_2 = arith.constant 0 : index
    %2 = vector.load %arg1[%c0_1, %c0_2] : memref<1x128xf32, #tpu.memory_space<vmem>>, vector<1x128xf32>
    %c0_3 = arith.constant 0 : index
    %c0_4 = arith.constant 0 : index
    %3 = vector.load %arg2[%c0_3, %c0_4] : memref<1x128xf32, #tpu.memory_space<vmem>>, vector<1x128xf32>
    %cst = arith.constant dense<0.000000e+00> : vector<2xf32>
    %4 = vector.multi_reduction <add>, %1, %cst [1] : vector<2x128xf32> to vector<2xf32>
    %5 = vector.shape_cast %4 : vector<2xf32> to vector<2x1xf32>
    %cst_5 = arith.constant 1.280000e+02 : f32
    %6 = vector.broadcast %cst_5 : f32 to vector<2x1xf32>
    %7 = arith.divf %5, %6 : vector<2x1xf32>
    %8 = vector.broadcast %7 : vector<2x1xf32> to vector<2x128xf32>
    %9 = arith.subf %1, %8 : vector<2x128xf32>
    %10 = arith.mulf %9, %9 : vector<2x128xf32>
    %cst_6 = arith.constant dense<0.000000e+00> : vector<2xf32>
    %11 = vector.multi_reduction <add>, %10, %cst_6 [1] : vector<2x128xf32> to vector<2xf32>
    %12 = vector.shape_cast %11 : vector<2xf32> to vector<2x1xf32>
    %cst_7 = arith.constant 1.280000e+02 : f32
    %13 = vector.broadcast %cst_7 : f32 to vector<2x1xf32>
    %14 = arith.divf %12, %13 : vector<2x1xf32>
    %15 = vector.broadcast %7 : vector<2x1xf32> to vector<2x128xf32>
    %16 = arith.subf %1, %15 : vector<2x128xf32>
    %cst_8 = arith.constant 9.99999974E-6 : f32
    %17 = vector.broadcast %cst_8 : f32 to vector<2x1xf32>
    %18 = arith.addf %14, %17 : vector<2x1xf32>
    %19 = math.rsqrt %18 : vector<2x1xf32>
    %20 = vector.broadcast %19 : vector<2x1xf32> to vector<2x128xf32>
    %21 = arith.mulf %16, %20 : vector<2x128xf32>
    %22 = vector.broadcast %2 : vector<1x128xf32> to vector<2x128xf32>
    %23 = arith.mulf %21, %22 : vector<2x128xf32>
    %24 = vector.broadcast %3 : vector<1x128xf32> to vector<2x128xf32>
    %25 = arith.addf %23, %24 : vector<2x128xf32>
    %26 = arith.truncf %25 : vector<2x128xf32> to vector<2x128xbf16>
    %c0_9 = arith.constant 0 : index
    %c0_10 = arith.constant 0 : index
    %27 = vector.load %arg3[%c0_9, %c0_10] : memref<128x128xbf16, #tpu.memory_space<vmem>>, vector<128x128xbf16>
    %cst_11 = arith.constant dense<0.000000e+00> : vector<2x128xf32>
    %28 = tpu.matmul %26, %27, %cst_11 {dimension_numbers = #tpu.dot_dimension_numbers<[1], [0], [0], [1], [0, 0, 1, 1], [], []>} : vector<2x128xbf16>, vector<128x128xbf16>, vector<2x128xf32> -> vector<2x128xf32>
    %c0_12 = arith.constant 0 : index
    %c0_13 = arith.constant 0 : index
    %29 = vector.load %arg4[%c0_12, %c0_13] : memref<1x128xf32, #tpu.memory_space<vmem>>, vector<1x128xf32>
    %30 = vector.broadcast %29 : vector<1x128xf32> to vector<2x128xf32>
    %31 = arith.addf %28, %30 : vector<2x128xf32>
    %c0_14 = arith.constant 0 : index
    %c0_15 = arith.constant 0 : index
    %32 = vector.load %arg5[%c0_14, %c0_15] : memref<1x128xf32, #tpu.memory_space<vmem>>, vector<1x128xf32>
    %c0_16 = arith.constant 0 : index
    %c0_17 = arith.constant 0 : index
    %33 = vector.load %arg6[%c0_16, %c0_17] : memref<1x128xf32, #tpu.memory_space<vmem>>, vector<1x128xf32>
    %cst_18 = arith.constant dense<0.000000e+00> : vector<2xf32>
    %34 = vector.multi_reduction <add>, %31, %cst_18 [1] : vector<2x128xf32> to vector<2xf32>
    %35 = vector.shape_cast %34 : vector<2xf32> to vector<2x1xf32>
    %cst_19 = arith.constant 1.280000e+02 : f32
    %36 = vector.broadcast %cst_19 : f32 to vector<2x1xf32>
    %37 = arith.divf %35, %36 : vector<2x1xf32>
    %38 = vector.broadcast %37 : vector<2x1xf32> to vector<2x128xf32>
    %39 = arith.subf %31, %38 : vector<2x128xf32>
    %40 = arith.mulf %39, %39 : vector<2x128xf32>
    %cst_20 = arith.constant dense<0.000000e+00> : vector<2xf32>
    %41 = vector.multi_reduction <add>, %40, %cst_20 [1] : vector<2x128xf32> to vector<2xf32>
    %42 = vector.shape_cast %41 : vector<2xf32> to vector<2x1xf32>
    %cst_21 = arith.constant 1.280000e+02 : f32
    %43 = vector.broadcast %cst_21 : f32 to vector<2x1xf32>
    %44 = arith.divf %42, %43 : vector<2x1xf32>
    %45 = vector.broadcast %37 : vector<2x1xf32> to vector<2x128xf32>
    %46 = arith.subf %31, %45 : vector<2x128xf32>
    %cst_22 = arith.constant 9.99999974E-6 : f32
    %47 = vector.broadcast %cst_22 : f32 to vector<2x1xf32>
    %48 = arith.addf %44, %47 : vector<2x1xf32>
    %49 = math.rsqrt %48 : vector<2x1xf32>
    %50 = vector.broadcast %49 : vector<2x1xf32> to vector<2x128xf32>
    %51 = arith.mulf %46, %50 : vector<2x128xf32>
    %52 = vector.broadcast %32 : vector<1x128xf32> to vector<2x128xf32>
    %53 = arith.mulf %51, %52 : vector<2x128xf32>
    %54 = vector.broadcast %33 : vector<1x128xf32> to vector<2x128xf32>
    %55 = arith.addf %53, %54 : vector<2x128xf32>
    %c0_23 = arith.constant 0 : index
    %c0_24 = arith.constant 0 : index
    %c0_25 = arith.constant 0 : index
    %56 = vector.load %arg7[%c0_23, %c0_24, %c0_25] : memref<2x8x128xf32, #tpu.memory_space<vmem>>, vector<1x8x128xf32>
    %57 = vector.shape_cast %56 : vector<1x8x128xf32> to vector<8x128xf32>
    %c0_26 = arith.constant 0 : index
    %c0_27 = arith.constant 0 : index
    %58 = vector.load %arg8[%c0_26, %c0_27] : memref<8x128xf32, #tpu.memory_space<vmem>>, vector<8x128xf32>
    %59 = arith.addf %57, %58 : vector<8x128xf32>
    %60 = vector.extract_strided_slice %55 {offsets = [0, 0], sizes = [1, 128], strides = [1, 1]} : vector<2x128xf32> to vector<1x128xf32>
    %61 = vector.broadcast %60 : vector<1x128xf32> to vector<8x128xf32>
    %62 = arith.addf %59, %61 : vector<8x128xf32>
    %63 = arith.truncf %62 : vector<8x128xf32> to vector<8x128xbf16>
    %c0_28 = arith.constant 0 : index
    %c0_29 = arith.constant 0 : index
    %c0_30 = arith.constant 0 : index
    %64 = vector.load %arg9[%c0_28, %c0_29, %c0_30] : memref<2x8x128xbf16, #tpu.memory_space<vmem>>, vector<1x8x128xbf16>
    %65 = vector.shape_cast %64 : vector<1x8x128xbf16> to vector<8x128xbf16>
    %66 = vector.shape_cast %63 : vector<8x128xbf16> to vector<1x8x128xbf16>
    tpu.vector_store %arg9[%c0_28, %c0_29, %c0_30], %66 {strides = array<i32>} : memref<2x8x128xbf16, #tpu.memory_space<vmem>>, vector<1x8x128xbf16>,
    %c1 = arith.constant 1 : index
    %c0_31 = arith.constant 0 : index
    %c0_32 = arith.constant 0 : index
    %67 = vector.load %arg7[%c1, %c0_31, %c0_32] : memref<2x8x128xf32, #tpu.memory_space<vmem>>, vector<1x8x128xf32>
    %68 = vector.shape_cast %67 : vector<1x8x128xf32> to vector<8x128xf32>
    %c0_33 = arith.constant 0 : index
    %c0_34 = arith.constant 0 : index
    %69 = vector.load %arg8[%c0_33, %c0_34] : memref<8x128xf32, #tpu.memory_space<vmem>>, vector<8x128xf32>
    %70 = arith.addf %68, %69 : vector<8x128xf32>
    %71 = vector.extract_strided_slice %55 {offsets = [1, 0], sizes = [1, 128], strides = [1, 1]} : vector<2x128xf32> to vector<1x128xf32>
    %72 = vector.broadcast %71 : vector<1x128xf32> to vector<8x128xf32>
    %73 = arith.addf %70, %72 : vector<8x128xf32>
    %74 = arith.truncf %73 : vector<8x128xf32> to vector<8x128xbf16>
    %c1_35 = arith.constant 1 : index
    %c0_36 = arith.constant 0 : index
    %c0_37 = arith.constant 0 : index
    %75 = vector.load %arg9[%c1_35, %c0_36, %c0_37] : memref<2x8x128xbf16, #tpu.memory_space<vmem>>, vector<1x8x128xbf16>
    %76 = vector.shape_cast %75 : vector<1x8x128xbf16> to vector<8x128xbf16>
    %77 = vector.shape_cast %74 : vector<8x128xbf16> to vector<1x8x128xbf16>
    tpu.vector_store %arg9[%c1_35, %c0_36, %c0_37], %77 {strides = array<i32>} : memref<2x8x128xbf16, #tpu.memory_space<vmem>>, vector<1x8x128xbf16>,
    return
  }
}

module attributes {stable_mosaic.version = 11 : i64} {
  func.func @kernel(%arg0: memref<2x17x128xbf16, #tpu.memory_space<vmem>>, %arg1: memref<1x128xf32, #tpu.memory_space<vmem>>, %arg2: memref<1x128xf32, #tpu.memory_space<vmem>>, %arg3: memref<128x128xbf16, #tpu.memory_space<vmem>>, %arg4: memref<1x128xf32, #tpu.memory_space<vmem>>, %arg5: memref<128x128xbf16, #tpu.memory_space<vmem>>, %arg6: memref<1x128xf32, #tpu.memory_space<vmem>>, %arg7: memref<128x128xbf16, #tpu.memory_space<vmem>>, %arg8: memref<1x128xf32, #tpu.memory_space<vmem>>, %arg9: memref<128x128xbf16, #tpu.memory_space<vmem>>, %arg10: memref<1x128xf32, #tpu.memory_space<vmem>>, %arg11: memref<1x128xf32, #tpu.memory_space<vmem>>, %arg12: memref<1x128xf32, #tpu.memory_space<vmem>>, %arg13: memref<128x512xbf16, #tpu.memory_space<vmem>>, %arg14: memref<1x512xf32, #tpu.memory_space<vmem>>, %arg15: memref<512x128xbf16, #tpu.memory_space<vmem>>, %arg16: memref<1x128xf32, #tpu.memory_space<vmem>>, %arg17: memref<2x17x128xbf16, #tpu.memory_space<vmem>>) attributes {dimension_semantics = [], scalar_prefetch = 0 : i64, scratch_operands = 0 : i64, tpu.core_type = #tpu.core_type<tc>} {
    %0 = tpu.iota {dimensions = array<i32: 1>} : vector<1x128xi32>
    %c0_i32 = arith.constant 0 : i32
    %1 = vector.broadcast %c0_i32 : i32 to vector<1x128xi32>
    %2 = arith.cmpi sge, %0, %1 : vector<1x128xi32>
    %c32_i32 = arith.constant 32 : i32
    %3 = vector.broadcast %c32_i32 : i32 to vector<1x128xi32>
    %4 = arith.cmpi slt, %0, %3 : vector<1x128xi32>
    %5 = arith.andi %2, %4 : vector<1x128xi1>
    %6 = arith.extui %5 : vector<1x128xi1> to vector<1x128xi32>
    %7 = arith.sitofp %6 : vector<1x128xi32> to vector<1x128xf32>
    %8 = arith.truncf %7 : vector<1x128xf32> to vector<1x128xbf16>
    %c32_i32_0 = arith.constant 32 : i32
    %9 = vector.broadcast %c32_i32_0 : i32 to vector<1x128xi32>
    %10 = arith.cmpi sge, %0, %9 : vector<1x128xi32>
    %c64_i32 = arith.constant 64 : i32
    %11 = vector.broadcast %c64_i32 : i32 to vector<1x128xi32>
    %12 = arith.cmpi slt, %0, %11 : vector<1x128xi32>
    %13 = arith.andi %10, %12 : vector<1x128xi1>
    %14 = arith.extui %13 : vector<1x128xi1> to vector<1x128xi32>
    %15 = arith.sitofp %14 : vector<1x128xi32> to vector<1x128xf32>
    %16 = arith.truncf %15 : vector<1x128xf32> to vector<1x128xbf16>
    %c64_i32_1 = arith.constant 64 : i32
    %17 = vector.broadcast %c64_i32_1 : i32 to vector<1x128xi32>
    %18 = arith.cmpi sge, %0, %17 : vector<1x128xi32>
    %c96_i32 = arith.constant 96 : i32
    %19 = vector.broadcast %c96_i32 : i32 to vector<1x128xi32>
    %20 = arith.cmpi slt, %0, %19 : vector<1x128xi32>
    %21 = arith.andi %18, %20 : vector<1x128xi1>
    %22 = arith.extui %21 : vector<1x128xi1> to vector<1x128xi32>
    %23 = arith.sitofp %22 : vector<1x128xi32> to vector<1x128xf32>
    %24 = arith.truncf %23 : vector<1x128xf32> to vector<1x128xbf16>
    %c96_i32_2 = arith.constant 96 : i32
    %25 = vector.broadcast %c96_i32_2 : i32 to vector<1x128xi32>
    %26 = arith.cmpi sge, %0, %25 : vector<1x128xi32>
    %c128_i32 = arith.constant 128 : i32
    %27 = vector.broadcast %c128_i32 : i32 to vector<1x128xi32>
    %28 = arith.cmpi slt, %0, %27 : vector<1x128xi32>
    %29 = arith.andi %26, %28 : vector<1x128xi1>
    %30 = arith.extui %29 : vector<1x128xi1> to vector<1x128xi32>
    %31 = arith.sitofp %30 : vector<1x128xi32> to vector<1x128xf32>
    %32 = arith.truncf %31 : vector<1x128xf32> to vector<1x128xbf16>
    %c0 = arith.constant 0 : index
    %c0_3 = arith.constant 0 : index
    %c0_4 = arith.constant 0 : index
    %33 = vector.load %arg0[%c0, %c0_3, %c0_4] : memref<2x17x128xbf16, #tpu.memory_space<vmem>>, vector<1x17x128xbf16>
    %34 = vector.shape_cast %33 : vector<1x17x128xbf16> to vector<17x128xbf16>
    %35 = arith.extf %34 : vector<17x128xbf16> to vector<17x128xf32>
    %c0_5 = arith.constant 0 : index
    %c0_6 = arith.constant 0 : index
    %36 = vector.load %arg1[%c0_5, %c0_6] : memref<1x128xf32, #tpu.memory_space<vmem>>, vector<1x128xf32>
    %c0_7 = arith.constant 0 : index
    %c0_8 = arith.constant 0 : index
    %37 = vector.load %arg2[%c0_7, %c0_8] : memref<1x128xf32, #tpu.memory_space<vmem>>, vector<1x128xf32>
    %cst = arith.constant dense<0.000000e+00> : vector<17xf32>
    %38 = vector.multi_reduction <add>, %35, %cst [1] : vector<17x128xf32> to vector<17xf32>
    %39 = vector.shape_cast %38 : vector<17xf32> to vector<17x1xf32>
    %cst_9 = arith.constant 1.280000e+02 : f32
    %40 = vector.broadcast %cst_9 : f32 to vector<17x1xf32>
    %41 = arith.divf %39, %40 : vector<17x1xf32>
    %42 = vector.broadcast %41 : vector<17x1xf32> to vector<17x128xf32>
    %43 = arith.subf %35, %42 : vector<17x128xf32>
    %44 = arith.mulf %43, %43 : vector<17x128xf32>
    %cst_10 = arith.constant dense<0.000000e+00> : vector<17xf32>
    %45 = vector.multi_reduction <add>, %44, %cst_10 [1] : vector<17x128xf32> to vector<17xf32>
    %46 = vector.shape_cast %45 : vector<17xf32> to vector<17x1xf32>
    %cst_11 = arith.constant 1.280000e+02 : f32
    %47 = vector.broadcast %cst_11 : f32 to vector<17x1xf32>
    %48 = arith.divf %46, %47 : vector<17x1xf32>
    %49 = vector.broadcast %41 : vector<17x1xf32> to vector<17x128xf32>
    %50 = arith.subf %35, %49 : vector<17x128xf32>
    %cst_12 = arith.constant 9.99999974E-6 : f32
    %51 = vector.broadcast %cst_12 : f32 to vector<17x1xf32>
    %52 = arith.addf %48, %51 : vector<17x1xf32>
    %53 = math.rsqrt %52 : vector<17x1xf32>
    %54 = vector.broadcast %53 : vector<17x1xf32> to vector<17x128xf32>
    %55 = arith.mulf %50, %54 : vector<17x128xf32>
    %56 = vector.broadcast %36 : vector<1x128xf32> to vector<17x128xf32>
    %57 = arith.mulf %55, %56 : vector<17x128xf32>
    %58 = vector.broadcast %37 : vector<1x128xf32> to vector<17x128xf32>
    %59 = arith.addf %57, %58 : vector<17x128xf32>
    %60 = arith.truncf %59 : vector<17x128xf32> to vector<17x128xbf16>
    %c0_13 = arith.constant 0 : index
    %c0_14 = arith.constant 0 : index
    %61 = vector.load %arg3[%c0_13, %c0_14] : memref<128x128xbf16, #tpu.memory_space<vmem>>, vector<128x128xbf16>
    %cst_15 = arith.constant dense<0.000000e+00> : vector<17x128xf32>
    %62 = tpu.matmul %60, %61, %cst_15 {dimension_numbers = #tpu.dot_dimension_numbers<[1], [0], [0], [1], [0, 0, 1, 1], [], []>} : vector<17x128xbf16>, vector<128x128xbf16>, vector<17x128xf32> -> vector<17x128xf32>
    %c0_16 = arith.constant 0 : index
    %c0_17 = arith.constant 0 : index
    %63 = vector.load %arg4[%c0_16, %c0_17] : memref<1x128xf32, #tpu.memory_space<vmem>>, vector<1x128xf32>
    %64 = vector.broadcast %63 : vector<1x128xf32> to vector<17x128xf32>
    %65 = arith.addf %62, %64 : vector<17x128xf32>
    %c0_18 = arith.constant 0 : index
    %c0_19 = arith.constant 0 : index
    %66 = vector.load %arg5[%c0_18, %c0_19] : memref<128x128xbf16, #tpu.memory_space<vmem>>, vector<128x128xbf16>
    %cst_20 = arith.constant dense<0.000000e+00> : vector<17x128xf32>
    %67 = tpu.matmul %60, %66, %cst_20 {dimension_numbers = #tpu.dot_dimension_numbers<[1], [0], [0], [1], [0, 0, 1, 1], [], []>} : vector<17x128xbf16>, vector<128x128xbf16>, vector<17x128xf32> -> vector<17x128xf32>
    %c0_21 = arith.constant 0 : index
    %c0_22 = arith.constant 0 : index
    %68 = vector.load %arg6[%c0_21, %c0_22] : memref<1x128xf32, #tpu.memory_space<vmem>>, vector<1x128xf32>
    %69 = vector.broadcast %68 : vector<1x128xf32> to vector<17x128xf32>
    %70 = arith.addf %67, %69 : vector<17x128xf32>
    %c0_23 = arith.constant 0 : index
    %c0_24 = arith.constant 0 : index
    %71 = vector.load %arg7[%c0_23, %c0_24] : memref<128x128xbf16, #tpu.memory_space<vmem>>, vector<128x128xbf16>
    %cst_25 = arith.constant dense<0.000000e+00> : vector<17x128xf32>
    %72 = tpu.matmul %60, %71, %cst_25 {dimension_numbers = #tpu.dot_dimension_numbers<[1], [0], [0], [1], [0, 0, 1, 1], [], []>} : vector<17x128xbf16>, vector<128x128xbf16>, vector<17x128xf32> -> vector<17x128xf32>
    %c0_26 = arith.constant 0 : index
    %c0_27 = arith.constant 0 : index
    %73 = vector.load %arg8[%c0_26, %c0_27] : memref<1x128xf32, #tpu.memory_space<vmem>>, vector<1x128xf32>
    %74 = vector.broadcast %73 : vector<1x128xf32> to vector<17x128xf32>
    %75 = arith.addf %72, %74 : vector<17x128xf32>
    %cst_28 = arith.constant 0.176776692 : f32
    %76 = vector.broadcast %cst_28 : f32 to vector<17x128xf32>
    %77 = arith.mulf %65, %76 : vector<17x128xf32>
    %78 = arith.truncf %77 : vector<17x128xf32> to vector<17x128xbf16>
    %79 = arith.truncf %70 : vector<17x128xf32> to vector<17x128xbf16>
    %80 = arith.truncf %75 : vector<17x128xf32> to vector<17x128xbf16>
    %cst_29 = arith.constant 0.000000e+00 : f32
    %81 = vector.broadcast %cst_29 : f32 to vector<17x128xf32>
    %82 = vector.broadcast %8 : vector<1x128xbf16> to vector<17x128xbf16>
    %83 = arith.mulf %78, %82 : vector<17x128xbf16>
    %cst_30 = arith.constant dense<0.000000e+00> : vector<17x17xf32>
    %84 = tpu.matmul %83, %79, %cst_30 {dimension_numbers = #tpu.dot_dimension_numbers<[1], [1], [0], [0], [0, 0, 1, 0], [], []>} : vector<17x128xbf16>, vector<17x128xbf16>, vector<17x17xf32> -> vector<17x17xf32>
    %cst_31 = arith.constant dense<0xFF800000> : vector<17xf32>
    %85 = vector.multi_reduction <maximumf>, %84, %cst_31 [1] : vector<17x17xf32> to vector<17xf32>
    %86 = vector.shape_cast %85 : vector<17xf32> to vector<17x1xf32>
    %87 = vector.broadcast %86 : vector<17x1xf32> to vector<17x17xf32>
    %88 = arith.subf %84, %87 : vector<17x17xf32>
    %89 = math.exp %88 : vector<17x17xf32>
    %cst_32 = arith.constant dense<0.000000e+00> : vector<17xf32>
    %90 = vector.multi_reduction <add>, %89, %cst_32 [1] : vector<17x17xf32> to vector<17xf32>
    %91 = vector.shape_cast %90 : vector<17xf32> to vector<17x1xf32>
    %92 = tpu.reciprocal %91 {approx = true} : vector<17x1xf32> -> vector<17x1xf32>
    %93 = vector.broadcast %92 : vector<17x1xf32> to vector<17x17xf32>
    %94 = arith.mulf %89, %93 : vector<17x17xf32>
    %95 = arith.truncf %94 : vector<17x17xf32> to vector<17x17xbf16>
    %96 = vector.broadcast %8 : vector<1x128xbf16> to vector<17x128xbf16>
    %97 = arith.mulf %80, %96 : vector<17x128xbf16>
    %cst_33 = arith.constant dense<0.000000e+00> : vector<17x128xf32>
    %98 = tpu.matmul %95, %97, %cst_33 {dimension_numbers = #tpu.dot_dimension_numbers<[1], [0], [0], [1], [0, 0, 1, 1], [], []>} : vector<17x17xbf16>, vector<17x128xbf16>, vector<17x128xf32> -> vector<17x128xf32>
    %99 = arith.addf %81, %98 : vector<17x128xf32>
    %100 = vector.broadcast %16 : vector<1x128xbf16> to vector<17x128xbf16>
    %101 = arith.mulf %78, %100 : vector<17x128xbf16>
    %cst_34 = arith.constant dense<0.000000e+00> : vector<17x17xf32>
    %102 = tpu.matmul %101, %79, %cst_34 {dimension_numbers = #tpu.dot_dimension_numbers<[1], [1], [0], [0], [0, 0, 1, 0], [], []>} : vector<17x128xbf16>, vector<17x128xbf16>, vector<17x17xf32> -> vector<17x17xf32>
    %cst_35 = arith.constant dense<0xFF800000> : vector<17xf32>
    %103 = vector.multi_reduction <maximumf>, %102, %cst_35 [1] : vector<17x17xf32> to vector<17xf32>
    %104 = vector.shape_cast %103 : vector<17xf32> to vector<17x1xf32>
    %105 = vector.broadcast %104 : vector<17x1xf32> to vector<17x17xf32>
    %106 = arith.subf %102, %105 : vector<17x17xf32>
    %107 = math.exp %106 : vector<17x17xf32>
    %cst_36 = arith.constant dense<0.000000e+00> : vector<17xf32>
    %108 = vector.multi_reduction <add>, %107, %cst_36 [1] : vector<17x17xf32> to vector<17xf32>
    %109 = vector.shape_cast %108 : vector<17xf32> to vector<17x1xf32>
    %110 = tpu.reciprocal %109 {approx = true} : vector<17x1xf32> -> vector<17x1xf32>
    %111 = vector.broadcast %110 : vector<17x1xf32> to vector<17x17xf32>
    %112 = arith.mulf %107, %111 : vector<17x17xf32>
    %113 = arith.truncf %112 : vector<17x17xf32> to vector<17x17xbf16>
    %114 = vector.broadcast %16 : vector<1x128xbf16> to vector<17x128xbf16>
    %115 = arith.mulf %80, %114 : vector<17x128xbf16>
    %cst_37 = arith.constant dense<0.000000e+00> : vector<17x128xf32>
    %116 = tpu.matmul %113, %115, %cst_37 {dimension_numbers = #tpu.dot_dimension_numbers<[1], [0], [0], [1], [0, 0, 1, 1], [], []>} : vector<17x17xbf16>, vector<17x128xbf16>, vector<17x128xf32> -> vector<17x128xf32>
    %117 = arith.addf %99, %116 : vector<17x128xf32>
    %118 = vector.broadcast %24 : vector<1x128xbf16> to vector<17x128xbf16>
    %119 = arith.mulf %78, %118 : vector<17x128xbf16>
    %cst_38 = arith.constant dense<0.000000e+00> : vector<17x17xf32>
    %120 = tpu.matmul %119, %79, %cst_38 {dimension_numbers = #tpu.dot_dimension_numbers<[1], [1], [0], [0], [0, 0, 1, 0], [], []>} : vector<17x128xbf16>, vector<17x128xbf16>, vector<17x17xf32> -> vector<17x17xf32>
    %cst_39 = arith.constant dense<0xFF800000> : vector<17xf32>
    %121 = vector.multi_reduction <maximumf>, %120, %cst_39 [1] : vector<17x17xf32> to vector<17xf32>
    %122 = vector.shape_cast %121 : vector<17xf32> to vector<17x1xf32>
    %123 = vector.broadcast %122 : vector<17x1xf32> to vector<17x17xf32>
    %124 = arith.subf %120, %123 : vector<17x17xf32>
    %125 = math.exp %124 : vector<17x17xf32>
    %cst_40 = arith.constant dense<0.000000e+00> : vector<17xf32>
    %126 = vector.multi_reduction <add>, %125, %cst_40 [1] : vector<17x17xf32> to vector<17xf32>
    %127 = vector.shape_cast %126 : vector<17xf32> to vector<17x1xf32>
    %128 = tpu.reciprocal %127 {approx = true} : vector<17x1xf32> -> vector<17x1xf32>
    %129 = vector.broadcast %128 : vector<17x1xf32> to vector<17x17xf32>
    %130 = arith.mulf %125, %129 : vector<17x17xf32>
    %131 = arith.truncf %130 : vector<17x17xf32> to vector<17x17xbf16>
    %132 = vector.broadcast %24 : vector<1x128xbf16> to vector<17x128xbf16>
    %133 = arith.mulf %80, %132 : vector<17x128xbf16>
    %cst_41 = arith.constant dense<0.000000e+00> : vector<17x128xf32>
    %134 = tpu.matmul %131, %133, %cst_41 {dimension_numbers = #tpu.dot_dimension_numbers<[1], [0], [0], [1], [0, 0, 1, 1], [], []>} : vector<17x17xbf16>, vector<17x128xbf16>, vector<17x128xf32> -> vector<17x128xf32>
    %135 = arith.addf %117, %134 : vector<17x128xf32>
    %136 = vector.broadcast %32 : vector<1x128xbf16> to vector<17x128xbf16>
    %137 = arith.mulf %78, %136 : vector<17x128xbf16>
    %cst_42 = arith.constant dense<0.000000e+00> : vector<17x17xf32>
    %138 = tpu.matmul %137, %79, %cst_42 {dimension_numbers = #tpu.dot_dimension_numbers<[1], [1], [0], [0], [0, 0, 1, 0], [], []>} : vector<17x128xbf16>, vector<17x128xbf16>, vector<17x17xf32> -> vector<17x17xf32>
    %cst_43 = arith.constant dense<0xFF800000> : vector<17xf32>
    %139 = vector.multi_reduction <maximumf>, %138, %cst_43 [1] : vector<17x17xf32> to vector<17xf32>
    %140 = vector.shape_cast %139 : vector<17xf32> to vector<17x1xf32>
    %141 = vector.broadcast %140 : vector<17x1xf32> to vector<17x17xf32>
    %142 = arith.subf %138, %141 : vector<17x17xf32>
    %143 = math.exp %142 : vector<17x17xf32>
    %cst_44 = arith.constant dense<0.000000e+00> : vector<17xf32>
    %144 = vector.multi_reduction <add>, %143, %cst_44 [1] : vector<17x17xf32> to vector<17xf32>
    %145 = vector.shape_cast %144 : vector<17xf32> to vector<17x1xf32>
    %146 = tpu.reciprocal %145 {approx = true} : vector<17x1xf32> -> vector<17x1xf32>
    %147 = vector.broadcast %146 : vector<17x1xf32> to vector<17x17xf32>
    %148 = arith.mulf %143, %147 : vector<17x17xf32>
    %149 = arith.truncf %148 : vector<17x17xf32> to vector<17x17xbf16>
    %150 = vector.broadcast %32 : vector<1x128xbf16> to vector<17x128xbf16>
    %151 = arith.mulf %80, %150 : vector<17x128xbf16>
    %cst_45 = arith.constant dense<0.000000e+00> : vector<17x128xf32>
    %152 = tpu.matmul %149, %151, %cst_45 {dimension_numbers = #tpu.dot_dimension_numbers<[1], [0], [0], [1], [0, 0, 1, 1], [], []>} : vector<17x17xbf16>, vector<17x128xbf16>, vector<17x128xf32> -> vector<17x128xf32>
    %153 = arith.addf %135, %152 : vector<17x128xf32>
    %154 = arith.truncf %153 : vector<17x128xf32> to vector<17x128xbf16>
    %c0_46 = arith.constant 0 : index
    %c0_47 = arith.constant 0 : index
    %155 = vector.load %arg9[%c0_46, %c0_47] : memref<128x128xbf16, #tpu.memory_space<vmem>>, vector<128x128xbf16>
    %cst_48 = arith.constant dense<0.000000e+00> : vector<17x128xf32>
    %156 = tpu.matmul %154, %155, %cst_48 {dimension_numbers = #tpu.dot_dimension_numbers<[1], [0], [0], [1], [0, 0, 1, 1], [], []>} : vector<17x128xbf16>, vector<128x128xbf16>, vector<17x128xf32> -> vector<17x128xf32>
    %c0_49 = arith.constant 0 : index
    %c0_50 = arith.constant 0 : index
    %157 = vector.load %arg10[%c0_49, %c0_50] : memref<1x128xf32, #tpu.memory_space<vmem>>, vector<1x128xf32>
    %158 = vector.broadcast %157 : vector<1x128xf32> to vector<17x128xf32>
    %159 = arith.addf %156, %158 : vector<17x128xf32>
    %160 = arith.addf %35, %159 : vector<17x128xf32>
    %c0_51 = arith.constant 0 : index
    %c0_52 = arith.constant 0 : index
    %161 = vector.load %arg11[%c0_51, %c0_52] : memref<1x128xf32, #tpu.memory_space<vmem>>, vector<1x128xf32>
    %c0_53 = arith.constant 0 : index
    %c0_54 = arith.constant 0 : index
    %162 = vector.load %arg12[%c0_53, %c0_54] : memref<1x128xf32, #tpu.memory_space<vmem>>, vector<1x128xf32>
    %cst_55 = arith.constant dense<0.000000e+00> : vector<17xf32>
    %163 = vector.multi_reduction <add>, %160, %cst_55 [1] : vector<17x128xf32> to vector<17xf32>
    %164 = vector.shape_cast %163 : vector<17xf32> to vector<17x1xf32>
    %cst_56 = arith.constant 1.280000e+02 : f32
    %165 = vector.broadcast %cst_56 : f32 to vector<17x1xf32>
    %166 = arith.divf %164, %165 : vector<17x1xf32>
    %167 = vector.broadcast %166 : vector<17x1xf32> to vector<17x128xf32>
    %168 = arith.subf %160, %167 : vector<17x128xf32>
    %169 = arith.mulf %168, %168 : vector<17x128xf32>
    %cst_57 = arith.constant dense<0.000000e+00> : vector<17xf32>
    %170 = vector.multi_reduction <add>, %169, %cst_57 [1] : vector<17x128xf32> to vector<17xf32>
    %171 = vector.shape_cast %170 : vector<17xf32> to vector<17x1xf32>
    %cst_58 = arith.constant 1.280000e+02 : f32
    %172 = vector.broadcast %cst_58 : f32 to vector<17x1xf32>
    %173 = arith.divf %171, %172 : vector<17x1xf32>
    %174 = vector.broadcast %166 : vector<17x1xf32> to vector<17x128xf32>
    %175 = arith.subf %160, %174 : vector<17x128xf32>
    %cst_59 = arith.constant 9.99999974E-6 : f32
    %176 = vector.broadcast %cst_59 : f32 to vector<17x1xf32>
    %177 = arith.addf %173, %176 : vector<17x1xf32>
    %178 = math.rsqrt %177 : vector<17x1xf32>
    %179 = vector.broadcast %178 : vector<17x1xf32> to vector<17x128xf32>
    %180 = arith.mulf %175, %179 : vector<17x128xf32>
    %181 = vector.broadcast %161 : vector<1x128xf32> to vector<17x128xf32>
    %182 = arith.mulf %180, %181 : vector<17x128xf32>
    %183 = vector.broadcast %162 : vector<1x128xf32> to vector<17x128xf32>
    %184 = arith.addf %182, %183 : vector<17x128xf32>
    %185 = arith.truncf %184 : vector<17x128xf32> to vector<17x128xbf16>
    %c0_60 = arith.constant 0 : index
    %c0_61 = arith.constant 0 : index
    %186 = vector.load %arg13[%c0_60, %c0_61] : memref<128x512xbf16, #tpu.memory_space<vmem>>, vector<128x512xbf16>
    %cst_62 = arith.constant dense<0.000000e+00> : vector<17x512xf32>
    %187 = tpu.matmul %185, %186, %cst_62 {dimension_numbers = #tpu.dot_dimension_numbers<[1], [0], [0], [1], [0, 0, 1, 1], [], []>} : vector<17x128xbf16>, vector<128x512xbf16>, vector<17x512xf32> -> vector<17x512xf32>
    %c0_63 = arith.constant 0 : index
    %c0_64 = arith.constant 0 : index
    %188 = vector.load %arg14[%c0_63, %c0_64] : memref<1x512xf32, #tpu.memory_space<vmem>>, vector<1x512xf32>
    %189 = vector.broadcast %188 : vector<1x512xf32> to vector<17x512xf32>
    %190 = arith.addf %187, %189 : vector<17x512xf32>
    %191 = arith.mulf %190, %190 : vector<17x512xf32>
    %192 = arith.mulf %190, %191 : vector<17x512xf32>
    %cst_65 = arith.constant 4.471500e-02 : f32
    %193 = vector.broadcast %cst_65 : f32 to vector<17x512xf32>
    %194 = arith.mulf %193, %192 : vector<17x512xf32>
    %195 = arith.addf %190, %194 : vector<17x512xf32>
    %cst_66 = arith.constant 0.797884583 : f32
    %196 = vector.broadcast %cst_66 : f32 to vector<17x512xf32>
    %197 = arith.mulf %196, %195 : vector<17x512xf32>
    %198 = math.tanh %197 : vector<17x512xf32>
    %cst_67 = arith.constant 1.000000e+00 : f32
    %199 = vector.broadcast %cst_67 : f32 to vector<17x512xf32>
    %200 = arith.addf %199, %198 : vector<17x512xf32>
    %cst_68 = arith.constant 5.000000e-01 : f32
    %201 = vector.broadcast %cst_68 : f32 to vector<17x512xf32>
    %202 = arith.mulf %201, %200 : vector<17x512xf32>
    %203 = arith.mulf %190, %202 : vector<17x512xf32>
    %204 = arith.truncf %203 : vector<17x512xf32> to vector<17x512xbf16>
    %c0_69 = arith.constant 0 : index
    %c0_70 = arith.constant 0 : index
    %205 = vector.load %arg15[%c0_69, %c0_70] : memref<512x128xbf16, #tpu.memory_space<vmem>>, vector<512x128xbf16>
    %cst_71 = arith.constant dense<0.000000e+00> : vector<17x128xf32>
    %206 = tpu.matmul %204, %205, %cst_71 {dimension_numbers = #tpu.dot_dimension_numbers<[1], [0], [0], [1], [0, 0, 1, 1], [], []>} : vector<17x512xbf16>, vector<512x128xbf16>, vector<17x128xf32> -> vector<17x128xf32>
    %c0_72 = arith.constant 0 : index
    %c0_73 = arith.constant 0 : index
    %207 = vector.load %arg16[%c0_72, %c0_73] : memref<1x128xf32, #tpu.memory_space<vmem>>, vector<1x128xf32>
    %208 = vector.broadcast %207 : vector<1x128xf32> to vector<17x128xf32>
    %209 = arith.addf %206, %208 : vector<17x128xf32>
    %210 = arith.addf %160, %209 : vector<17x128xf32>
    %211 = arith.truncf %210 : vector<17x128xf32> to vector<17x128xbf16>
    %c0_74 = arith.constant 0 : index
    %c0_75 = arith.constant 0 : index
    %c0_76 = arith.constant 0 : index
    %212 = vector.load %arg17[%c0_74, %c0_75, %c0_76] : memref<2x17x128xbf16, #tpu.memory_space<vmem>>, vector<1x17x128xbf16>
    %213 = vector.shape_cast %212 : vector<1x17x128xbf16> to vector<17x128xbf16>
    %214 = vector.shape_cast %211 : vector<17x128xbf16> to vector<1x17x128xbf16>
    tpu.vector_store %arg17[%c0_74, %c0_75, %c0_76], %214 {strides = array<i32>} : memref<2x17x128xbf16, #tpu.memory_space<vmem>>, vector<1x17x128xbf16>,
    %c1 = arith.constant 1 : index
    %c0_77 = arith.constant 0 : index
    %c0_78 = arith.constant 0 : index
    %215 = vector.load %arg0[%c1, %c0_77, %c0_78] : memref<2x17x128xbf16, #tpu.memory_space<vmem>>, vector<1x17x128xbf16>
    %216 = vector.shape_cast %215 : vector<1x17x128xbf16> to vector<17x128xbf16>
    %217 = arith.extf %216 : vector<17x128xbf16> to vector<17x128xf32>
    %c0_79 = arith.constant 0 : index
    %c0_80 = arith.constant 0 : index
    %218 = vector.load %arg1[%c0_79, %c0_80] : memref<1x128xf32, #tpu.memory_space<vmem>>, vector<1x128xf32>
    %c0_81 = arith.constant 0 : index
    %c0_82 = arith.constant 0 : index
    %219 = vector.load %arg2[%c0_81, %c0_82] : memref<1x128xf32, #tpu.memory_space<vmem>>, vector<1x128xf32>
    %cst_83 = arith.constant dense<0.000000e+00> : vector<17xf32>
    %220 = vector.multi_reduction <add>, %217, %cst_83 [1] : vector<17x128xf32> to vector<17xf32>
    %221 = vector.shape_cast %220 : vector<17xf32> to vector<17x1xf32>
    %cst_84 = arith.constant 1.280000e+02 : f32
    %222 = vector.broadcast %cst_84 : f32 to vector<17x1xf32>
    %223 = arith.divf %221, %222 : vector<17x1xf32>
    %224 = vector.broadcast %223 : vector<17x1xf32> to vector<17x128xf32>
    %225 = arith.subf %217, %224 : vector<17x128xf32>
    %226 = arith.mulf %225, %225 : vector<17x128xf32>
    %cst_85 = arith.constant dense<0.000000e+00> : vector<17xf32>
    %227 = vector.multi_reduction <add>, %226, %cst_85 [1] : vector<17x128xf32> to vector<17xf32>
    %228 = vector.shape_cast %227 : vector<17xf32> to vector<17x1xf32>
    %cst_86 = arith.constant 1.280000e+02 : f32
    %229 = vector.broadcast %cst_86 : f32 to vector<17x1xf32>
    %230 = arith.divf %228, %229 : vector<17x1xf32>
    %231 = vector.broadcast %223 : vector<17x1xf32> to vector<17x128xf32>
    %232 = arith.subf %217, %231 : vector<17x128xf32>
    %cst_87 = arith.constant 9.99999974E-6 : f32
    %233 = vector.broadcast %cst_87 : f32 to vector<17x1xf32>
    %234 = arith.addf %230, %233 : vector<17x1xf32>
    %235 = math.rsqrt %234 : vector<17x1xf32>
    %236 = vector.broadcast %235 : vector<17x1xf32> to vector<17x128xf32>
    %237 = arith.mulf %232, %236 : vector<17x128xf32>
    %238 = vector.broadcast %218 : vector<1x128xf32> to vector<17x128xf32>
    %239 = arith.mulf %237, %238 : vector<17x128xf32>
    %240 = vector.broadcast %219 : vector<1x128xf32> to vector<17x128xf32>
    %241 = arith.addf %239, %240 : vector<17x128xf32>
    %242 = arith.truncf %241 : vector<17x128xf32> to vector<17x128xbf16>
    %c0_88 = arith.constant 0 : index
    %c0_89 = arith.constant 0 : index
    %243 = vector.load %arg3[%c0_88, %c0_89] : memref<128x128xbf16, #tpu.memory_space<vmem>>, vector<128x128xbf16>
    %cst_90 = arith.constant dense<0.000000e+00> : vector<17x128xf32>
    %244 = tpu.matmul %242, %243, %cst_90 {dimension_numbers = #tpu.dot_dimension_numbers<[1], [0], [0], [1], [0, 0, 1, 1], [], []>} : vector<17x128xbf16>, vector<128x128xbf16>, vector<17x128xf32> -> vector<17x128xf32>
    %c0_91 = arith.constant 0 : index
    %c0_92 = arith.constant 0 : index
    %245 = vector.load %arg4[%c0_91, %c0_92] : memref<1x128xf32, #tpu.memory_space<vmem>>, vector<1x128xf32>
    %246 = vector.broadcast %245 : vector<1x128xf32> to vector<17x128xf32>
    %247 = arith.addf %244, %246 : vector<17x128xf32>
    %c0_93 = arith.constant 0 : index
    %c0_94 = arith.constant 0 : index
    %248 = vector.load %arg5[%c0_93, %c0_94] : memref<128x128xbf16, #tpu.memory_space<vmem>>, vector<128x128xbf16>
    %cst_95 = arith.constant dense<0.000000e+00> : vector<17x128xf32>
    %249 = tpu.matmul %242, %248, %cst_95 {dimension_numbers = #tpu.dot_dimension_numbers<[1], [0], [0], [1], [0, 0, 1, 1], [], []>} : vector<17x128xbf16>, vector<128x128xbf16>, vector<17x128xf32> -> vector<17x128xf32>
    %c0_96 = arith.constant 0 : index
    %c0_97 = arith.constant 0 : index
    %250 = vector.load %arg6[%c0_96, %c0_97] : memref<1x128xf32, #tpu.memory_space<vmem>>, vector<1x128xf32>
    %251 = vector.broadcast %250 : vector<1x128xf32> to vector<17x128xf32>
    %252 = arith.addf %249, %251 : vector<17x128xf32>
    %c0_98 = arith.constant 0 : index
    %c0_99 = arith.constant 0 : index
    %253 = vector.load %arg7[%c0_98, %c0_99] : memref<128x128xbf16, #tpu.memory_space<vmem>>, vector<128x128xbf16>
    %cst_100 = arith.constant dense<0.000000e+00> : vector<17x128xf32>
    %254 = tpu.matmul %242, %253, %cst_100 {dimension_numbers = #tpu.dot_dimension_numbers<[1], [0], [0], [1], [0, 0, 1, 1], [], []>} : vector<17x128xbf16>, vector<128x128xbf16>, vector<17x128xf32> -> vector<17x128xf32>
    %c0_101 = arith.constant 0 : index
    %c0_102 = arith.constant 0 : index
    %255 = vector.load %arg8[%c0_101, %c0_102] : memref<1x128xf32, #tpu.memory_space<vmem>>, vector<1x128xf32>
    %256 = vector.broadcast %255 : vector<1x128xf32> to vector<17x128xf32>
    %257 = arith.addf %254, %256 : vector<17x128xf32>
    %cst_103 = arith.constant 0.176776692 : f32
    %258 = vector.broadcast %cst_103 : f32 to vector<17x128xf32>
    %259 = arith.mulf %247, %258 : vector<17x128xf32>
    %260 = arith.truncf %259 : vector<17x128xf32> to vector<17x128xbf16>
    %261 = arith.truncf %252 : vector<17x128xf32> to vector<17x128xbf16>
    %262 = arith.truncf %257 : vector<17x128xf32> to vector<17x128xbf16>
    %cst_104 = arith.constant 0.000000e+00 : f32
    %263 = vector.broadcast %cst_104 : f32 to vector<17x128xf32>
    %264 = vector.broadcast %8 : vector<1x128xbf16> to vector<17x128xbf16>
    %265 = arith.mulf %260, %264 : vector<17x128xbf16>
    %cst_105 = arith.constant dense<0.000000e+00> : vector<17x17xf32>
    %266 = tpu.matmul %265, %261, %cst_105 {dimension_numbers = #tpu.dot_dimension_numbers<[1], [1], [0], [0], [0, 0, 1, 0], [], []>} : vector<17x128xbf16>, vector<17x128xbf16>, vector<17x17xf32> -> vector<17x17xf32>
    %cst_106 = arith.constant dense<0xFF800000> : vector<17xf32>
    %267 = vector.multi_reduction <maximumf>, %266, %cst_106 [1] : vector<17x17xf32> to vector<17xf32>
    %268 = vector.shape_cast %267 : vector<17xf32> to vector<17x1xf32>
    %269 = vector.broadcast %268 : vector<17x1xf32> to vector<17x17xf32>
    %270 = arith.subf %266, %269 : vector<17x17xf32>
    %271 = math.exp %270 : vector<17x17xf32>
    %cst_107 = arith.constant dense<0.000000e+00> : vector<17xf32>
    %272 = vector.multi_reduction <add>, %271, %cst_107 [1] : vector<17x17xf32> to vector<17xf32>
    %273 = vector.shape_cast %272 : vector<17xf32> to vector<17x1xf32>
    %274 = tpu.reciprocal %273 {approx = true} : vector<17x1xf32> -> vector<17x1xf32>
    %275 = vector.broadcast %274 : vector<17x1xf32> to vector<17x17xf32>
    %276 = arith.mulf %271, %275 : vector<17x17xf32>
    %277 = arith.truncf %276 : vector<17x17xf32> to vector<17x17xbf16>
    %278 = vector.broadcast %8 : vector<1x128xbf16> to vector<17x128xbf16>
    %279 = arith.mulf %262, %278 : vector<17x128xbf16>
    %cst_108 = arith.constant dense<0.000000e+00> : vector<17x128xf32>
    %280 = tpu.matmul %277, %279, %cst_108 {dimension_numbers = #tpu.dot_dimension_numbers<[1], [0], [0], [1], [0, 0, 1, 1], [], []>} : vector<17x17xbf16>, vector<17x128xbf16>, vector<17x128xf32> -> vector<17x128xf32>
    %281 = arith.addf %263, %280 : vector<17x128xf32>
    %282 = vector.broadcast %16 : vector<1x128xbf16> to vector<17x128xbf16>
    %283 = arith.mulf %260, %282 : vector<17x128xbf16>
    %cst_109 = arith.constant dense<0.000000e+00> : vector<17x17xf32>
    %284 = tpu.matmul %283, %261, %cst_109 {dimension_numbers = #tpu.dot_dimension_numbers<[1], [1], [0], [0], [0, 0, 1, 0], [], []>} : vector<17x128xbf16>, vector<17x128xbf16>, vector<17x17xf32> -> vector<17x17xf32>
    %cst_110 = arith.constant dense<0xFF800000> : vector<17xf32>
    %285 = vector.multi_reduction <maximumf>, %284, %cst_110 [1] : vector<17x17xf32> to vector<17xf32>
    %286 = vector.shape_cast %285 : vector<17xf32> to vector<17x1xf32>
    %287 = vector.broadcast %286 : vector<17x1xf32> to vector<17x17xf32>
    %288 = arith.subf %284, %287 : vector<17x17xf32>
    %289 = math.exp %288 : vector<17x17xf32>
    %cst_111 = arith.constant dense<0.000000e+00> : vector<17xf32>
    %290 = vector.multi_reduction <add>, %289, %cst_111 [1] : vector<17x17xf32> to vector<17xf32>
    %291 = vector.shape_cast %290 : vector<17xf32> to vector<17x1xf32>
    %292 = tpu.reciprocal %291 {approx = true} : vector<17x1xf32> -> vector<17x1xf32>
    %293 = vector.broadcast %292 : vector<17x1xf32> to vector<17x17xf32>
    %294 = arith.mulf %289, %293 : vector<17x17xf32>
    %295 = arith.truncf %294 : vector<17x17xf32> to vector<17x17xbf16>
    %296 = vector.broadcast %16 : vector<1x128xbf16> to vector<17x128xbf16>
    %297 = arith.mulf %262, %296 : vector<17x128xbf16>
    %cst_112 = arith.constant dense<0.000000e+00> : vector<17x128xf32>
    %298 = tpu.matmul %295, %297, %cst_112 {dimension_numbers = #tpu.dot_dimension_numbers<[1], [0], [0], [1], [0, 0, 1, 1], [], []>} : vector<17x17xbf16>, vector<17x128xbf16>, vector<17x128xf32> -> vector<17x128xf32>
    %299 = arith.addf %281, %298 : vector<17x128xf32>
    %300 = vector.broadcast %24 : vector<1x128xbf16> to vector<17x128xbf16>
    %301 = arith.mulf %260, %300 : vector<17x128xbf16>
    %cst_113 = arith.constant dense<0.000000e+00> : vector<17x17xf32>
    %302 = tpu.matmul %301, %261, %cst_113 {dimension_numbers = #tpu.dot_dimension_numbers<[1], [1], [0], [0], [0, 0, 1, 0], [], []>} : vector<17x128xbf16>, vector<17x128xbf16>, vector<17x17xf32> -> vector<17x17xf32>
    %cst_114 = arith.constant dense<0xFF800000> : vector<17xf32>
    %303 = vector.multi_reduction <maximumf>, %302, %cst_114 [1] : vector<17x17xf32> to vector<17xf32>
    %304 = vector.shape_cast %303 : vector<17xf32> to vector<17x1xf32>
    %305 = vector.broadcast %304 : vector<17x1xf32> to vector<17x17xf32>
    %306 = arith.subf %302, %305 : vector<17x17xf32>
    %307 = math.exp %306 : vector<17x17xf32>
    %cst_115 = arith.constant dense<0.000000e+00> : vector<17xf32>
    %308 = vector.multi_reduction <add>, %307, %cst_115 [1] : vector<17x17xf32> to vector<17xf32>
    %309 = vector.shape_cast %308 : vector<17xf32> to vector<17x1xf32>
    %310 = tpu.reciprocal %309 {approx = true} : vector<17x1xf32> -> vector<17x1xf32>
    %311 = vector.broadcast %310 : vector<17x1xf32> to vector<17x17xf32>
    %312 = arith.mulf %307, %311 : vector<17x17xf32>
    %313 = arith.truncf %312 : vector<17x17xf32> to vector<17x17xbf16>
    %314 = vector.broadcast %24 : vector<1x128xbf16> to vector<17x128xbf16>
    %315 = arith.mulf %262, %314 : vector<17x128xbf16>
    %cst_116 = arith.constant dense<0.000000e+00> : vector<17x128xf32>
    %316 = tpu.matmul %313, %315, %cst_116 {dimension_numbers = #tpu.dot_dimension_numbers<[1], [0], [0], [1], [0, 0, 1, 1], [], []>} : vector<17x17xbf16>, vector<17x128xbf16>, vector<17x128xf32> -> vector<17x128xf32>
    %317 = arith.addf %299, %316 : vector<17x128xf32>
    %318 = vector.broadcast %32 : vector<1x128xbf16> to vector<17x128xbf16>
    %319 = arith.mulf %260, %318 : vector<17x128xbf16>
    %cst_117 = arith.constant dense<0.000000e+00> : vector<17x17xf32>
    %320 = tpu.matmul %319, %261, %cst_117 {dimension_numbers = #tpu.dot_dimension_numbers<[1], [1], [0], [0], [0, 0, 1, 0], [], []>} : vector<17x128xbf16>, vector<17x128xbf16>, vector<17x17xf32> -> vector<17x17xf32>
    %cst_118 = arith.constant dense<0xFF800000> : vector<17xf32>
    %321 = vector.multi_reduction <maximumf>, %320, %cst_118 [1] : vector<17x17xf32> to vector<17xf32>
    %322 = vector.shape_cast %321 : vector<17xf32> to vector<17x1xf32>
    %323 = vector.broadcast %322 : vector<17x1xf32> to vector<17x17xf32>
    %324 = arith.subf %320, %323 : vector<17x17xf32>
    %325 = math.exp %324 : vector<17x17xf32>
    %cst_119 = arith.constant dense<0.000000e+00> : vector<17xf32>
    %326 = vector.multi_reduction <add>, %325, %cst_119 [1] : vector<17x17xf32> to vector<17xf32>
    %327 = vector.shape_cast %326 : vector<17xf32> to vector<17x1xf32>
    %328 = tpu.reciprocal %327 {approx = true} : vector<17x1xf32> -> vector<17x1xf32>
    %329 = vector.broadcast %328 : vector<17x1xf32> to vector<17x17xf32>
    %330 = arith.mulf %325, %329 : vector<17x17xf32>
    %331 = arith.truncf %330 : vector<17x17xf32> to vector<17x17xbf16>
    %332 = vector.broadcast %32 : vector<1x128xbf16> to vector<17x128xbf16>
    %333 = arith.mulf %262, %332 : vector<17x128xbf16>
    %cst_120 = arith.constant dense<0.000000e+00> : vector<17x128xf32>
    %334 = tpu.matmul %331, %333, %cst_120 {dimension_numbers = #tpu.dot_dimension_numbers<[1], [0], [0], [1], [0, 0, 1, 1], [], []>} : vector<17x17xbf16>, vector<17x128xbf16>, vector<17x128xf32> -> vector<17x128xf32>
    %335 = arith.addf %317, %334 : vector<17x128xf32>
    %336 = arith.truncf %335 : vector<17x128xf32> to vector<17x128xbf16>
    %c0_121 = arith.constant 0 : index
    %c0_122 = arith.constant 0 : index
    %337 = vector.load %arg9[%c0_121, %c0_122] : memref<128x128xbf16, #tpu.memory_space<vmem>>, vector<128x128xbf16>
    %cst_123 = arith.constant dense<0.000000e+00> : vector<17x128xf32>
    %338 = tpu.matmul %336, %337, %cst_123 {dimension_numbers = #tpu.dot_dimension_numbers<[1], [0], [0], [1], [0, 0, 1, 1], [], []>} : vector<17x128xbf16>, vector<128x128xbf16>, vector<17x128xf32> -> vector<17x128xf32>
    %c0_124 = arith.constant 0 : index
    %c0_125 = arith.constant 0 : index
    %339 = vector.load %arg10[%c0_124, %c0_125] : memref<1x128xf32, #tpu.memory_space<vmem>>, vector<1x128xf32>
    %340 = vector.broadcast %339 : vector<1x128xf32> to vector<17x128xf32>
    %341 = arith.addf %338, %340 : vector<17x128xf32>
    %342 = arith.addf %217, %341 : vector<17x128xf32>
    %c0_126 = arith.constant 0 : index
    %c0_127 = arith.constant 0 : index
    %343 = vector.load %arg11[%c0_126, %c0_127] : memref<1x128xf32, #tpu.memory_space<vmem>>, vector<1x128xf32>
    %c0_128 = arith.constant 0 : index
    %c0_129 = arith.constant 0 : index
    %344 = vector.load %arg12[%c0_128, %c0_129] : memref<1x128xf32, #tpu.memory_space<vmem>>, vector<1x128xf32>
    %cst_130 = arith.constant dense<0.000000e+00> : vector<17xf32>
    %345 = vector.multi_reduction <add>, %342, %cst_130 [1] : vector<17x128xf32> to vector<17xf32>
    %346 = vector.shape_cast %345 : vector<17xf32> to vector<17x1xf32>
    %cst_131 = arith.constant 1.280000e+02 : f32
    %347 = vector.broadcast %cst_131 : f32 to vector<17x1xf32>
    %348 = arith.divf %346, %347 : vector<17x1xf32>
    %349 = vector.broadcast %348 : vector<17x1xf32> to vector<17x128xf32>
    %350 = arith.subf %342, %349 : vector<17x128xf32>
    %351 = arith.mulf %350, %350 : vector<17x128xf32>
    %cst_132 = arith.constant dense<0.000000e+00> : vector<17xf32>
    %352 = vector.multi_reduction <add>, %351, %cst_132 [1] : vector<17x128xf32> to vector<17xf32>
    %353 = vector.shape_cast %352 : vector<17xf32> to vector<17x1xf32>
    %cst_133 = arith.constant 1.280000e+02 : f32
    %354 = vector.broadcast %cst_133 : f32 to vector<17x1xf32>
    %355 = arith.divf %353, %354 : vector<17x1xf32>
    %356 = vector.broadcast %348 : vector<17x1xf32> to vector<17x128xf32>
    %357 = arith.subf %342, %356 : vector<17x128xf32>
    %cst_134 = arith.constant 9.99999974E-6 : f32
    %358 = vector.broadcast %cst_134 : f32 to vector<17x1xf32>
    %359 = arith.addf %355, %358 : vector<17x1xf32>
    %360 = math.rsqrt %359 : vector<17x1xf32>
    %361 = vector.broadcast %360 : vector<17x1xf32> to vector<17x128xf32>
    %362 = arith.mulf %357, %361 : vector<17x128xf32>
    %363 = vector.broadcast %343 : vector<1x128xf32> to vector<17x128xf32>
    %364 = arith.mulf %362, %363 : vector<17x128xf32>
    %365 = vector.broadcast %344 : vector<1x128xf32> to vector<17x128xf32>
    %366 = arith.addf %364, %365 : vector<17x128xf32>
    %367 = arith.truncf %366 : vector<17x128xf32> to vector<17x128xbf16>
    %c0_135 = arith.constant 0 : index
    %c0_136 = arith.constant 0 : index
    %368 = vector.load %arg13[%c0_135, %c0_136] : memref<128x512xbf16, #tpu.memory_space<vmem>>, vector<128x512xbf16>
    %cst_137 = arith.constant dense<0.000000e+00> : vector<17x512xf32>
    %369 = tpu.matmul %367, %368, %cst_137 {dimension_numbers = #tpu.dot_dimension_numbers<[1], [0], [0], [1], [0, 0, 1, 1], [], []>} : vector<17x128xbf16>, vector<128x512xbf16>, vector<17x512xf32> -> vector<17x512xf32>
    %c0_138 = arith.constant 0 : index
    %c0_139 = arith.constant 0 : index
    %370 = vector.load %arg14[%c0_138, %c0_139] : memref<1x512xf32, #tpu.memory_space<vmem>>, vector<1x512xf32>
    %371 = vector.broadcast %370 : vector<1x512xf32> to vector<17x512xf32>
    %372 = arith.addf %369, %371 : vector<17x512xf32>
    %373 = arith.mulf %372, %372 : vector<17x512xf32>
    %374 = arith.mulf %372, %373 : vector<17x512xf32>
    %cst_140 = arith.constant 4.471500e-02 : f32
    %375 = vector.broadcast %cst_140 : f32 to vector<17x512xf32>
    %376 = arith.mulf %375, %374 : vector<17x512xf32>
    %377 = arith.addf %372, %376 : vector<17x512xf32>
    %cst_141 = arith.constant 0.797884583 : f32
    %378 = vector.broadcast %cst_141 : f32 to vector<17x512xf32>
    %379 = arith.mulf %378, %377 : vector<17x512xf32>
    %380 = math.tanh %379 : vector<17x512xf32>
    %cst_142 = arith.constant 1.000000e+00 : f32
    %381 = vector.broadcast %cst_142 : f32 to vector<17x512xf32>
    %382 = arith.addf %381, %380 : vector<17x512xf32>
    %cst_143 = arith.constant 5.000000e-01 : f32
    %383 = vector.broadcast %cst_143 : f32 to vector<17x512xf32>
    %384 = arith.mulf %383, %382 : vector<17x512xf32>
    %385 = arith.mulf %372, %384 : vector<17x512xf32>
    %386 = arith.truncf %385 : vector<17x512xf32> to vector<17x512xbf16>
    %c0_144 = arith.constant 0 : index
    %c0_145 = arith.constant 0 : index
    %387 = vector.load %arg15[%c0_144, %c0_145] : memref<512x128xbf16, #tpu.memory_space<vmem>>, vector<512x128xbf16>
    %cst_146 = arith.constant dense<0.000000e+00> : vector<17x128xf32>
    %388 = tpu.matmul %386, %387, %cst_146 {dimension_numbers = #tpu.dot_dimension_numbers<[1], [0], [0], [1], [0, 0, 1, 1], [], []>} : vector<17x512xbf16>, vector<512x128xbf16>, vector<17x128xf32> -> vector<17x128xf32>
    %c0_147 = arith.constant 0 : index
    %c0_148 = arith.constant 0 : index
    %389 = vector.load %arg16[%c0_147, %c0_148] : memref<1x128xf32, #tpu.memory_space<vmem>>, vector<1x128xf32>
    %390 = vector.broadcast %389 : vector<1x128xf32> to vector<17x128xf32>
    %391 = arith.addf %388, %390 : vector<17x128xf32>
    %392 = arith.addf %342, %391 : vector<17x128xf32>
    %393 = arith.truncf %392 : vector<17x128xf32> to vector<17x128xbf16>
    %c1_149 = arith.constant 1 : index
    %c0_150 = arith.constant 0 : index
    %c0_151 = arith.constant 0 : index
    %394 = vector.load %arg17[%c1_149, %c0_150, %c0_151] : memref<2x17x128xbf16, #tpu.memory_space<vmem>>, vector<1x17x128xbf16>
    %395 = vector.shape_cast %394 : vector<1x17x128xbf16> to vector<17x128xbf16>
    %396 = vector.shape_cast %393 : vector<17x128xbf16> to vector<1x17x128xbf16>
    tpu.vector_store %arg17[%c1_149, %c0_150, %c0_151], %396 {strides = array<i32>} : memref<2x17x128xbf16, #tpu.memory_space<vmem>>, vector<1x17x128xbf16>,
    return
  }
}

module attributes {stable_mosaic.version = 11 : i64} {
  func.func @_lm_head_kernel(%arg0: i32, %arg1: memref<16x128xbf16, #tpu.memory_space<vmem>>, %arg2: memref<1x128xf32, #tpu.memory_space<vmem>>, %arg3: memref<1x128xf32, #tpu.memory_space<vmem>>, %arg4: memref<128x512xbf16, #tpu.memory_space<vmem>>, %arg5: memref<1x512xf32, #tpu.memory_space<vmem>>, %arg6: memref<16x512xf32, #tpu.memory_space<vmem>>) attributes {dimension_semantics = [#tpu.dimension_semantics<parallel>], iteration_bounds = array<i64: 1>, scalar_prefetch = 0 : i64, scratch_operands = 0 : i64, tpu.core_type = #tpu.core_type<tc>, window_params = [{pipeline_mode = #tpu.pipeline_mode<synchronous>, transform_indices = @transform_0, window_bounds = array<i64: 16, 128>}, {pipeline_mode = #tpu.pipeline_mode<synchronous>, transform_indices = @transform_1, window_bounds = array<i64: 1, 128>}, {pipeline_mode = #tpu.pipeline_mode<synchronous>, transform_indices = @transform_2, window_bounds = array<i64: 1, 128>}, {transform_indices = @transform_3, window_bounds = array<i64: 128, 512>}, {transform_indices = @transform_4, window_bounds = array<i64: 1, 512>}, {transform_indices = @transform_5, window_bounds = array<i64: 16, 512>}]} {
    %c0 = arith.constant 0 : index
    %c0_0 = arith.constant 0 : index
    %0 = vector.load %arg1[%c0, %c0_0] : memref<16x128xbf16, #tpu.memory_space<vmem>>, vector<16x128xbf16>
    %1 = arith.extf %0 : vector<16x128xbf16> to vector<16x128xf32>
    %cst = arith.constant dense<0.000000e+00> : vector<16xf32>
    %2 = vector.multi_reduction <add>, %1, %cst [1] : vector<16x128xf32> to vector<16xf32>
    %3 = vector.shape_cast %2 : vector<16xf32> to vector<16x1xf32>
    %cst_1 = arith.constant 1.280000e+02 : f32
    %4 = vector.broadcast %cst_1 : f32 to vector<16x1xf32>
    %5 = arith.divf %3, %4 : vector<16x1xf32>
    %6 = vector.broadcast %5 : vector<16x1xf32> to vector<16x128xf32>
    %7 = arith.subf %1, %6 : vector<16x128xf32>
    %8 = arith.mulf %7, %7 : vector<16x128xf32>
    %cst_2 = arith.constant dense<0.000000e+00> : vector<16xf32>
    %9 = vector.multi_reduction <add>, %8, %cst_2 [1] : vector<16x128xf32> to vector<16xf32>
    %10 = vector.shape_cast %9 : vector<16xf32> to vector<16x1xf32>
    %cst_3 = arith.constant 1.280000e+02 : f32
    %11 = vector.broadcast %cst_3 : f32 to vector<16x1xf32>
    %12 = arith.divf %10, %11 : vector<16x1xf32>
    %13 = vector.broadcast %5 : vector<16x1xf32> to vector<16x128xf32>
    %14 = arith.subf %1, %13 : vector<16x128xf32>
    %cst_4 = arith.constant 9.99999974E-6 : f32
    %15 = vector.broadcast %cst_4 : f32 to vector<16x1xf32>
    %16 = arith.addf %12, %15 : vector<16x1xf32>
    %17 = math.rsqrt %16 : vector<16x1xf32>
    %18 = vector.broadcast %17 : vector<16x1xf32> to vector<16x128xf32>
    %19 = arith.mulf %14, %18 : vector<16x128xf32>
    %c0_5 = arith.constant 0 : index
    %c0_6 = arith.constant 0 : index
    %20 = vector.load %arg2[%c0_5, %c0_6] : memref<1x128xf32, #tpu.memory_space<vmem>>, vector<1x128xf32>
    %21 = vector.broadcast %20 : vector<1x128xf32> to vector<16x128xf32>
    %22 = arith.mulf %19, %21 : vector<16x128xf32>
    %c0_7 = arith.constant 0 : index
    %c0_8 = arith.constant 0 : index
    %23 = vector.load %arg3[%c0_7, %c0_8] : memref<1x128xf32, #tpu.memory_space<vmem>>, vector<1x128xf32>
    %24 = vector.broadcast %23 : vector<1x128xf32> to vector<16x128xf32>
    %25 = arith.addf %22, %24 : vector<16x128xf32>
    %26 = arith.truncf %25 : vector<16x128xf32> to vector<16x128xbf16>
    %c0_9 = arith.constant 0 : index
    %c0_10 = arith.constant 0 : index
    %27 = vector.load %arg4[%c0_9, %c0_10] : memref<128x512xbf16, #tpu.memory_space<vmem>>, vector<128x512xbf16>
    %cst_11 = arith.constant dense<0.000000e+00> : vector<16x512xf32>
    %28 = tpu.matmul %26, %27, %cst_11 {dimension_numbers = #tpu.dot_dimension_numbers<[1], [0], [0], [1], [0, 0, 1, 1], [], []>} : vector<16x128xbf16>, vector<128x512xbf16>, vector<16x512xf32> -> vector<16x512xf32>
    %c0_12 = arith.constant 0 : index
    %c0_13 = arith.constant 0 : index
    %29 = vector.load %arg5[%c0_12, %c0_13] : memref<1x512xf32, #tpu.memory_space<vmem>>, vector<1x512xf32>
    %30 = vector.broadcast %29 : vector<1x512xf32> to vector<16x512xf32>
    %31 = arith.addf %28, %30 : vector<16x512xf32>
    %c0_14 = arith.constant 0 : index
    %c0_15 = arith.constant 0 : index
    %32 = vector.load %arg6[%c0_14, %c0_15] : memref<16x512xf32, #tpu.memory_space<vmem>>, vector<16x512xf32>
    tpu.vector_store %arg6[%c0_14, %c0_15], %31 {strides = array<i32>} : memref<16x512xf32, #tpu.memory_space<vmem>>, vector<16x512xf32>,
    return
  }
  func.func @transform_0(%arg0: i32) -> (i32, i32) {
    %c0_i32 = arith.constant 0 : i32
    %c0_i32_0 = arith.constant 0 : i32
    %c0_i32_1 = arith.constant 0 : i32
    return %c0_i32, %c0_i32_0 : i32, i32
  }
  func.func @transform_1(%arg0: i32) -> (i32, i32) {
    %c0_i32 = arith.constant 0 : i32
    %c0_i32_0 = arith.constant 0 : i32
    %c0_i32_1 = arith.constant 0 : i32
    return %c0_i32, %c0_i32_0 : i32, i32
  }
  func.func @transform_2(%arg0: i32) -> (i32, i32) {
    %c0_i32 = arith.constant 0 : i32
    %c0_i32_0 = arith.constant 0 : i32
    %c0_i32_1 = arith.constant 0 : i32
    return %c0_i32, %c0_i32_0 : i32, i32
  }
  func.func @transform_3(%arg0: i32) -> (i32, i32) {
    %c0_i32 = arith.constant 0 : i32
    %c0_i32_0 = arith.constant 0 : i32
    return %c0_i32, %arg0 : i32, i32
  }
  func.func @transform_4(%arg0: i32) -> (i32, i32) {
    %c0_i32 = arith.constant 0 : i32
    %c0_i32_0 = arith.constant 0 : i32
    return %c0_i32, %arg0 : i32, i32
  }
  func.func @transform_5(%arg0: i32) -> (i32, i32) {
    %c0_i32 = arith.constant 0 : i32
    %c0_i32_0 = arith.constant 0 : i32
    return %c0_i32, %arg0 : i32, i32
  }
}

</mosaic_0001>

<llo_original>
// kernel: nanovlm_forward.10
$region0: #{nanovlm_forward.10}
  #allocation0 [shape = 'u32[]', space=smem, size = 0x4, offset = 0x4, fixed_abs, tag = 'smem constant byte address 0x4 - core index']
  #allocation1 [shape = 'u32[144,128]{1,0:T(1,128)}', space=vmem, size = 0x12000, scoped, tag = 'internal scratch']
  %s0 = inlined_call_operand.vmem [shape: bf16[2,128], index: 0, kind: input, shape index: {}]
  %s1 = inlined_call_operand.vmem [shape: f32[1,128], index: 1, kind: input, shape index: {}]
  %s2 = inlined_call_operand.vmem [shape: f32[1,128], index: 2, kind: input, shape index: {}]
  %s3 = inlined_call_operand.vmem [shape: bf16[128,128], index: 3, kind: input, shape index: {}]
  %s4 = inlined_call_operand.vmem [shape: f32[1,128], index: 4, kind: input, shape index: {}]
  %s5 = inlined_call_operand.vmem [shape: f32[1,128], index: 5, kind: input, shape index: {}]
  %s6 = inlined_call_operand.vmem [shape: f32[1,128], index: 6, kind: input, shape index: {}]
  %s7 = inlined_call_operand.vmem [shape: f32[2,8,128], index: 7, kind: input, shape index: {}]
  %s8 = inlined_call_operand.vmem [shape: f32[8,128], index: 8, kind: input, shape index: {}]
  %s9 = inlined_call_operand.hbm [shape: bf16[2,8,128], index: 9, kind: output, shape index: {}]
  %s10 = sld [smem:[#allocation0]]
  $region46: #{nanovlm_forward.10} parent=0
    _
  %s12 = ssub.s32 1, %s10
  %s13 = scalar_select 0, %s12, %s10
  $region1: #{nanovlm_forward.10} parent=0
    #allocation2 [shape = 'u8[4096]{0}', space=vmem, size = 0x1000, scoped, tag = 'output window, operand 0, single buffered']
    #allocation3 [shape = 's32[1]{0}', space=sflag, size = 0x4, scoped, tag = 'scoped memory for nanovlm_forward.10']
    %14 = vsyncpa [#allocation3], 0
    // Predicated region
    $region2: #{nanovlm_forward.10} parent=1 // pred_check
      _
    $region3: #{nanovlm_forward.10} parent=1 // pred_check_branch
      %16 = sbr.rel (0) target = $region5
    $region4: #{nanovlm_forward.10} parent=1 // pred_region
      _
    $region5: #{nanovlm_forward.10} parent=1 // pred_fallthru
      _
    // Predicated region
    $region6: #{nanovlm_forward.10} parent=1 // pred_check
      _
    $region7: #{nanovlm_forward.10} parent=1 // pred_check_branch
      %18 = sbr.rel (0) target = $region9
    $region8: #{nanovlm_forward.10} parent=1 // pred_region
      _
    $region9: #{nanovlm_forward.10} parent=1 // pred_fallthru
      _
    // Predicated region
    $region10: #{nanovlm_forward.10} parent=1 // pred_check
      _
    $region11: #{nanovlm_forward.10} parent=1 // pred_check_branch
      %20 = sbr.rel (0) target = $region13
    $region12: #{nanovlm_forward.10} parent=1 // pred_region
      _
    $region13: #{nanovlm_forward.10} parent=1 // pred_fallthru
      _
    // Predicated region
    $region14: #{nanovlm_forward.10} parent=1 // pred_check
      _
    $region15: #{nanovlm_forward.10} parent=1 // pred_check_branch
      %22 = sbr.rel (0) target = $region17
    $region16: #{nanovlm_forward.10} parent=1 // pred_region
      _
    $region17: #{nanovlm_forward.10} parent=1 // pred_fallthru
      _
    // Predicated region
    $region18: #{nanovlm_forward.10} parent=1 // pred_check
      _
    $region19: #{nanovlm_forward.10} parent=1 // pred_check_branch
      %24 = sbr.rel (0) target = $region21
    $region20: #{nanovlm_forward.10} parent=1 // pred_region
      _
    $region21: #{nanovlm_forward.10} parent=1 // pred_fallthru
      _
    // Predicated region
    $region22: #{nanovlm_forward.10} parent=1 // pred_check
      _
    $region23: #{nanovlm_forward.10} parent=1 // pred_check_branch
      %26 = sbr.rel (0) target = $region25
    $region24: #{nanovlm_forward.10} parent=1 // pred_region
      _
    $region25: #{nanovlm_forward.10} parent=1 // pred_fallthru
      _
    // Predicated region
    $region26: #{nanovlm_forward.10} parent=1 // pred_check
      _
    $region27: #{nanovlm_forward.10} parent=1 // pred_check_branch
      %28 = sbr.rel (0) target = $region29
    $region28: #{nanovlm_forward.10} parent=1 // pred_region
      _
    $region29: #{nanovlm_forward.10} parent=1 // pred_fallthru
      _
    // Predicated region
    $region30: #{nanovlm_forward.10} parent=1 // pred_check
      _
    $region31: #{nanovlm_forward.10} parent=1 // pred_check_branch
      %30 = sbr.rel (0) target = $region33
    $region32: #{nanovlm_forward.10} parent=1 // pred_region
      _
    $region33: #{nanovlm_forward.10} parent=1 // pred_fallthru
      _
    // Predicated region
    $region34: #{nanovlm_forward.10} parent=1 // pred_check
      _
    $region35: #{nanovlm_forward.10} parent=1 // pred_check_branch
      %32 = sbr.rel (0) target = $region37
    $region36: #{nanovlm_forward.10} parent=1 // pred_region
      _
    $region37: #{nanovlm_forward.10} parent=1 // pred_fallthru
      _
    %v34 = vld [vmem:[%s0] sm:$0x1]
    %v35 = vunpack.c.l.bf16 %v34
    %v36 = vld [vmem:[%s1] sm:$0x1]
    %v37 = vld [vmem:[%s2] sm:$0x1]
    %vm38 = vcmask 1041408
    %v39 = vsel %vm38, %v35, 0.0
    %40 = vadd.xlane.f32.xlu0 %v39
    %v41 = vpop.xlane.xlu0 %40
    %v42 = vrcp.pop 128.0
    %v43 = vmul.f32 %v41, %v42
    %v44 = vsub.f32 %v35, %v43
    %v45 = vmul.f32 %v44, %v44
    %v46 = vsel %vm38, %v45, 0.0
    %47 = vadd.xlane.f32.xlu0 %v46
    %v48 = vpop.xlane.xlu0 %47
    %v49 = vmul.f32 %v48, %v42
    %v50 = vadd.f32 %v49, 1e-05
    %v51 = vrsqrt.pop %v50
    %v52 = vmul.f32 %v44, %v51
    %v54 = vlaneseq
    %v55 = vshrl.u32 %v54, 7
    %v56 = vsub.s32 0, %v55
    %v57 = vrot.slane %v36, %v56
    %v59 = vmul.f32 %v52, %v57
    %v61 = vlaneseq
    %v62 = vshrl.u32 %v61, 7
    %v63 = vsub.s32 0, %v62
    %v64 = vrot.slane %v37, %v63
    %v66 = vadd.f32 %v59, %v64
    %v67 = vpack.c.bf16 %v66, %v66
    %v68 = vld [vmem:[%s3] sm:$0xf]
    %v69 = vld [vmem:[%s3 + $0x4] sm:$0xf]
    %v70 = vld [vmem:[%s3 + $0x8] sm:$0xf]
    %v71 = vld [vmem:[%s3 + $0xc] sm:$0xf]
    %v72 = vld [vmem:[%s3 + $0x10] sm:$0xf]
    %v73 = vld [vmem:[%s3 + $0x14] sm:$0xf]
    %v74 = vld [vmem:[%s3 + $0x18] sm:$0xf]
    %v75 = vld [vmem:[%s3 + $0x1c] sm:$0xf]
    %v76 = vld [vmem:[%s3 + $0x20] sm:$0xf]
    %v77 = vld [vmem:[%s3 + $0x24] sm:$0xf]
    %v78 = vld [vmem:[%s3 + $0x28] sm:$0xf]
    %v79 = vld [vmem:[%s3 + $0x2c] sm:$0xf]
    %v80 = vld [vmem:[%s3 + $0x30] sm:$0xf]
    %v81 = vld [vmem:[%s3 + $0x34] sm:$0xf]
    %v82 = vld [vmem:[%s3 + $0x38] sm:$0xf]
    %v83 = vld [vmem:[%s3 + $0x3c] sm:$0xf]
    %v84 = vld [vmem:[%s4] sm:$0x1]
    %v86 = vlaneseq
    %v87 = vshrl.u32 %v86, 7
    %v88 = vsub.s32 0, %v87
    %v89 = vrot.slane %v84, %v88
    %v107 = vunpack.c.l.b16 %v68
    %v108 = vunpack.c.l.b16 %v69
    %v109 = vunpack.c.l.b16 %v70
    %v110 = vunpack.c.l.b16 %v71
    %v111 = vunpack.c.l.b16 %v72
    %v112 = vunpack.c.l.b16 %v73
    %v113 = vunpack.c.l.b16 %v74
    %v114 = vunpack.c.l.b16 %v75
    %v115 = vunpack.c.l.b16 %v76
    %v116 = vunpack.c.l.b16 %v77
    %v117 = vunpack.c.l.b16 %v78
    %v118 = vunpack.c.l.b16 %v79
    %v119 = vunpack.c.l.b16 %v80
    %v120 = vunpack.c.l.b16 %v81
    %v121 = vunpack.c.l.b16 %v82
    %v122 = vunpack.c.l.b16 %v83
    %v123 = vpack.c.b16 %v108, %v107
    %v124 = vpack.c.b16 %v110, %v109
    %v125 = vpack.c.b16 %v112, %v111
    %v126 = vpack.c.b16 %v114, %v113
    %v127 = vpack.c.b16 %v116, %v115
    %v128 = vpack.c.b16 %v118, %v117
    %v129 = vpack.c.b16 %v120, %v119
    %v130 = vpack.c.b16 %v122, %v121
    %139 = vmatprep.subr.bf16.mxu0 0
    %140 = vmatpush1.bf16.msra.mxu0 %v123
    %141 = vmatprep.subr.bf16.mxu0 0
    %142 = vmatpush1.bf16.msra.mxu0 %v124
    %143 = vmatprep.subr.bf16.mxu0 0
    %144 = vmatpush1.bf16.msra.mxu0 %v125
    %145 = vmatprep.subr.bf16.mxu0 0
    %146 = vmatpush1.bf16.msra.mxu0 %v126
    %147 = vmatprep.subr.bf16.mxu0 0
    %148 = vmatpush1.bf16.msra.mxu0 %v127
    %149 = vmatprep.subr.bf16.mxu0 0
    %150 = vmatpush1.bf16.msra.mxu0 %v128
    %151 = vmatprep.subr.bf16.mxu0 0
    %152 = vmatpush1.bf16.msra.mxu0 %v129
    %153 = vmatprep.subr.bf16.mxu0 0
    %154 = vmatpush1.bf16.msra.mxu0 %v130
    %155 = vmatprep.subr.bf16.mxu0 0
    %156 = vmatpush1.bf16.msra.mxu0 0
    %157 = vmatprep.subr.bf16.mxu0 0
    %158 = vmatpush1.bf16.msra.mxu0 0
    %159 = vmatprep.subr.bf16.mxu0 0
    %160 = vmatpush1.bf16.msra.mxu0 0
    %161 = vmatprep.subr.bf16.mxu0 0
    %162 = vmatpush1.bf16.msra.mxu0 0
    %163 = vmatprep.subr.bf16.mxu0 0
    %164 = vmatpush1.bf16.msra.mxu0 0
    %165 = vmatprep.subr.bf16.mxu0 0
    %166 = vmatpush1.bf16.msra.mxu0 0
    %167 = vmatprep.subr.bf16.mxu0 0
    %168 = vmatpush1.bf16.msra.mxu0 0
    %169 = vmatprep.subr.bf16.mxu0 0
    %170 = vmatpush1.bf16.msra.mxu0 0
    %171 = vmatprep.mubr.bf16.mxu0 0
    %172 = vmatmul.mubr.bf16.gmra.mrb[0].mxu0 %v67
    %v173 = vpop.f32.mrb[0].mxu0
    %v174 = vadd.f32 %v89, %v173
    %v175 = vpop.f32.mrb[0].mxu0
    %v176 = vpop.f32.mrb[0].mxu0
    %v177 = vpop.f32.mrb[0].mxu0
    %178 = vdwg.mxu0
    %v179 = vld [vmem:[%s5] sm:$0x1]
    %v180 = vld [vmem:[%s6] sm:$0x1]
    %v181 = vsel %vm38, %v174, 0.0
    %182 = vadd.xlane.f32.xlu0 %v181
    %v183 = vpop.xlane.xlu0 %182
    %v184 = vmul.f32 %v183, %v42
    %v185 = vsub.f32 %v174, %v184
    %v186 = vmul.f32 %v185, %v185
    %v187 = vsel %vm38, %v186, 0.0
    %188 = vadd.xlane.f32.xlu0 %v187
    %v189 = vpop.xlane.xlu0 %188
    %v190 = vmul.f32 %v189, %v42
    %v191 = vadd.f32 %v190, 1e-05
    %v192 = vrsqrt.pop %v191
    %v193 = vmul.f32 %v185, %v192
    %v195 = vlaneseq
    %v196 = vshrl.u32 %v195, 7
    %v197 = vsub.s32 0, %v196
    %v198 = vrot.slane %v179, %v197
    %v200 = vmul.f32 %v193, %v198
    %v202 = vlaneseq
    %v203 = vshrl.u32 %v202, 7
    %v204 = vsub.s32 0, %v203
    %v205 = vrot.slane %v180, %v204
    %v207 = vadd.f32 %v200, %v205
    %v208 = vld [vmem:[%s7] sm:$0xff]
    %v209 = vld [vmem:[%s8] sm:$0xff]
    %v210 = vadd.f32 %v208, %v209
    %v211 = vlaneseq
    %v212 = vshrl.u32 %v211, 7
    %v213 = vsub.s32 0, %v212
    %v214 = vrot.slane %v207, %v213
    %v215 = vadd.f32 %v210, %v214
    %v216 = vpack.c.bf16 %v215, %v215
    %217 = vst [vmem:[#allocation2] sm:$0xf] %v216
    %s218 = scalar_lea.vmem %s7, 8
    %v219 = vld [vmem:[%s218] sm:$0xff]
    %v220 = vld [vmem:[%s8] sm:$0xff]
    %v221 = vadd.f32 %v219, %v220
    %v222 = vlaneseq
    %v223 = vshrl.u32 %v222, 7
    %v224 = vsub.s32 1, %v223
    %v225 = vrot.slane %v207, %v224
    %v226 = vadd.f32 %v221, %v225
    %v227 = vpack.c.bf16 %v226, %v226
    %s228 = scalar_lea.vmem [#allocation2], 4
    %229 = vst [vmem:[%s228] sm:$0xf] %v227
    // Predicated region
    $region38: #{nanovlm_forward.10} parent=1 // pred_check
      _
    $region39: #{nanovlm_forward.10} parent=1 // pred_check_branch
      %231 = sbr.rel (0) target = $region41
    $region40: #{nanovlm_forward.10} parent=1 // pred_region
      %s233 = ssub.s32 128, 128
      %234 = vsyncadd [#allocation3], %s233
      %s235 = sshll.u32 [#allocation2], 4
      %s236 = int_to_ptr.vmem [resolvable:$true] %s235
      %241 = dma.vmem_to_hbm [thread:$0]  %s236, 128, %s9, [#allocation3], 64, 64, 4
    $region41: #{nanovlm_forward.10} parent=1 // pred_fallthru
      _
    // Predicated region
    $region42: #{nanovlm_forward.10} parent=1 // pred_check
      _
    $region43: #{nanovlm_forward.10} parent=1 // pred_check_branch
      %243 = sbr.rel (0) target = $region45
    $region44: #{nanovlm_forward.10} parent=1 // pred_region
      %244 = dma.done [#allocation3], 128
    $region45: #{nanovlm_forward.10} parent=1 // pred_fallthru
      _
    %245 = vsyncpa [#allocation3], 1

// kernel: nanovlm_forward.7
$region0: #{nanovlm_forward.7}
  #allocation0 [shape = 'u32[]', space=smem, size = 0x4, offset = 0x4, fixed_abs, tag = 'smem constant byte address 0x4 - core index']
  #allocation1 [shape = 'u32[144,128]{1,0:T(1,128)}', space=vmem, size = 0x12000, scoped, tag = 'internal scratch']
  %s0 = inlined_call_operand.vmem [shape: bf16[2,16,192], index: 0, kind: input, shape index: {}]
  %s1 = inlined_call_operand.vmem [shape: bf16[192,128], index: 1, kind: input, shape index: {}]
  %s2 = inlined_call_operand.vmem [shape: f32[1,128], index: 2, kind: input, shape index: {}]
  %s3 = inlined_call_operand.vmem [shape: f32[1,128], index: 3, kind: input, shape index: {}]
  %s4 = inlined_call_operand.vmem [shape: f32[17,128], index: 4, kind: input, shape index: {}]
  %s5 = inlined_call_operand.hbm [shape: bf16[2,17,128], index: 5, kind: output, shape index: {}]
  %s6 = sld [smem:[#allocation0]]
  $region30: #{nanovlm_forward.7} parent=0
    _
  %s8 = ssub.s32 1, %s6
  %s9 = scalar_select 0, %s8, %s6
  $region1: #{nanovlm_forward.7} parent=0
    #allocation2 [shape = 'u8[12288]{0}', space=vmem, size = 0x3000, scoped, tag = 'output window, operand 0, single buffered']
    #allocation3 [shape = 's32[1]{0}', space=sflag, size = 0x4, scoped, tag = 'scoped memory for nanovlm_forward.7']
    %10 = vsyncpa [#allocation3], 0
    // Predicated region
    $region2: #{nanovlm_forward.7} parent=1 // pred_check
      _
    $region3: #{nanovlm_forward.7} parent=1 // pred_check_branch
      %12 = sbr.rel (0) target = $region5
    $region4: #{nanovlm_forward.7} parent=1 // pred_region
      _
    $region5: #{nanovlm_forward.7} parent=1 // pred_fallthru
      _
    // Predicated region
    $region6: #{nanovlm_forward.7} parent=1 // pred_check
      _
    $region7: #{nanovlm_forward.7} parent=1 // pred_check_branch
      %14 = sbr.rel (0) target = $region9
    $region8: #{nanovlm_forward.7} parent=1 // pred_region
      _
    $region9: #{nanovlm_forward.7} parent=1 // pred_fallthru
      _
    // Predicated region
    $region10: #{nanovlm_forward.7} parent=1 // pred_check
      _
    $region11: #{nanovlm_forward.7} parent=1 // pred_check_branch
      %16 = sbr.rel (0) target = $region13
    $region12: #{nanovlm_forward.7} parent=1 // pred_region
      _
    $region13: #{nanovlm_forward.7} parent=1 // pred_fallthru
      _
    // Predicated region
    $region14: #{nanovlm_forward.7} parent=1 // pred_check
      _
    $region15: #{nanovlm_forward.7} parent=1 // pred_check_branch
      %18 = sbr.rel (0) target = $region17
    $region16: #{nanovlm_forward.7} parent=1 // pred_region
      _
    $region17: #{nanovlm_forward.7} parent=1 // pred_fallthru
      _
    // Predicated region
    $region18: #{nanovlm_forward.7} parent=1 // pred_check
      _
    $region19: #{nanovlm_forward.7} parent=1 // pred_check_branch
      %20 = sbr.rel (0) target = $region21
    $region20: #{nanovlm_forward.7} parent=1 // pred_region
      _
    $region21: #{nanovlm_forward.7} parent=1 // pred_fallthru
      _
    %v22 = vld [vmem:[%s0] sm:$0xff]
    %v23 = vld [vmem:[%s0 + $0x8] sm:$0xff]
    %v24 = vld [vmem:[%s1] sm:$0xf]
    %v25 = vld [vmem:[%s1 + $0x4] sm:$0xf]
    %v26 = vld [vmem:[%s1 + $0x8] sm:$0xf]
    %v27 = vld [vmem:[%s1 + $0xc] sm:$0xf]
    %v28 = vld [vmem:[%s1 + $0x10] sm:$0xf]
    %v29 = vld [vmem:[%s1 + $0x14] sm:$0xf]
    %v30 = vld [vmem:[%s1 + $0x18] sm:$0xf]
    %v31 = vld [vmem:[%s1 + $0x1c] sm:$0xf]
    %v32 = vld [vmem:[%s1 + $0x20] sm:$0xf]
    %v33 = vld [vmem:[%s1 + $0x24] sm:$0xf]
    %v34 = vld [vmem:[%s1 + $0x28] sm:$0xf]
    %v35 = vld [vmem:[%s1 + $0x2c] sm:$0xf]
    %v36 = vld [vmem:[%s1 + $0x30] sm:$0xf]
    %v37 = vld [vmem:[%s1 + $0x34] sm:$0xf]
    %v38 = vld [vmem:[%s1 + $0x38] sm:$0xf]
    %v39 = vld [vmem:[%s1 + $0x3c] sm:$0xf]
    %v40 = vld [vmem:[%s1 + $0x40] sm:$0xf]
    %v41 = vld [vmem:[%s1 + $0x44] sm:$0xf]
    %v42 = vld [vmem:[%s1 + $0x48] sm:$0xf]
    %v43 = vld [vmem:[%s1 + $0x4c] sm:$0xf]
    %v44 = vld [vmem:[%s1 + $0x50] sm:$0xf]
    %v45 = vld [vmem:[%s1 + $0x54] sm:$0xf]
    %v46 = vld [vmem:[%s1 + $0x58] sm:$0xf]
    %v47 = vld [vmem:[%s1 + $0x5c] sm:$0xf]
    %v48 = vld [vmem:[%s2] sm:$0x1]
    %v50 = vlaneseq
    %v51 = vshrl.u32 %v50, 7
    %v52 = vsub.s32 0, %v51
    %v53 = vrot.slane %v48, %v52
    %v57 = vunpack.c.l.b16 %v22
    %v58 = vunpack.c.h.b16 %v22
    %v59 = vunpack.c.l.b16 %v23
    %v60 = vunpack.c.h.b16 %v23
    %v61 = vpack.c.b16 %v59, %v57
    %v62 = vpack.c.b16 %v60, %v58
    %v88 = vunpack.c.l.b16 %v24
    %v89 = vunpack.c.l.b16 %v25
    %v90 = vunpack.c.l.b16 %v26
    %v91 = vunpack.c.l.b16 %v27
    %v92 = vunpack.c.l.b16 %v28
    %v93 = vunpack.c.l.b16 %v29
    %v94 = vunpack.c.l.b16 %v30
    %v95 = vunpack.c.l.b16 %v31
    %v96 = vunpack.c.l.b16 %v32
    %v97 = vunpack.c.l.b16 %v33
    %v98 = vunpack.c.l.b16 %v34
    %v99 = vunpack.c.l.b16 %v35
    %v100 = vunpack.c.l.b16 %v36
    %v101 = vunpack.c.l.b16 %v37
    %v102 = vunpack.c.l.b16 %v38
    %v103 = vunpack.c.l.b16 %v39
    %v104 = vunpack.c.l.b16 %v40
    %v105 = vunpack.c.l.b16 %v41
    %v106 = vunpack.c.l.b16 %v42
    %v107 = vunpack.c.l.b16 %v43
    %v108 = vunpack.c.l.b16 %v44
    %v109 = vunpack.c.l.b16 %v45
    %v110 = vunpack.c.l.b16 %v46
    %v111 = vunpack.c.l.b16 %v47
    %v112 = vpack.c.b16 %v89, %v88
    %v113 = vpack.c.b16 %v91, %v90
    %v114 = vpack.c.b16 %v93, %v92
    %v115 = vpack.c.b16 %v95, %v94
    %v116 = vpack.c.b16 %v97, %v96
    %v117 = vpack.c.b16 %v99, %v98
    %v118 = vpack.c.b16 %v101, %v100
    %v119 = vpack.c.b16 %v103, %v102
    %v120 = vpack.c.b16 %v105, %v104
    %v121 = vpack.c.b16 %v107, %v106
    %v122 = vpack.c.b16 %v109, %v108
    %v123 = vpack.c.b16 %v111, %v110
    %vm136 = vcmask 523264
    %v138 = vsel %vm136, %v62, 0
    %140 = vmatprep.subr.bf16.mxu0 0
    %141 = vmatpush1.bf16.msra.mxu0 %v112
    %142 = vmatprep.subr.bf16.mxu0 0
    %143 = vmatpush1.bf16.msra.mxu0 %v113
    %144 = vmatprep.subr.bf16.mxu0 0
    %145 = vmatpush1.bf16.msra.mxu0 %v114
    %146 = vmatprep.subr.bf16.mxu0 0
    %147 = vmatpush1.bf16.msra.mxu0 %v115
    %148 = vmatprep.subr.bf16.mxu0 0
    %149 = vmatpush1.bf16.msra.mxu0 %v116
    %150 = vmatprep.subr.bf16.mxu0 0
    %151 = vmatpush1.bf16.msra.mxu0 %v117
    %152 = vmatprep.subr.bf16.mxu0 0
    %153 = vmatpush1.bf16.msra.mxu0 %v118
    %154 = vmatprep.subr.bf16.mxu0 0
    %155 = vmatpush1.bf16.msra.mxu0 %v119
    %156 = vmatprep.subr.bf16.mxu0 0
    %157 = vmatpush1.bf16.msra.mxu0 %v120
    %158 = vmatprep.subr.bf16.mxu0 0
    %159 = vmatpush1.bf16.msra.mxu0 %v121
    %160 = vmatprep.subr.bf16.mxu0 0
    %161 = vmatpush1.bf16.msra.mxu0 %v122
    %162 = vmatprep.subr.bf16.mxu0 0
    %163 = vmatpush1.bf16.msra.mxu0 %v123
    %164 = vmatprep.subr.bf16.mxu0 0
    %165 = vmatpush1.bf16.msra.mxu0 0
    %166 = vmatprep.subr.bf16.mxu0 0
    %167 = vmatpush1.bf16.msra.mxu0 0
    %168 = vmatprep.subr.bf16.mxu0 0
    %169 = vmatpush1.bf16.msra.mxu0 0
    %170 = vmatprep.subr.bf16.mxu0 0
    %171 = vmatpush1.bf16.msra.mxu0 0
    %172 = vmatprep.mubr.bf16.mxu0 %v138
    %173 = vmatmul.mubr.bf16.gmra.mrb[0].mxu0 %v61
    %v174 = vpop.f32.mrb[0].mxu0
    %v175 = vadd.f32 %v53, %v174
    %v176 = vpop.f32.mrb[0].mxu0
    %v177 = vpop.f32.mrb[0].mxu0
    %v178 = vadd.f32 %v53, %v177
    %v179 = vpop.f32.mrb[0].mxu0
    %180 = vdwg.mxu0
    %v181 = vld [vmem:[%s3] sm:$0x1]
    %vm184 = vcmask 1040384
    %v185 = vrot.slane %v175, 7
    %v186 = vrot.slane %v178, 7
    %v187 = vsel %vm184, %v185, %v186
    %v191 = vsel %vm184, %v181, %v185
    %v192 = vld [vmem:[%s4] sm:$0xff]
    %v193 = vld [vmem:[%s4 + $0x8] sm:$0xff]
    %v194 = vld [vmem:[%s4 + $0x10] sm:$0x1]
    %v195 = vadd.f32 %v191, %v192
    %v196 = vadd.f32 %v187, %v193
    %v197 = vadd.f32 %v186, %v194
    %v198 = vpack.c.bf16 %v196, %v195
    %v199 = vpack.c.bf16 %v197, %v197
    %v202 = vunpack.c.l.b16 %v198
    %v203 = vunpack.c.h.b16 %v198
    %v204 = vunpack.c.l.b16 %v199
    %v205 = vpack.c.b16 %v202, %v202
    %v206 = vpack.c.b16 %v203, %v203
    %v207 = vpack.c.b16 %v204, %v204
    %211 = vst [vmem:[#allocation2] sm:$0xf] %v205
    %212 = vst [vmem:[#allocation2 + $0x4] sm:$0xf] %v206
    %vm213 = vcmask 1040384
    %vm214 = vsmask.f32 256
    %vm215 = vmand %vm213, %vm214
    %v216 = vld [vmem:[#allocation2 + $0x8] sm:$0x1]
    %v217 = vsel %vm215, %v207, %v216
    %218 = vst [vmem:[#allocation2 + $0x8] sm:$0x1] %v217
    %s219 = scalar_lea.vmem %s0, 16
    %v220 = vld [vmem:[%s219] sm:$0xff]
    %v221 = vld [vmem:[%s219 + $0x8] sm:$0xff]
    %v222 = vld [vmem:[%s1] sm:$0xf]
    %v223 = vld [vmem:[%s1 + $0x4] sm:$0xf]
    %v224 = vld [vmem:[%s1 + $0x8] sm:$0xf]
    %v225 = vld [vmem:[%s1 + $0xc] sm:$0xf]
    %v226 = vld [vmem:[%s1 + $0x10] sm:$0xf]
    %v227 = vld [vmem:[%s1 + $0x14] sm:$0xf]
    %v228 = vld [vmem:[%s1 + $0x18] sm:$0xf]
    %v229 = vld [vmem:[%s1 + $0x1c] sm:$0xf]
    %v230 = vld [vmem:[%s1 + $0x20] sm:$0xf]
    %v231 = vld [vmem:[%s1 + $0x24] sm:$0xf]
    %v232 = vld [vmem:[%s1 + $0x28] sm:$0xf]
    %v233 = vld [vmem:[%s1 + $0x2c] sm:$0xf]
    %v234 = vld [vmem:[%s1 + $0x30] sm:$0xf]
    %v235 = vld [vmem:[%s1 + $0x34] sm:$0xf]
    %v236 = vld [vmem:[%s1 + $0x38] sm:$0xf]
    %v237 = vld [vmem:[%s1 + $0x3c] sm:$0xf]
    %v238 = vld [vmem:[%s1 + $0x40] sm:$0xf]
    %v239 = vld [vmem:[%s1 + $0x44] sm:$0xf]
    %v240 = vld [vmem:[%s1 + $0x48] sm:$0xf]
    %v241 = vld [vmem:[%s1 + $0x4c] sm:$0xf]
    %v242 = vld [vmem:[%s1 + $0x50] sm:$0xf]
    %v243 = vld [vmem:[%s1 + $0x54] sm:$0xf]
    %v244 = vld [vmem:[%s1 + $0x58] sm:$0xf]
    %v245 = vld [vmem:[%s1 + $0x5c] sm:$0xf]
    %v246 = vld [vmem:[%s2] sm:$0x1]
    %v248 = vlaneseq
    %v249 = vshrl.u32 %v248, 7
    %v250 = vsub.s32 0, %v249
    %v251 = vrot.slane %v246, %v250
    %v255 = vunpack.c.l.b16 %v220
    %v256 = vunpack.c.h.b16 %v220
    %v257 = vunpack.c.l.b16 %v221
    %v258 = vunpack.c.h.b16 %v221
    %v259 = vpack.c.b16 %v257, %v255
    %v260 = vpack.c.b16 %v258, %v256
    %v286 = vunpack.c.l.b16 %v222
    %v287 = vunpack.c.l.b16 %v223
    %v288 = vunpack.c.l.b16 %v224
    %v289 = vunpack.c.l.b16 %v225
    %v290 = vunpack.c.l.b16 %v226
    %v291 = vunpack.c.l.b16 %v227
    %v292 = vunpack.c.l.b16 %v228
    %v293 = vunpack.c.l.b16 %v229
    %v294 = vunpack.c.l.b16 %v230
    %v295 = vunpack.c.l.b16 %v231
    %v296 = vunpack.c.l.b16 %v232
    %v297 = vunpack.c.l.b16 %v233
    %v298 = vunpack.c.l.b16 %v234
    %v299 = vunpack.c.l.b16 %v235
    %v300 = vunpack.c.l.b16 %v236
    %v301 = vunpack.c.l.b16 %v237
    %v302 = vunpack.c.l.b16 %v238
    %v303 = vunpack.c.l.b16 %v239
    %v304 = vunpack.c.l.b16 %v240
    %v305 = vunpack.c.l.b16 %v241
    %v306 = vunpack.c.l.b16 %v242
    %v307 = vunpack.c.l.b16 %v243
    %v308 = vunpack.c.l.b16 %v244
    %v309 = vunpack.c.l.b16 %v245
    %v310 = vpack.c.b16 %v287, %v286
    %v311 = vpack.c.b16 %v289, %v288
    %v312 = vpack.c.b16 %v291, %v290
    %v313 = vpack.c.b16 %v293, %v292
    %v314 = vpack.c.b16 %v295, %v294
    %v315 = vpack.c.b16 %v297, %v296
    %v316 = vpack.c.b16 %v299, %v298
    %v317 = vpack.c.b16 %v301, %v300
    %v318 = vpack.c.b16 %v303, %v302
    %v319 = vpack.c.b16 %v305, %v304
    %v320 = vpack.c.b16 %v307, %v306
    %v321 = vpack.c.b16 %v309, %v308
    %v335 = vsel %vm136, %v260, 0
    %337 = vmatprep.subr.bf16.mxu0 0
    %338 = vmatpush1.bf16.msra.mxu0 %v310
    %339 = vmatprep.subr.bf16.mxu0 0
    %340 = vmatpush1.bf16.msra.mxu0 %v311
    %341 = vmatprep.subr.bf16.mxu0 0
    %342 = vmatpush1.bf16.msra.mxu0 %v312
    %343 = vmatprep.subr.bf16.mxu0 0
    %344 = vmatpush1.bf16.msra.mxu0 %v313
    %345 = vmatprep.subr.bf16.mxu0 0
    %346 = vmatpush1.bf16.msra.mxu0 %v314
    %347 = vmatprep.subr.bf16.mxu0 0
    %348 = vmatpush1.bf16.msra.mxu0 %v315
    %349 = vmatprep.subr.bf16.mxu0 0
    %350 = vmatpush1.bf16.msra.mxu0 %v316
    %351 = vmatprep.subr.bf16.mxu0 0
    %352 = vmatpush1.bf16.msra.mxu0 %v317
    %353 = vmatprep.subr.bf16.mxu0 0
    %354 = vmatpush1.bf16.msra.mxu0 %v318
    %355 = vmatprep.subr.bf16.mxu0 0
    %356 = vmatpush1.bf16.msra.mxu0 %v319
    %357 = vmatprep.subr.bf16.mxu0 0
    %358 = vmatpush1.bf16.msra.mxu0 %v320
    %359 = vmatprep.subr.bf16.mxu0 0
    %360 = vmatpush1.bf16.msra.mxu0 %v321
    %361 = vmatprep.subr.bf16.mxu0 0
    %362 = vmatpush1.bf16.msra.mxu0 0
    %363 = vmatprep.subr.bf16.mxu0 0
    %364 = vmatpush1.bf16.msra.mxu0 0
    %365 = vmatprep.subr.bf16.mxu0 0
    %366 = vmatpush1.bf16.msra.mxu0 0
    %367 = vmatprep.subr.bf16.mxu0 0
    %368 = vmatpush1.bf16.msra.mxu0 0
    %369 = vmatprep.mubr.bf16.mxu0 %v335
    %370 = vmatmul.mubr.bf16.gmra.mrb[0].mxu0 %v259
    %v371 = vpop.f32.mrb[0].mxu0
    %v372 = vadd.f32 %v251, %v371
    %v373 = vpop.f32.mrb[0].mxu0
    %v374 = vpop.f32.mrb[0].mxu0
    %v375 = vadd.f32 %v251, %v374
    %v376 = vpop.f32.mrb[0].mxu0
    %377 = vdwg.mxu0
    %v378 = vld [vmem:[%s3] sm:$0x1]
    %v381 = vrot.slane %v372, 7
    %v382 = vrot.slane %v375, 7
    %v383 = vsel %vm184, %v381, %v382
    %v387 = vsel %vm184, %v378, %v381
    %v388 = vld [vmem:[%s4] sm:$0xff]
    %v389 = vld [vmem:[%s4 + $0x8] sm:$0xff]
    %v390 = vld [vmem:[%s4 + $0x10] sm:$0x1]
    %v391 = vadd.f32 %v387, %v388
    %v392 = vadd.f32 %v383, %v389
    %v393 = vadd.f32 %v382, %v390
    %v394 = vpack.c.bf16 %v392, %v391
    %v395 = vpack.c.bf16 %v393, %v393
    %v398 = vunpack.c.l.b16 %v394
    %v399 = vunpack.c.h.b16 %v394
    %v400 = vunpack.c.l.b16 %v395
    %v401 = vpack.c.b16 %v398, %v398
    %v402 = vpack.c.b16 %v399, %v399
    %v403 = vpack.c.b16 %v400, %v400
    %s407 = scalar_lea.vmem [#allocation2], 12
    %408 = vst [vmem:[%s407] sm:$0xf] %v401
    %409 = vst [vmem:[%s407 + $0x4] sm:$0xf] %v402
    %v410 = vld [vmem:[%s407 + $0x8] sm:$0x1]
    %v411 = vsel %vm215, %v403, %v410
    %412 = vst [vmem:[%s407 + $0x8] sm:$0x1] %v411
    // Predicated region
    $region22: #{nanovlm_forward.7} parent=1 // pred_check
      _
    $region23: #{nanovlm_forward.7} parent=1 // pred_check_branch
      %414 = sbr.rel (0) target = $region25
    $region24: #{nanovlm_forward.7} parent=1 // pred_region
      %s416 = ssub.s32 384, 384
      %417 = vsyncadd [#allocation3], %s416
      %s418 = sshll.u32 [#allocation2], 4
      %s419 = int_to_ptr.vmem [resolvable:$true] %s418
      %424 = dma.vmem_to_hbm [thread:$0]  %s419, 384, %s5, [#allocation3], 64, 64, 4
    $region25: #{nanovlm_forward.7} parent=1 // pred_fallthru
      _
    // Predicated region
    $region26: #{nanovlm_forward.7} parent=1 // pred_check
      _
    $region27: #{nanovlm_forward.7} parent=1 // pred_check_branch
      %426 = sbr.rel (0) target = $region29
    $region28: #{nanovlm_forward.7} parent=1 // pred_region
      %427 = dma.done [#allocation3], 384
    $region29: #{nanovlm_forward.7} parent=1 // pred_fallthru
      _
    %428 = vsyncpa [#allocation3], 1

// kernel: nanovlm_forward.13
$region0: #{nanovlm_forward.13}
  #allocation0 [shape = 'u32[]', space=smem, size = 0x4, offset = 0x4, fixed_abs, tag = 'smem constant byte address 0x4 - core index']
  #allocation1 [shape = 'u32[144,128]{1,0:T(1,128)}', space=vmem, size = 0x12000, scoped, tag = 'internal scratch']
  %s0 = inlined_call_operand.hbm [shape: bf16[16,128], index: 0, kind: input, shape index: {}]
  %s1 = inlined_call_operand.vmem [shape: f32[1,128], index: 1, kind: input, shape index: {}]
  %s2 = inlined_call_operand.vmem [shape: f32[1,128], index: 2, kind: input, shape index: {}]
  %s3 = inlined_call_operand.hbm [shape: bf16[128,512], index: 3, kind: input, shape index: {}]
  %s4 = inlined_call_operand.hbm [shape: f32[1,512], index: 4, kind: input, shape index: {}]
  %s5 = inlined_call_operand.hbm [shape: f32[16,512], index: 5, kind: output, shape index: {}]
  %s6 = sld [smem:[#allocation0]]
  $region42: #{nanovlm_forward.13} parent=0
    _
  %s8 = ssub.s32 1, %s6
  %s9 = scalar_select 0, %s8, %s6
  $region1: #{nanovlm_forward.13} parent=0
    #allocation2 [shape = 'u8[4096]{0}', space=vmem, size = 0x1000, scoped, tag = 'input window, operand 0, single buffered']
    #allocation3 [shape = 's32[1]{0}', space=sflag, size = 0x4, scoped, tag = 'scoped memory for nanovlm_forward.13']
    #allocation4 [shape = 's32[1]{0}', space=sflag, size = 0x4, scoped, tag = 'scoped memory for nanovlm_forward.13']
    #allocation5 [shape = 'u8[131072]{0}', space=vmem, size = 0x20000, scoped, tag = 'input window, operand 3, single buffered']
    #allocation6 [shape = 's32[1]{0}', space=sflag, size = 0x4, scoped, tag = 'scoped memory for nanovlm_forward.13']
    #allocation7 [shape = 'u8[2048]{0}', space=vmem, size = 0x800, scoped, tag = 'input window, operand 4, single buffered']
    #allocation8 [shape = 'u8[32768]{0}', space=vmem, size = 0x8000, scoped, tag = 'output window, operand 0, single buffered']
    %10 = vsyncpa [#allocation3], 0
    %11 = vsyncpa [#allocation6], 0
    %12 = vsyncpa [#allocation4], 0
    // Predicated region
    $region2: #{nanovlm_forward.13} parent=1 // pred_check
      _
    $region3: #{nanovlm_forward.13} parent=1 // pred_check_branch
      %14 = sbr.rel (0) target = $region5
    $region4: #{nanovlm_forward.13} parent=1 // pred_region
      %s16 = ssub.s32 128, 128
      %17 = vsyncadd [#allocation3], %s16
      %s18 = sshll.u32 [#allocation2], 4
      %s19 = int_to_ptr.vmem [resolvable:$true] %s18
      %24 = dma.hbm_to_vmem [thread:$0]  %s0, 128, %s19, [#allocation3], 64, 64, 4
    $region5: #{nanovlm_forward.13} parent=1 // pred_fallthru
      _
    // Predicated region
    $region6: #{nanovlm_forward.13} parent=1 // pred_check
      _
    $region7: #{nanovlm_forward.13} parent=1 // pred_check_branch
      %26 = sbr.rel (0) target = $region9
    $region8: #{nanovlm_forward.13} parent=1 // pred_region
      _
    $region9: #{nanovlm_forward.13} parent=1 // pred_fallthru
      _
    // Predicated region
    $region10: #{nanovlm_forward.13} parent=1 // pred_check
      _
    $region11: #{nanovlm_forward.13} parent=1 // pred_check_branch
      %28 = sbr.rel (0) target = $region13
    $region12: #{nanovlm_forward.13} parent=1 // pred_region
      _
    $region13: #{nanovlm_forward.13} parent=1 // pred_fallthru
      _
    // Predicated region
    $region14: #{nanovlm_forward.13} parent=1 // pred_check
      _
    $region15: #{nanovlm_forward.13} parent=1 // pred_check_branch
      %30 = sbr.rel (0) target = $region17
    $region16: #{nanovlm_forward.13} parent=1 // pred_region
      %s32 = ssub.s32 4096, 4096
      %33 = vsyncadd [#allocation6], %s32
      %s34 = sshll.u32 [#allocation5], 4
      %s35 = int_to_ptr.vmem [resolvable:$true] %s34
      %40 = dma.hbm_to_vmem [thread:$0]  %s3, 4096, %s35, [#allocation6], 256, 256, 16
    $region17: #{nanovlm_forward.13} parent=1 // pred_fallthru
      _
    // Predicated region
    $region18: #{nanovlm_forward.13} parent=1 // pred_check
      _
    $region19: #{nanovlm_forward.13} parent=1 // pred_check_branch
      %42 = sbr.rel (0) target = $region21
    $region20: #{nanovlm_forward.13} parent=1 // pred_region
      %s44 = ssub.s32 64, 64
      %45 = vsyncadd [#allocation6], %s44
      %s47 = sshll.u32 [#allocation7], 4
      %s48 = int_to_ptr.vmem [resolvable:$true] %s47
      %50 = dma.hbm_to_vmem [thread:$0]  %s4, 64, %s48, [#allocation6]
    $region21: #{nanovlm_forward.13} parent=1 // pred_fallthru
      _
    // Predicated region
    $region22: #{nanovlm_forward.13} parent=1 // pred_check
      _
    $region23: #{nanovlm_forward.13} parent=1 // pred_check_branch
      %52 = sbr.rel (0) target = $region25
    $region24: #{nanovlm_forward.13} parent=1 // pred_region
      %53 = dma.done [#allocation3], 128
    $region25: #{nanovlm_forward.13} parent=1 // pred_fallthru
      _
    // Predicated region
    $region26: #{nanovlm_forward.13} parent=1 // pred_check
      _
    $region27: #{nanovlm_forward.13} parent=1 // pred_check_branch
      %55 = sbr.rel (0) target = $region29
    $region28: #{nanovlm_forward.13} parent=1 // pred_region
      %56 = dma.done [#allocation6], 4096
    $region29: #{nanovlm_forward.13} parent=1 // pred_fallthru
      _
    // Predicated region
    $region30: #{nanovlm_forward.13} parent=1 // pred_check
      _
    $region31: #{nanovlm_forward.13} parent=1 // pred_check_branch
      %58 = sbr.rel (0) target = $region33
    $region32: #{nanovlm_forward.13} parent=1 // pred_region
      %59 = dma.done [#allocation6], 64
    $region33: #{nanovlm_forward.13} parent=1 // pred_fallthru
      _
    %v61 = vld [vmem:[#allocation2] sm:$0xf]
    %v62 = vld [vmem:[#allocation2 + $0x4] sm:$0xf]
    %v63 = vunpack.c.l.bf16 %v61
    %v64 = vunpack.c.l.bf16 %v62
    %65 = vadd.xlane.f32.xlu0 %v63
    %v66 = vpop.xlane.xlu0 %65
    %67 = vadd.xlane.f32.xlu0 %v64
    %v68 = vpop.xlane.xlu0 %67
    %v69 = vrcp.pop 128.0
    %v70 = vmul.f32 %v66, %v69
    %v71 = vmul.f32 %v68, %v69
    %v72 = vsub.f32 %v63, %v70
    %v73 = vsub.f32 %v64, %v71
    %v74 = vmul.f32 %v72, %v72
    %v75 = vmul.f32 %v73, %v73
    %76 = vadd.xlane.f32.xlu0 %v74
    %v77 = vpop.xlane.xlu0 %76
    %78 = vadd.xlane.f32.xlu0 %v75
    %v79 = vpop.xlane.xlu0 %78
    %v80 = vmul.f32 %v77, %v69
    %v81 = vmul.f32 %v79, %v69
    %v82 = vadd.f32 %v80, 1e-05
    %v83 = vadd.f32 %v81, 1e-05
    %v84 = vrsqrt.pop %v82
    %v85 = vrsqrt.pop %v83
    %v86 = vmul.f32 %v72, %v84
    %v87 = vmul.f32 %v73, %v85
    %v88 = vld [vmem:[%s1] sm:$0x1]
    %v90 = vlaneseq
    %v91 = vshrl.u32 %v90, 7
    %v92 = vsub.s32 0, %v91
    %v93 = vrot.slane %v88, %v92
    %v95 = vmul.f32 %v86, %v93
    %v96 = vmul.f32 %v87, %v93
    %v97 = vld [vmem:[%s2] sm:$0x1]
    %v99 = vlaneseq
    %v100 = vshrl.u32 %v99, 7
    %v101 = vsub.s32 0, %v100
    %v102 = vrot.slane %v97, %v101
    %v104 = vadd.f32 %v95, %v102
    %v105 = vadd.f32 %v96, %v102
    %v106 = vpack.c.bf16 %v105, %v104
    %v107 = vld [vmem:[#allocation5] sm:$0xff]
    %v108 = vld [vmem:[#allocation5 + $0x8] sm:$0xff]
    %v109 = vld [vmem:[#allocation5 + $0x10] sm:$0xff]
    %v110 = vld [vmem:[#allocation5 + $0x18] sm:$0xff]
    %v111 = vld [vmem:[#allocation5 + $0x20] sm:$0xff]
    %v112 = vld [vmem:[#allocation5 + $0x28] sm:$0xff]
    %v113 = vld [vmem:[#allocation5 + $0x30] sm:$0xff]
    %v114 = vld [vmem:[#allocation5 + $0x38] sm:$0xff]
    %v115 = vld [vmem:[#allocation5 + $0x40] sm:$0xff]
    %v116 = vld [vmem:[#allocation5 + $0x48] sm:$0xff]
    %v117 = vld [vmem:[#allocation5 + $0x50] sm:$0xff]
    %v118 = vld [vmem:[#allocation5 + $0x58] sm:$0xff]
    %v119 = vld [vmem:[#allocation5 + $0x60] sm:$0xff]
    %v120 = vld [vmem:[#allocation5 + $0x68] sm:$0xff]
    %v121 = vld [vmem:[#allocation5 + $0x70] sm:$0xff]
    %v122 = vld [vmem:[#allocation5 + $0x78] sm:$0xff]
    %v123 = vld [vmem:[#allocation5 + $0x80] sm:$0xff]
    %v124 = vld [vmem:[#allocation5 + $0x88] sm:$0xff]
    %v125 = vld [vmem:[#allocation5 + $0x90] sm:$0xff]
    %v126 = vld [vmem:[#allocation5 + $0x98] sm:$0xff]
    %v127 = vld [vmem:[#allocation5 + $0xa0] sm:$0xff]
    %v128 = vld [vmem:[#allocation5 + $0xa8] sm:$0xff]
    %v129 = vld [vmem:[#allocation5 + $0xb0] sm:$0xff]
    %v130 = vld [vmem:[#allocation5 + $0xb8] sm:$0xff]
    %v131 = vld [vmem:[#allocation5 + $0xc0] sm:$0xff]
    %v132 = vld [vmem:[#allocation5 + $0xc8] sm:$0xff]
    %v133 = vld [vmem:[#allocation5 + $0xd0] sm:$0xff]
    %v134 = vld [vmem:[#allocation5 + $0xd8] sm:$0xff]
    %v135 = vld [vmem:[#allocation5 + $0xe0] sm:$0xff]
    %v136 = vld [vmem:[#allocation5 + $0xe8] sm:$0xff]
    %v137 = vld [vmem:[#allocation5 + $0xf0] sm:$0xff]
    %v138 = vld [vmem:[#allocation5 + $0xf8] sm:$0xff]
    %v139 = vld [vmem:[#allocation7] sm:$0xf]
    %v141 = vlaneseq
    %v142 = vshrl.u32 %v141, 7
    %v143 = vsub.s32 0, %v142
    %v144 = vrot.slane %v139, %v143
    %v145 = vlaneseq
    %v146 = vshrl.u32 %v145, 7
    %v147 = vsub.s32 1, %v146
    %v148 = vrot.slane %v139, %v147
    %v149 = vlaneseq
    %v150 = vshrl.u32 %v149, 7
    %v151 = vsub.s32 2, %v150
    %v152 = vrot.slane %v139, %v151
    %v153 = vlaneseq
    %v154 = vshrl.u32 %v153, 7
    %v155 = vsub.s32 3, %v154
    %v156 = vrot.slane %v139, %v155
    %v193 = vunpack.c.l.b16 %v107
    %v194 = vunpack.c.h.b16 %v107
    %v195 = vunpack.c.l.b16 %v108
    %v196 = vunpack.c.h.b16 %v108
    %v197 = vunpack.c.l.b16 %v109
    %v198 = vunpack.c.h.b16 %v109
    %v199 = vunpack.c.l.b16 %v110
    %v200 = vunpack.c.h.b16 %v110
    %v201 = vunpack.c.l.b16 %v111
    %v202 = vunpack.c.h.b16 %v111
    %v203 = vunpack.c.l.b16 %v112
    %v204 = vunpack.c.h.b16 %v112
    %v205 = vunpack.c.l.b16 %v113
    %v206 = vunpack.c.h.b16 %v113
    %v207 = vunpack.c.l.b16 %v114
    %v208 = vunpack.c.h.b16 %v114
    %v209 = vunpack.c.l.b16 %v115
    %v210 = vunpack.c.h.b16 %v115
    %v211 = vunpack.c.l.b16 %v116
    %v212 = vunpack.c.h.b16 %v116
    %v213 = vunpack.c.l.b16 %v117
    %v214 = vunpack.c.h.b16 %v117
    %v215 = vunpack.c.l.b16 %v118
    %v216 = vunpack.c.h.b16 %v118
    %v217 = vunpack.c.l.b16 %v119
    %v218 = vunpack.c.h.b16 %v119
    %v219 = vunpack.c.l.b16 %v120
    %v220 = vunpack.c.h.b16 %v120
    %v221 = vunpack.c.l.b16 %v121
    %v222 = vunpack.c.h.b16 %v121
    %v223 = vunpack.c.l.b16 %v122
    %v224 = vunpack.c.h.b16 %v122
    %v225 = vunpack.c.l.b16 %v123
    %v226 = vunpack.c.h.b16 %v123
    %v227 = vunpack.c.l.b16 %v124
    %v228 = vunpack.c.h.b16 %v124
    %v229 = vunpack.c.l.b16 %v125
    %v230 = vunpack.c.h.b16 %v125
    %v231 = vunpack.c.l.b16 %v126
    %v232 = vunpack.c.h.b16 %v126
    %v233 = vunpack.c.l.b16 %v127
    %v234 = vunpack.c.h.b16 %v127
    %v235 = vunpack.c.l.b16 %v128
    %v236 = vunpack.c.h.b16 %v128
    %v237 = vunpack.c.l.b16 %v129
    %v238 = vunpack.c.h.b16 %v129
    %v239 = vunpack.c.l.b16 %v130
    %v240 = vunpack.c.h.b16 %v130
    %v241 = vunpack.c.l.b16 %v131
    %v242 = vunpack.c.h.b16 %v131
    %v243 = vunpack.c.l.b16 %v132
    %v244 = vunpack.c.h.b16 %v132
    %v245 = vunpack.c.l.b16 %v133
    %v246 = vunpack.c.h.b16 %v133
    %v247 = vunpack.c.l.b16 %v134
    %v248 = vunpack.c.h.b16 %v134
    %v249 = vunpack.c.l.b16 %v135
    %v250 = vunpack.c.h.b16 %v135
    %v251 = vunpack.c.l.b16 %v136
    %v252 = vunpack.c.h.b16 %v136
    %v253 = vunpack.c.l.b16 %v137
    %v254 = vunpack.c.h.b16 %v137
    %v255 = vunpack.c.l.b16 %v138
    %v256 = vunpack.c.h.b16 %v138
    %v257 = vpack.c.b16 %v197, %v193
    %v258 = vpack.c.b16 %v198, %v194
    %v259 = vpack.c.b16 %v199, %v195
    %v260 = vpack.c.b16 %v200, %v196
    %v261 = vpack.c.b16 %v205, %v201
    %v262 = vpack.c.b16 %v206, %v202
    %v263 = vpack.c.b16 %v207, %v203
    %v264 = vpack.c.b16 %v208, %v204
    %v265 = vpack.c.b16 %v213, %v209
    %v266 = vpack.c.b16 %v214, %v210
    %v267 = vpack.c.b16 %v215, %v211
    %v268 = vpack.c.b16 %v216, %v212
    %v269 = vpack.c.b16 %v221, %v217
    %v270 = vpack.c.b16 %v222, %v218
    %v271 = vpack.c.b16 %v223, %v219
    %v272 = vpack.c.b16 %v224, %v220
    %v273 = vpack.c.b16 %v229, %v225
    %v274 = vpack.c.b16 %v230, %v226
    %v275 = vpack.c.b16 %v231, %v227
    %v276 = vpack.c.b16 %v232, %v228
    %v277 = vpack.c.b16 %v237, %v233
    %v278 = vpack.c.b16 %v238, %v234
    %v279 = vpack.c.b16 %v239, %v235
    %v280 = vpack.c.b16 %v240, %v236
    %v281 = vpack.c.b16 %v245, %v241
    %v282 = vpack.c.b16 %v246, %v242
    %v283 = vpack.c.b16 %v247, %v243
    %v284 = vpack.c.b16 %v248, %v244
    %v285 = vpack.c.b16 %v253, %v249
    %v286 = vpack.c.b16 %v254, %v250
    %v287 = vpack.c.b16 %v255, %v251
    %v288 = vpack.c.b16 %v256, %v252
    %321 = vmatprep.subr.bf16.mxu0 %v258
    %322 = vmatpush1.bf16.msra.mxu0 %v257
    %323 = vmatprep.subr.bf16.mxu0 %v262
    %324 = vmatpush1.bf16.msra.mxu0 %v261
    %325 = vmatprep.subr.bf16.mxu0 %v266
    %326 = vmatpush1.bf16.msra.mxu0 %v265
    %327 = vmatprep.subr.bf16.mxu0 %v270
    %328 = vmatpush1.bf16.msra.mxu0 %v269
    %329 = vmatprep.subr.bf16.mxu0 %v274
    %330 = vmatpush1.bf16.msra.mxu0 %v273
    %331 = vmatprep.subr.bf16.mxu0 %v278
    %332 = vmatpush1.bf16.msra.mxu0 %v277
    %333 = vmatprep.subr.bf16.mxu0 %v282
    %334 = vmatpush1.bf16.msra.mxu0 %v281
    %335 = vmatprep.subr.bf16.mxu0 %v286
    %336 = vmatpush1.bf16.msra.mxu0 %v285
    %337 = vmatprep.subr.bf16.mxu0 0
    %338 = vmatpush1.bf16.msra.mxu0 0
    %339 = vmatprep.subr.bf16.mxu0 0
    %340 = vmatpush1.bf16.msra.mxu0 0
    %341 = vmatprep.subr.bf16.mxu0 0
    %342 = vmatpush1.bf16.msra.mxu0 0
    %343 = vmatprep.subr.bf16.mxu0 0
    %344 = vmatpush1.bf16.msra.mxu0 0
    %345 = vmatprep.subr.bf16.mxu0 0
    %346 = vmatpush1.bf16.msra.mxu0 0
    %347 = vmatprep.subr.bf16.mxu0 0
    %348 = vmatpush1.bf16.msra.mxu0 0
    %349 = vmatprep.subr.bf16.mxu0 0
    %350 = vmatpush1.bf16.msra.mxu0 0
    %351 = vmatprep.subr.bf16.mxu0 0
    %352 = vmatpush1.bf16.msra.mxu0 0
    %353 = vmatprep.mubr.bf16.mxu0 0
    %354 = vmatmul.mubr.bf16.gmra.mrb[0].mxu0 %v106
    %v355 = vpop.f32.mrb[0].mxu0
    %v356 = vadd.f32 %v144, %v355
    %v357 = vpop.f32.mrb[0].mxu0
    %v358 = vadd.f32 %v148, %v357
    %v359 = vpop.f32.mrb[0].mxu0
    %v360 = vadd.f32 %v144, %v359
    %v361 = vpop.f32.mrb[0].mxu0
    %v362 = vadd.f32 %v148, %v361
    %363 = vdwg.mxu0
    %364 = vmatprep.subr.bf16.mxu0 %v260
    %365 = vmatpush1.bf16.msra.mxu0 %v259
    %366 = vmatprep.subr.bf16.mxu0 %v264
    %367 = vmatpush1.bf16.msra.mxu0 %v263
    %368 = vmatprep.subr.bf16.mxu0 %v268
    %369 = vmatpush1.bf16.msra.mxu0 %v267
    %370 = vmatprep.subr.bf16.mxu0 %v272
    %371 = vmatpush1.bf16.msra.mxu0 %v271
    %372 = vmatprep.subr.bf16.mxu0 %v276
    %373 = vmatpush1.bf16.msra.mxu0 %v275
    %374 = vmatprep.subr.bf16.mxu0 %v280
    %375 = vmatpush1.bf16.msra.mxu0 %v279
    %376 = vmatprep.subr.bf16.mxu0 %v284
    %377 = vmatpush1.bf16.msra.mxu0 %v283
    %378 = vmatprep.subr.bf16.mxu0 %v288
    %379 = vmatpush1.bf16.msra.mxu0 %v287
    %380 = vmatprep.subr.bf16.mxu0 0
    %381 = vmatpush1.bf16.msra.mxu0 0
    %382 = vmatprep.subr.bf16.mxu0 0
    %383 = vmatpush1.bf16.msra.mxu0 0
    %384 = vmatprep.subr.bf16.mxu0 0
    %385 = vmatpush1.bf16.msra.mxu0 0
    %386 = vmatprep.subr.bf16.mxu0 0
    %387 = vmatpush1.bf16.msra.mxu0 0
    %388 = vmatprep.subr.bf16.mxu0 0
    %389 = vmatpush1.bf16.msra.mxu0 0
    %390 = vmatprep.subr.bf16.mxu0 0
    %391 = vmatpush1.bf16.msra.mxu0 0
    %392 = vmatprep.subr.bf16.mxu0 0
    %393 = vmatpush1.bf16.msra.mxu0 0
    %394 = vmatprep.subr.bf16.mxu0 0
    %395 = vmatpush1.bf16.msra.mxu0 0
    %396 = vmatprep.mubr.bf16.mxu0 0
    %397 = vmatmul.mubr.bf16.gmra.mrb[0].mxu0 %v106
    %v398 = vpop.f32.mrb[0].mxu0
    %v399 = vadd.f32 %v152, %v398
    %v400 = vpop.f32.mrb[0].mxu0
    %v401 = vadd.f32 %v156, %v400
    %v402 = vpop.f32.mrb[0].mxu0
    %v403 = vadd.f32 %v152, %v402
    %v404 = vpop.f32.mrb[0].mxu0
    %v405 = vadd.f32 %v156, %v404
    %406 = vdwg.mxu0
    %407 = vst [vmem:[#allocation8] sm:$0xff] %v356
    %408 = vst [vmem:[#allocation8 + $0x8] sm:$0xff] %v358
    %409 = vst [vmem:[#allocation8 + $0x10] sm:$0xff] %v399
    %410 = vst [vmem:[#allocation8 + $0x18] sm:$0xff] %v401
    %411 = vst [vmem:[#allocation8 + $0x20] sm:$0xff] %v360
    %412 = vst [vmem:[#allocation8 + $0x28] sm:$0xff] %v362
    %413 = vst [vmem:[#allocation8 + $0x30] sm:$0xff] %v403
    %414 = vst [vmem:[#allocation8 + $0x38] sm:$0xff] %v405
    // Predicated region
    $region34: #{nanovlm_forward.13} parent=1 // pred_check
      _
    $region35: #{nanovlm_forward.13} parent=1 // pred_check_branch
      %416 = sbr.rel (0) target = $region37
    $region36: #{nanovlm_forward.13} parent=1 // pred_region
      %s418 = ssub.s32 1024, 1024
      %419 = vsyncadd [#allocation4], %s418
      %s420 = sshll.u32 [#allocation8], 4
      %s421 = int_to_ptr.vmem [resolvable:$true] %s420
      %426 = dma.vmem_to_hbm [thread:$0]  %s421, 1024, %s5, [#allocation4], 512, 512, 32
    $region37: #{nanovlm_forward.13} parent=1 // pred_fallthru
      _
    // Predicated region
    $region38: #{nanovlm_forward.13} parent=1 // pred_check
      _
    $region39: #{nanovlm_forward.13} parent=1 // pred_check_branch
      %428 = sbr.rel (0) target = $region41
    $region40: #{nanovlm_forward.13} parent=1 // pred_region
      %429 = dma.done [#allocation4], 1024
    $region41: #{nanovlm_forward.13} parent=1 // pred_fallthru
      _
    %430 = vsyncpa [#allocation3], 1
    %431 = vsyncpa [#allocation6], 1
    %432 = vsyncpa [#allocation4], 1

// kernel: nanovlm_forward.11
$region0: #{nanovlm_forward.11}
  #allocation0 [shape = 'u32[]', space=smem, size = 0x4, offset = 0x4, fixed_abs, tag = 'smem constant byte address 0x4 - core index']
  #allocation1 [shape = 'u32[144,128]{1,0:T(1,128)}', space=vmem, size = 0x12000, scoped, tag = 'internal scratch']
  %s0 = inlined_call_operand.hbm [shape: bf16[2,8,128], index: 0, kind: input, shape index: {}]
  %s1 = inlined_call_operand.hbm [shape: f32[1,128], index: 1, kind: input, shape index: {}]
  %s2 = inlined_call_operand.hbm [shape: f32[1,128], index: 2, kind: input, shape index: {}]
  %s3 = inlined_call_operand.hbm [shape: bf16[128,128], index: 3, kind: input, shape index: {}]
  %s4 = inlined_call_operand.hbm [shape: f32[1,128], index: 4, kind: input, shape index: {}]
  %s5 = inlined_call_operand.hbm [shape: bf16[128,128], index: 5, kind: input, shape index: {}]
  %s6 = inlined_call_operand.hbm [shape: f32[1,128], index: 6, kind: input, shape index: {}]
  %s7 = inlined_call_operand.hbm [shape: bf16[128,128], index: 7, kind: input, shape index: {}]
  %s8 = inlined_call_operand.hbm [shape: f32[1,128], index: 8, kind: input, shape index: {}]
  %s9 = inlined_call_operand.hbm [shape: bf16[128,128], index: 9, kind: input, shape index: {}]
  %s10 = inlined_call_operand.hbm [shape: f32[1,128], index: 10, kind: input, shape index: {}]
  %s11 = inlined_call_operand.hbm [shape: f32[1,128], index: 11, kind: input, shape index: {}]
  %s12 = inlined_call_operand.hbm [shape: f32[1,128], index: 12, kind: input, shape index: {}]
  %s13 = inlined_call_operand.hbm [shape: bf16[128,512], index: 13, kind: input, shape index: {}]
  %s14 = inlined_call_operand.hbm [shape: f32[1,512], index: 14, kind: input, shape index: {}]
  %s15 = inlined_call_operand.hbm [shape: bf16[512,128], index: 15, kind: input, shape index: {}]
  %s16 = inlined_call_operand.hbm [shape: f32[1,128], index: 16, kind: input, shape index: {}]
  %s17 = inlined_call_operand.hbm [shape: bf16[2,8,128], index: 17, kind: output, shape index: {}]
  %s18 = sld [smem:[#allocation0]]
  $region146: #{nanovlm_forward.11} parent=0
    _
  %s20 = ssub.s32 1, %s18
  %s21 = scalar_select 0, %s20, %s18
  $region1: #{nanovlm_forward.11} parent=0
    #allocation2 [shape = 'u8[4096]{0}', space=vmem, size = 0x1000, scoped, tag = 'input window, operand 0, single buffered']
    #allocation3 [shape = 's32[1]{0}', space=sflag, size = 0x4, scoped, tag = 'scoped memory for nanovlm_forward.11']
    #allocation4 [shape = 's32[1]{0}', space=sflag, size = 0x4, scoped, tag = 'scoped memory for nanovlm_forward.11']
    #allocation5 [shape = 'u8[512]{0}', space=vmem, size = 0x400, scoped, tag = 'input window, operand 1, single buffered']
    #allocation6 [shape = 's32[1]{0}', space=sflag, size = 0x4, scoped, tag = 'scoped memory for nanovlm_forward.11']
    #allocation7 [shape = 'u8[512]{0}', space=vmem, size = 0x400, scoped, tag = 'input window, operand 2, single buffered']
    #allocation8 [shape = 'u8[32768]{0}', space=vmem, size = 0x8000, scoped, tag = 'input window, operand 3, single buffered']
    #allocation9 [shape = 's32[1]{0}', space=sflag, size = 0x4, scoped, tag = 'scoped memory for nanovlm_forward.11']
    #allocation10 [shape = 'u8[512]{0}', space=vmem, size = 0x400, scoped, tag = 'input window, operand 4, single buffered']
    #allocation11 [shape = 'u8[32768]{0}', space=vmem, size = 0x8000, scoped, tag = 'input window, operand 5, single buffered']
    #allocation12 [shape = 's32[1]{0}', space=sflag, size = 0x4, scoped, tag = 'scoped memory for nanovlm_forward.11']
    #allocation13 [shape = 'u8[512]{0}', space=vmem, size = 0x400, scoped, tag = 'input window, operand 6, single buffered']
    #allocation14 [shape = 'u8[32768]{0}', space=vmem, size = 0x8000, scoped, tag = 'input window, operand 7, single buffered']
    #allocation15 [shape = 's32[1]{0}', space=sflag, size = 0x4, scoped, tag = 'scoped memory for nanovlm_forward.11']
    #allocation16 [shape = 'u8[512]{0}', space=vmem, size = 0x400, scoped, tag = 'input window, operand 8, single buffered']
    #allocation17 [shape = 'u8[32768]{0}', space=vmem, size = 0x8000, scoped, tag = 'input window, operand 9, single buffered']
    #allocation18 [shape = 's32[1]{0}', space=sflag, size = 0x4, scoped, tag = 'scoped memory for nanovlm_forward.11']
    #allocation19 [shape = 'u8[512]{0}', space=vmem, size = 0x400, scoped, tag = 'input window, operand 10, single buffered']
    #allocation20 [shape = 'u8[512]{0}', space=vmem, size = 0x400, scoped, tag = 'input window, operand 11, single buffered']
    #allocation21 [shape = 's32[1]{0}', space=sflag, size = 0x4, scoped, tag = 'scoped memory for nanovlm_forward.11']
    #allocation22 [shape = 'u8[512]{0}', space=vmem, size = 0x400, scoped, tag = 'input window, operand 12, single buffered']
    #allocation23 [shape = 'u8[131072]{0}', space=vmem, size = 0x20000, scoped, tag = 'input window, operand 13, single buffered']
    #allocation24 [shape = 's32[1]{0}', space=sflag, size = 0x4, scoped, tag = 'scoped memory for nanovlm_forward.11']
    #allocation25 [shape = 'u8[2048]{0}', space=vmem, size = 0x800, scoped, tag = 'input window, operand 14, single buffered']
    #allocation26 [shape = 'u8[131072]{0}', space=vmem, size = 0x20000, scoped, tag = 'input window, operand 15, single buffered']
    #allocation27 [shape = 's32[1]{0}', space=sflag, size = 0x4, scoped, tag = 'scoped memory for nanovlm_forward.11']
    #allocation28 [shape = 'u8[512]{0}', space=vmem, size = 0x400, scoped, tag = 'input window, operand 16, single buffered']
    #allocation29 [shape = 'u8[4096]{0}', space=vmem, size = 0x1000, scoped, tag = 'output window, operand 0, single buffered']
    %22 = vsyncpa [#allocation3], 0
    %23 = vsyncpa [#allocation6], 0
    %24 = vsyncpa [#allocation9], 0
    %25 = vsyncpa [#allocation12], 0
    %26 = vsyncpa [#allocation15], 0
    %27 = vsyncpa [#allocation18], 0
    %28 = vsyncpa [#allocation21], 0
    %29 = vsyncpa [#allocation24], 0
    %30 = vsyncpa [#allocation27], 0
    %31 = vsyncpa [#allocation4], 0
    // Predicated region
    $region2: #{nanovlm_forward.11} parent=1 // pred_check
      _
    $region3: #{nanovlm_forward.11} parent=1 // pred_check_branch
      %33 = sbr.rel (0) target = $region5
    $region4: #{nanovlm_forward.11} parent=1 // pred_region
      %s35 = ssub.s32 128, 128
      %36 = vsyncadd [#allocation3], %s35
      %s37 = sshll.u32 [#allocation2], 4
      %s38 = int_to_ptr.vmem [resolvable:$true] %s37
      %43 = dma.hbm_to_vmem [thread:$0]  %s0, 128, %s38, [#allocation3], 64, 64, 4
    $region5: #{nanovlm_forward.11} parent=1 // pred_fallthru
      _
    // Predicated region
    $region6: #{nanovlm_forward.11} parent=1 // pred_check
      _
    $region7: #{nanovlm_forward.11} parent=1 // pred_check_branch
      %45 = sbr.rel (0) target = $region9
    $region8: #{nanovlm_forward.11} parent=1 // pred_region
      %s47 = ssub.s32 16, 16
      %48 = vsyncadd [#allocation6], %s47
      %s50 = sshll.u32 [#allocation5], 4
      %s51 = int_to_ptr.vmem [resolvable:$true] %s50
      %53 = dma.hbm_to_vmem [thread:$0]  %s1, 16, %s51, [#allocation6]
    $region9: #{nanovlm_forward.11} parent=1 // pred_fallthru
      _
    // Predicated region
    $region10: #{nanovlm_forward.11} parent=1 // pred_check
      _
    $region11: #{nanovlm_forward.11} parent=1 // pred_check_branch
      %55 = sbr.rel (0) target = $region13
    $region12: #{nanovlm_forward.11} parent=1 // pred_region
      %s57 = ssub.s32 16, 16
      %58 = vsyncadd [#allocation6], %s57
      %s60 = sshll.u32 [#allocation7], 4
      %s61 = int_to_ptr.vmem [resolvable:$true] %s60
      %63 = dma.hbm_to_vmem [thread:$0]  %s2, 16, %s61, [#allocation6]
    $region13: #{nanovlm_forward.11} parent=1 // pred_fallthru
      _
    // Predicated region
    $region14: #{nanovlm_forward.11} parent=1 // pred_check
      _
    $region15: #{nanovlm_forward.11} parent=1 // pred_check_branch
      %65 = sbr.rel (0) target = $region17
    $region16: #{nanovlm_forward.11} parent=1 // pred_region
      %s67 = ssub.s32 1024, 1024
      %68 = vsyncadd [#allocation9], %s67
      %s69 = sshll.u32 [#allocation8], 4
      %s70 = int_to_ptr.vmem [resolvable:$true] %s69
      %75 = dma.hbm_to_vmem [thread:$0]  %s3, 1024, %s70, [#allocation9], 64, 64, 4
    $region17: #{nanovlm_forward.11} parent=1 // pred_fallthru
      _
    // Predicated region
    $region18: #{nanovlm_forward.11} parent=1 // pred_check
      _
    $region19: #{nanovlm_forward.11} parent=1 // pred_check_branch
      %77 = sbr.rel (0) target = $region21
    $region20: #{nanovlm_forward.11} parent=1 // pred_region
      %s79 = ssub.s32 16, 16
      %80 = vsyncadd [#allocation9], %s79
      %s82 = sshll.u32 [#allocation10], 4
      %s83 = int_to_ptr.vmem [resolvable:$true] %s82
      %85 = dma.hbm_to_vmem [thread:$0]  %s4, 16, %s83, [#allocation9]
    $region21: #{nanovlm_forward.11} parent=1 // pred_fallthru
      _
    // Predicated region
    $region22: #{nanovlm_forward.11} parent=1 // pred_check
      _
    $region23: #{nanovlm_forward.11} parent=1 // pred_check_branch
      %87 = sbr.rel (0) target = $region25
    $region24: #{nanovlm_forward.11} parent=1 // pred_region
      %s89 = ssub.s32 1024, 1024
      %90 = vsyncadd [#allocation12], %s89
      %s91 = sshll.u32 [#allocation11], 4
      %s92 = int_to_ptr.vmem [resolvable:$true] %s91
      %97 = dma.hbm_to_vmem [thread:$0]  %s5, 1024, %s92, [#allocation12], 64, 64, 4
    $region25: #{nanovlm_forward.11} parent=1 // pred_fallthru
      _
    // Predicated region
    $region26: #{nanovlm_forward.11} parent=1 // pred_check
      _
    $region27: #{nanovlm_forward.11} parent=1 // pred_check_branch
      %99 = sbr.rel (0) target = $region29
    $region28: #{nanovlm_forward.11} parent=1 // pred_region
      %s101 = ssub.s32 16, 16
      %102 = vsyncadd [#allocation12], %s101
      %s104 = sshll.u32 [#allocation13], 4
      %s105 = int_to_ptr.vmem [resolvable:$true] %s104
      %107 = dma.hbm_to_vmem [thread:$0]  %s6, 16, %s105, [#allocation12]
    $region29: #{nanovlm_forward.11} parent=1 // pred_fallthru
      _
    // Predicated region
    $region30: #{nanovlm_forward.11} parent=1 // pred_check
      _
    $region31: #{nanovlm_forward.11} parent=1 // pred_check_branch
      %109 = sbr.rel (0) target = $region33
    $region32: #{nanovlm_forward.11} parent=1 // pred_region
      %s111 = ssub.s32 1024, 1024
      %112 = vsyncadd [#allocation15], %s111
      %s113 = sshll.u32 [#allocation14], 4
      %s114 = int_to_ptr.vmem [resolvable:$true] %s113
      %119 = dma.hbm_to_vmem [thread:$0]  %s7, 1024, %s114, [#allocation15], 64, 64, 4
    $region33: #{nanovlm_forward.11} parent=1 // pred_fallthru
      _
    // Predicated region
    $region34: #{nanovlm_forward.11} parent=1 // pred_check
      _
    $region35: #{nanovlm_forward.11} parent=1 // pred_check_branch
      %121 = sbr.rel (0) target = $region37
    $region36: #{nanovlm_forward.11} parent=1 // pred_region
      %s123 = ssub.s32 16, 16
      %124 = vsyncadd [#allocation15], %s123
      %s126 = sshll.u32 [#allocation16], 4
      %s127 = int_to_ptr.vmem [resolvable:$true] %s126
      %129 = dma.hbm_to_vmem [thread:$0]  %s8, 16, %s127, [#allocation15]
    $region37: #{nanovlm_forward.11} parent=1 // pred_fallthru
      _
    // Predicated region
    $region38: #{nanovlm_forward.11} parent=1 // pred_check
      _
    $region39: #{nanovlm_forward.11} parent=1 // pred_check_branch
      %131 = sbr.rel (0) target = $region41
    $region40: #{nanovlm_forward.11} parent=1 // pred_region
      %s133 = ssub.s32 1024, 1024
      %134 = vsyncadd [#allocation18], %s133
      %s135 = sshll.u32 [#allocation17], 4
      %s136 = int_to_ptr.vmem [resolvable:$true] %s135
      %141 = dma.hbm_to_vmem [thread:$0]  %s9, 1024, %s136, [#allocation18], 64, 64, 4
    $region41: #{nanovlm_forward.11} parent=1 // pred_fallthru
      _
    // Predicated region
    $region42: #{nanovlm_forward.11} parent=1 // pred_check
      _
    $region43: #{nanovlm_forward.11} parent=1 // pred_check_branch
      %143 = sbr.rel (0) target = $region45
    $region44: #{nanovlm_forward.11} parent=1 // pred_region
      %s145 = ssub.s32 16, 16
      %146 = vsyncadd [#allocation18], %s145
      %s148 = sshll.u32 [#allocation19], 4
      %s149 = int_to_ptr.vmem [resolvable:$true] %s148
      %151 = dma.hbm_to_vmem [thread:$0]  %s10, 16, %s149, [#allocation18]
    $region45: #{nanovlm_forward.11} parent=1 // pred_fallthru
      _
    // Predicated region
    $region46: #{nanovlm_forward.11} parent=1 // pred_check
      _
    $region47: #{nanovlm_forward.11} parent=1 // pred_check_branch
      %153 = sbr.rel (0) target = $region49
    $region48: #{nanovlm_forward.11} parent=1 // pred_region
      %s155 = ssub.s32 16, 16
      %156 = vsyncadd [#allocation21], %s155
      %s158 = sshll.u32 [#allocation20], 4
      %s159 = int_to_ptr.vmem [resolvable:$true] %s158
      %161 = dma.hbm_to_vmem [thread:$0]  %s11, 16, %s159, [#allocation21]
    $region49: #{nanovlm_forward.11} parent=1 // pred_fallthru
      _
    // Predicated region
    $region50: #{nanovlm_forward.11} parent=1 // pred_check
      _
    $region51: #{nanovlm_forward.11} parent=1 // pred_check_branch
      %163 = sbr.rel (0) target = $region53
    $region52: #{nanovlm_forward.11} parent=1 // pred_region
      %s165 = ssub.s32 16, 16
      %166 = vsyncadd [#allocation21], %s165
      %s168 = sshll.u32 [#allocation22], 4
      %s169 = int_to_ptr.vmem [resolvable:$true] %s168
      %171 = dma.hbm_to_vmem [thread:$0]  %s12, 16, %s169, [#allocation21]
    $region53: #{nanovlm_forward.11} parent=1 // pred_fallthru
      _
    // Predicated region
    $region54: #{nanovlm_forward.11} parent=1 // pred_check
      _
    $region55: #{nanovlm_forward.11} parent=1 // pred_check_branch
      %173 = sbr.rel (0) target = $region57
    $region56: #{nanovlm_forward.11} parent=1 // pred_region
      %s175 = ssub.s32 4096, 4096
      %176 = vsyncadd [#allocation24], %s175
      %s177 = sshll.u32 [#allocation23], 4
      %s178 = int_to_ptr.vmem [resolvable:$true] %s177
      %183 = dma.hbm_to_vmem [thread:$0]  %s13, 4096, %s178, [#allocation24], 256, 256, 16
    $region57: #{nanovlm_forward.11} parent=1 // pred_fallthru
      _
    // Predicated region
    $region58: #{nanovlm_forward.11} parent=1 // pred_check
      _
    $region59: #{nanovlm_forward.11} parent=1 // pred_check_branch
      %185 = sbr.rel (0) target = $region61
    $region60: #{nanovlm_forward.11} parent=1 // pred_region
      %s187 = ssub.s32 64, 64
      %188 = vsyncadd [#allocation24], %s187
      %s190 = sshll.u32 [#allocation25], 4
      %s191 = int_to_ptr.vmem [resolvable:$true] %s190
      %193 = dma.hbm_to_vmem [thread:$0]  %s14, 64, %s191, [#allocation24]
    $region61: #{nanovlm_forward.11} parent=1 // pred_fallthru
      _
    // Predicated region
    $region62: #{nanovlm_forward.11} parent=1 // pred_check
      _
    $region63: #{nanovlm_forward.11} parent=1 // pred_check_branch
      %195 = sbr.rel (0) target = $region65
    $region64: #{nanovlm_forward.11} parent=1 // pred_region
      %s197 = ssub.s32 4096, 4096
      %198 = vsyncadd [#allocation27], %s197
      %s199 = sshll.u32 [#allocation26], 4
      %s200 = int_to_ptr.vmem [resolvable:$true] %s199
      %205 = dma.hbm_to_vmem [thread:$0]  %s15, 4096, %s200, [#allocation27], 64, 64, 4
    $region65: #{nanovlm_forward.11} parent=1 // pred_fallthru
      _
    // Predicated region
    $region66: #{nanovlm_forward.11} parent=1 // pred_check
      _
    $region67: #{nanovlm_forward.11} parent=1 // pred_check_branch
      %207 = sbr.rel (0) target = $region69
    $region68: #{nanovlm_forward.11} parent=1 // pred_region
      %s209 = ssub.s32 16, 16
      %210 = vsyncadd [#allocation27], %s209
      %s212 = sshll.u32 [#allocation28], 4
      %s213 = int_to_ptr.vmem [resolvable:$true] %s212
      %215 = dma.hbm_to_vmem [thread:$0]  %s16, 16, %s213, [#allocation27]
    $region69: #{nanovlm_forward.11} parent=1 // pred_fallthru
      _
    // Predicated region
    $region70: #{nanovlm_forward.11} parent=1 // pred_check
      _
    $region71: #{nanovlm_forward.11} parent=1 // pred_check_branch
      %217 = sbr.rel (0) target = $region73
    $region72: #{nanovlm_forward.11} parent=1 // pred_region
      %218 = dma.done [#allocation3], 128
    $region73: #{nanovlm_forward.11} parent=1 // pred_fallthru
      _
    // Predicated region
    $region74: #{nanovlm_forward.11} parent=1 // pred_check
      _
    $region75: #{nanovlm_forward.11} parent=1 // pred_check_branch
      %220 = sbr.rel (0) target = $region77
    $region76: #{nanovlm_forward.11} parent=1 // pred_region
      %221 = dma.done [#allocation6], 16
    $region77: #{nanovlm_forward.11} parent=1 // pred_fallthru
      _
    // Predicated region
    $region78: #{nanovlm_forward.11} parent=1 // pred_check
      _
    $region79: #{nanovlm_forward.11} parent=1 // pred_check_branch
      %223 = sbr.rel (0) target = $region81
    $region80: #{nanovlm_forward.11} parent=1 // pred_region
      %224 = dma.done [#allocation6], 16
    $region81: #{nanovlm_forward.11} parent=1 // pred_fallthru
      _
    // Predicated region
    $region82: #{nanovlm_forward.11} parent=1 // pred_check
      _
    $region83: #{nanovlm_forward.11} parent=1 // pred_check_branch
      %226 = sbr.rel (0) target = $region85
    $region84: #{nanovlm_forward.11} parent=1 // pred_region
      %227 = dma.done [#allocation9], 1024
    $region85: #{nanovlm_forward.11} parent=1 // pred_fallthru
      _
    // Predicated region
    $region86: #{nanovlm_forward.11} parent=1 // pred_check
      _
    $region87: #{nanovlm_forward.11} parent=1 // pred_check_branch
      %229 = sbr.rel (0) target = $region89
    $region88: #{nanovlm_forward.11} parent=1 // pred_region
      %230 = dma.done [#allocation9], 16
    $region89: #{nanovlm_forward.11} parent=1 // pred_fallthru
      _
    // Predicated region
    $region90: #{nanovlm_forward.11} parent=1 // pred_check
      _
    $region91: #{nanovlm_forward.11} parent=1 // pred_check_branch
      %232 = sbr.rel (0) target = $region93
    $region92: #{nanovlm_forward.11} parent=1 // pred_region
      %233 = dma.done [#allocation12], 1024
    $region93: #{nanovlm_forward.11} parent=1 // pred_fallthru
      _
    // Predicated region
    $region94: #{nanovlm_forward.11} parent=1 // pred_check
      _
    $region95: #{nanovlm_forward.11} parent=1 // pred_check_branch
      %235 = sbr.rel (0) target = $region97
    $region96: #{nanovlm_forward.11} parent=1 // pred_region
      %236 = dma.done [#allocation12], 16
    $region97: #{nanovlm_forward.11} parent=1 // pred_fallthru
      _
    // Predicated region
    $region98: #{nanovlm_forward.11} parent=1 // pred_check
      _
    $region99: #{nanovlm_forward.11} parent=1 // pred_check_branch
      %238 = sbr.rel (0) target = $region101
    $region100: #{nanovlm_forward.11} parent=1 // pred_region
      %239 = dma.done [#allocation15], 1024
    $region101: #{nanovlm_forward.11} parent=1 // pred_fallthru
      _
    // Predicated region
    $region102: #{nanovlm_forward.11} parent=1 // pred_check
      _
    $region103: #{nanovlm_forward.11} parent=1 // pred_check_branch
      %241 = sbr.rel (0) target = $region105
    $region104: #{nanovlm_forward.11} parent=1 // pred_region
      %242 = dma.done [#allocation15], 16
    $region105: #{nanovlm_forward.11} parent=1 // pred_fallthru
      _
    // Predicated region
    $region106: #{nanovlm_forward.11} parent=1 // pred_check
      _
    $region107: #{nanovlm_forward.11} parent=1 // pred_check_branch
      %244 = sbr.rel (0) target = $region109
    $region108: #{nanovlm_forward.11} parent=1 // pred_region
      %245 = dma.done [#allocation18], 1024
    $region109: #{nanovlm_forward.11} parent=1 // pred_fallthru
      _
    // Predicated region
    $region110: #{nanovlm_forward.11} parent=1 // pred_check
      _
    $region111: #{nanovlm_forward.11} parent=1 // pred_check_branch
      %247 = sbr.rel (0) target = $region113
    $region112: #{nanovlm_forward.11} parent=1 // pred_region
      %248 = dma.done [#allocation18], 16
    $region113: #{nanovlm_forward.11} parent=1 // pred_fallthru
      _
    // Predicated region
    $region114: #{nanovlm_forward.11} parent=1 // pred_check
      _
    $region115: #{nanovlm_forward.11} parent=1 // pred_check_branch
      %250 = sbr.rel (0) target = $region117
    $region116: #{nanovlm_forward.11} parent=1 // pred_region
      %251 = dma.done [#allocation21], 16
    $region117: #{nanovlm_forward.11} parent=1 // pred_fallthru
      _
    // Predicated region
    $region118: #{nanovlm_forward.11} parent=1 // pred_check
      _
    $region119: #{nanovlm_forward.11} parent=1 // pred_check_branch
      %253 = sbr.rel (0) target = $region121
    $region120: #{nanovlm_forward.11} parent=1 // pred_region
      %254 = dma.done [#allocation21], 16
    $region121: #{nanovlm_forward.11} parent=1 // pred_fallthru
      _
    // Predicated region
    $region122: #{nanovlm_forward.11} parent=1 // pred_check
      _
    $region123: #{nanovlm_forward.11} parent=1 // pred_check_branch
      %256 = sbr.rel (0) target = $region125
    $region124: #{nanovlm_forward.11} parent=1 // pred_region
      %257 = dma.done [#allocation24], 4096
    $region125: #{nanovlm_forward.11} parent=1 // pred_fallthru
      _
    // Predicated region
    $region126: #{nanovlm_forward.11} parent=1 // pred_check
      _
    $region127: #{nanovlm_forward.11} parent=1 // pred_check_branch
      %259 = sbr.rel (0) target = $region129
    $region128: #{nanovlm_forward.11} parent=1 // pred_region
      %260 = dma.done [#allocation24], 64
    $region129: #{nanovlm_forward.11} parent=1 // pred_fallthru
      _
    // Predicated region
    $region130: #{nanovlm_forward.11} parent=1 // pred_check
      _
    $region131: #{nanovlm_forward.11} parent=1 // pred_check_branch
      %262 = sbr.rel (0) target = $region133
    $region132: #{nanovlm_forward.11} parent=1 // pred_region
      %263 = dma.done [#allocation27], 4096
    $region133: #{nanovlm_forward.11} parent=1 // pred_fallthru
      _
    // Predicated region
    $region134: #{nanovlm_forward.11} parent=1 // pred_check
      _
    $region135: #{nanovlm_forward.11} parent=1 // pred_check_branch
      %265 = sbr.rel (0) target = $region137
    $region136: #{nanovlm_forward.11} parent=1 // pred_region
      %266 = dma.done [#allocation27], 16
    $region137: #{nanovlm_forward.11} parent=1 // pred_fallthru
      _
    %v268 = vlaneseq
    %v269 = vand.u32 %v268, 127
    %vm270 = vcmp.ge.s32.totalorder %v269, 0
    %vm271 = vcmp.lt.s32.totalorder %v269, 32
    %vm272 = vmand %vm270, %vm271
    %v273 = vsel %vm272, 1, 0
    %v274 = vcvt.s32.f32 %v273
    %v275 = vpack.c.bf16 %v274, %v274
    %vm276 = vcmp.ge.s32.totalorder %v269, 32
    %vm277 = vcmp.lt.s32.totalorder %v269, 64
    %vm278 = vmand %vm276, %vm277
    %v279 = vsel %vm278, 1, 0
    %v280 = vcvt.s32.f32 %v279
    %v281 = vpack.c.bf16 %v280, %v280
    %vm282 = vcmp.ge.s32.totalorder %v269, 64
    %vm283 = vcmp.lt.s32.totalorder %v269, 96
    %vm284 = vmand %vm282, %vm283
    %v285 = vsel %vm284, 1, 0
    %v286 = vcvt.s32.f32 %v285
    %v287 = vpack.c.bf16 %v286, %v286
    %vm288 = vcmp.ge.s32.totalorder %v269, 96
    %vm289 = vcmp.lt.s32.totalorder %v269, 128
    %vm290 = vmand %vm288, %vm289
    %v291 = vsel %vm290, 1, 0
    %v292 = vcvt.s32.f32 %v291
    %v293 = vpack.c.bf16 %v292, %v292
    %v294 = vlaneseq
    %v295 = vshrl.u32 %v294, 7
    %vm296 = vcmp.ge.s32.totalorder %v295, %v269
    %v297 = vld [vmem:[#allocation2] sm:$0xf]
    %v298 = vunpack.c.l.bf16 %v297
    %v299 = vld [vmem:[#allocation5] sm:$0x1]
    %v300 = vld [vmem:[#allocation7] sm:$0x1]
    %301 = vadd.xlane.f32.xlu0 %v298
    %v302 = vpop.xlane.xlu0 %301
    %v303 = vrcp.pop 128.0
    %v304 = vmul.f32 %v302, %v303
    %v305 = vsub.f32 %v298, %v304
    %v306 = vmul.f32 %v305, %v305
    %307 = vadd.xlane.f32.xlu0 %v306
    %v308 = vpop.xlane.xlu0 %307
    %v309 = vmul.f32 %v308, %v303
    %v310 = vadd.f32 %v309, 1e-05
    %v311 = vrsqrt.pop %v310
    %v312 = vmul.f32 %v305, %v311
    %v314 = vlaneseq
    %v315 = vshrl.u32 %v314, 7
    %v316 = vsub.s32 0, %v315
    %v317 = vrot.slane %v299, %v316
    %v319 = vmul.f32 %v312, %v317
    %v321 = vlaneseq
    %v322 = vshrl.u32 %v321, 7
    %v323 = vsub.s32 0, %v322
    %v324 = vrot.slane %v300, %v323
    %v326 = vadd.f32 %v319, %v324
    %v327 = vpack.c.bf16 %v326, %v326
    %v328 = vld [vmem:[#allocation8] sm:$0xf]
    %v329 = vld [vmem:[#allocation8 + $0x4] sm:$0xf]
    %v330 = vld [vmem:[#allocation8 + $0x8] sm:$0xf]
    %v331 = vld [vmem:[#allocation8 + $0xc] sm:$0xf]
    %v332 = vld [vmem:[#allocation8 + $0x10] sm:$0xf]
    %v333 = vld [vmem:[#allocation8 + $0x14] sm:$0xf]
    %v334 = vld [vmem:[#allocation8 + $0x18] sm:$0xf]
    %v335 = vld [vmem:[#allocation8 + $0x1c] sm:$0xf]
    %v336 = vld [vmem:[#allocation8 + $0x20] sm:$0xf]
    %v337 = vld [vmem:[#allocation8 + $0x24] sm:$0xf]
    %v338 = vld [vmem:[#allocation8 + $0x28] sm:$0xf]
    %v339 = vld [vmem:[#allocation8 + $0x2c] sm:$0xf]
    %v340 = vld [vmem:[#allocation8 + $0x30] sm:$0xf]
    %v341 = vld [vmem:[#allocation8 + $0x34] sm:$0xf]
    %v342 = vld [vmem:[#allocation8 + $0x38] sm:$0xf]
    %v343 = vld [vmem:[#allocation8 + $0x3c] sm:$0xf]
    %v344 = vld [vmem:[#allocation10] sm:$0x1]
    %v346 = vlaneseq
    %v347 = vshrl.u32 %v346, 7
    %v348 = vsub.s32 0, %v347
    %v349 = vrot.slane %v344, %v348
    %v367 = vunpack.c.l.b16 %v328
    %v368 = vunpack.c.l.b16 %v329
    %v369 = vunpack.c.l.b16 %v330
    %v370 = vunpack.c.l.b16 %v331
    %v371 = vunpack.c.l.b16 %v332
    %v372 = vunpack.c.l.b16 %v333
    %v373 = vunpack.c.l.b16 %v334
    %v374 = vunpack.c.l.b16 %v335
    %v375 = vunpack.c.l.b16 %v336
    %v376 = vunpack.c.l.b16 %v337
    %v377 = vunpack.c.l.b16 %v338
    %v378 = vunpack.c.l.b16 %v339
    %v379 = vunpack.c.l.b16 %v340
    %v380 = vunpack.c.l.b16 %v341
    %v381 = vunpack.c.l.b16 %v342
    %v382 = vunpack.c.l.b16 %v343
    %v383 = vpack.c.b16 %v368, %v367
    %v384 = vpack.c.b16 %v370, %v369
    %v385 = vpack.c.b16 %v372, %v371
    %v386 = vpack.c.b16 %v374, %v373
    %v387 = vpack.c.b16 %v376, %v375
    %v388 = vpack.c.b16 %v378, %v377
    %v389 = vpack.c.b16 %v380, %v379
    %v390 = vpack.c.b16 %v382, %v381
    %399 = vmatprep.subr.bf16.mxu0 0
    %400 = vmatpush1.bf16.msra.mxu0 %v383
    %401 = vmatprep.subr.bf16.mxu0 0
    %402 = vmatpush1.bf16.msra.mxu0 %v384
    %403 = vmatprep.subr.bf16.mxu0 0
    %404 = vmatpush1.bf16.msra.mxu0 %v385
    %405 = vmatprep.subr.bf16.mxu0 0
    %406 = vmatpush1.bf16.msra.mxu0 %v386
    %407 = vmatprep.subr.bf16.mxu0 0
    %408 = vmatpush1.bf16.msra.mxu0 %v387
    %409 = vmatprep.subr.bf16.mxu0 0
    %410 = vmatpush1.bf16.msra.mxu0 %v388
    %411 = vmatprep.subr.bf16.mxu0 0
    %412 = vmatpush1.bf16.msra.mxu0 %v389
    %413 = vmatprep.subr.bf16.mxu0 0
    %414 = vmatpush1.bf16.msra.mxu0 %v390
    %415 = vmatprep.subr.bf16.mxu0 0
    %416 = vmatpush1.bf16.msra.mxu0 0
    %417 = vmatprep.subr.bf16.mxu0 0
    %418 = vmatpush1.bf16.msra.mxu0 0
    %419 = vmatprep.subr.bf16.mxu0 0
    %420 = vmatpush1.bf16.msra.mxu0 0
    %421 = vmatprep.subr.bf16.mxu0 0
    %422 = vmatpush1.bf16.msra.mxu0 0
    %423 = vmatprep.subr.bf16.mxu0 0
    %424 = vmatpush1.bf16.msra.mxu0 0
    %425 = vmatprep.subr.bf16.mxu0 0
    %426 = vmatpush1.bf16.msra.mxu0 0
    %427 = vmatprep.subr.bf16.mxu0 0
    %428 = vmatpush1.bf16.msra.mxu0 0
    %429 = vmatprep.subr.bf16.mxu0 0
    %430 = vmatpush1.bf16.msra.mxu0 0
    %431 = vmatprep.mubr.bf16.mxu0 0
    %432 = vmatmul.mubr.bf16.gmra.mrb[0].mxu0 %v327
    %v433 = vpop.f32.mrb[0].mxu0
    %v434 = vadd.f32 %v349, %v433
    %v435 = vpop.f32.mrb[0].mxu0
    %v436 = vpop.f32.mrb[0].mxu0
    %v437 = vpop.f32.mrb[0].mxu0
    %438 = vdwg.mxu0
    %v439 = vld [vmem:[#allocation11] sm:$0xf]
    %v440 = vld [vmem:[#allocation11 + $0x4] sm:$0xf]
    %v441 = vld [vmem:[#allocation11 + $0x8] sm:$0xf]
    %v442 = vld [vmem:[#allocation11 + $0xc] sm:$0xf]
    %v443 = vld [vmem:[#allocation11 + $0x10] sm:$0xf]
    %v444 = vld [vmem:[#allocation11 + $0x14] sm:$0xf]
    %v445 = vld [vmem:[#allocation11 + $0x18] sm:$0xf]
    %v446 = vld [vmem:[#allocation11 + $0x1c] sm:$0xf]
    %v447 = vld [vmem:[#allocation11 + $0x20] sm:$0xf]
    %v448 = vld [vmem:[#allocation11 + $0x24] sm:$0xf]
    %v449 = vld [vmem:[#allocation11 + $0x28] sm:$0xf]
    %v450 = vld [vmem:[#allocation11 + $0x2c] sm:$0xf]
    %v451 = vld [vmem:[#allocation11 + $0x30] sm:$0xf]
    %v452 = vld [vmem:[#allocation11 + $0x34] sm:$0xf]
    %v453 = vld [vmem:[#allocation11 + $0x38] sm:$0xf]
    %v454 = vld [vmem:[#allocation11 + $0x3c] sm:$0xf]
    %v455 = vld [vmem:[#allocation13] sm:$0x1]
    %v457 = vlaneseq
    %v458 = vshrl.u32 %v457, 7
    %v459 = vsub.s32 0, %v458
    %v460 = vrot.slane %v455, %v459
    %v478 = vunpack.c.l.b16 %v439
    %v479 = vunpack.c.l.b16 %v440
    %v480 = vunpack.c.l.b16 %v441
    %v481 = vunpack.c.l.b16 %v442
    %v482 = vunpack.c.l.b16 %v443
    %v483 = vunpack.c.l.b16 %v444
    %v484 = vunpack.c.l.b16 %v445
    %v485 = vunpack.c.l.b16 %v446
    %v486 = vunpack.c.l.b16 %v447
    %v487 = vunpack.c.l.b16 %v448
    %v488 = vunpack.c.l.b16 %v449
    %v489 = vunpack.c.l.b16 %v450
    %v490 = vunpack.c.l.b16 %v451
    %v491 = vunpack.c.l.b16 %v452
    %v492 = vunpack.c.l.b16 %v453
    %v493 = vunpack.c.l.b16 %v454
    %v494 = vpack.c.b16 %v479, %v478
    %v495 = vpack.c.b16 %v481, %v480
    %v496 = vpack.c.b16 %v483, %v482
    %v497 = vpack.c.b16 %v485, %v484
    %v498 = vpack.c.b16 %v487, %v486
    %v499 = vpack.c.b16 %v489, %v488
    %v500 = vpack.c.b16 %v491, %v490
    %v501 = vpack.c.b16 %v493, %v492
    %510 = vmatprep.subr.bf16.mxu0 0
    %511 = vmatpush1.bf16.msra.mxu0 %v494
    %512 = vmatprep.subr.bf16.mxu0 0
    %513 = vmatpush1.bf16.msra.mxu0 %v495
    %514 = vmatprep.subr.bf16.mxu0 0
    %515 = vmatpush1.bf16.msra.mxu0 %v496
    %516 = vmatprep.subr.bf16.mxu0 0
    %517 = vmatpush1.bf16.msra.mxu0 %v497
    %518 = vmatprep.subr.bf16.mxu0 0
    %519 = vmatpush1.bf16.msra.mxu0 %v498
    %520 = vmatprep.subr.bf16.mxu0 0
    %521 = vmatpush1.bf16.msra.mxu0 %v499
    %522 = vmatprep.subr.bf16.mxu0 0
    %523 = vmatpush1.bf16.msra.mxu0 %v500
    %524 = vmatprep.subr.bf16.mxu0 0
    %525 = vmatpush1.bf16.msra.mxu0 %v501
    %526 = vmatprep.subr.bf16.mxu0 0
    %527 = vmatpush1.bf16.msra.mxu0 0
    %528 = vmatprep.subr.bf16.mxu0 0
    %529 = vmatpush1.bf16.msra.mxu0 0
    %530 = vmatprep.subr.bf16.mxu0 0
    %531 = vmatpush1.bf16.msra.mxu0 0
    %532 = vmatprep.subr.bf16.mxu0 0
    %533 = vmatpush1.bf16.msra.mxu0 0
    %534 = vmatprep.subr.bf16.mxu0 0
    %535 = vmatpush1.bf16.msra.mxu0 0
    %536 = vmatprep.subr.bf16.mxu0 0
    %537 = vmatpush1.bf16.msra.mxu0 0
    %538 = vmatprep.subr.bf16.mxu0 0
    %539 = vmatpush1.bf16.msra.mxu0 0
    %540 = vmatprep.subr.bf16.mxu0 0
    %541 = vmatpush1.bf16.msra.mxu0 0
    %542 = vmatprep.mubr.bf16.mxu0 0
    %543 = vmatmul.mubr.bf16.gmra.mrb[0].mxu0 %v327
    %v544 = vpop.f32.mrb[0].mxu0
    %v545 = vadd.f32 %v460, %v544
    %v546 = vpop.f32.mrb[0].mxu0
    %v547 = vpop.f32.mrb[0].mxu0
    %v548 = vpop.f32.mrb[0].mxu0
    %549 = vdwg.mxu0
    %v550 = vld [vmem:[#allocation14] sm:$0xf]
    %v551 = vld [vmem:[#allocation14 + $0x4] sm:$0xf]
    %v552 = vld [vmem:[#allocation14 + $0x8] sm:$0xf]
    %v553 = vld [vmem:[#allocation14 + $0xc] sm:$0xf]
    %v554 = vld [vmem:[#allocation14 + $0x10] sm:$0xf]
    %v555 = vld [vmem:[#allocation14 + $0x14] sm:$0xf]
    %v556 = vld [vmem:[#allocation14 + $0x18] sm:$0xf]
    %v557 = vld [vmem:[#allocation14 + $0x1c] sm:$0xf]
    %v558 = vld [vmem:[#allocation14 + $0x20] sm:$0xf]
    %v559 = vld [vmem:[#allocation14 + $0x24] sm:$0xf]
    %v560 = vld [vmem:[#allocation14 + $0x28] sm:$0xf]
    %v561 = vld [vmem:[#allocation14 + $0x2c] sm:$0xf]
    %v562 = vld [vmem:[#allocation14 + $0x30] sm:$0xf]
    %v563 = vld [vmem:[#allocation14 + $0x34] sm:$0xf]
    %v564 = vld [vmem:[#allocation14 + $0x38] sm:$0xf]
    %v565 = vld [vmem:[#allocation14 + $0x3c] sm:$0xf]
    %v566 = vld [vmem:[#allocation16] sm:$0x1]
    %v568 = vlaneseq
    %v569 = vshrl.u32 %v568, 7
    %v570 = vsub.s32 0, %v569
    %v571 = vrot.slane %v566, %v570
    %v589 = vunpack.c.l.b16 %v550
    %v590 = vunpack.c.l.b16 %v551
    %v591 = vunpack.c.l.b16 %v552
    %v592 = vunpack.c.l.b16 %v553
    %v593 = vunpack.c.l.b16 %v554
    %v594 = vunpack.c.l.b16 %v555
    %v595 = vunpack.c.l.b16 %v556
    %v596 = vunpack.c.l.b16 %v557
    %v597 = vunpack.c.l.b16 %v558
    %v598 = vunpack.c.l.b16 %v559
    %v599 = vunpack.c.l.b16 %v560
    %v600 = vunpack.c.l.b16 %v561
    %v601 = vunpack.c.l.b16 %v562
    %v602 = vunpack.c.l.b16 %v563
    %v603 = vunpack.c.l.b16 %v564
    %v604 = vunpack.c.l.b16 %v565
    %v605 = vpack.c.b16 %v590, %v589
    %v606 = vpack.c.b16 %v592, %v591
    %v607 = vpack.c.b16 %v594, %v593
    %v608 = vpack.c.b16 %v596, %v595
    %v609 = vpack.c.b16 %v598, %v597
    %v610 = vpack.c.b16 %v600, %v599
    %v611 = vpack.c.b16 %v602, %v601
    %v612 = vpack.c.b16 %v604, %v603
    %621 = vmatprep.subr.bf16.mxu0 0
    %622 = vmatpush1.bf16.msra.mxu0 %v605
    %623 = vmatprep.subr.bf16.mxu0 0
    %624 = vmatpush1.bf16.msra.mxu0 %v606
    %625 = vmatprep.subr.bf16.mxu0 0
    %626 = vmatpush1.bf16.msra.mxu0 %v607
    %627 = vmatprep.subr.bf16.mxu0 0
    %628 = vmatpush1.bf16.msra.mxu0 %v608
    %629 = vmatprep.subr.bf16.mxu0 0
    %630 = vmatpush1.bf16.msra.mxu0 %v609
    %631 = vmatprep.subr.bf16.mxu0 0
    %632 = vmatpush1.bf16.msra.mxu0 %v610
    %633 = vmatprep.subr.bf16.mxu0 0
    %634 = vmatpush1.bf16.msra.mxu0 %v611
    %635 = vmatprep.subr.bf16.mxu0 0
    %636 = vmatpush1.bf16.msra.mxu0 %v612
    %637 = vmatprep.subr.bf16.mxu0 0
    %638 = vmatpush1.bf16.msra.mxu0 0
    %639 = vmatprep.subr.bf16.mxu0 0
    %640 = vmatpush1.bf16.msra.mxu0 0
    %641 = vmatprep.subr.bf16.mxu0 0
    %642 = vmatpush1.bf16.msra.mxu0 0
    %643 = vmatprep.subr.bf16.mxu0 0
    %644 = vmatpush1.bf16.msra.mxu0 0
    %645 = vmatprep.subr.bf16.mxu0 0
    %646 = vmatpush1.bf16.msra.mxu0 0
    %647 = vmatprep.subr.bf16.mxu0 0
    %648 = vmatpush1.bf16.msra.mxu0 0
    %649 = vmatprep.subr.bf16.mxu0 0
    %650 = vmatpush1.bf16.msra.mxu0 0
    %651 = vmatprep.subr.bf16.mxu0 0
    %652 = vmatpush1.bf16.msra.mxu0 0
    %653 = vmatprep.mubr.bf16.mxu0 0
    %654 = vmatmul.mubr.bf16.gmra.mrb[0].mxu0 %v327
    %v655 = vpop.f32.mrb[0].mxu0
    %v656 = vadd.f32 %v571, %v655
    %v657 = vpop.f32.mrb[0].mxu0
    %v658 = vpop.f32.mrb[0].mxu0
    %v659 = vpop.f32.mrb[0].mxu0
    %660 = vdwg.mxu0
    %v661 = vmul.f32 %v434, 0.17677669
    %v662 = vpack.c.bf16 %v661, %v661
    %v663 = vpack.c.bf16 %v545, %v545
    %v664 = vpack.c.bf16 %v656, %v656
    %v665 = vmul.bf16 %v662, %v275
    %666 = vmatprep.subr.bf16.mxu0 0
    %667 = vmatpush1.bf16.xpose.msra.mxu0 %v663
    %668 = vmatprep.subr.bf16.mxu0 0
    %669 = vmatpush1.bf16.xpose.msra.mxu0 0
    %670 = vmatprep.subr.bf16.mxu0 0
    %671 = vmatpush1.bf16.xpose.msra.mxu0 0
    %672 = vmatprep.subr.bf16.mxu0 0
    %673 = vmatpush1.bf16.xpose.msra.mxu0 0
    %674 = vmatprep.subr.bf16.mxu0 0
    %675 = vmatpush1.bf16.xpose.msra.mxu0 0
    %676 = vmatprep.subr.bf16.mxu0 0
    %677 = vmatpush1.bf16.xpose.msra.mxu0 0
    %678 = vmatprep.subr.bf16.mxu0 0
    %679 = vmatpush1.bf16.xpose.msra.mxu0 0
    %680 = vmatprep.subr.bf16.mxu0 0
    %681 = vmatpush1.bf16.xpose.msra.mxu0 0
    %682 = vmatprep.subr.bf16.mxu0 0
    %683 = vmatpush1.bf16.xpose.msra.mxu0 0
    %684 = vmatprep.subr.bf16.mxu0 0
    %685 = vmatpush1.bf16.xpose.msra.mxu0 0
    %686 = vmatprep.subr.bf16.mxu0 0
    %687 = vmatpush1.bf16.xpose.msra.mxu0 0
    %688 = vmatprep.subr.bf16.mxu0 0
    %689 = vmatpush1.bf16.xpose.msra.mxu0 0
    %690 = vmatprep.subr.bf16.mxu0 0
    %691 = vmatpush1.bf16.xpose.msra.mxu0 0
    %692 = vmatprep.subr.bf16.mxu0 0
    %693 = vmatpush1.bf16.xpose.msra.mxu0 0
    %694 = vmatprep.subr.bf16.mxu0 0
    %695 = vmatpush1.bf16.xpose.msra.mxu0 0
    %696 = vmatprep.subr.bf16.mxu0 0
    %697 = vmatpush1.bf16.xpose.msra.mxu0 0
    %698 = vmatprep.mubr.bf16.mxu0 0
    %699 = vmatmul.mubr.bf16.gmra.mrb[0].mxu0 %v665
    %v700 = vpop.f32.mrb[0].mxu0
    %v701 = vadd.f32 0.0, %v700
    %v702 = vpop.f32.mrb[0].mxu0
    %v703 = vpop.f32.mrb[0].mxu0
    %v704 = vpop.f32.mrb[0].mxu0
    %705 = vdwg.mxu0
    %v706 = vsel %vm296, %v701, -1e+30
    %vm707 = vcmask 64512
    %v708 = vsel %vm707, %v706, -inf
    %709 = vmax.xlane.f32.xlu0 %v708
    %v710 = vpop.xlane.xlu0 %709
    %v711 = vsub.f32 %v706, %v710
    %v712 = vmul.f32 %v711, 1.442695
    %v713 = vpow.pop %v712
    %v714 = vsel %vm707, %v713, 0.0
    %715 = vadd.xlane.f32.xlu0 %v714
    %v716 = vpop.xlane.xlu0 %715
    %v717 = vrcp.pop %v716
    %v718 = vmul.f32 %v713, %v717
    %v719 = vpack.c.bf16 %v718, %v718
    %v720 = vmul.bf16 %v664, %v275
    %v721 = vmul.bf16 %v662, %v281
    %722 = vmatprep.subr.bf16.mxu0 0
    %723 = vmatpush1.bf16.xpose.msra.mxu0 %v663
    %724 = vmatprep.subr.bf16.mxu0 0
    %725 = vmatpush1.bf16.xpose.msra.mxu0 0
    %726 = vmatprep.subr.bf16.mxu0 0
    %727 = vmatpush1.bf16.xpose.msra.mxu0 0
    %728 = vmatprep.subr.bf16.mxu0 0
    %729 = vmatpush1.bf16.xpose.msra.mxu0 0
    %730 = vmatprep.subr.bf16.mxu0 0
    %731 = vmatpush1.bf16.xpose.msra.mxu0 0
    %732 = vmatprep.subr.bf16.mxu0 0
    %733 = vmatpush1.bf16.xpose.msra.mxu0 0
    %734 = vmatprep.subr.bf16.mxu0 0
    %735 = vmatpush1.bf16.xpose.msra.mxu0 0
    %736 = vmatprep.subr.bf16.mxu0 0
    %737 = vmatpush1.bf16.xpose.msra.mxu0 0
    %738 = vmatprep.subr.bf16.mxu0 0
    %739 = vmatpush1.bf16.xpose.msra.mxu0 0
    %740 = vmatprep.subr.bf16.mxu0 0
    %741 = vmatpush1.bf16.xpose.msra.mxu0 0
    %742 = vmatprep.subr.bf16.mxu0 0
    %743 = vmatpush1.bf16.xpose.msra.mxu0 0
    %744 = vmatprep.subr.bf16.mxu0 0
    %745 = vmatpush1.bf16.xpose.msra.mxu0 0
    %746 = vmatprep.subr.bf16.mxu0 0
    %747 = vmatpush1.bf16.xpose.msra.mxu0 0
    %748 = vmatprep.subr.bf16.mxu0 0
    %749 = vmatpush1.bf16.xpose.msra.mxu0 0
    %750 = vmatprep.subr.bf16.mxu0 0
    %751 = vmatpush1.bf16.xpose.msra.mxu0 0
    %752 = vmatprep.subr.bf16.mxu0 0
    %753 = vmatpush1.bf16.xpose.msra.mxu0 0
    %754 = vmatprep.mubr.bf16.mxu0 0
    %755 = vmatmul.mubr.bf16.gmra.mrb[0].mxu0 %v721
    %v756 = vpop.f32.mrb[0].mxu0
    %v757 = vadd.f32 0.0, %v756
    %v758 = vpop.f32.mrb[0].mxu0
    %v759 = vpop.f32.mrb[0].mxu0
    %v760 = vpop.f32.mrb[0].mxu0
    %761 = vdwg.mxu0
    %v762 = vsel %vm296, %v757, -1e+30
    %v763 = vsel %vm707, %v762, -inf
    %764 = vmax.xlane.f32.xlu0 %v763
    %v765 = vpop.xlane.xlu0 %764
    %v766 = vsub.f32 %v762, %v765
    %v767 = vmul.f32 %v766, 1.442695
    %v768 = vpow.pop %v767
    %v769 = vsel %vm707, %v768, 0.0
    %770 = vadd.xlane.f32.xlu0 %v769
    %v771 = vpop.xlane.xlu0 %770
    %v772 = vrcp.pop %v771
    %v773 = vmul.f32 %v768, %v772
    %v774 = vpack.c.bf16 %v773, %v773
    %v775 = vmul.bf16 %v664, %v281
    %v777 = vsel %vm707, %v774, 0
    %vm779 = vcmask 1043456
    %v781 = vsel %vm779, %v775, 0
    %783 = vmatprep.subr.bf16.mxu0 0
    %784 = vmatpush1.bf16.msra.mxu0 %v781
    %785 = vmatprep.subr.bf16.mxu0 0
    %786 = vmatpush1.bf16.msra.mxu0 0
    %787 = vmatprep.subr.bf16.mxu0 0
    %788 = vmatpush1.bf16.msra.mxu0 0
    %789 = vmatprep.subr.bf16.mxu0 0
    %790 = vmatpush1.bf16.msra.mxu0 0
    %791 = vmatprep.subr.bf16.mxu0 0
    %792 = vmatpush1.bf16.msra.mxu0 0
    %793 = vmatprep.subr.bf16.mxu0 0
    %794 = vmatpush1.bf16.msra.mxu0 0
    %795 = vmatprep.subr.bf16.mxu0 0
    %796 = vmatpush1.bf16.msra.mxu0 0
    %797 = vmatprep.subr.bf16.mxu0 0
    %798 = vmatpush1.bf16.msra.mxu0 0
    %799 = vmatprep.subr.bf16.mxu0 0
    %800 = vmatpush1.bf16.msra.mxu0 0
    %801 = vmatprep.subr.bf16.mxu0 0
    %802 = vmatpush1.bf16.msra.mxu0 0
    %803 = vmatprep.subr.bf16.mxu0 0
    %804 = vmatpush1.bf16.msra.mxu0 0
    %805 = vmatprep.subr.bf16.mxu0 0
    %806 = vmatpush1.bf16.msra.mxu0 0
    %807 = vmatprep.subr.bf16.mxu0 0
    %808 = vmatpush1.bf16.msra.mxu0 0
    %809 = vmatprep.subr.bf16.mxu0 0
    %810 = vmatpush1.bf16.msra.mxu0 0
    %811 = vmatprep.subr.bf16.mxu0 0
    %812 = vmatpush1.bf16.msra.mxu0 0
    %813 = vmatprep.subr.bf16.mxu0 0
    %814 = vmatpush1.bf16.msra.mxu0 0
    %815 = vmatprep.mubr.bf16.mxu0 0
    %816 = vmatmul.mubr.bf16.gmra.mrb[0].mxu0 %v777
    %v817 = vpop.f32.mrb[0].mxu0
    %v818 = vadd.f32 0.0, %v817
    %v819 = vpop.f32.mrb[0].mxu0
    %v820 = vpop.f32.mrb[0].mxu0
    %v821 = vpop.f32.mrb[0].mxu0
    %822 = vdwg.mxu0
    %v824 = vsel %vm707, %v719, 0
    %v827 = vsel %vm779, %v720, 0
    %829 = vmatprep.subr.bf16.mxu0 0
    %830 = vmatpush1.bf16.msra.mxu0 %v827
    %831 = vmatprep.subr.bf16.mxu0 0
    %832 = vmatpush1.bf16.msra.mxu0 0
    %833 = vmatprep.subr.bf16.mxu0 0
    %834 = vmatpush1.bf16.msra.mxu0 0
    %835 = vmatprep.subr.bf16.mxu0 0
    %836 = vmatpush1.bf16.msra.mxu0 0
    %837 = vmatprep.subr.bf16.mxu0 0
    %838 = vmatpush1.bf16.msra.mxu0 0
    %839 = vmatprep.subr.bf16.mxu0 0
    %840 = vmatpush1.bf16.msra.mxu0 0
    %841 = vmatprep.subr.bf16.mxu0 0
    %842 = vmatpush1.bf16.msra.mxu0 0
    %843 = vmatprep.subr.bf16.mxu0 0
    %844 = vmatpush1.bf16.msra.mxu0 0
    %845 = vmatprep.subr.bf16.mxu0 0
    %846 = vmatpush1.bf16.msra.mxu0 0
    %847 = vmatprep.subr.bf16.mxu0 0
    %848 = vmatpush1.bf16.msra.mxu0 0
    %849 = vmatprep.subr.bf16.mxu0 0
    %850 = vmatpush1.bf16.msra.mxu0 0
    %851 = vmatprep.subr.bf16.mxu0 0
    %852 = vmatpush1.bf16.msra.mxu0 0
    %853 = vmatprep.subr.bf16.mxu0 0
    %854 = vmatpush1.bf16.msra.mxu0 0
    %855 = vmatprep.subr.bf16.mxu0 0
    %856 = vmatpush1.bf16.msra.mxu0 0
    %857 = vmatprep.subr.bf16.mxu0 0
    %858 = vmatpush1.bf16.msra.mxu0 0
    %859 = vmatprep.subr.bf16.mxu0 0
    %860 = vmatpush1.bf16.msra.mxu0 0
    %861 = vmatprep.mubr.bf16.mxu0 0
    %862 = vmatmul.mubr.bf16.gmra.mrb[0].mxu0 %v824
    %v863 = vpop.f32.mrb[0].mxu0
    %v864 = vadd.f32 %v818, %v863
    %v865 = vpop.f32.mrb[0].mxu0
    %v866 = vpop.f32.mrb[0].mxu0
    %v867 = vpop.f32.mrb[0].mxu0
    %868 = vdwg.mxu0
    %v869 = vmul.bf16 %v662, %v287
    %870 = vmatprep.subr.bf16.mxu0 0
    %871 = vmatpush1.bf16.xpose.msra.mxu0 %v663
    %872 = vmatprep.subr.bf16.mxu0 0
    %873 = vmatpush1.bf16.xpose.msra.mxu0 0
    %874 = vmatprep.subr.bf16.mxu0 0
    %875 = vmatpush1.bf16.xpose.msra.mxu0 0
    %876 = vmatprep.subr.bf16.mxu0 0
    %877 = vmatpush1.bf16.xpose.msra.mxu0 0
    %878 = vmatprep.subr.bf16.mxu0 0
    %879 = vmatpush1.bf16.xpose.msra.mxu0 0
    %880 = vmatprep.subr.bf16.mxu0 0
    %881 = vmatpush1.bf16.xpose.msra.mxu0 0
    %882 = vmatprep.subr.bf16.mxu0 0
    %883 = vmatpush1.bf16.xpose.msra.mxu0 0
    %884 = vmatprep.subr.bf16.mxu0 0
    %885 = vmatpush1.bf16.xpose.msra.mxu0 0
    %886 = vmatprep.subr.bf16.mxu0 0
    %887 = vmatpush1.bf16.xpose.msra.mxu0 0
    %888 = vmatprep.subr.bf16.mxu0 0
    %889 = vmatpush1.bf16.xpose.msra.mxu0 0
    %890 = vmatprep.subr.bf16.mxu0 0
    %891 = vmatpush1.bf16.xpose.msra.mxu0 0
    %892 = vmatprep.subr.bf16.mxu0 0
    %893 = vmatpush1.bf16.xpose.msra.mxu0 0
    %894 = vmatprep.subr.bf16.mxu0 0
    %895 = vmatpush1.bf16.xpose.msra.mxu0 0
    %896 = vmatprep.subr.bf16.mxu0 0
    %897 = vmatpush1.bf16.xpose.msra.mxu0 0
    %898 = vmatprep.subr.bf16.mxu0 0
    %899 = vmatpush1.bf16.xpose.msra.mxu0 0
    %900 = vmatprep.subr.bf16.mxu0 0
    %901 = vmatpush1.bf16.xpose.msra.mxu0 0
    %902 = vmatprep.mubr.bf16.mxu0 0
    %903 = vmatmul.mubr.bf16.gmra.mrb[0].mxu0 %v869
    %v904 = vpop.f32.mrb[0].mxu0
    %v905 = vadd.f32 0.0, %v904
    %v906 = vpop.f32.mrb[0].mxu0
    %v907 = vpop.f32.mrb[0].mxu0
    %v908 = vpop.f32.mrb[0].mxu0
    %909 = vdwg.mxu0
    %v910 = vsel %vm296, %v905, -1e+30
    %v911 = vsel %vm707, %v910, -inf
    %912 = vmax.xlane.f32.xlu0 %v911
    %v913 = vpop.xlane.xlu0 %912
    %v914 = vsub.f32 %v910, %v913
    %v915 = vmul.f32 %v914, 1.442695
    %v916 = vpow.pop %v915
    %v917 = vsel %vm707, %v916, 0.0
    %918 = vadd.xlane.f32.xlu0 %v917
    %v919 = vpop.xlane.xlu0 %918
    %v920 = vrcp.pop %v919
    %v921 = vmul.f32 %v916, %v920
    %v922 = vpack.c.bf16 %v921, %v921
    %v923 = vmul.bf16 %v664, %v287
    %v925 = vsel %vm707, %v922, 0
    %v928 = vsel %vm779, %v923, 0
    %930 = vmatprep.subr.bf16.mxu0 0
    %931 = vmatpush1.bf16.msra.mxu0 %v928
    %932 = vmatprep.subr.bf16.mxu0 0
    %933 = vmatpush1.bf16.msra.mxu0 0
    %934 = vmatprep.subr.bf16.mxu0 0
    %935 = vmatpush1.bf16.msra.mxu0 0
    %936 = vmatprep.subr.bf16.mxu0 0
    %937 = vmatpush1.bf16.msra.mxu0 0
    %938 = vmatprep.subr.bf16.mxu0 0
    %939 = vmatpush1.bf16.msra.mxu0 0
    %940 = vmatprep.subr.bf16.mxu0 0
    %941 = vmatpush1.bf16.msra.mxu0 0
    %942 = vmatprep.subr.bf16.mxu0 0
    %943 = vmatpush1.bf16.msra.mxu0 0
    %944 = vmatprep.subr.bf16.mxu0 0
    %945 = vmatpush1.bf16.msra.mxu0 0
    %946 = vmatprep.subr.bf16.mxu0 0
    %947 = vmatpush1.bf16.msra.mxu0 0
    %948 = vmatprep.subr.bf16.mxu0 0
    %949 = vmatpush1.bf16.msra.mxu0 0
    %950 = vmatprep.subr.bf16.mxu0 0
    %951 = vmatpush1.bf16.msra.mxu0 0
    %952 = vmatprep.subr.bf16.mxu0 0
    %953 = vmatpush1.bf16.msra.mxu0 0
    %954 = vmatprep.subr.bf16.mxu0 0
    %955 = vmatpush1.bf16.msra.mxu0 0
    %956 = vmatprep.subr.bf16.mxu0 0
    %957 = vmatpush1.bf16.msra.mxu0 0
    %958 = vmatprep.subr.bf16.mxu0 0
    %959 = vmatpush1.bf16.msra.mxu0 0
    %960 = vmatprep.subr.bf16.mxu0 0
    %961 = vmatpush1.bf16.msra.mxu0 0
    %962 = vmatprep.mubr.bf16.mxu0 0
    %963 = vmatmul.mubr.bf16.gmra.mrb[0].mxu0 %v925
    %v964 = vpop.f32.mrb[0].mxu0
    %v965 = vadd.f32 0.0, %v964
    %v966 = vpop.f32.mrb[0].mxu0
    %v967 = vpop.f32.mrb[0].mxu0
    %v968 = vpop.f32.mrb[0].mxu0
    %969 = vdwg.mxu0
    %v970 = vadd.f32 %v864, %v965
    %v971 = vmul.bf16 %v662, %v293
    %972 = vmatprep.subr.bf16.mxu0 0
    %973 = vmatpush1.bf16.xpose.msra.mxu0 %v663
    %974 = vmatprep.subr.bf16.mxu0 0
    %975 = vmatpush1.bf16.xpose.msra.mxu0 0
    %976 = vmatprep.subr.bf16.mxu0 0
    %977 = vmatpush1.bf16.xpose.msra.mxu0 0
    %978 = vmatprep.subr.bf16.mxu0 0
    %979 = vmatpush1.bf16.xpose.msra.mxu0 0
    %980 = vmatprep.subr.bf16.mxu0 0
    %981 = vmatpush1.bf16.xpose.msra.mxu0 0
    %982 = vmatprep.subr.bf16.mxu0 0
    %983 = vmatpush1.bf16.xpose.msra.mxu0 0
    %984 = vmatprep.subr.bf16.mxu0 0
    %985 = vmatpush1.bf16.xpose.msra.mxu0 0
    %986 = vmatprep.subr.bf16.mxu0 0
    %987 = vmatpush1.bf16.xpose.msra.mxu0 0
    %988 = vmatprep.subr.bf16.mxu0 0
    %989 = vmatpush1.bf16.xpose.msra.mxu0 0
    %990 = vmatprep.subr.bf16.mxu0 0
    %991 = vmatpush1.bf16.xpose.msra.mxu0 0
    %992 = vmatprep.subr.bf16.mxu0 0
    %993 = vmatpush1.bf16.xpose.msra.mxu0 0
    %994 = vmatprep.subr.bf16.mxu0 0
    %995 = vmatpush1.bf16.xpose.msra.mxu0 0
    %996 = vmatprep.subr.bf16.mxu0 0
    %997 = vmatpush1.bf16.xpose.msra.mxu0 0
    %998 = vmatprep.subr.bf16.mxu0 0
    %999 = vmatpush1.bf16.xpose.msra.mxu0 0
    %1000 = vmatprep.subr.bf16.mxu0 0
    %1001 = vmatpush1.bf16.xpose.msra.mxu0 0
    %1002 = vmatprep.subr.bf16.mxu0 0
    %1003 = vmatpush1.bf16.xpose.msra.mxu0 0
    %1004 = vmatprep.mubr.bf16.mxu0 0
    %1005 = vmatmul.mubr.bf16.gmra.mrb[0].mxu0 %v971
    %v1006 = vpop.f32.mrb[0].mxu0
    %v1007 = vadd.f32 0.0, %v1006
    %v1008 = vpop.f32.mrb[0].mxu0
    %v1009 = vpop.f32.mrb[0].mxu0
    %v1010 = vpop.f32.mrb[0].mxu0
    %1011 = vdwg.mxu0
    %v1012 = vsel %vm296, %v1007, -1e+30
    %v1013 = vsel %vm707, %v1012, -inf
    %1014 = vmax.xlane.f32.xlu0 %v1013
    %v1015 = vpop.xlane.xlu0 %1014
    %v1016 = vsub.f32 %v1012, %v1015
    %v1017 = vmul.f32 %v1016, 1.442695
    %v1018 = vpow.pop %v1017
    %v1019 = vsel %vm707, %v1018, 0.0
    %1020 = vadd.xlane.f32.xlu0 %v1019
    %v1021 = vpop.xlane.xlu0 %1020
    %v1022 = vrcp.pop %v1021
    %v1023 = vmul.f32 %v1018, %v1022
    %v1024 = vpack.c.bf16 %v1023, %v1023
    %v1025 = vmul.bf16 %v664, %v293
    %v1027 = vsel %vm707, %v1024, 0
    %v1030 = vsel %vm779, %v1025, 0
    %1032 = vmatprep.subr.bf16.mxu0 0
    %1033 = vmatpush1.bf16.msra.mxu0 %v1030
    %1034 = vmatprep.subr.bf16.mxu0 0
    %1035 = vmatpush1.bf16.msra.mxu0 0
    %1036 = vmatprep.subr.bf16.mxu0 0
    %1037 = vmatpush1.bf16.msra.mxu0 0
    %1038 = vmatprep.subr.bf16.mxu0 0
    %1039 = vmatpush1.bf16.msra.mxu0 0
    %1040 = vmatprep.subr.bf16.mxu0 0
    %1041 = vmatpush1.bf16.msra.mxu0 0
    %1042 = vmatprep.subr.bf16.mxu0 0
    %1043 = vmatpush1.bf16.msra.mxu0 0
    %1044 = vmatprep.subr.bf16.mxu0 0
    %1045 = vmatpush1.bf16.msra.mxu0 0
    %1046 = vmatprep.subr.bf16.mxu0 0
    %1047 = vmatpush1.bf16.msra.mxu0 0
    %1048 = vmatprep.subr.bf16.mxu0 0
    %1049 = vmatpush1.bf16.msra.mxu0 0
    %1050 = vmatprep.subr.bf16.mxu0 0
    %1051 = vmatpush1.bf16.msra.mxu0 0
    %1052 = vmatprep.subr.bf16.mxu0 0
    %1053 = vmatpush1.bf16.msra.mxu0 0
    %1054 = vmatprep.subr.bf16.mxu0 0
    %1055 = vmatpush1.bf16.msra.mxu0 0
    %1056 = vmatprep.subr.bf16.mxu0 0
    %1057 = vmatpush1.bf16.msra.mxu0 0
    %1058 = vmatprep.subr.bf16.mxu0 0
    %1059 = vmatpush1.bf16.msra.mxu0 0
    %1060 = vmatprep.subr.bf16.mxu0 0
    %1061 = vmatpush1.bf16.msra.mxu0 0
    %1062 = vmatprep.subr.bf16.mxu0 0
    %1063 = vmatpush1.bf16.msra.mxu0 0
    %1064 = vmatprep.mubr.bf16.mxu0 0
    %1065 = vmatmul.mubr.bf16.gmra.mrb[0].mxu0 %v1027
    %v1066 = vpop.f32.mrb[0].mxu0
    %v1067 = vadd.f32 0.0, %v1066
    %v1068 = vpop.f32.mrb[0].mxu0
    %v1069 = vpop.f32.mrb[0].mxu0
    %v1070 = vpop.f32.mrb[0].mxu0
    %1071 = vdwg.mxu0
    %v1072 = vadd.f32 %v970, %v1067
    %v1073 = vpack.c.bf16 %v1072, %v1072
    %v1074 = vld [vmem:[#allocation17] sm:$0xf]
    %v1075 = vld [vmem:[#allocation17 + $0x4] sm:$0xf]
    %v1076 = vld [vmem:[#allocation17 + $0x8] sm:$0xf]
    %v1077 = vld [vmem:[#allocation17 + $0xc] sm:$0xf]
    %v1078 = vld [vmem:[#allocation17 + $0x10] sm:$0xf]
    %v1079 = vld [vmem:[#allocation17 + $0x14] sm:$0xf]
    %v1080 = vld [vmem:[#allocation17 + $0x18] sm:$0xf]
    %v1081 = vld [vmem:[#allocation17 + $0x1c] sm:$0xf]
    %v1082 = vld [vmem:[#allocation17 + $0x20] sm:$0xf]
    %v1083 = vld [vmem:[#allocation17 + $0x24] sm:$0xf]
    %v1084 = vld [vmem:[#allocation17 + $0x28] sm:$0xf]
    %v1085 = vld [vmem:[#allocation17 + $0x2c] sm:$0xf]
    %v1086 = vld [vmem:[#allocation17 + $0x30] sm:$0xf]
    %v1087 = vld [vmem:[#allocation17 + $0x34] sm:$0xf]
    %v1088 = vld [vmem:[#allocation17 + $0x38] sm:$0xf]
    %v1089 = vld [vmem:[#allocation17 + $0x3c] sm:$0xf]
    %v1090 = vld [vmem:[#allocation19] sm:$0x1]
    %v1092 = vlaneseq
    %v1093 = vshrl.u32 %v1092, 7
    %v1094 = vsub.s32 0, %v1093
    %v1095 = vrot.slane %v1090, %v1094
    %v1113 = vunpack.c.l.b16 %v1074
    %v1114 = vunpack.c.l.b16 %v1075
    %v1115 = vunpack.c.l.b16 %v1076
    %v1116 = vunpack.c.l.b16 %v1077
    %v1117 = vunpack.c.l.b16 %v1078
    %v1118 = vunpack.c.l.b16 %v1079
    %v1119 = vunpack.c.l.b16 %v1080
    %v1120 = vunpack.c.l.b16 %v1081
    %v1121 = vunpack.c.l.b16 %v1082
    %v1122 = vunpack.c.l.b16 %v1083
    %v1123 = vunpack.c.l.b16 %v1084
    %v1124 = vunpack.c.l.b16 %v1085
    %v1125 = vunpack.c.l.b16 %v1086
    %v1126 = vunpack.c.l.b16 %v1087
    %v1127 = vunpack.c.l.b16 %v1088
    %v1128 = vunpack.c.l.b16 %v1089
    %v1129 = vpack.c.b16 %v1114, %v1113
    %v1130 = vpack.c.b16 %v1116, %v1115
    %v1131 = vpack.c.b16 %v1118, %v1117
    %v1132 = vpack.c.b16 %v1120, %v1119
    %v1133 = vpack.c.b16 %v1122, %v1121
    %v1134 = vpack.c.b16 %v1124, %v1123
    %v1135 = vpack.c.b16 %v1126, %v1125
    %v1136 = vpack.c.b16 %v1128, %v1127
    %1145 = vmatprep.subr.bf16.mxu0 0
    %1146 = vmatpush1.bf16.msra.mxu0 %v1129
    %1147 = vmatprep.subr.bf16.mxu0 0
    %1148 = vmatpush1.bf16.msra.mxu0 %v1130
    %1149 = vmatprep.subr.bf16.mxu0 0
    %1150 = vmatpush1.bf16.msra.mxu0 %v1131
    %1151 = vmatprep.subr.bf16.mxu0 0
    %1152 = vmatpush1.bf16.msra.mxu0 %v1132
    %1153 = vmatprep.subr.bf16.mxu0 0
    %1154 = vmatpush1.bf16.msra.mxu0 %v1133
    %1155 = vmatprep.subr.bf16.mxu0 0
    %1156 = vmatpush1.bf16.msra.mxu0 %v1134
    %1157 = vmatprep.subr.bf16.mxu0 0
    %1158 = vmatpush1.bf16.msra.mxu0 %v1135
    %1159 = vmatprep.subr.bf16.mxu0 0
    %1160 = vmatpush1.bf16.msra.mxu0 %v1136
    %1161 = vmatprep.subr.bf16.mxu0 0
    %1162 = vmatpush1.bf16.msra.mxu0 0
    %1163 = vmatprep.subr.bf16.mxu0 0
    %1164 = vmatpush1.bf16.msra.mxu0 0
    %1165 = vmatprep.subr.bf16.mxu0 0
    %1166 = vmatpush1.bf16.msra.mxu0 0
    %1167 = vmatprep.subr.bf16.mxu0 0
    %1168 = vmatpush1.bf16.msra.mxu0 0
    %1169 = vmatprep.subr.bf16.mxu0 0
    %1170 = vmatpush1.bf16.msra.mxu0 0
    %1171 = vmatprep.subr.bf16.mxu0 0
    %1172 = vmatpush1.bf16.msra.mxu0 0
    %1173 = vmatprep.subr.bf16.mxu0 0
    %1174 = vmatpush1.bf16.msra.mxu0 0
    %1175 = vmatprep.subr.bf16.mxu0 0
    %1176 = vmatpush1.bf16.msra.mxu0 0
    %1177 = vmatprep.mubr.bf16.mxu0 0
    %1178 = vmatmul.mubr.bf16.gmra.mrb[0].mxu0 %v1073
    %v1179 = vpop.f32.mrb[0].mxu0
    %v1180 = vadd.f32 %v1095, %v1179
    %v1181 = vpop.f32.mrb[0].mxu0
    %v1182 = vpop.f32.mrb[0].mxu0
    %v1183 = vpop.f32.mrb[0].mxu0
    %1184 = vdwg.mxu0
    %v1185 = vadd.f32 %v298, %v1180
    %v1186 = vld [vmem:[#allocation20] sm:$0x1]
    %v1187 = vld [vmem:[#allocation22] sm:$0x1]
    %1188 = vadd.xlane.f32.xlu0 %v1185
    %v1189 = vpop.xlane.xlu0 %1188
    %v1190 = vmul.f32 %v1189, %v303
    %v1191 = vsub.f32 %v1185, %v1190
    %v1192 = vmul.f32 %v1191, %v1191
    %1193 = vadd.xlane.f32.xlu0 %v1192
    %v1194 = vpop.xlane.xlu0 %1193
    %v1195 = vmul.f32 %v1194, %v303
    %v1196 = vadd.f32 %v1195, 1e-05
    %v1197 = vrsqrt.pop %v1196
    %v1198 = vmul.f32 %v1191, %v1197
    %v1200 = vlaneseq
    %v1201 = vshrl.u32 %v1200, 7
    %v1202 = vsub.s32 0, %v1201
    %v1203 = vrot.slane %v1186, %v1202
    %v1205 = vmul.f32 %v1198, %v1203
    %v1207 = vlaneseq
    %v1208 = vshrl.u32 %v1207, 7
    %v1209 = vsub.s32 0, %v1208
    %v1210 = vrot.slane %v1187, %v1209
    %v1212 = vadd.f32 %v1205, %v1210
    %v1213 = vpack.c.bf16 %v1212, %v1212
    %v1214 = vld [vmem:[#allocation23] sm:$0xff]
    %v1215 = vld [vmem:[#allocation23 + $0x8] sm:$0xff]
    %v1216 = vld [vmem:[#allocation23 + $0x10] sm:$0xff]
    %v1217 = vld [vmem:[#allocation23 + $0x18] sm:$0xff]
    %v1218 = vld [vmem:[#allocation23 + $0x20] sm:$0xff]
    %v1219 = vld [vmem:[#allocation23 + $0x28] sm:$0xff]
    %v1220 = vld [vmem:[#allocation23 + $0x30] sm:$0xff]
    %v1221 = vld [vmem:[#allocation23 + $0x38] sm:$0xff]
    %v1222 = vld [vmem:[#allocation23 + $0x40] sm:$0xff]
    %v1223 = vld [vmem:[#allocation23 + $0x48] sm:$0xff]
    %v1224 = vld [vmem:[#allocation23 + $0x50] sm:$0xff]
    %v1225 = vld [vmem:[#allocation23 + $0x58] sm:$0xff]
    %v1226 = vld [vmem:[#allocation23 + $0x60] sm:$0xff]
    %v1227 = vld [vmem:[#allocation23 + $0x68] sm:$0xff]
    %v1228 = vld [vmem:[#allocation23 + $0x70] sm:$0xff]
    %v1229 = vld [vmem:[#allocation23 + $0x78] sm:$0xff]
    %v1230 = vld [vmem:[#allocation23 + $0x80] sm:$0xff]
    %v1231 = vld [vmem:[#allocation23 + $0x88] sm:$0xff]
    %v1232 = vld [vmem:[#allocation23 + $0x90] sm:$0xff]
    %v1233 = vld [vmem:[#allocation23 + $0x98] sm:$0xff]
    %v1234 = vld [vmem:[#allocation23 + $0xa0] sm:$0xff]
    %v1235 = vld [vmem:[#allocation23 + $0xa8] sm:$0xff]
    %v1236 = vld [vmem:[#allocation23 + $0xb0] sm:$0xff]
    %v1237 = vld [vmem:[#allocation23 + $0xb8] sm:$0xff]
    %v1238 = vld [vmem:[#allocation23 + $0xc0] sm:$0xff]
    %v1239 = vld [vmem:[#allocation23 + $0xc8] sm:$0xff]
    %v1240 = vld [vmem:[#allocation23 + $0xd0] sm:$0xff]
    %v1241 = vld [vmem:[#allocation23 + $0xd8] sm:$0xff]
    %v1242 = vld [vmem:[#allocation23 + $0xe0] sm:$0xff]
    %v1243 = vld [vmem:[#allocation23 + $0xe8] sm:$0xff]
    %v1244 = vld [vmem:[#allocation23 + $0xf0] sm:$0xff]
    %v1245 = vld [vmem:[#allocation23 + $0xf8] sm:$0xff]
    %v1246 = vld [vmem:[#allocation25] sm:$0xf]
    %v1248 = vlaneseq
    %v1249 = vshrl.u32 %v1248, 7
    %v1250 = vsub.s32 0, %v1249
    %v1251 = vrot.slane %v1246, %v1250
    %v1252 = vlaneseq
    %v1253 = vshrl.u32 %v1252, 7
    %v1254 = vsub.s32 1, %v1253
    %v1255 = vrot.slane %v1246, %v1254
    %v1256 = vlaneseq
    %v1257 = vshrl.u32 %v1256, 7
    %v1258 = vsub.s32 2, %v1257
    %v1259 = vrot.slane %v1246, %v1258
    %v1260 = vlaneseq
    %v1261 = vshrl.u32 %v1260, 7
    %v1262 = vsub.s32 3, %v1261
    %v1263 = vrot.slane %v1246, %v1262
    %v1300 = vunpack.c.l.b16 %v1214
    %v1301 = vunpack.c.h.b16 %v1214
    %v1302 = vunpack.c.l.b16 %v1215
    %v1303 = vunpack.c.h.b16 %v1215
    %v1304 = vunpack.c.l.b16 %v1216
    %v1305 = vunpack.c.h.b16 %v1216
    %v1306 = vunpack.c.l.b16 %v1217
    %v1307 = vunpack.c.h.b16 %v1217
    %v1308 = vunpack.c.l.b16 %v1218
    %v1309 = vunpack.c.h.b16 %v1218
    %v1310 = vunpack.c.l.b16 %v1219
    %v1311 = vunpack.c.h.b16 %v1219
    %v1312 = vunpack.c.l.b16 %v1220
    %v1313 = vunpack.c.h.b16 %v1220
    %v1314 = vunpack.c.l.b16 %v1221
    %v1315 = vunpack.c.h.b16 %v1221
    %v1316 = vunpack.c.l.b16 %v1222
    %v1317 = vunpack.c.h.b16 %v1222
    %v1318 = vunpack.c.l.b16 %v1223
    %v1319 = vunpack.c.h.b16 %v1223
    %v1320 = vunpack.c.l.b16 %v1224
    %v1321 = vunpack.c.h.b16 %v1224
    %v1322 = vunpack.c.l.b16 %v1225
    %v1323 = vunpack.c.h.b16 %v1225
    %v1324 = vunpack.c.l.b16 %v1226
    %v1325 = vunpack.c.h.b16 %v1226
    %v1326 = vunpack.c.l.b16 %v1227
    %v1327 = vunpack.c.h.b16 %v1227
    %v1328 = vunpack.c.l.b16 %v1228
    %v1329 = vunpack.c.h.b16 %v1228
    %v1330 = vunpack.c.l.b16 %v1229
    %v1331 = vunpack.c.h.b16 %v1229
    %v1332 = vunpack.c.l.b16 %v1230
    %v1333 = vunpack.c.h.b16 %v1230
    %v1334 = vunpack.c.l.b16 %v1231
    %v1335 = vunpack.c.h.b16 %v1231
    %v1336 = vunpack.c.l.b16 %v1232
    %v1337 = vunpack.c.h.b16 %v1232
    %v1338 = vunpack.c.l.b16 %v1233
    %v1339 = vunpack.c.h.b16 %v1233
    %v1340 = vunpack.c.l.b16 %v1234
    %v1341 = vunpack.c.h.b16 %v1234
    %v1342 = vunpack.c.l.b16 %v1235
    %v1343 = vunpack.c.h.b16 %v1235
    %v1344 = vunpack.c.l.b16 %v1236
    %v1345 = vunpack.c.h.b16 %v1236
    %v1346 = vunpack.c.l.b16 %v1237
    %v1347 = vunpack.c.h.b16 %v1237
    %v1348 = vunpack.c.l.b16 %v1238
    %v1349 = vunpack.c.h.b16 %v1238
    %v1350 = vunpack.c.l.b16 %v1239
    %v1351 = vunpack.c.h.b16 %v1239
    %v1352 = vunpack.c.l.b16 %v1240
    %v1353 = vunpack.c.h.b16 %v1240
    %v1354 = vunpack.c.l.b16 %v1241
    %v1355 = vunpack.c.h.b16 %v1241
    %v1356 = vunpack.c.l.b16 %v1242
    %v1357 = vunpack.c.h.b16 %v1242
    %v1358 = vunpack.c.l.b16 %v1243
    %v1359 = vunpack.c.h.b16 %v1243
    %v1360 = vunpack.c.l.b16 %v1244
    %v1361 = vunpack.c.h.b16 %v1244
    %v1362 = vunpack.c.l.b16 %v1245
    %v1363 = vunpack.c.h.b16 %v1245
    %v1364 = vpack.c.b16 %v1304, %v1300
    %v1365 = vpack.c.b16 %v1305, %v1301
    %v1366 = vpack.c.b16 %v1306, %v1302
    %v1367 = vpack.c.b16 %v1307, %v1303
    %v1368 = vpack.c.b16 %v1312, %v1308
    %v1369 = vpack.c.b16 %v1313, %v1309
    %v1370 = vpack.c.b16 %v1314, %v1310
    %v1371 = vpack.c.b16 %v1315, %v1311
    %v1372 = vpack.c.b16 %v1320, %v1316
    %v1373 = vpack.c.b16 %v1321, %v1317
    %v1374 = vpack.c.b16 %v1322, %v1318
    %v1375 = vpack.c.b16 %v1323, %v1319
    %v1376 = vpack.c.b16 %v1328, %v1324
    %v1377 = vpack.c.b16 %v1329, %v1325
    %v1378 = vpack.c.b16 %v1330, %v1326
    %v1379 = vpack.c.b16 %v1331, %v1327
    %v1380 = vpack.c.b16 %v1336, %v1332
    %v1381 = vpack.c.b16 %v1337, %v1333
    %v1382 = vpack.c.b16 %v1338, %v1334
    %v1383 = vpack.c.b16 %v1339, %v1335
    %v1384 = vpack.c.b16 %v1344, %v1340
    %v1385 = vpack.c.b16 %v1345, %v1341
    %v1386 = vpack.c.b16 %v1346, %v1342
    %v1387 = vpack.c.b16 %v1347, %v1343
    %v1388 = vpack.c.b16 %v1352, %v1348
    %v1389 = vpack.c.b16 %v1353, %v1349
    %v1390 = vpack.c.b16 %v1354, %v1350
    %v1391 = vpack.c.b16 %v1355, %v1351
    %v1392 = vpack.c.b16 %v1360, %v1356
    %v1393 = vpack.c.b16 %v1361, %v1357
    %v1394 = vpack.c.b16 %v1362, %v1358
    %v1395 = vpack.c.b16 %v1363, %v1359
    %1428 = vmatprep.subr.bf16.mxu0 %v1365
    %1429 = vmatpush1.bf16.msra.mxu0 %v1364
    %1430 = vmatprep.subr.bf16.mxu0 %v1369
    %1431 = vmatpush1.bf16.msra.mxu0 %v1368
    %1432 = vmatprep.subr.bf16.mxu0 %v1373
    %1433 = vmatpush1.bf16.msra.mxu0 %v1372
    %1434 = vmatprep.subr.bf16.mxu0 %v1377
    %1435 = vmatpush1.bf16.msra.mxu0 %v1376
    %1436 = vmatprep.subr.bf16.mxu0 %v1381
    %1437 = vmatpush1.bf16.msra.mxu0 %v1380
    %1438 = vmatprep.subr.bf16.mxu0 %v1385
    %1439 = vmatpush1.bf16.msra.mxu0 %v1384
    %1440 = vmatprep.subr.bf16.mxu0 %v1389
    %1441 = vmatpush1.bf16.msra.mxu0 %v1388
    %1442 = vmatprep.subr.bf16.mxu0 %v1393
    %1443 = vmatpush1.bf16.msra.mxu0 %v1392
    %1444 = vmatprep.subr.bf16.mxu0 0
    %1445 = vmatpush1.bf16.msra.mxu0 0
    %1446 = vmatprep.subr.bf16.mxu0 0
    %1447 = vmatpush1.bf16.msra.mxu0 0
    %1448 = vmatprep.subr.bf16.mxu0 0
    %1449 = vmatpush1.bf16.msra.mxu0 0
    %1450 = vmatprep.subr.bf16.mxu0 0
    %1451 = vmatpush1.bf16.msra.mxu0 0
    %1452 = vmatprep.subr.bf16.mxu0 0
    %1453 = vmatpush1.bf16.msra.mxu0 0
    %1454 = vmatprep.subr.bf16.mxu0 0
    %1455 = vmatpush1.bf16.msra.mxu0 0
    %1456 = vmatprep.subr.bf16.mxu0 0
    %1457 = vmatpush1.bf16.msra.mxu0 0
    %1458 = vmatprep.subr.bf16.mxu0 0
    %1459 = vmatpush1.bf16.msra.mxu0 0
    %1460 = vmatprep.mubr.bf16.mxu0 0
    %1461 = vmatmul.mubr.bf16.gmra.mrb[0].mxu0 %v1213
    %v1462 = vpop.f32.mrb[0].mxu0
    %v1463 = vadd.f32 %v1251, %v1462
    %v1464 = vpop.f32.mrb[0].mxu0
    %v1465 = vadd.f32 %v1255, %v1464
    %v1466 = vpop.f32.mrb[0].mxu0
    %v1467 = vpop.f32.mrb[0].mxu0
    %1468 = vdwg.mxu0
    %1469 = vmatprep.subr.bf16.mxu0 %v1367
    %1470 = vmatpush1.bf16.msra.mxu0 %v1366
    %1471 = vmatprep.subr.bf16.mxu0 %v1371
    %1472 = vmatpush1.bf16.msra.mxu0 %v1370
    %1473 = vmatprep.subr.bf16.mxu0 %v1375
    %1474 = vmatpush1.bf16.msra.mxu0 %v1374
    %1475 = vmatprep.subr.bf16.mxu0 %v1379
    %1476 = vmatpush1.bf16.msra.mxu0 %v1378
    %1477 = vmatprep.subr.bf16.mxu0 %v1383
    %1478 = vmatpush1.bf16.msra.mxu0 %v1382
    %1479 = vmatprep.subr.bf16.mxu0 %v1387
    %1480 = vmatpush1.bf16.msra.mxu0 %v1386
    %1481 = vmatprep.subr.bf16.mxu0 %v1391
    %1482 = vmatpush1.bf16.msra.mxu0 %v1390
    %1483 = vmatprep.subr.bf16.mxu0 %v1395
    %1484 = vmatpush1.bf16.msra.mxu0 %v1394
    %1485 = vmatprep.subr.bf16.mxu0 0
    %1486 = vmatpush1.bf16.msra.mxu0 0
    %1487 = vmatprep.subr.bf16.mxu0 0
    %1488 = vmatpush1.bf16.msra.mxu0 0
    %1489 = vmatprep.subr.bf16.mxu0 0
    %1490 = vmatpush1.bf16.msra.mxu0 0
    %1491 = vmatprep.subr.bf16.mxu0 0
    %1492 = vmatpush1.bf16.msra.mxu0 0
    %1493 = vmatprep.subr.bf16.mxu0 0
    %1494 = vmatpush1.bf16.msra.mxu0 0
    %1495 = vmatprep.subr.bf16.mxu0 0
    %1496 = vmatpush1.bf16.msra.mxu0 0
    %1497 = vmatprep.subr.bf16.mxu0 0
    %1498 = vmatpush1.bf16.msra.mxu0 0
    %1499 = vmatprep.subr.bf16.mxu0 0
    %1500 = vmatpush1.bf16.msra.mxu0 0
    %1501 = vmatprep.mubr.bf16.mxu0 0
    %1502 = vmatmul.mubr.bf16.gmra.mrb[0].mxu0 %v1213
    %v1503 = vpop.f32.mrb[0].mxu0
    %v1504 = vadd.f32 %v1259, %v1503
    %v1505 = vpop.f32.mrb[0].mxu0
    %v1506 = vadd.f32 %v1263, %v1505
    %v1507 = vpop.f32.mrb[0].mxu0
    %v1508 = vpop.f32.mrb[0].mxu0
    %1509 = vdwg.mxu0
    %v1510 = vmul.f32 %v1463, %v1463
    %v1511 = vmul.f32 %v1465, %v1465
    %v1512 = vmul.f32 %v1504, %v1504
    %v1513 = vmul.f32 %v1506, %v1506
    %v1514 = vmul.f32 %v1463, %v1510
    %v1515 = vmul.f32 %v1465, %v1511
    %v1516 = vmul.f32 %v1504, %v1512
    %v1517 = vmul.f32 %v1506, %v1513
    %v1518 = vmul.f32 %v1514, 0.044715
    %v1519 = vmul.f32 %v1515, 0.044715
    %v1520 = vmul.f32 %v1516, 0.044715
    %v1521 = vmul.f32 %v1517, 0.044715
    %v1522 = vadd.f32 %v1463, %v1518
    %v1523 = vadd.f32 %v1465, %v1519
    %v1524 = vadd.f32 %v1504, %v1520
    %v1525 = vadd.f32 %v1506, %v1521
    %v1526 = vmul.f32 %v1522, 0.7978846
    %v1527 = vmul.f32 %v1523, 0.7978846
    %v1528 = vmul.f32 %v1524, 0.7978846
    %v1529 = vmul.f32 %v1525, 0.7978846
    %v1530 = vtanh.pop %v1526
    %v1531 = vtanh.pop %v1527
    %v1532 = vtanh.pop %v1528
    %v1533 = vtanh.pop %v1529
    %v1534 = vadd.f32 %v1530, 1.0
    %v1535 = vadd.f32 %v1531, 1.0
    %v1536 = vadd.f32 %v1532, 1.0
    %v1537 = vadd.f32 %v1533, 1.0
    %v1538 = vmul.f32 %v1534, 0.5
    %v1539 = vmul.f32 %v1535, 0.5
    %v1540 = vmul.f32 %v1536, 0.5
    %v1541 = vmul.f32 %v1537, 0.5
    %v1542 = vmul.f32 %v1463, %v1538
    %v1543 = vmul.f32 %v1465, %v1539
    %v1544 = vmul.f32 %v1504, %v1540
    %v1545 = vmul.f32 %v1506, %v1541
    %v1546 = vpack.c.bf16 %v1542, %v1542
    %v1547 = vpack.c.bf16 %v1543, %v1543
    %v1548 = vpack.c.bf16 %v1544, %v1544
    %v1549 = vpack.c.bf16 %v1545, %v1545
    %v1550 = vld [vmem:[#allocation26] sm:$0xf]
    %v1551 = vld [vmem:[#allocation26 + $0x4] sm:$0xf]
    %v1552 = vld [vmem:[#allocation26 + $0x8] sm:$0xf]
    %v1553 = vld [vmem:[#allocation26 + $0xc] sm:$0xf]
    %v1554 = vld [vmem:[#allocation26 + $0x10] sm:$0xf]
    %v1555 = vld [vmem:[#allocation26 + $0x14] sm:$0xf]
    %v1556 = vld [vmem:[#allocation26 + $0x18] sm:$0xf]
    %v1557 = vld [vmem:[#allocation26 + $0x1c] sm:$0xf]
    %v1558 = vld [vmem:[#allocation26 + $0x20] sm:$0xf]
    %v1559 = vld [vmem:[#allocation26 + $0x24] sm:$0xf]
    %v1560 = vld [vmem:[#allocation26 + $0x28] sm:$0xf]
    %v1561 = vld [vmem:[#allocation26 + $0x2c] sm:$0xf]
    %v1562 = vld [vmem:[#allocation26 + $0x30] sm:$0xf]
    %v1563 = vld [vmem:[#allocation26 + $0x34] sm:$0xf]
    %v1564 = vld [vmem:[#allocation26 + $0x38] sm:$0xf]
    %v1565 = vld [vmem:[#allocation26 + $0x3c] sm:$0xf]
    %v1566 = vld [vmem:[#allocation26 + $0x40] sm:$0xf]
    %v1567 = vld [vmem:[#allocation26 + $0x44] sm:$0xf]
    %v1568 = vld [vmem:[#allocation26 + $0x48] sm:$0xf]
    %v1569 = vld [vmem:[#allocation26 + $0x4c] sm:$0xf]
    %v1570 = vld [vmem:[#allocation26 + $0x50] sm:$0xf]
    %v1571 = vld [vmem:[#allocation26 + $0x54] sm:$0xf]
    %v1572 = vld [vmem:[#allocation26 + $0x58] sm:$0xf]
    %v1573 = vld [vmem:[#allocation26 + $0x5c] sm:$0xf]
    %v1574 = vld [vmem:[#allocation26 + $0x60] sm:$0xf]
    %v1575 = vld [vmem:[#allocation26 + $0x64] sm:$0xf]
    %v1576 = vld [vmem:[#allocation26 + $0x68] sm:$0xf]
    %v1577 = vld [vmem:[#allocation26 + $0x6c] sm:$0xf]
    %v1578 = vld [vmem:[#allocation26 + $0x70] sm:$0xf]
    %v1579 = vld [vmem:[#allocation26 + $0x74] sm:$0xf]
    %v1580 = vld [vmem:[#allocation26 + $0x78] sm:$0xf]
    %v1581 = vld [vmem:[#allocation26 + $0x7c] sm:$0xf]
    %v1582 = vld [vmem:[#allocation26 + $0x80] sm:$0xf]
    %v1583 = vld [vmem:[#allocation26 + $0x84] sm:$0xf]
    %v1584 = vld [vmem:[#allocation26 + $0x88] sm:$0xf]
    %v1585 = vld [vmem:[#allocation26 + $0x8c] sm:$0xf]
    %v1586 = vld [vmem:[#allocation26 + $0x90] sm:$0xf]
    %v1587 = vld [vmem:[#allocation26 + $0x94] sm:$0xf]
    %v1588 = vld [vmem:[#allocation26 + $0x98] sm:$0xf]
    %v1589 = vld [vmem:[#allocation26 + $0x9c] sm:$0xf]
    %v1590 = vld [vmem:[#allocation26 + $0xa0] sm:$0xf]
    %v1591 = vld [vmem:[#allocation26 + $0xa4] sm:$0xf]
    %v1592 = vld [vmem:[#allocation26 + $0xa8] sm:$0xf]
    %v1593 = vld [vmem:[#allocation26 + $0xac] sm:$0xf]
    %v1594 = vld [vmem:[#allocation26 + $0xb0] sm:$0xf]
    %v1595 = vld [vmem:[#allocation26 + $0xb4] sm:$0xf]
    %v1596 = vld [vmem:[#allocation26 + $0xb8] sm:$0xf]
    %v1597 = vld [vmem:[#allocation26 + $0xbc] sm:$0xf]
    %v1598 = vld [vmem:[#allocation26 + $0xc0] sm:$0xf]
    %v1599 = vld [vmem:[#allocation26 + $0xc4] sm:$0xf]
    %v1600 = vld [vmem:[#allocation26 + $0xc8] sm:$0xf]
    %v1601 = vld [vmem:[#allocation26 + $0xcc] sm:$0xf]
    %v1602 = vld [vmem:[#allocation26 + $0xd0] sm:$0xf]
    %v1603 = vld [vmem:[#allocation26 + $0xd4] sm:$0xf]
    %v1604 = vld [vmem:[#allocation26 + $0xd8] sm:$0xf]
    %v1605 = vld [vmem:[#allocation26 + $0xdc] sm:$0xf]
    %v1606 = vld [vmem:[#allocation26 + $0xe0] sm:$0xf]
    %v1607 = vld [vmem:[#allocation26 + $0xe4] sm:$0xf]
    %v1608 = vld [vmem:[#allocation26 + $0xe8] sm:$0xf]
    %v1609 = vld [vmem:[#allocation26 + $0xec] sm:$0xf]
    %v1610 = vld [vmem:[#allocation26 + $0xf0] sm:$0xf]
    %v1611 = vld [vmem:[#allocation26 + $0xf4] sm:$0xf]
    %v1612 = vld [vmem:[#allocation26 + $0xf8] sm:$0xf]
    %v1613 = vld [vmem:[#allocation26 + $0xfc] sm:$0xf]
    %v1614 = vld [vmem:[#allocation28] sm:$0x1]
    %v1616 = vlaneseq
    %v1617 = vshrl.u32 %v1616, 7
    %v1618 = vsub.s32 0, %v1617
    %v1619 = vrot.slane %v1614, %v1618
    %v1685 = vunpack.c.l.b16 %v1550
    %v1686 = vunpack.c.l.b16 %v1551
    %v1687 = vunpack.c.l.b16 %v1552
    %v1688 = vunpack.c.l.b16 %v1553
    %v1689 = vunpack.c.l.b16 %v1554
    %v1690 = vunpack.c.l.b16 %v1555
    %v1691 = vunpack.c.l.b16 %v1556
    %v1692 = vunpack.c.l.b16 %v1557
    %v1693 = vunpack.c.l.b16 %v1558
    %v1694 = vunpack.c.l.b16 %v1559
    %v1695 = vunpack.c.l.b16 %v1560
    %v1696 = vunpack.c.l.b16 %v1561
    %v1697 = vunpack.c.l.b16 %v1562
    %v1698 = vunpack.c.l.b16 %v1563
    %v1699 = vunpack.c.l.b16 %v1564
    %v1700 = vunpack.c.l.b16 %v1565
    %v1701 = vunpack.c.l.b16 %v1566
    %v1702 = vunpack.c.l.b16 %v1567
    %v1703 = vunpack.c.l.b16 %v1568
    %v1704 = vunpack.c.l.b16 %v1569
    %v1705 = vunpack.c.l.b16 %v1570
    %v1706 = vunpack.c.l.b16 %v1571
    %v1707 = vunpack.c.l.b16 %v1572
    %v1708 = vunpack.c.l.b16 %v1573
    %v1709 = vunpack.c.l.b16 %v1574
    %v1710 = vunpack.c.l.b16 %v1575
    %v1711 = vunpack.c.l.b16 %v1576
    %v1712 = vunpack.c.l.b16 %v1577
    %v1713 = vunpack.c.l.b16 %v1578
    %v1714 = vunpack.c.l.b16 %v1579
    %v1715 = vunpack.c.l.b16 %v1580
    %v1716 = vunpack.c.l.b16 %v1581
    %v1717 = vunpack.c.l.b16 %v1582
    %v1718 = vunpack.c.l.b16 %v1583
    %v1719 = vunpack.c.l.b16 %v1584
    %v1720 = vunpack.c.l.b16 %v1585
    %v1721 = vunpack.c.l.b16 %v1586
    %v1722 = vunpack.c.l.b16 %v1587
    %v1723 = vunpack.c.l.b16 %v1588
    %v1724 = vunpack.c.l.b16 %v1589
    %v1725 = vunpack.c.l.b16 %v1590
    %v1726 = vunpack.c.l.b16 %v1591
    %v1727 = vunpack.c.l.b16 %v1592
    %v1728 = vunpack.c.l.b16 %v1593
    %v1729 = vunpack.c.l.b16 %v1594
    %v1730 = vunpack.c.l.b16 %v1595
    %v1731 = vunpack.c.l.b16 %v1596
    %v1732 = vunpack.c.l.b16 %v1597
    %v1733 = vunpack.c.l.b16 %v1598
    %v1734 = vunpack.c.l.b16 %v1599
    %v1735 = vunpack.c.l.b16 %v1600
    %v1736 = vunpack.c.l.b16 %v1601
    %v1737 = vunpack.c.l.b16 %v1602
    %v1738 = vunpack.c.l.b16 %v1603
    %v1739 = vunpack.c.l.b16 %v1604
    %v1740 = vunpack.c.l.b16 %v1605
    %v1741 = vunpack.c.l.b16 %v1606
    %v1742 = vunpack.c.l.b16 %v1607
    %v1743 = vunpack.c.l.b16 %v1608
    %v1744 = vunpack.c.l.b16 %v1609
    %v1745 = vunpack.c.l.b16 %v1610
    %v1746 = vunpack.c.l.b16 %v1611
    %v1747 = vunpack.c.l.b16 %v1612
    %v1748 = vunpack.c.l.b16 %v1613
    %v1749 = vpack.c.b16 %v1686, %v1685
    %v1750 = vpack.c.b16 %v1688, %v1687
    %v1751 = vpack.c.b16 %v1690, %v1689
    %v1752 = vpack.c.b16 %v1692, %v1691
    %v1753 = vpack.c.b16 %v1694, %v1693
    %v1754 = vpack.c.b16 %v1696, %v1695
    %v1755 = vpack.c.b16 %v1698, %v1697
    %v1756 = vpack.c.b16 %v1700, %v1699
    %v1757 = vpack.c.b16 %v1702, %v1701
    %v1758 = vpack.c.b16 %v1704, %v1703
    %v1759 = vpack.c.b16 %v1706, %v1705
    %v1760 = vpack.c.b16 %v1708, %v1707
    %v1761 = vpack.c.b16 %v1710, %v1709
    %v1762 = vpack.c.b16 %v1712, %v1711
    %v1763 = vpack.c.b16 %v1714, %v1713
    %v1764 = vpack.c.b16 %v1716, %v1715
    %v1765 = vpack.c.b16 %v1718, %v1717
    %v1766 = vpack.c.b16 %v1720, %v1719
    %v1767 = vpack.c.b16 %v1722, %v1721
    %v1768 = vpack.c.b16 %v1724, %v1723
    %v1769 = vpack.c.b16 %v1726, %v1725
    %v1770 = vpack.c.b16 %v1728, %v1727
    %v1771 = vpack.c.b16 %v1730, %v1729
    %v1772 = vpack.c.b16 %v1732, %v1731
    %v1773 = vpack.c.b16 %v1734, %v1733
    %v1774 = vpack.c.b16 %v1736, %v1735
    %v1775 = vpack.c.b16 %v1738, %v1737
    %v1776 = vpack.c.b16 %v1740, %v1739
    %v1777 = vpack.c.b16 %v1742, %v1741
    %v1778 = vpack.c.b16 %v1744, %v1743
    %v1779 = vpack.c.b16 %v1746, %v1745
    %v1780 = vpack.c.b16 %v1748, %v1747
    %1813 = vmatprep.subr.bf16.mxu0 0
    %1814 = vmatpush1.bf16.msra.mxu0 %v1749
    %1815 = vmatprep.subr.bf16.mxu0 0
    %1816 = vmatpush1.bf16.msra.mxu0 %v1750
    %1817 = vmatprep.subr.bf16.mxu0 0
    %1818 = vmatpush1.bf16.msra.mxu0 %v1751
    %1819 = vmatprep.subr.bf16.mxu0 0
    %1820 = vmatpush1.bf16.msra.mxu0 %v1752
    %1821 = vmatprep.subr.bf16.mxu0 0
    %1822 = vmatpush1.bf16.msra.mxu0 %v1753
    %1823 = vmatprep.subr.bf16.mxu0 0
    %1824 = vmatpush1.bf16.msra.mxu0 %v1754
    %1825 = vmatprep.subr.bf16.mxu0 0
    %1826 = vmatpush1.bf16.msra.mxu0 %v1755
    %1827 = vmatprep.subr.bf16.mxu0 0
    %1828 = vmatpush1.bf16.msra.mxu0 %v1756
    %1829 = vmatprep.subr.bf16.mxu0 0
    %1830 = vmatpush1.bf16.msra.mxu0 %v1757
    %1831 = vmatprep.subr.bf16.mxu0 0
    %1832 = vmatpush1.bf16.msra.mxu0 %v1758
    %1833 = vmatprep.subr.bf16.mxu0 0
    %1834 = vmatpush1.bf16.msra.mxu0 %v1759
    %1835 = vmatprep.subr.bf16.mxu0 0
    %1836 = vmatpush1.bf16.msra.mxu0 %v1760
    %1837 = vmatprep.subr.bf16.mxu0 0
    %1838 = vmatpush1.bf16.msra.mxu0 %v1761
    %1839 = vmatprep.subr.bf16.mxu0 0
    %1840 = vmatpush1.bf16.msra.mxu0 %v1762
    %1841 = vmatprep.subr.bf16.mxu0 0
    %1842 = vmatpush1.bf16.msra.mxu0 %v1763
    %1843 = vmatprep.subr.bf16.mxu0 0
    %1844 = vmatpush1.bf16.msra.mxu0 %v1764
    %1845 = vmatprep.mubr.bf16.mxu0 %v1547
    %1846 = vmatmul.mubr.bf16.gmra.mrb[0].mxu0 %v1546
    %v1847 = vpop.f32.mrb[0].mxu0
    %v1848 = vadd.f32 %v1619, %v1847
    %v1849 = vpop.f32.mrb[0].mxu0
    %v1850 = vpop.f32.mrb[0].mxu0
    %v1851 = vpop.f32.mrb[0].mxu0
    %1852 = vdwg.mxu0
    %1853 = vmatprep.subr.bf16.mxu0 0
    %1854 = vmatpush1.bf16.msra.mxu0 %v1765
    %1855 = vmatprep.subr.bf16.mxu0 0
    %1856 = vmatpush1.bf16.msra.mxu0 %v1766
    %1857 = vmatprep.subr.bf16.mxu0 0
    %1858 = vmatpush1.bf16.msra.mxu0 %v1767
    %1859 = vmatprep.subr.bf16.mxu0 0
    %1860 = vmatpush1.bf16.msra.mxu0 %v1768
    %1861 = vmatprep.subr.bf16.mxu0 0
    %1862 = vmatpush1.bf16.msra.mxu0 %v1769
    %1863 = vmatprep.subr.bf16.mxu0 0
    %1864 = vmatpush1.bf16.msra.mxu0 %v1770
    %1865 = vmatprep.subr.bf16.mxu0 0
    %1866 = vmatpush1.bf16.msra.mxu0 %v1771
    %1867 = vmatprep.subr.bf16.mxu0 0
    %1868 = vmatpush1.bf16.msra.mxu0 %v1772
    %1869 = vmatprep.subr.bf16.mxu0 0
    %1870 = vmatpush1.bf16.msra.mxu0 %v1773
    %1871 = vmatprep.subr.bf16.mxu0 0
    %1872 = vmatpush1.bf16.msra.mxu0 %v1774
    %1873 = vmatprep.subr.bf16.mxu0 0
    %1874 = vmatpush1.bf16.msra.mxu0 %v1775
    %1875 = vmatprep.subr.bf16.mxu0 0
    %1876 = vmatpush1.bf16.msra.mxu0 %v1776
    %1877 = vmatprep.subr.bf16.mxu0 0
    %1878 = vmatpush1.bf16.msra.mxu0 %v1777
    %1879 = vmatprep.subr.bf16.mxu0 0
    %1880 = vmatpush1.bf16.msra.mxu0 %v1778
    %1881 = vmatprep.subr.bf16.mxu0 0
    %1882 = vmatpush1.bf16.msra.mxu0 %v1779
    %1883 = vmatprep.subr.bf16.mxu0 0
    %1884 = vmatpush1.bf16.msra.mxu0 %v1780
    %1885 = vmatprep.mubr.bf16.mxu0 %v1549
    %1886 = vmatmul.mubr.bf16.gmra.mrb[0].mxu0 %v1548
    %v1887 = vpop.f32.mrb[0].mxu0
    %v1888 = vadd.f32 %v1848, %v1887
    %v1889 = vpop.f32.mrb[0].mxu0
    %v1890 = vpop.f32.mrb[0].mxu0
    %v1891 = vpop.f32.mrb[0].mxu0
    %1892 = vdwg.mxu0
    %v1893 = vadd.f32 %v1185, %v1888
    %v1894 = vpack.c.bf16 %v1893, %v1893
    %1895 = vst [vmem:[#allocation29] sm:$0xf] %v1894
    %s1896 = scalar_lea.vmem [#allocation2], 4
    %v1897 = vld [vmem:[%s1896] sm:$0xf]
    %v1898 = vunpack.c.l.bf16 %v1897
    %v1899 = vld [vmem:[#allocation5] sm:$0x1]
    %v1900 = vld [vmem:[#allocation7] sm:$0x1]
    %1901 = vadd.xlane.f32.xlu0 %v1898
    %v1902 = vpop.xlane.xlu0 %1901
    %v1903 = vmul.f32 %v1902, %v303
    %v1904 = vsub.f32 %v1898, %v1903
    %v1905 = vmul.f32 %v1904, %v1904
    %1906 = vadd.xlane.f32.xlu0 %v1905
    %v1907 = vpop.xlane.xlu0 %1906
    %v1908 = vmul.f32 %v1907, %v303
    %v1909 = vadd.f32 %v1908, 1e-05
    %v1910 = vrsqrt.pop %v1909
    %v1911 = vmul.f32 %v1904, %v1910
    %v1913 = vlaneseq
    %v1914 = vshrl.u32 %v1913, 7
    %v1915 = vsub.s32 0, %v1914
    %v1916 = vrot.slane %v1899, %v1915
    %v1918 = vmul.f32 %v1911, %v1916
    %v1920 = vlaneseq
    %v1921 = vshrl.u32 %v1920, 7
    %v1922 = vsub.s32 0, %v1921
    %v1923 = vrot.slane %v1900, %v1922
    %v1925 = vadd.f32 %v1918, %v1923
    %v1926 = vpack.c.bf16 %v1925, %v1925
    %v1927 = vld [vmem:[#allocation8] sm:$0xf]
    %v1928 = vld [vmem:[#allocation8 + $0x4] sm:$0xf]
    %v1929 = vld [vmem:[#allocation8 + $0x8] sm:$0xf]
    %v1930 = vld [vmem:[#allocation8 + $0xc] sm:$0xf]
    %v1931 = vld [vmem:[#allocation8 + $0x10] sm:$0xf]
    %v1932 = vld [vmem:[#allocation8 + $0x14] sm:$0xf]
    %v1933 = vld [vmem:[#allocation8 + $0x18] sm:$0xf]
    %v1934 = vld [vmem:[#allocation8 + $0x1c] sm:$0xf]
    %v1935 = vld [vmem:[#allocation8 + $0x20] sm:$0xf]
    %v1936 = vld [vmem:[#allocation8 + $0x24] sm:$0xf]
    %v1937 = vld [vmem:[#allocation8 + $0x28] sm:$0xf]
    %v1938 = vld [vmem:[#allocation8 + $0x2c] sm:$0xf]
    %v1939 = vld [vmem:[#allocation8 + $0x30] sm:$0xf]
    %v1940 = vld [vmem:[#allocation8 + $0x34] sm:$0xf]
    %v1941 = vld [vmem:[#allocation8 + $0x38] sm:$0xf]
    %v1942 = vld [vmem:[#allocation8 + $0x3c] sm:$0xf]
    %v1943 = vld [vmem:[#allocation10] sm:$0x1]
    %v1945 = vlaneseq
    %v1946 = vshrl.u32 %v1945, 7
    %v1947 = vsub.s32 0, %v1946
    %v1948 = vrot.slane %v1943, %v1947
    %v1966 = vunpack.c.l.b16 %v1927
    %v1967 = vunpack.c.l.b16 %v1928
    %v1968 = vunpack.c.l.b16 %v1929
    %v1969 = vunpack.c.l.b16 %v1930
    %v1970 = vunpack.c.l.b16 %v1931
    %v1971 = vunpack.c.l.b16 %v1932
    %v1972 = vunpack.c.l.b16 %v1933
    %v1973 = vunpack.c.l.b16 %v1934
    %v1974 = vunpack.c.l.b16 %v1935
    %v1975 = vunpack.c.l.b16 %v1936
    %v1976 = vunpack.c.l.b16 %v1937
    %v1977 = vunpack.c.l.b16 %v1938
    %v1978 = vunpack.c.l.b16 %v1939
    %v1979 = vunpack.c.l.b16 %v1940
    %v1980 = vunpack.c.l.b16 %v1941
    %v1981 = vunpack.c.l.b16 %v1942
    %v1982 = vpack.c.b16 %v1967, %v1966
    %v1983 = vpack.c.b16 %v1969, %v1968
    %v1984 = vpack.c.b16 %v1971, %v1970
    %v1985 = vpack.c.b16 %v1973, %v1972
    %v1986 = vpack.c.b16 %v1975, %v1974
    %v1987 = vpack.c.b16 %v1977, %v1976
    %v1988 = vpack.c.b16 %v1979, %v1978
    %v1989 = vpack.c.b16 %v1981, %v1980
    %1998 = vmatprep.subr.bf16.mxu0 0
    %1999 = vmatpush1.bf16.msra.mxu0 %v1982
    %2000 = vmatprep.subr.bf16.mxu0 0
    %2001 = vmatpush1.bf16.msra.mxu0 %v1983
    %2002 = vmatprep.subr.bf16.mxu0 0
    %2003 = vmatpush1.bf16.msra.mxu0 %v1984
    %2004 = vmatprep.subr.bf16.mxu0 0
    %2005 = vmatpush1.bf16.msra.mxu0 %v1985
    %2006 = vmatprep.subr.bf16.mxu0 0
    %2007 = vmatpush1.bf16.msra.mxu0 %v1986
    %2008 = vmatprep.subr.bf16.mxu0 0
    %2009 = vmatpush1.bf16.msra.mxu0 %v1987
    %2010 = vmatprep.subr.bf16.mxu0 0
    %2011 = vmatpush1.bf16.msra.mxu0 %v1988
    %2012 = vmatprep.subr.bf16.mxu0 0
    %2013 = vmatpush1.bf16.msra.mxu0 %v1989
    %2014 = vmatprep.subr.bf16.mxu0 0
    %2015 = vmatpush1.bf16.msra.mxu0 0
    %2016 = vmatprep.subr.bf16.mxu0 0
    %2017 = vmatpush1.bf16.msra.mxu0 0
    %2018 = vmatprep.subr.bf16.mxu0 0
    %2019 = vmatpush1.bf16.msra.mxu0 0
    %2020 = vmatprep.subr.bf16.mxu0 0
    %2021 = vmatpush1.bf16.msra.mxu0 0
    %2022 = vmatprep.subr.bf16.mxu0 0
    %2023 = vmatpush1.bf16.msra.mxu0 0
    %2024 = vmatprep.subr.bf16.mxu0 0
    %2025 = vmatpush1.bf16.msra.mxu0 0
    %2026 = vmatprep.subr.bf16.mxu0 0
    %2027 = vmatpush1.bf16.msra.mxu0 0
    %2028 = vmatprep.subr.bf16.mxu0 0
    %2029 = vmatpush1.bf16.msra.mxu0 0
    %2030 = vmatprep.mubr.bf16.mxu0 0
    %2031 = vmatmul.mubr.bf16.gmra.mrb[0].mxu0 %v1926
    %v2032 = vpop.f32.mrb[0].mxu0
    %v2033 = vadd.f32 %v1948, %v2032
    %v2034 = vpop.f32.mrb[0].mxu0
    %v2035 = vpop.f32.mrb[0].mxu0
    %v2036 = vpop.f32.mrb[0].mxu0
    %2037 = vdwg.mxu0
    %v2038 = vld [vmem:[#allocation11] sm:$0xf]
    %v2039 = vld [vmem:[#allocation11 + $0x4] sm:$0xf]
    %v2040 = vld [vmem:[#allocation11 + $0x8] sm:$0xf]
    %v2041 = vld [vmem:[#allocation11 + $0xc] sm:$0xf]
    %v2042 = vld [vmem:[#allocation11 + $0x10] sm:$0xf]
    %v2043 = vld [vmem:[#allocation11 + $0x14] sm:$0xf]
    %v2044 = vld [vmem:[#allocation11 + $0x18] sm:$0xf]
    %v2045 = vld [vmem:[#allocation11 + $0x1c] sm:$0xf]
    %v2046 = vld [vmem:[#allocation11 + $0x20] sm:$0xf]
    %v2047 = vld [vmem:[#allocation11 + $0x24] sm:$0xf]
    %v2048 = vld [vmem:[#allocation11 + $0x28] sm:$0xf]
    %v2049 = vld [vmem:[#allocation11 + $0x2c] sm:$0xf]
    %v2050 = vld [vmem:[#allocation11 + $0x30] sm:$0xf]
    %v2051 = vld [vmem:[#allocation11 + $0x34] sm:$0xf]
    %v2052 = vld [vmem:[#allocation11 + $0x38] sm:$0xf]
    %v2053 = vld [vmem:[#allocation11 + $0x3c] sm:$0xf]
    %v2054 = vld [vmem:[#allocation13] sm:$0x1]
    %v2056 = vlaneseq
    %v2057 = vshrl.u32 %v2056, 7
    %v2058 = vsub.s32 0, %v2057
    %v2059 = vrot.slane %v2054, %v2058
    %v2077 = vunpack.c.l.b16 %v2038
    %v2078 = vunpack.c.l.b16 %v2039
    %v2079 = vunpack.c.l.b16 %v2040
    %v2080 = vunpack.c.l.b16 %v2041
    %v2081 = vunpack.c.l.b16 %v2042
    %v2082 = vunpack.c.l.b16 %v2043
    %v2083 = vunpack.c.l.b16 %v2044
    %v2084 = vunpack.c.l.b16 %v2045
    %v2085 = vunpack.c.l.b16 %v2046
    %v2086 = vunpack.c.l.b16 %v2047
    %v2087 = vunpack.c.l.b16 %v2048
    %v2088 = vunpack.c.l.b16 %v2049
    %v2089 = vunpack.c.l.b16 %v2050
    %v2090 = vunpack.c.l.b16 %v2051
    %v2091 = vunpack.c.l.b16 %v2052
    %v2092 = vunpack.c.l.b16 %v2053
    %v2093 = vpack.c.b16 %v2078, %v2077
    %v2094 = vpack.c.b16 %v2080, %v2079
    %v2095 = vpack.c.b16 %v2082, %v2081
    %v2096 = vpack.c.b16 %v2084, %v2083
    %v2097 = vpack.c.b16 %v2086, %v2085
    %v2098 = vpack.c.b16 %v2088, %v2087
    %v2099 = vpack.c.b16 %v2090, %v2089
    %v2100 = vpack.c.b16 %v2092, %v2091
    %2109 = vmatprep.subr.bf16.mxu0 0
    %2110 = vmatpush1.bf16.msra.mxu0 %v2093
    %2111 = vmatprep.subr.bf16.mxu0 0
    %2112 = vmatpush1.bf16.msra.mxu0 %v2094
    %2113 = vmatprep.subr.bf16.mxu0 0
    %2114 = vmatpush1.bf16.msra.mxu0 %v2095
    %2115 = vmatprep.subr.bf16.mxu0 0
    %2116 = vmatpush1.bf16.msra.mxu0 %v2096
    %2117 = vmatprep.subr.bf16.mxu0 0
    %2118 = vmatpush1.bf16.msra.mxu0 %v2097
    %2119 = vmatprep.subr.bf16.mxu0 0
    %2120 = vmatpush1.bf16.msra.mxu0 %v2098
    %2121 = vmatprep.subr.bf16.mxu0 0
    %2122 = vmatpush1.bf16.msra.mxu0 %v2099
    %2123 = vmatprep.subr.bf16.mxu0 0
    %2124 = vmatpush1.bf16.msra.mxu0 %v2100
    %2125 = vmatprep.subr.bf16.mxu0 0
    %2126 = vmatpush1.bf16.msra.mxu0 0
    %2127 = vmatprep.subr.bf16.mxu0 0
    %2128 = vmatpush1.bf16.msra.mxu0 0
    %2129 = vmatprep.subr.bf16.mxu0 0
    %2130 = vmatpush1.bf16.msra.mxu0 0
    %2131 = vmatprep.subr.bf16.mxu0 0
    %2132 = vmatpush1.bf16.msra.mxu0 0
    %2133 = vmatprep.subr.bf16.mxu0 0
    %2134 = vmatpush1.bf16.msra.mxu0 0
    %2135 = vmatprep.subr.bf16.mxu0 0
    %2136 = vmatpush1.bf16.msra.mxu0 0
    %2137 = vmatprep.subr.bf16.mxu0 0
    %2138 = vmatpush1.bf16.msra.mxu0 0
    %2139 = vmatprep.subr.bf16.mxu0 0
    %2140 = vmatpush1.bf16.msra.mxu0 0
    %2141 = vmatprep.mubr.bf16.mxu0 0
    %2142 = vmatmul.mubr.bf16.gmra.mrb[0].mxu0 %v1926
    %v2143 = vpop.f32.mrb[0].mxu0
    %v2144 = vadd.f32 %v2059, %v2143
    %v2145 = vpop.f32.mrb[0].mxu0
    %v2146 = vpop.f32.mrb[0].mxu0
    %v2147 = vpop.f32.mrb[0].mxu0
    %2148 = vdwg.mxu0
    %v2149 = vld [vmem:[#allocation14] sm:$0xf]
    %v2150 = vld [vmem:[#allocation14 + $0x4] sm:$0xf]
    %v2151 = vld [vmem:[#allocation14 + $0x8] sm:$0xf]
    %v2152 = vld [vmem:[#allocation14 + $0xc] sm:$0xf]
    %v2153 = vld [vmem:[#allocation14 + $0x10] sm:$0xf]
    %v2154 = vld [vmem:[#allocation14 + $0x14] sm:$0xf]
    %v2155 = vld [vmem:[#allocation14 + $0x18] sm:$0xf]
    %v2156 = vld [vmem:[#allocation14 + $0x1c] sm:$0xf]
    %v2157 = vld [vmem:[#allocation14 + $0x20] sm:$0xf]
    %v2158 = vld [vmem:[#allocation14 + $0x24] sm:$0xf]
    %v2159 = vld [vmem:[#allocation14 + $0x28] sm:$0xf]
    %v2160 = vld [vmem:[#allocation14 + $0x2c] sm:$0xf]
    %v2161 = vld [vmem:[#allocation14 + $0x30] sm:$0xf]
    %v2162 = vld [vmem:[#allocation14 + $0x34] sm:$0xf]
    %v2163 = vld [vmem:[#allocation14 + $0x38] sm:$0xf]
    %v2164 = vld [vmem:[#allocation14 + $0x3c] sm:$0xf]
    %v2165 = vld [vmem:[#allocation16] sm:$0x1]
    %v2167 = vlaneseq
    %v2168 = vshrl.u32 %v2167, 7
    %v2169 = vsub.s32 0, %v2168
    %v2170 = vrot.slane %v2165, %v2169
    %v2188 = vunpack.c.l.b16 %v2149
    %v2189 = vunpack.c.l.b16 %v2150
    %v2190 = vunpack.c.l.b16 %v2151
    %v2191 = vunpack.c.l.b16 %v2152
    %v2192 = vunpack.c.l.b16 %v2153
    %v2193 = vunpack.c.l.b16 %v2154
    %v2194 = vunpack.c.l.b16 %v2155
    %v2195 = vunpack.c.l.b16 %v2156
    %v2196 = vunpack.c.l.b16 %v2157
    %v2197 = vunpack.c.l.b16 %v2158
    %v2198 = vunpack.c.l.b16 %v2159
    %v2199 = vunpack.c.l.b16 %v2160
    %v2200 = vunpack.c.l.b16 %v2161
    %v2201 = vunpack.c.l.b16 %v2162
    %v2202 = vunpack.c.l.b16 %v2163
    %v2203 = vunpack.c.l.b16 %v2164
    %v2204 = vpack.c.b16 %v2189, %v2188
    %v2205 = vpack.c.b16 %v2191, %v2190
    %v2206 = vpack.c.b16 %v2193, %v2192
    %v2207 = vpack.c.b16 %v2195, %v2194
    %v2208 = vpack.c.b16 %v2197, %v2196
    %v2209 = vpack.c.b16 %v2199, %v2198
    %v2210 = vpack.c.b16 %v2201, %v2200
    %v2211 = vpack.c.b16 %v2203, %v2202
    %2220 = vmatprep.subr.bf16.mxu0 0
    %2221 = vmatpush1.bf16.msra.mxu0 %v2204
    %2222 = vmatprep.subr.bf16.mxu0 0
    %2223 = vmatpush1.bf16.msra.mxu0 %v2205
    %2224 = vmatprep.subr.bf16.mxu0 0
    %2225 = vmatpush1.bf16.msra.mxu0 %v2206
    %2226 = vmatprep.subr.bf16.mxu0 0
    %2227 = vmatpush1.bf16.msra.mxu0 %v2207
    %2228 = vmatprep.subr.bf16.mxu0 0
    %2229 = vmatpush1.bf16.msra.mxu0 %v2208
    %2230 = vmatprep.subr.bf16.mxu0 0
    %2231 = vmatpush1.bf16.msra.mxu0 %v2209
    %2232 = vmatprep.subr.bf16.mxu0 0
    %2233 = vmatpush1.bf16.msra.mxu0 %v2210
    %2234 = vmatprep.subr.bf16.mxu0 0
    %2235 = vmatpush1.bf16.msra.mxu0 %v2211
    %2236 = vmatprep.subr.bf16.mxu0 0
    %2237 = vmatpush1.bf16.msra.mxu0 0
    %2238 = vmatprep.subr.bf16.mxu0 0
    %2239 = vmatpush1.bf16.msra.mxu0 0
    %2240 = vmatprep.subr.bf16.mxu0 0
    %2241 = vmatpush1.bf16.msra.mxu0 0
    %2242 = vmatprep.subr.bf16.mxu0 0
    %2243 = vmatpush1.bf16.msra.mxu0 0
    %2244 = vmatprep.subr.bf16.mxu0 0
    %2245 = vmatpush1.bf16.msra.mxu0 0
    %2246 = vmatprep.subr.bf16.mxu0 0
    %2247 = vmatpush1.bf16.msra.mxu0 0
    %2248 = vmatprep.subr.bf16.mxu0 0
    %2249 = vmatpush1.bf16.msra.mxu0 0
    %2250 = vmatprep.subr.bf16.mxu0 0
    %2251 = vmatpush1.bf16.msra.mxu0 0
    %2252 = vmatprep.mubr.bf16.mxu0 0
    %2253 = vmatmul.mubr.bf16.gmra.mrb[0].mxu0 %v1926
    %v2254 = vpop.f32.mrb[0].mxu0
    %v2255 = vadd.f32 %v2170, %v2254
    %v2256 = vpop.f32.mrb[0].mxu0
    %v2257 = vpop.f32.mrb[0].mxu0
    %v2258 = vpop.f32.mrb[0].mxu0
    %2259 = vdwg.mxu0
    %v2260 = vmul.f32 %v2033, 0.17677669
    %v2261 = vpack.c.bf16 %v2260, %v2260
    %v2262 = vpack.c.bf16 %v2144, %v2144
    %v2263 = vpack.c.bf16 %v2255, %v2255
    %v2264 = vmul.bf16 %v2261, %v275
    %2265 = vmatprep.subr.bf16.mxu0 0
    %2266 = vmatpush1.bf16.xpose.msra.mxu0 %v2262
    %2267 = vmatprep.subr.bf16.mxu0 0
    %2268 = vmatpush1.bf16.xpose.msra.mxu0 0
    %2269 = vmatprep.subr.bf16.mxu0 0
    %2270 = vmatpush1.bf16.xpose.msra.mxu0 0
    %2271 = vmatprep.subr.bf16.mxu0 0
    %2272 = vmatpush1.bf16.xpose.msra.mxu0 0
    %2273 = vmatprep.subr.bf16.mxu0 0
    %2274 = vmatpush1.bf16.xpose.msra.mxu0 0
    %2275 = vmatprep.subr.bf16.mxu0 0
    %2276 = vmatpush1.bf16.xpose.msra.mxu0 0
    %2277 = vmatprep.subr.bf16.mxu0 0
    %2278 = vmatpush1.bf16.xpose.msra.mxu0 0
    %2279 = vmatprep.subr.bf16.mxu0 0
    %2280 = vmatpush1.bf16.xpose.msra.mxu0 0
    %2281 = vmatprep.subr.bf16.mxu0 0
    %2282 = vmatpush1.bf16.xpose.msra.mxu0 0
    %2283 = vmatprep.subr.bf16.mxu0 0
    %2284 = vmatpush1.bf16.xpose.msra.mxu0 0
    %2285 = vmatprep.subr.bf16.mxu0 0
    %2286 = vmatpush1.bf16.xpose.msra.mxu0 0
    %2287 = vmatprep.subr.bf16.mxu0 0
    %2288 = vmatpush1.bf16.xpose.msra.mxu0 0
    %2289 = vmatprep.subr.bf16.mxu0 0
    %2290 = vmatpush1.bf16.xpose.msra.mxu0 0
    %2291 = vmatprep.subr.bf16.mxu0 0
    %2292 = vmatpush1.bf16.xpose.msra.mxu0 0
    %2293 = vmatprep.subr.bf16.mxu0 0
    %2294 = vmatpush1.bf16.xpose.msra.mxu0 0
    %2295 = vmatprep.subr.bf16.mxu0 0
    %2296 = vmatpush1.bf16.xpose.msra.mxu0 0
    %2297 = vmatprep.mubr.bf16.mxu0 0
    %2298 = vmatmul.mubr.bf16.gmra.mrb[0].mxu0 %v2264
    %v2299 = vpop.f32.mrb[0].mxu0
    %v2300 = vadd.f32 0.0, %v2299
    %v2301 = vpop.f32.mrb[0].mxu0
    %v2302 = vpop.f32.mrb[0].mxu0
    %v2303 = vpop.f32.mrb[0].mxu0
    %2304 = vdwg.mxu0
    %v2305 = vsel %vm296, %v2300, -1e+30
    %v2306 = vsel %vm707, %v2305, -inf
    %2307 = vmax.xlane.f32.xlu0 %v2306
    %v2308 = vpop.xlane.xlu0 %2307
    %v2309 = vsub.f32 %v2305, %v2308
    %v2310 = vmul.f32 %v2309, 1.442695
    %v2311 = vpow.pop %v2310
    %v2312 = vsel %vm707, %v2311, 0.0
    %2313 = vadd.xlane.f32.xlu0 %v2312
    %v2314 = vpop.xlane.xlu0 %2313
    %v2315 = vrcp.pop %v2314
    %v2316 = vmul.f32 %v2311, %v2315
    %v2317 = vpack.c.bf16 %v2316, %v2316
    %v2318 = vmul.bf16 %v2263, %v275
    %v2319 = vmul.bf16 %v2261, %v281
    %2320 = vmatprep.subr.bf16.mxu0 0
    %2321 = vmatpush1.bf16.xpose.msra.mxu0 %v2262
    %2322 = vmatprep.subr.bf16.mxu0 0
    %2323 = vmatpush1.bf16.xpose.msra.mxu0 0
    %2324 = vmatprep.subr.bf16.mxu0 0
    %2325 = vmatpush1.bf16.xpose.msra.mxu0 0
    %2326 = vmatprep.subr.bf16.mxu0 0
    %2327 = vmatpush1.bf16.xpose.msra.mxu0 0
    %2328 = vmatprep.subr.bf16.mxu0 0
    %2329 = vmatpush1.bf16.xpose.msra.mxu0 0
    %2330 = vmatprep.subr.bf16.mxu0 0
    %2331 = vmatpush1.bf16.xpose.msra.mxu0 0
    %2332 = vmatprep.subr.bf16.mxu0 0
    %2333 = vmatpush1.bf16.xpose.msra.mxu0 0
    %2334 = vmatprep.subr.bf16.mxu0 0
    %2335 = vmatpush1.bf16.xpose.msra.mxu0 0
    %2336 = vmatprep.subr.bf16.mxu0 0
    %2337 = vmatpush1.bf16.xpose.msra.mxu0 0
    %2338 = vmatprep.subr.bf16.mxu0 0
    %2339 = vmatpush1.bf16.xpose.msra.mxu0 0
    %2340 = vmatprep.subr.bf16.mxu0 0
    %2341 = vmatpush1.bf16.xpose.msra.mxu0 0
    %2342 = vmatprep.subr.bf16.mxu0 0
    %2343 = vmatpush1.bf16.xpose.msra.mxu0 0
    %2344 = vmatprep.subr.bf16.mxu0 0
    %2345 = vmatpush1.bf16.xpose.msra.mxu0 0
    %2346 = vmatprep.subr.bf16.mxu0 0
    %2347 = vmatpush1.bf16.xpose.msra.mxu0 0
    %2348 = vmatprep.subr.bf16.mxu0 0
    %2349 = vmatpush1.bf16.xpose.msra.mxu0 0
    %2350 = vmatprep.subr.bf16.mxu0 0
    %2351 = vmatpush1.bf16.xpose.msra.mxu0 0
    %2352 = vmatprep.mubr.bf16.mxu0 0
    %2353 = vmatmul.mubr.bf16.gmra.mrb[0].mxu0 %v2319
    %v2354 = vpop.f32.mrb[0].mxu0
    %v2355 = vadd.f32 0.0, %v2354
    %v2356 = vpop.f32.mrb[0].mxu0
    %v2357 = vpop.f32.mrb[0].mxu0
    %v2358 = vpop.f32.mrb[0].mxu0
    %2359 = vdwg.mxu0
    %v2360 = vsel %vm296, %v2355, -1e+30
    %v2361 = vsel %vm707, %v2360, -inf
    %2362 = vmax.xlane.f32.xlu0 %v2361
    %v2363 = vpop.xlane.xlu0 %2362
    %v2364 = vsub.f32 %v2360, %v2363
    %v2365 = vmul.f32 %v2364, 1.442695
    %v2366 = vpow.pop %v2365
    %v2367 = vsel %vm707, %v2366, 0.0
    %2368 = vadd.xlane.f32.xlu0 %v2367
    %v2369 = vpop.xlane.xlu0 %2368
    %v2370 = vrcp.pop %v2369
    %v2371 = vmul.f32 %v2366, %v2370
    %v2372 = vpack.c.bf16 %v2371, %v2371
    %v2373 = vmul.bf16 %v2263, %v281
    %v2375 = vsel %vm707, %v2372, 0
    %v2378 = vsel %vm779, %v2373, 0
    %2380 = vmatprep.subr.bf16.mxu0 0
    %2381 = vmatpush1.bf16.msra.mxu0 %v2378
    %2382 = vmatprep.subr.bf16.mxu0 0
    %2383 = vmatpush1.bf16.msra.mxu0 0
    %2384 = vmatprep.subr.bf16.mxu0 0
    %2385 = vmatpush1.bf16.msra.mxu0 0
    %2386 = vmatprep.subr.bf16.mxu0 0
    %2387 = vmatpush1.bf16.msra.mxu0 0
    %2388 = vmatprep.subr.bf16.mxu0 0
    %2389 = vmatpush1.bf16.msra.mxu0 0
    %2390 = vmatprep.subr.bf16.mxu0 0
    %2391 = vmatpush1.bf16.msra.mxu0 0
    %2392 = vmatprep.subr.bf16.mxu0 0
    %2393 = vmatpush1.bf16.msra.mxu0 0
    %2394 = vmatprep.subr.bf16.mxu0 0
    %2395 = vmatpush1.bf16.msra.mxu0 0
    %2396 = vmatprep.subr.bf16.mxu0 0
    %2397 = vmatpush1.bf16.msra.mxu0 0
    %2398 = vmatprep.subr.bf16.mxu0 0
    %2399 = vmatpush1.bf16.msra.mxu0 0
    %2400 = vmatprep.subr.bf16.mxu0 0
    %2401 = vmatpush1.bf16.msra.mxu0 0
    %2402 = vmatprep.subr.bf16.mxu0 0
    %2403 = vmatpush1.bf16.msra.mxu0 0
    %2404 = vmatprep.subr.bf16.mxu0 0
    %2405 = vmatpush1.bf16.msra.mxu0 0
    %2406 = vmatprep.subr.bf16.mxu0 0
    %2407 = vmatpush1.bf16.msra.mxu0 0
    %2408 = vmatprep.subr.bf16.mxu0 0
    %2409 = vmatpush1.bf16.msra.mxu0 0
    %2410 = vmatprep.subr.bf16.mxu0 0
    %2411 = vmatpush1.bf16.msra.mxu0 0
    %2412 = vmatprep.mubr.bf16.mxu0 0
    %2413 = vmatmul.mubr.bf16.gmra.mrb[0].mxu0 %v2375
    %v2414 = vpop.f32.mrb[0].mxu0
    %v2415 = vadd.f32 0.0, %v2414
    %v2416 = vpop.f32.mrb[0].mxu0
    %v2417 = vpop.f32.mrb[0].mxu0
    %v2418 = vpop.f32.mrb[0].mxu0
    %2419 = vdwg.mxu0
    %v2421 = vsel %vm707, %v2317, 0
    %v2424 = vsel %vm779, %v2318, 0
    %2426 = vmatprep.subr.bf16.mxu0 0
    %2427 = vmatpush1.bf16.msra.mxu0 %v2424
    %2428 = vmatprep.subr.bf16.mxu0 0
    %2429 = vmatpush1.bf16.msra.mxu0 0
    %2430 = vmatprep.subr.bf16.mxu0 0
    %2431 = vmatpush1.bf16.msra.mxu0 0
    %2432 = vmatprep.subr.bf16.mxu0 0
    %2433 = vmatpush1.bf16.msra.mxu0 0
    %2434 = vmatprep.subr.bf16.mxu0 0
    %2435 = vmatpush1.bf16.msra.mxu0 0
    %2436 = vmatprep.subr.bf16.mxu0 0
    %2437 = vmatpush1.bf16.msra.mxu0 0
    %2438 = vmatprep.subr.bf16.mxu0 0
    %2439 = vmatpush1.bf16.msra.mxu0 0
    %2440 = vmatprep.subr.bf16.mxu0 0
    %2441 = vmatpush1.bf16.msra.mxu0 0
    %2442 = vmatprep.subr.bf16.mxu0 0
    %2443 = vmatpush1.bf16.msra.mxu0 0
    %2444 = vmatprep.subr.bf16.mxu0 0
    %2445 = vmatpush1.bf16.msra.mxu0 0
    %2446 = vmatprep.subr.bf16.mxu0 0
    %2447 = vmatpush1.bf16.msra.mxu0 0
    %2448 = vmatprep.subr.bf16.mxu0 0
    %2449 = vmatpush1.bf16.msra.mxu0 0
    %2450 = vmatprep.subr.bf16.mxu0 0
    %2451 = vmatpush1.bf16.msra.mxu0 0
    %2452 = vmatprep.subr.bf16.mxu0 0
    %2453 = vmatpush1.bf16.msra.mxu0 0
    %2454 = vmatprep.subr.bf16.mxu0 0
    %2455 = vmatpush1.bf16.msra.mxu0 0
    %2456 = vmatprep.subr.bf16.mxu0 0
    %2457 = vmatpush1.bf16.msra.mxu0 0
    %2458 = vmatprep.mubr.bf16.mxu0 0
    %2459 = vmatmul.mubr.bf16.gmra.mrb[0].mxu0 %v2421
    %v2460 = vpop.f32.mrb[0].mxu0
    %v2461 = vadd.f32 %v2415, %v2460
    %v2462 = vpop.f32.mrb[0].mxu0
    %v2463 = vpop.f32.mrb[0].mxu0
    %v2464 = vpop.f32.mrb[0].mxu0
    %2465 = vdwg.mxu0
    %v2466 = vmul.bf16 %v2261, %v287
    %2467 = vmatprep.subr.bf16.mxu0 0
    %2468 = vmatpush1.bf16.xpose.msra.mxu0 %v2262
    %2469 = vmatprep.subr.bf16.mxu0 0
    %2470 = vmatpush1.bf16.xpose.msra.mxu0 0
    %2471 = vmatprep.subr.bf16.mxu0 0
    %2472 = vmatpush1.bf16.xpose.msra.mxu0 0
    %2473 = vmatprep.subr.bf16.mxu0 0
    %2474 = vmatpush1.bf16.xpose.msra.mxu0 0
    %2475 = vmatprep.subr.bf16.mxu0 0
    %2476 = vmatpush1.bf16.xpose.msra.mxu0 0
    %2477 = vmatprep.subr.bf16.mxu0 0
    %2478 = vmatpush1.bf16.xpose.msra.mxu0 0
    %2479 = vmatprep.subr.bf16.mxu0 0
    %2480 = vmatpush1.bf16.xpose.msra.mxu0 0
    %2481 = vmatprep.subr.bf16.mxu0 0
    %2482 = vmatpush1.bf16.xpose.msra.mxu0 0
    %2483 = vmatprep.subr.bf16.mxu0 0
    %2484 = vmatpush1.bf16.xpose.msra.mxu0 0
    %2485 = vmatprep.subr.bf16.mxu0 0
    %2486 = vmatpush1.bf16.xpose.msra.mxu0 0
    %2487 = vmatprep.subr.bf16.mxu0 0
    %2488 = vmatpush1.bf16.xpose.msra.mxu0 0
    %2489 = vmatprep.subr.bf16.mxu0 0
    %2490 = vmatpush1.bf16.xpose.msra.mxu0 0
    %2491 = vmatprep.subr.bf16.mxu0 0
    %2492 = vmatpush1.bf16.xpose.msra.mxu0 0
    %2493 = vmatprep.subr.bf16.mxu0 0
    %2494 = vmatpush1.bf16.xpose.msra.mxu0 0
    %2495 = vmatprep.subr.bf16.mxu0 0
    %2496 = vmatpush1.bf16.xpose.msra.mxu0 0
    %2497 = vmatprep.subr.bf16.mxu0 0
    %2498 = vmatpush1.bf16.xpose.msra.mxu0 0
    %2499 = vmatprep.mubr.bf16.mxu0 0
    %2500 = vmatmul.mubr.bf16.gmra.mrb[0].mxu0 %v2466
    %v2501 = vpop.f32.mrb[0].mxu0
    %v2502 = vadd.f32 0.0, %v2501
    %v2503 = vpop.f32.mrb[0].mxu0
    %v2504 = vpop.f32.mrb[0].mxu0
    %v2505 = vpop.f32.mrb[0].mxu0
    %2506 = vdwg.mxu0
    %v2507 = vsel %vm296, %v2502, -1e+30
    %v2508 = vsel %vm707, %v2507, -inf
    %2509 = vmax.xlane.f32.xlu0 %v2508
    %v2510 = vpop.xlane.xlu0 %2509
    %v2511 = vsub.f32 %v2507, %v2510
    %v2512 = vmul.f32 %v2511, 1.442695
    %v2513 = vpow.pop %v2512
    %v2514 = vsel %vm707, %v2513, 0.0
    %2515 = vadd.xlane.f32.xlu0 %v2514
    %v2516 = vpop.xlane.xlu0 %2515
    %v2517 = vrcp.pop %v2516
    %v2518 = vmul.f32 %v2513, %v2517
    %v2519 = vpack.c.bf16 %v2518, %v2518
    %v2520 = vmul.bf16 %v2263, %v287
    %v2522 = vsel %vm707, %v2519, 0
    %v2525 = vsel %vm779, %v2520, 0
    %2527 = vmatprep.subr.bf16.mxu0 0
    %2528 = vmatpush1.bf16.msra.mxu0 %v2525
    %2529 = vmatprep.subr.bf16.mxu0 0
    %2530 = vmatpush1.bf16.msra.mxu0 0
    %2531 = vmatprep.subr.bf16.mxu0 0
    %2532 = vmatpush1.bf16.msra.mxu0 0
    %2533 = vmatprep.subr.bf16.mxu0 0
    %2534 = vmatpush1.bf16.msra.mxu0 0
    %2535 = vmatprep.subr.bf16.mxu0 0
    %2536 = vmatpush1.bf16.msra.mxu0 0
    %2537 = vmatprep.subr.bf16.mxu0 0
    %2538 = vmatpush1.bf16.msra.mxu0 0
    %2539 = vmatprep.subr.bf16.mxu0 0
    %2540 = vmatpush1.bf16.msra.mxu0 0
    %2541 = vmatprep.subr.bf16.mxu0 0
    %2542 = vmatpush1.bf16.msra.mxu0 0
    %2543 = vmatprep.subr.bf16.mxu0 0
    %2544 = vmatpush1.bf16.msra.mxu0 0
    %2545 = vmatprep.subr.bf16.mxu0 0
    %2546 = vmatpush1.bf16.msra.mxu0 0
    %2547 = vmatprep.subr.bf16.mxu0 0
    %2548 = vmatpush1.bf16.msra.mxu0 0
    %2549 = vmatprep.subr.bf16.mxu0 0
    %2550 = vmatpush1.bf16.msra.mxu0 0
    %2551 = vmatprep.subr.bf16.mxu0 0
    %2552 = vmatpush1.bf16.msra.mxu0 0
    %2553 = vmatprep.subr.bf16.mxu0 0
    %2554 = vmatpush1.bf16.msra.mxu0 0
    %2555 = vmatprep.subr.bf16.mxu0 0
    %2556 = vmatpush1.bf16.msra.mxu0 0
    %2557 = vmatprep.subr.bf16.mxu0 0
    %2558 = vmatpush1.bf16.msra.mxu0 0
    %2559 = vmatprep.mubr.bf16.mxu0 0
    %2560 = vmatmul.mubr.bf16.gmra.mrb[0].mxu0 %v2522
    %v2561 = vpop.f32.mrb[0].mxu0
    %v2562 = vadd.f32 0.0, %v2561
    %v2563 = vpop.f32.mrb[0].mxu0
    %v2564 = vpop.f32.mrb[0].mxu0
    %v2565 = vpop.f32.mrb[0].mxu0
    %2566 = vdwg.mxu0
    %v2567 = vadd.f32 %v2461, %v2562
    %v2568 = vmul.bf16 %v2261, %v293
    %2569 = vmatprep.subr.bf16.mxu0 0
    %2570 = vmatpush1.bf16.xpose.msra.mxu0 %v2262
    %2571 = vmatprep.subr.bf16.mxu0 0
    %2572 = vmatpush1.bf16.xpose.msra.mxu0 0
    %2573 = vmatprep.subr.bf16.mxu0 0
    %2574 = vmatpush1.bf16.xpose.msra.mxu0 0
    %2575 = vmatprep.subr.bf16.mxu0 0
    %2576 = vmatpush1.bf16.xpose.msra.mxu0 0
    %2577 = vmatprep.subr.bf16.mxu0 0
    %2578 = vmatpush1.bf16.xpose.msra.mxu0 0
    %2579 = vmatprep.subr.bf16.mxu0 0
    %2580 = vmatpush1.bf16.xpose.msra.mxu0 0
    %2581 = vmatprep.subr.bf16.mxu0 0
    %2582 = vmatpush1.bf16.xpose.msra.mxu0 0
    %2583 = vmatprep.subr.bf16.mxu0 0
    %2584 = vmatpush1.bf16.xpose.msra.mxu0 0
    %2585 = vmatprep.subr.bf16.mxu0 0
    %2586 = vmatpush1.bf16.xpose.msra.mxu0 0
    %2587 = vmatprep.subr.bf16.mxu0 0
    %2588 = vmatpush1.bf16.xpose.msra.mxu0 0
    %2589 = vmatprep.subr.bf16.mxu0 0
    %2590 = vmatpush1.bf16.xpose.msra.mxu0 0
    %2591 = vmatprep.subr.bf16.mxu0 0
    %2592 = vmatpush1.bf16.xpose.msra.mxu0 0
    %2593 = vmatprep.subr.bf16.mxu0 0
    %2594 = vmatpush1.bf16.xpose.msra.mxu0 0
    %2595 = vmatprep.subr.bf16.mxu0 0
    %2596 = vmatpush1.bf16.xpose.msra.mxu0 0
    %2597 = vmatprep.subr.bf16.mxu0 0
    %2598 = vmatpush1.bf16.xpose.msra.mxu0 0
    %2599 = vmatprep.subr.bf16.mxu0 0
    %2600 = vmatpush1.bf16.xpose.msra.mxu0 0
    %2601 = vmatprep.mubr.bf16.mxu0 0
    %2602 = vmatmul.mubr.bf16.gmra.mrb[0].mxu0 %v2568
    %v2603 = vpop.f32.mrb[0].mxu0
    %v2604 = vadd.f32 0.0, %v2603
    %v2605 = vpop.f32.mrb[0].mxu0
    %v2606 = vpop.f32.mrb[0].mxu0
    %v2607 = vpop.f32.mrb[0].mxu0
    %2608 = vdwg.mxu0
    %v2609 = vsel %vm296, %v2604, -1e+30
    %v2610 = vsel %vm707, %v2609, -inf
    %2611 = vmax.xlane.f32.xlu0 %v2610
    %v2612 = vpop.xlane.xlu0 %2611
    %v2613 = vsub.f32 %v2609, %v2612
    %v2614 = vmul.f32 %v2613, 1.442695
    %v2615 = vpow.pop %v2614
    %v2616 = vsel %vm707, %v2615, 0.0
    %2617 = vadd.xlane.f32.xlu0 %v2616
    %v2618 = vpop.xlane.xlu0 %2617
    %v2619 = vrcp.pop %v2618
    %v2620 = vmul.f32 %v2615, %v2619
    %v2621 = vpack.c.bf16 %v2620, %v2620
    %v2622 = vmul.bf16 %v2263, %v293
    %v2624 = vsel %vm707, %v2621, 0
    %v2627 = vsel %vm779, %v2622, 0
    %2629 = vmatprep.subr.bf16.mxu0 0
    %2630 = vmatpush1.bf16.msra.mxu0 %v2627
    %2631 = vmatprep.subr.bf16.mxu0 0
    %2632 = vmatpush1.bf16.msra.mxu0 0
    %2633 = vmatprep.subr.bf16.mxu0 0
    %2634 = vmatpush1.bf16.msra.mxu0 0
    %2635 = vmatprep.subr.bf16.mxu0 0
    %2636 = vmatpush1.bf16.msra.mxu0 0
    %2637 = vmatprep.subr.bf16.mxu0 0
    %2638 = vmatpush1.bf16.msra.mxu0 0
    %2639 = vmatprep.subr.bf16.mxu0 0
    %2640 = vmatpush1.bf16.msra.mxu0 0
    %2641 = vmatprep.subr.bf16.mxu0 0
    %2642 = vmatpush1.bf16.msra.mxu0 0
    %2643 = vmatprep.subr.bf16.mxu0 0
    %2644 = vmatpush1.bf16.msra.mxu0 0
    %2645 = vmatprep.subr.bf16.mxu0 0
    %2646 = vmatpush1.bf16.msra.mxu0 0
    %2647 = vmatprep.subr.bf16.mxu0 0
    %2648 = vmatpush1.bf16.msra.mxu0 0
    %2649 = vmatprep.subr.bf16.mxu0 0
    %2650 = vmatpush1.bf16.msra.mxu0 0
    %2651 = vmatprep.subr.bf16.mxu0 0
    %2652 = vmatpush1.bf16.msra.mxu0 0
    %2653 = vmatprep.subr.bf16.mxu0 0
    %2654 = vmatpush1.bf16.msra.mxu0 0
    %2655 = vmatprep.subr.bf16.mxu0 0
    %2656 = vmatpush1.bf16.msra.mxu0 0
    %2657 = vmatprep.subr.bf16.mxu0 0
    %2658 = vmatpush1.bf16.msra.mxu0 0
    %2659 = vmatprep.subr.bf16.mxu0 0
    %2660 = vmatpush1.bf16.msra.mxu0 0
    %2661 = vmatprep.mubr.bf16.mxu0 0
    %2662 = vmatmul.mubr.bf16.gmra.mrb[0].mxu0 %v2624
    %v2663 = vpop.f32.mrb[0].mxu0
    %v2664 = vadd.f32 0.0, %v2663
    %v2665 = vpop.f32.mrb[0].mxu0
    %v2666 = vpop.f32.mrb[0].mxu0
    %v2667 = vpop.f32.mrb[0].mxu0
    %2668 = vdwg.mxu0
    %v2669 = vadd.f32 %v2567, %v2664
    %v2670 = vpack.c.bf16 %v2669, %v2669
    %v2671 = vld [vmem:[#allocation17] sm:$0xf]
    %v2672 = vld [vmem:[#allocation17 + $0x4] sm:$0xf]
    %v2673 = vld [vmem:[#allocation17 + $0x8] sm:$0xf]
    %v2674 = vld [vmem:[#allocation17 + $0xc] sm:$0xf]
    %v2675 = vld [vmem:[#allocation17 + $0x10] sm:$0xf]
    %v2676 = vld [vmem:[#allocation17 + $0x14] sm:$0xf]
    %v2677 = vld [vmem:[#allocation17 + $0x18] sm:$0xf]
    %v2678 = vld [vmem:[#allocation17 + $0x1c] sm:$0xf]
    %v2679 = vld [vmem:[#allocation17 + $0x20] sm:$0xf]
    %v2680 = vld [vmem:[#allocation17 + $0x24] sm:$0xf]
    %v2681 = vld [vmem:[#allocation17 + $0x28] sm:$0xf]
    %v2682 = vld [vmem:[#allocation17 + $0x2c] sm:$0xf]
    %v2683 = vld [vmem:[#allocation17 + $0x30] sm:$0xf]
    %v2684 = vld [vmem:[#allocation17 + $0x34] sm:$0xf]
    %v2685 = vld [vmem:[#allocation17 + $0x38] sm:$0xf]
    %v2686 = vld [vmem:[#allocation17 + $0x3c] sm:$0xf]
    %v2687 = vld [vmem:[#allocation19] sm:$0x1]
    %v2689 = vlaneseq
    %v2690 = vshrl.u32 %v2689, 7
    %v2691 = vsub.s32 0, %v2690
    %v2692 = vrot.slane %v2687, %v2691
    %v2710 = vunpack.c.l.b16 %v2671
    %v2711 = vunpack.c.l.b16 %v2672
    %v2712 = vunpack.c.l.b16 %v2673
    %v2713 = vunpack.c.l.b16 %v2674
    %v2714 = vunpack.c.l.b16 %v2675
    %v2715 = vunpack.c.l.b16 %v2676
    %v2716 = vunpack.c.l.b16 %v2677
    %v2717 = vunpack.c.l.b16 %v2678
    %v2718 = vunpack.c.l.b16 %v2679
    %v2719 = vunpack.c.l.b16 %v2680
    %v2720 = vunpack.c.l.b16 %v2681
    %v2721 = vunpack.c.l.b16 %v2682
    %v2722 = vunpack.c.l.b16 %v2683
    %v2723 = vunpack.c.l.b16 %v2684
    %v2724 = vunpack.c.l.b16 %v2685
    %v2725 = vunpack.c.l.b16 %v2686
    %v2726 = vpack.c.b16 %v2711, %v2710
    %v2727 = vpack.c.b16 %v2713, %v2712
    %v2728 = vpack.c.b16 %v2715, %v2714
    %v2729 = vpack.c.b16 %v2717, %v2716
    %v2730 = vpack.c.b16 %v2719, %v2718
    %v2731 = vpack.c.b16 %v2721, %v2720
    %v2732 = vpack.c.b16 %v2723, %v2722
    %v2733 = vpack.c.b16 %v2725, %v2724
    %2742 = vmatprep.subr.bf16.mxu0 0
    %2743 = vmatpush1.bf16.msra.mxu0 %v2726
    %2744 = vmatprep.subr.bf16.mxu0 0
    %2745 = vmatpush1.bf16.msra.mxu0 %v2727
    %2746 = vmatprep.subr.bf16.mxu0 0
    %2747 = vmatpush1.bf16.msra.mxu0 %v2728
    %2748 = vmatprep.subr.bf16.mxu0 0
    %2749 = vmatpush1.bf16.msra.mxu0 %v2729
    %2750 = vmatprep.subr.bf16.mxu0 0
    %2751 = vmatpush1.bf16.msra.mxu0 %v2730
    %2752 = vmatprep.subr.bf16.mxu0 0
    %2753 = vmatpush1.bf16.msra.mxu0 %v2731
    %2754 = vmatprep.subr.bf16.mxu0 0
    %2755 = vmatpush1.bf16.msra.mxu0 %v2732
    %2756 = vmatprep.subr.bf16.mxu0 0
    %2757 = vmatpush1.bf16.msra.mxu0 %v2733
    %2758 = vmatprep.subr.bf16.mxu0 0
    %2759 = vmatpush1.bf16.msra.mxu0 0
    %2760 = vmatprep.subr.bf16.mxu0 0
    %2761 = vmatpush1.bf16.msra.mxu0 0
    %2762 = vmatprep.subr.bf16.mxu0 0
    %2763 = vmatpush1.bf16.msra.mxu0 0
    %2764 = vmatprep.subr.bf16.mxu0 0
    %2765 = vmatpush1.bf16.msra.mxu0 0
    %2766 = vmatprep.subr.bf16.mxu0 0
    %2767 = vmatpush1.bf16.msra.mxu0 0
    %2768 = vmatprep.subr.bf16.mxu0 0
    %2769 = vmatpush1.bf16.msra.mxu0 0
    %2770 = vmatprep.subr.bf16.mxu0 0
    %2771 = vmatpush1.bf16.msra.mxu0 0
    %2772 = vmatprep.subr.bf16.mxu0 0
    %2773 = vmatpush1.bf16.msra.mxu0 0
    %2774 = vmatprep.mubr.bf16.mxu0 0
    %2775 = vmatmul.mubr.bf16.gmra.mrb[0].mxu0 %v2670
    %v2776 = vpop.f32.mrb[0].mxu0
    %v2777 = vadd.f32 %v2692, %v2776
    %v2778 = vpop.f32.mrb[0].mxu0
    %v2779 = vpop.f32.mrb[0].mxu0
    %v2780 = vpop.f32.mrb[0].mxu0
    %2781 = vdwg.mxu0
    %v2782 = vadd.f32 %v1898, %v2777
    %v2783 = vld [vmem:[#allocation20] sm:$0x1]
    %v2784 = vld [vmem:[#allocation22] sm:$0x1]
    %2785 = vadd.xlane.f32.xlu0 %v2782
    %v2786 = vpop.xlane.xlu0 %2785
    %v2787 = vmul.f32 %v2786, %v303
    %v2788 = vsub.f32 %v2782, %v2787
    %v2789 = vmul.f32 %v2788, %v2788
    %2790 = vadd.xlane.f32.xlu0 %v2789
    %v2791 = vpop.xlane.xlu0 %2790
    %v2792 = vmul.f32 %v2791, %v303
    %v2793 = vadd.f32 %v2792, 1e-05
    %v2794 = vrsqrt.pop %v2793
    %v2795 = vmul.f32 %v2788, %v2794
    %v2797 = vlaneseq
    %v2798 = vshrl.u32 %v2797, 7
    %v2799 = vsub.s32 0, %v2798
    %v2800 = vrot.slane %v2783, %v2799
    %v2802 = vmul.f32 %v2795, %v2800
    %v2804 = vlaneseq
    %v2805 = vshrl.u32 %v2804, 7
    %v2806 = vsub.s32 0, %v2805
    %v2807 = vrot.slane %v2784, %v2806
    %v2809 = vadd.f32 %v2802, %v2807
    %v2810 = vpack.c.bf16 %v2809, %v2809
    %v2811 = vld [vmem:[#allocation23] sm:$0xff]
    %v2812 = vld [vmem:[#allocation23 + $0x8] sm:$0xff]
    %v2813 = vld [vmem:[#allocation23 + $0x10] sm:$0xff]
    %v2814 = vld [vmem:[#allocation23 + $0x18] sm:$0xff]
    %v2815 = vld [vmem:[#allocation23 + $0x20] sm:$0xff]
    %v2816 = vld [vmem:[#allocation23 + $0x28] sm:$0xff]
    %v2817 = vld [vmem:[#allocation23 + $0x30] sm:$0xff]
    %v2818 = vld [vmem:[#allocation23 + $0x38] sm:$0xff]
    %v2819 = vld [vmem:[#allocation23 + $0x40] sm:$0xff]
    %v2820 = vld [vmem:[#allocation23 + $0x48] sm:$0xff]
    %v2821 = vld [vmem:[#allocation23 + $0x50] sm:$0xff]
    %v2822 = vld [vmem:[#allocation23 + $0x58] sm:$0xff]
    %v2823 = vld [vmem:[#allocation23 + $0x60] sm:$0xff]
    %v2824 = vld [vmem:[#allocation23 + $0x68] sm:$0xff]
    %v2825 = vld [vmem:[#allocation23 + $0x70] sm:$0xff]
    %v2826 = vld [vmem:[#allocation23 + $0x78] sm:$0xff]
    %v2827 = vld [vmem:[#allocation23 + $0x80] sm:$0xff]
    %v2828 = vld [vmem:[#allocation23 + $0x88] sm:$0xff]
    %v2829 = vld [vmem:[#allocation23 + $0x90] sm:$0xff]
    %v2830 = vld [vmem:[#allocation23 + $0x98] sm:$0xff]
    %v2831 = vld [vmem:[#allocation23 + $0xa0] sm:$0xff]
    %v2832 = vld [vmem:[#allocation23 + $0xa8] sm:$0xff]
    %v2833 = vld [vmem:[#allocation23 + $0xb0] sm:$0xff]
    %v2834 = vld [vmem:[#allocation23 + $0xb8] sm:$0xff]
    %v2835 = vld [vmem:[#allocation23 + $0xc0] sm:$0xff]
    %v2836 = vld [vmem:[#allocation23 + $0xc8] sm:$0xff]
    %v2837 = vld [vmem:[#allocation23 + $0xd0] sm:$0xff]
    %v2838 = vld [vmem:[#allocation23 + $0xd8] sm:$0xff]
    %v2839 = vld [vmem:[#allocation23 + $0xe0] sm:$0xff]
    %v2840 = vld [vmem:[#allocation23 + $0xe8] sm:$0xff]
    %v2841 = vld [vmem:[#allocation23 + $0xf0] sm:$0xff]
    %v2842 = vld [vmem:[#allocation23 + $0xf8] sm:$0xff]
    %v2843 = vld [vmem:[#allocation25] sm:$0xf]
    %v2845 = vlaneseq
    %v2846 = vshrl.u32 %v2845, 7
    %v2847 = vsub.s32 0, %v2846
    %v2848 = vrot.slane %v2843, %v2847
    %v2849 = vlaneseq
    %v2850 = vshrl.u32 %v2849, 7
    %v2851 = vsub.s32 1, %v2850
    %v2852 = vrot.slane %v2843, %v2851
    %v2853 = vlaneseq
    %v2854 = vshrl.u32 %v2853, 7
    %v2855 = vsub.s32 2, %v2854
    %v2856 = vrot.slane %v2843, %v2855
    %v2857 = vlaneseq
    %v2858 = vshrl.u32 %v2857, 7
    %v2859 = vsub.s32 3, %v2858
    %v2860 = vrot.slane %v2843, %v2859
    %v2897 = vunpack.c.l.b16 %v2811
    %v2898 = vunpack.c.h.b16 %v2811
    %v2899 = vunpack.c.l.b16 %v2812
    %v2900 = vunpack.c.h.b16 %v2812
    %v2901 = vunpack.c.l.b16 %v2813
    %v2902 = vunpack.c.h.b16 %v2813
    %v2903 = vunpack.c.l.b16 %v2814
    %v2904 = vunpack.c.h.b16 %v2814
    %v2905 = vunpack.c.l.b16 %v2815
    %v2906 = vunpack.c.h.b16 %v2815
    %v2907 = vunpack.c.l.b16 %v2816
    %v2908 = vunpack.c.h.b16 %v2816
    %v2909 = vunpack.c.l.b16 %v2817
    %v2910 = vunpack.c.h.b16 %v2817
    %v2911 = vunpack.c.l.b16 %v2818
    %v2912 = vunpack.c.h.b16 %v2818
    %v2913 = vunpack.c.l.b16 %v2819
    %v2914 = vunpack.c.h.b16 %v2819
    %v2915 = vunpack.c.l.b16 %v2820
    %v2916 = vunpack.c.h.b16 %v2820
    %v2917 = vunpack.c.l.b16 %v2821
    %v2918 = vunpack.c.h.b16 %v2821
    %v2919 = vunpack.c.l.b16 %v2822
    %v2920 = vunpack.c.h.b16 %v2822
    %v2921 = vunpack.c.l.b16 %v2823
    %v2922 = vunpack.c.h.b16 %v2823
    %v2923 = vunpack.c.l.b16 %v2824
    %v2924 = vunpack.c.h.b16 %v2824
    %v2925 = vunpack.c.l.b16 %v2825
    %v2926 = vunpack.c.h.b16 %v2825
    %v2927 = vunpack.c.l.b16 %v2826
    %v2928 = vunpack.c.h.b16 %v2826
    %v2929 = vunpack.c.l.b16 %v2827
    %v2930 = vunpack.c.h.b16 %v2827
    %v2931 = vunpack.c.l.b16 %v2828
    %v2932 = vunpack.c.h.b16 %v2828
    %v2933 = vunpack.c.l.b16 %v2829
    %v2934 = vunpack.c.h.b16 %v2829
    %v2935 = vunpack.c.l.b16 %v2830
    %v2936 = vunpack.c.h.b16 %v2830
    %v2937 = vunpack.c.l.b16 %v2831
    %v2938 = vunpack.c.h.b16 %v2831
    %v2939 = vunpack.c.l.b16 %v2832
    %v2940 = vunpack.c.h.b16 %v2832
    %v2941 = vunpack.c.l.b16 %v2833
    %v2942 = vunpack.c.h.b16 %v2833
    %v2943 = vunpack.c.l.b16 %v2834
    %v2944 = vunpack.c.h.b16 %v2834
    %v2945 = vunpack.c.l.b16 %v2835
    %v2946 = vunpack.c.h.b16 %v2835
    %v2947 = vunpack.c.l.b16 %v2836
    %v2948 = vunpack.c.h.b16 %v2836
    %v2949 = vunpack.c.l.b16 %v2837
    %v2950 = vunpack.c.h.b16 %v2837
    %v2951 = vunpack.c.l.b16 %v2838
    %v2952 = vunpack.c.h.b16 %v2838
    %v2953 = vunpack.c.l.b16 %v2839
    %v2954 = vunpack.c.h.b16 %v2839
    %v2955 = vunpack.c.l.b16 %v2840
    %v2956 = vunpack.c.h.b16 %v2840
    %v2957 = vunpack.c.l.b16 %v2841
    %v2958 = vunpack.c.h.b16 %v2841
    %v2959 = vunpack.c.l.b16 %v2842
    %v2960 = vunpack.c.h.b16 %v2842
    %v2961 = vpack.c.b16 %v2901, %v2897
    %v2962 = vpack.c.b16 %v2902, %v2898
    %v2963 = vpack.c.b16 %v2903, %v2899
    %v2964 = vpack.c.b16 %v2904, %v2900
    %v2965 = vpack.c.b16 %v2909, %v2905
    %v2966 = vpack.c.b16 %v2910, %v2906
    %v2967 = vpack.c.b16 %v2911, %v2907
    %v2968 = vpack.c.b16 %v2912, %v2908
    %v2969 = vpack.c.b16 %v2917, %v2913
    %v2970 = vpack.c.b16 %v2918, %v2914
    %v2971 = vpack.c.b16 %v2919, %v2915
    %v2972 = vpack.c.b16 %v2920, %v2916
    %v2973 = vpack.c.b16 %v2925, %v2921
    %v2974 = vpack.c.b16 %v2926, %v2922
    %v2975 = vpack.c.b16 %v2927, %v2923
    %v2976 = vpack.c.b16 %v2928, %v2924
    %v2977 = vpack.c.b16 %v2933, %v2929
    %v2978 = vpack.c.b16 %v2934, %v2930
    %v2979 = vpack.c.b16 %v2935, %v2931
    %v2980 = vpack.c.b16 %v2936, %v2932
    %v2981 = vpack.c.b16 %v2941, %v2937
    %v2982 = vpack.c.b16 %v2942, %v2938
    %v2983 = vpack.c.b16 %v2943, %v2939
    %v2984 = vpack.c.b16 %v2944, %v2940
    %v2985 = vpack.c.b16 %v2949, %v2945
    %v2986 = vpack.c.b16 %v2950, %v2946
    %v2987 = vpack.c.b16 %v2951, %v2947
    %v2988 = vpack.c.b16 %v2952, %v2948
    %v2989 = vpack.c.b16 %v2957, %v2953
    %v2990 = vpack.c.b16 %v2958, %v2954
    %v2991 = vpack.c.b16 %v2959, %v2955
    %v2992 = vpack.c.b16 %v2960, %v2956
    %3025 = vmatprep.subr.bf16.mxu0 %v2962
    %3026 = vmatpush1.bf16.msra.mxu0 %v2961
    %3027 = vmatprep.subr.bf16.mxu0 %v2966
    %3028 = vmatpush1.bf16.msra.mxu0 %v2965
    %3029 = vmatprep.subr.bf16.mxu0 %v2970
    %3030 = vmatpush1.bf16.msra.mxu0 %v2969
    %3031 = vmatprep.subr.bf16.mxu0 %v2974
    %3032 = vmatpush1.bf16.msra.mxu0 %v2973
    %3033 = vmatprep.subr.bf16.mxu0 %v2978
    %3034 = vmatpush1.bf16.msra.mxu0 %v2977
    %3035 = vmatprep.subr.bf16.mxu0 %v2982
    %3036 = vmatpush1.bf16.msra.mxu0 %v2981
    %3037 = vmatprep.subr.bf16.mxu0 %v2986
    %3038 = vmatpush1.bf16.msra.mxu0 %v2985
    %3039 = vmatprep.subr.bf16.mxu0 %v2990
    %3040 = vmatpush1.bf16.msra.mxu0 %v2989
    %3041 = vmatprep.subr.bf16.mxu0 0
    %3042 = vmatpush1.bf16.msra.mxu0 0
    %3043 = vmatprep.subr.bf16.mxu0 0
    %3044 = vmatpush1.bf16.msra.mxu0 0
    %3045 = vmatprep.subr.bf16.mxu0 0
    %3046 = vmatpush1.bf16.msra.mxu0 0
    %3047 = vmatprep.subr.bf16.mxu0 0
    %3048 = vmatpush1.bf16.msra.mxu0 0
    %3049 = vmatprep.subr.bf16.mxu0 0
    %3050 = vmatpush1.bf16.msra.mxu0 0
    %3051 = vmatprep.subr.bf16.mxu0 0
    %3052 = vmatpush1.bf16.msra.mxu0 0
    %3053 = vmatprep.subr.bf16.mxu0 0
    %3054 = vmatpush1.bf16.msra.mxu0 0
    %3055 = vmatprep.subr.bf16.mxu0 0
    %3056 = vmatpush1.bf16.msra.mxu0 0
    %3057 = vmatprep.mubr.bf16.mxu0 0
    %3058 = vmatmul.mubr.bf16.gmra.mrb[0].mxu0 %v2810
    %v3059 = vpop.f32.mrb[0].mxu0
    %v3060 = vadd.f32 %v2848, %v3059
    %v3061 = vpop.f32.mrb[0].mxu0
    %v3062 = vadd.f32 %v2852, %v3061
    %v3063 = vpop.f32.mrb[0].mxu0
    %v3064 = vpop.f32.mrb[0].mxu0
    %3065 = vdwg.mxu0
    %3066 = vmatprep.subr.bf16.mxu0 %v2964
    %3067 = vmatpush1.bf16.msra.mxu0 %v2963
    %3068 = vmatprep.subr.bf16.mxu0 %v2968
    %3069 = vmatpush1.bf16.msra.mxu0 %v2967
    %3070 = vmatprep.subr.bf16.mxu0 %v2972
    %3071 = vmatpush1.bf16.msra.mxu0 %v2971
    %3072 = vmatprep.subr.bf16.mxu0 %v2976
    %3073 = vmatpush1.bf16.msra.mxu0 %v2975
    %3074 = vmatprep.subr.bf16.mxu0 %v2980
    %3075 = vmatpush1.bf16.msra.mxu0 %v2979
    %3076 = vmatprep.subr.bf16.mxu0 %v2984
    %3077 = vmatpush1.bf16.msra.mxu0 %v2983
    %3078 = vmatprep.subr.bf16.mxu0 %v2988
    %3079 = vmatpush1.bf16.msra.mxu0 %v2987
    %3080 = vmatprep.subr.bf16.mxu0 %v2992
    %3081 = vmatpush1.bf16.msra.mxu0 %v2991
    %3082 = vmatprep.subr.bf16.mxu0 0
    %3083 = vmatpush1.bf16.msra.mxu0 0
    %3084 = vmatprep.subr.bf16.mxu0 0
    %3085 = vmatpush1.bf16.msra.mxu0 0
    %3086 = vmatprep.subr.bf16.mxu0 0
    %3087 = vmatpush1.bf16.msra.mxu0 0
    %3088 = vmatprep.subr.bf16.mxu0 0
    %3089 = vmatpush1.bf16.msra.mxu0 0
    %3090 = vmatprep.subr.bf16.mxu0 0
    %3091 = vmatpush1.bf16.msra.mxu0 0
    %3092 = vmatprep.subr.bf16.mxu0 0
    %3093 = vmatpush1.bf16.msra.mxu0 0
    %3094 = vmatprep.subr.bf16.mxu0 0
    %3095 = vmatpush1.bf16.msra.mxu0 0
    %3096 = vmatprep.subr.bf16.mxu0 0
    %3097 = vmatpush1.bf16.msra.mxu0 0
    %3098 = vmatprep.mubr.bf16.mxu0 0
    %3099 = vmatmul.mubr.bf16.gmra.mrb[0].mxu0 %v2810
    %v3100 = vpop.f32.mrb[0].mxu0
    %v3101 = vadd.f32 %v2856, %v3100
    %v3102 = vpop.f32.mrb[0].mxu0
    %v3103 = vadd.f32 %v2860, %v3102
    %v3104 = vpop.f32.mrb[0].mxu0
    %v3105 = vpop.f32.mrb[0].mxu0
    %3106 = vdwg.mxu0
    %v3107 = vmul.f32 %v3060, %v3060
    %v3108 = vmul.f32 %v3062, %v3062
    %v3109 = vmul.f32 %v3101, %v3101
    %v3110 = vmul.f32 %v3103, %v3103
    %v3111 = vmul.f32 %v3060, %v3107
    %v3112 = vmul.f32 %v3062, %v3108
    %v3113 = vmul.f32 %v3101, %v3109
    %v3114 = vmul.f32 %v3103, %v3110
    %v3115 = vmul.f32 %v3111, 0.044715
    %v3116 = vmul.f32 %v3112, 0.044715
    %v3117 = vmul.f32 %v3113, 0.044715
    %v3118 = vmul.f32 %v3114, 0.044715
    %v3119 = vadd.f32 %v3060, %v3115
    %v3120 = vadd.f32 %v3062, %v3116
    %v3121 = vadd.f32 %v3101, %v3117
    %v3122 = vadd.f32 %v3103, %v3118
    %v3123 = vmul.f32 %v3119, 0.7978846
    %v3124 = vmul.f32 %v3120, 0.7978846
    %v3125 = vmul.f32 %v3121, 0.7978846
    %v3126 = vmul.f32 %v3122, 0.7978846
    %v3127 = vtanh.pop %v3123
    %v3128 = vtanh.pop %v3124
    %v3129 = vtanh.pop %v3125
    %v3130 = vtanh.pop %v3126
    %v3131 = vadd.f32 %v3127, 1.0
    %v3132 = vadd.f32 %v3128, 1.0
    %v3133 = vadd.f32 %v3129, 1.0
    %v3134 = vadd.f32 %v3130, 1.0
    %v3135 = vmul.f32 %v3131, 0.5
    %v3136 = vmul.f32 %v3132, 0.5
    %v3137 = vmul.f32 %v3133, 0.5
    %v3138 = vmul.f32 %v3134, 0.5
    %v3139 = vmul.f32 %v3060, %v3135
    %v3140 = vmul.f32 %v3062, %v3136
    %v3141 = vmul.f32 %v3101, %v3137
    %v3142 = vmul.f32 %v3103, %v3138
    %v3143 = vpack.c.bf16 %v3139, %v3139
    %v3144 = vpack.c.bf16 %v3140, %v3140
    %v3145 = vpack.c.bf16 %v3141, %v3141
    %v3146 = vpack.c.bf16 %v3142, %v3142
    %v3147 = vld [vmem:[#allocation26] sm:$0xf]
    %v3148 = vld [vmem:[#allocation26 + $0x4] sm:$0xf]
    %v3149 = vld [vmem:[#allocation26 + $0x8] sm:$0xf]
    %v3150 = vld [vmem:[#allocation26 + $0xc] sm:$0xf]
    %v3151 = vld [vmem:[#allocation26 + $0x10] sm:$0xf]
    %v3152 = vld [vmem:[#allocation26 + $0x14] sm:$0xf]
    %v3153 = vld [vmem:[#allocation26 + $0x18] sm:$0xf]
    %v3154 = vld [vmem:[#allocation26 + $0x1c] sm:$0xf]
    %v3155 = vld [vmem:[#allocation26 + $0x20] sm:$0xf]
    %v3156 = vld [vmem:[#allocation26 + $0x24] sm:$0xf]
    %v3157 = vld [vmem:[#allocation26 + $0x28] sm:$0xf]
    %v3158 = vld [vmem:[#allocation26 + $0x2c] sm:$0xf]
    %v3159 = vld [vmem:[#allocation26 + $0x30] sm:$0xf]
    %v3160 = vld [vmem:[#allocation26 + $0x34] sm:$0xf]
    %v3161 = vld [vmem:[#allocation26 + $0x38] sm:$0xf]
    %v3162 = vld [vmem:[#allocation26 + $0x3c] sm:$0xf]
    %v3163 = vld [vmem:[#allocation26 + $0x40] sm:$0xf]
    %v3164 = vld [vmem:[#allocation26 + $0x44] sm:$0xf]
    %v3165 = vld [vmem:[#allocation26 + $0x48] sm:$0xf]
    %v3166 = vld [vmem:[#allocation26 + $0x4c] sm:$0xf]
    %v3167 = vld [vmem:[#allocation26 + $0x50] sm:$0xf]
    %v3168 = vld [vmem:[#allocation26 + $0x54] sm:$0xf]
    %v3169 = vld [vmem:[#allocation26 + $0x58] sm:$0xf]
    %v3170 = vld [vmem:[#allocation26 + $0x5c] sm:$0xf]
    %v3171 = vld [vmem:[#allocation26 + $0x60] sm:$0xf]
    %v3172 = vld [vmem:[#allocation26 + $0x64] sm:$0xf]
    %v3173 = vld [vmem:[#allocation26 + $0x68] sm:$0xf]
    %v3174 = vld [vmem:[#allocation26 + $0x6c] sm:$0xf]
    %v3175 = vld [vmem:[#allocation26 + $0x70] sm:$0xf]
    %v3176 = vld [vmem:[#allocation26 + $0x74] sm:$0xf]
    %v3177 = vld [vmem:[#allocation26 + $0x78] sm:$0xf]
    %v3178 = vld [vmem:[#allocation26 + $0x7c] sm:$0xf]
    %v3179 = vld [vmem:[#allocation26 + $0x80] sm:$0xf]
    %v3180 = vld [vmem:[#allocation26 + $0x84] sm:$0xf]
    %v3181 = vld [vmem:[#allocation26 + $0x88] sm:$0xf]
    %v3182 = vld [vmem:[#allocation26 + $0x8c] sm:$0xf]
    %v3183 = vld [vmem:[#allocation26 + $0x90] sm:$0xf]
    %v3184 = vld [vmem:[#allocation26 + $0x94] sm:$0xf]
    %v3185 = vld [vmem:[#allocation26 + $0x98] sm:$0xf]
    %v3186 = vld [vmem:[#allocation26 + $0x9c] sm:$0xf]
    %v3187 = vld [vmem:[#allocation26 + $0xa0] sm:$0xf]
    %v3188 = vld [vmem:[#allocation26 + $0xa4] sm:$0xf]
    %v3189 = vld [vmem:[#allocation26 + $0xa8] sm:$0xf]
    %v3190 = vld [vmem:[#allocation26 + $0xac] sm:$0xf]
    %v3191 = vld [vmem:[#allocation26 + $0xb0] sm:$0xf]
    %v3192 = vld [vmem:[#allocation26 + $0xb4] sm:$0xf]
    %v3193 = vld [vmem:[#allocation26 + $0xb8] sm:$0xf]
    %v3194 = vld [vmem:[#allocation26 + $0xbc] sm:$0xf]
    %v3195 = vld [vmem:[#allocation26 + $0xc0] sm:$0xf]
    %v3196 = vld [vmem:[#allocation26 + $0xc4] sm:$0xf]
    %v3197 = vld [vmem:[#allocation26 + $0xc8] sm:$0xf]
    %v3198 = vld [vmem:[#allocation26 + $0xcc] sm:$0xf]
    %v3199 = vld [vmem:[#allocation26 + $0xd0] sm:$0xf]
    %v3200 = vld [vmem:[#allocation26 + $0xd4] sm:$0xf]
    %v3201 = vld [vmem:[#allocation26 + $0xd8] sm:$0xf]
    %v3202 = vld [vmem:[#allocation26 + $0xdc] sm:$0xf]
    %v3203 = vld [vmem:[#allocation26 + $0xe0] sm:$0xf]
    %v3204 = vld [vmem:[#allocation26 + $0xe4] sm:$0xf]
    %v3205 = vld [vmem:[#allocation26 + $0xe8] sm:$0xf]
    %v3206 = vld [vmem:[#allocation26 + $0xec] sm:$0xf]
    %v3207 = vld [vmem:[#allocation26 + $0xf0] sm:$0xf]
    %v3208 = vld [vmem:[#allocation26 + $0xf4] sm:$0xf]
    %v3209 = vld [vmem:[#allocation26 + $0xf8] sm:$0xf]
    %v3210 = vld [vmem:[#allocation26 + $0xfc] sm:$0xf]
    %v3211 = vld [vmem:[#allocation28] sm:$0x1]
    %v3213 = vlaneseq
    %v3214 = vshrl.u32 %v3213, 7
    %v3215 = vsub.s32 0, %v3214
    %v3216 = vrot.slane %v3211, %v3215
    %v3282 = vunpack.c.l.b16 %v3147
    %v3283 = vunpack.c.l.b16 %v3148
    %v3284 = vunpack.c.l.b16 %v3149
    %v3285 = vunpack.c.l.b16 %v3150
    %v3286 = vunpack.c.l.b16 %v3151
    %v3287 = vunpack.c.l.b16 %v3152
    %v3288 = vunpack.c.l.b16 %v3153
    %v3289 = vunpack.c.l.b16 %v3154
    %v3290 = vunpack.c.l.b16 %v3155
    %v3291 = vunpack.c.l.b16 %v3156
    %v3292 = vunpack.c.l.b16 %v3157
    %v3293 = vunpack.c.l.b16 %v3158
    %v3294 = vunpack.c.l.b16 %v3159
    %v3295 = vunpack.c.l.b16 %v3160
    %v3296 = vunpack.c.l.b16 %v3161
    %v3297 = vunpack.c.l.b16 %v3162
    %v3298 = vunpack.c.l.b16 %v3163
    %v3299 = vunpack.c.l.b16 %v3164
    %v3300 = vunpack.c.l.b16 %v3165
    %v3301 = vunpack.c.l.b16 %v3166
    %v3302 = vunpack.c.l.b16 %v3167
    %v3303 = vunpack.c.l.b16 %v3168
    %v3304 = vunpack.c.l.b16 %v3169
    %v3305 = vunpack.c.l.b16 %v3170
    %v3306 = vunpack.c.l.b16 %v3171
    %v3307 = vunpack.c.l.b16 %v3172
    %v3308 = vunpack.c.l.b16 %v3173
    %v3309 = vunpack.c.l.b16 %v3174
    %v3310 = vunpack.c.l.b16 %v3175
    %v3311 = vunpack.c.l.b16 %v3176
    %v3312 = vunpack.c.l.b16 %v3177
    %v3313 = vunpack.c.l.b16 %v3178
    %v3314 = vunpack.c.l.b16 %v3179
    %v3315 = vunpack.c.l.b16 %v3180
    %v3316 = vunpack.c.l.b16 %v3181
    %v3317 = vunpack.c.l.b16 %v3182
    %v3318 = vunpack.c.l.b16 %v3183
    %v3319 = vunpack.c.l.b16 %v3184
    %v3320 = vunpack.c.l.b16 %v3185
    %v3321 = vunpack.c.l.b16 %v3186
    %v3322 = vunpack.c.l.b16 %v3187
    %v3323 = vunpack.c.l.b16 %v3188
    %v3324 = vunpack.c.l.b16 %v3189
    %v3325 = vunpack.c.l.b16 %v3190
    %v3326 = vunpack.c.l.b16 %v3191
    %v3327 = vunpack.c.l.b16 %v3192
    %v3328 = vunpack.c.l.b16 %v3193
    %v3329 = vunpack.c.l.b16 %v3194
    %v3330 = vunpack.c.l.b16 %v3195
    %v3331 = vunpack.c.l.b16 %v3196
    %v3332 = vunpack.c.l.b16 %v3197
    %v3333 = vunpack.c.l.b16 %v3198
    %v3334 = vunpack.c.l.b16 %v3199
    %v3335 = vunpack.c.l.b16 %v3200
    %v3336 = vunpack.c.l.b16 %v3201
    %v3337 = vunpack.c.l.b16 %v3202
    %v3338 = vunpack.c.l.b16 %v3203
    %v3339 = vunpack.c.l.b16 %v3204
    %v3340 = vunpack.c.l.b16 %v3205
    %v3341 = vunpack.c.l.b16 %v3206
    %v3342 = vunpack.c.l.b16 %v3207
    %v3343 = vunpack.c.l.b16 %v3208
    %v3344 = vunpack.c.l.b16 %v3209
    %v3345 = vunpack.c.l.b16 %v3210
    %v3346 = vpack.c.b16 %v3283, %v3282
    %v3347 = vpack.c.b16 %v3285, %v3284
    %v3348 = vpack.c.b16 %v3287, %v3286
    %v3349 = vpack.c.b16 %v3289, %v3288
    %v3350 = vpack.c.b16 %v3291, %v3290
    %v3351 = vpack.c.b16 %v3293, %v3292
    %v3352 = vpack.c.b16 %v3295, %v3294
    %v3353 = vpack.c.b16 %v3297, %v3296
    %v3354 = vpack.c.b16 %v3299, %v3298
    %v3355 = vpack.c.b16 %v3301, %v3300
    %v3356 = vpack.c.b16 %v3303, %v3302
    %v3357 = vpack.c.b16 %v3305, %v3304
    %v3358 = vpack.c.b16 %v3307, %v3306
    %v3359 = vpack.c.b16 %v3309, %v3308
    %v3360 = vpack.c.b16 %v3311, %v3310
    %v3361 = vpack.c.b16 %v3313, %v3312
    %v3362 = vpack.c.b16 %v3315, %v3314
    %v3363 = vpack.c.b16 %v3317, %v3316
    %v3364 = vpack.c.b16 %v3319, %v3318
    %v3365 = vpack.c.b16 %v3321, %v3320
    %v3366 = vpack.c.b16 %v3323, %v3322
    %v3367 = vpack.c.b16 %v3325, %v3324
    %v3368 = vpack.c.b16 %v3327, %v3326
    %v3369 = vpack.c.b16 %v3329, %v3328
    %v3370 = vpack.c.b16 %v3331, %v3330
    %v3371 = vpack.c.b16 %v3333, %v3332
    %v3372 = vpack.c.b16 %v3335, %v3334
    %v3373 = vpack.c.b16 %v3337, %v3336
    %v3374 = vpack.c.b16 %v3339, %v3338
    %v3375 = vpack.c.b16 %v3341, %v3340
    %v3376 = vpack.c.b16 %v3343, %v3342
    %v3377 = vpack.c.b16 %v3345, %v3344
    %3410 = vmatprep.subr.bf16.mxu0 0
    %3411 = vmatpush1.bf16.msra.mxu0 %v3346
    %3412 = vmatprep.subr.bf16.mxu0 0
    %3413 = vmatpush1.bf16.msra.mxu0 %v3347
    %3414 = vmatprep.subr.bf16.mxu0 0
    %3415 = vmatpush1.bf16.msra.mxu0 %v3348
    %3416 = vmatprep.subr.bf16.mxu0 0
    %3417 = vmatpush1.bf16.msra.mxu0 %v3349
    %3418 = vmatprep.subr.bf16.mxu0 0
    %3419 = vmatpush1.bf16.msra.mxu0 %v3350
    %3420 = vmatprep.subr.bf16.mxu0 0
    %3421 = vmatpush1.bf16.msra.mxu0 %v3351
    %3422 = vmatprep.subr.bf16.mxu0 0
    %3423 = vmatpush1.bf16.msra.mxu0 %v3352
    %3424 = vmatprep.subr.bf16.mxu0 0
    %3425 = vmatpush1.bf16.msra.mxu0 %v3353
    %3426 = vmatprep.subr.bf16.mxu0 0
    %3427 = vmatpush1.bf16.msra.mxu0 %v3354
    %3428 = vmatprep.subr.bf16.mxu0 0
    %3429 = vmatpush1.bf16.msra.mxu0 %v3355
    %3430 = vmatprep.subr.bf16.mxu0 0
    %3431 = vmatpush1.bf16.msra.mxu0 %v3356
    %3432 = vmatprep.subr.bf16.mxu0 0
    %3433 = vmatpush1.bf16.msra.mxu0 %v3357
    %3434 = vmatprep.subr.bf16.mxu0 0
    %3435 = vmatpush1.bf16.msra.mxu0 %v3358
    %3436 = vmatprep.subr.bf16.mxu0 0
    %3437 = vmatpush1.bf16.msra.mxu0 %v3359
    %3438 = vmatprep.subr.bf16.mxu0 0
    %3439 = vmatpush1.bf16.msra.mxu0 %v3360
    %3440 = vmatprep.subr.bf16.mxu0 0
    %3441 = vmatpush1.bf16.msra.mxu0 %v3361
    %3442 = vmatprep.mubr.bf16.mxu0 %v3144
    %3443 = vmatmul.mubr.bf16.gmra.mrb[0].mxu0 %v3143
    %v3444 = vpop.f32.mrb[0].mxu0
    %v3445 = vadd.f32 %v3216, %v3444
    %v3446 = vpop.f32.mrb[0].mxu0
    %v3447 = vpop.f32.mrb[0].mxu0
    %v3448 = vpop.f32.mrb[0].mxu0
    %3449 = vdwg.mxu0
    %3450 = vmatprep.subr.bf16.mxu0 0
    %3451 = vmatpush1.bf16.msra.mxu0 %v3362
    %3452 = vmatprep.subr.bf16.mxu0 0
    %3453 = vmatpush1.bf16.msra.mxu0 %v3363
    %3454 = vmatprep.subr.bf16.mxu0 0
    %3455 = vmatpush1.bf16.msra.mxu0 %v3364
    %3456 = vmatprep.subr.bf16.mxu0 0
    %3457 = vmatpush1.bf16.msra.mxu0 %v3365
    %3458 = vmatprep.subr.bf16.mxu0 0
    %3459 = vmatpush1.bf16.msra.mxu0 %v3366
    %3460 = vmatprep.subr.bf16.mxu0 0
    %3461 = vmatpush1.bf16.msra.mxu0 %v3367
    %3462 = vmatprep.subr.bf16.mxu0 0
    %3463 = vmatpush1.bf16.msra.mxu0 %v3368
    %3464 = vmatprep.subr.bf16.mxu0 0
    %3465 = vmatpush1.bf16.msra.mxu0 %v3369
    %3466 = vmatprep.subr.bf16.mxu0 0
    %3467 = vmatpush1.bf16.msra.mxu0 %v3370
    %3468 = vmatprep.subr.bf16.mxu0 0
    %3469 = vmatpush1.bf16.msra.mxu0 %v3371
    %3470 = vmatprep.subr.bf16.mxu0 0
    %3471 = vmatpush1.bf16.msra.mxu0 %v3372
    %3472 = vmatprep.subr.bf16.mxu0 0
    %3473 = vmatpush1.bf16.msra.mxu0 %v3373
    %3474 = vmatprep.subr.bf16.mxu0 0
    %3475 = vmatpush1.bf16.msra.mxu0 %v3374
    %3476 = vmatprep.subr.bf16.mxu0 0
    %3477 = vmatpush1.bf16.msra.mxu0 %v3375
    %3478 = vmatprep.subr.bf16.mxu0 0
    %3479 = vmatpush1.bf16.msra.mxu0 %v3376
    %3480 = vmatprep.subr.bf16.mxu0 0
    %3481 = vmatpush1.bf16.msra.mxu0 %v3377
    %3482 = vmatprep.mubr.bf16.mxu0 %v3146
    %3483 = vmatmul.mubr.bf16.gmra.mrb[0].mxu0 %v3145
    %v3484 = vpop.f32.mrb[0].mxu0
    %v3485 = vadd.f32 %v3445, %v3484
    %v3486 = vpop.f32.mrb[0].mxu0
    %v3487 = vpop.f32.mrb[0].mxu0
    %v3488 = vpop.f32.mrb[0].mxu0
    %3489 = vdwg.mxu0
    %v3490 = vadd.f32 %v2782, %v3485
    %v3491 = vpack.c.bf16 %v3490, %v3490
    %s3492 = scalar_lea.vmem [#allocation29], 4
    %3493 = vst [vmem:[%s3492] sm:$0xf] %v3491
    // Predicated region
    $region138: #{nanovlm_forward.11} parent=1 // pred_check
      _
    $region139: #{nanovlm_forward.11} parent=1 // pred_check_branch
      %3495 = sbr.rel (0) target = $region141
    $region140: #{nanovlm_forward.11} parent=1 // pred_region
      %s3497 = ssub.s32 128, 128
      %3498 = vsyncadd [#allocation4], %s3497
      %s3499 = sshll.u32 [#allocation29], 4
      %s3500 = int_to_ptr.vmem [resolvable:$true] %s3499
      %3505 = dma.vmem_to_hbm [thread:$0]  %s3500, 128, %s17, [#allocation4], 64, 64, 4
    $region141: #{nanovlm_forward.11} parent=1 // pred_fallthru
      _
    // Predicated region
    $region142: #{nanovlm_forward.11} parent=1 // pred_check
      _
    $region143: #{nanovlm_forward.11} parent=1 // pred_check_branch
      %3507 = sbr.rel (0) target = $region145
    $region144: #{nanovlm_forward.11} parent=1 // pred_region
      %3508 = dma.done [#allocation4], 128
    $region145: #{nanovlm_forward.11} parent=1 // pred_fallthru
      _
    %3509 = vsyncpa [#allocation3], 1
    %3510 = vsyncpa [#allocation6], 1
    %3511 = vsyncpa [#allocation9], 1
    %3512 = vsyncpa [#allocation12], 1
    %3513 = vsyncpa [#allocation15], 1
    %3514 = vsyncpa [#allocation18], 1
    %3515 = vsyncpa [#allocation21], 1
    %3516 = vsyncpa [#allocation24], 1
    %3517 = vsyncpa [#allocation27], 1
    %3518 = vsyncpa [#allocation4], 1

// kernel: nanovlm_forward.8
$region0: #{nanovlm_forward.8}
  #allocation0 [shape = 'u32[]', space=smem, size = 0x4, offset = 0x4, fixed_abs, tag = 'smem constant byte address 0x4 - core index']
  #allocation1 [shape = 'u32[144,128]{1,0:T(1,128)}', space=vmem, size = 0x12000, scoped, tag = 'internal scratch']
  %s0 = inlined_call_operand.hbm [shape: bf16[2,17,128], index: 0, kind: input, shape index: {}]
  %s1 = inlined_call_operand.hbm [shape: f32[1,128], index: 1, kind: input, shape index: {}]
  %s2 = inlined_call_operand.hbm [shape: f32[1,128], index: 2, kind: input, shape index: {}]
  %s3 = inlined_call_operand.hbm [shape: bf16[128,128], index: 3, kind: input, shape index: {}]
  %s4 = inlined_call_operand.hbm [shape: f32[1,128], index: 4, kind: input, shape index: {}]
  %s5 = inlined_call_operand.hbm [shape: bf16[128,128], index: 5, kind: input, shape index: {}]
  %s6 = inlined_call_operand.hbm [shape: f32[1,128], index: 6, kind: input, shape index: {}]
  %s7 = inlined_call_operand.hbm [shape: bf16[128,128], index: 7, kind: input, shape index: {}]
  %s8 = inlined_call_operand.hbm [shape: f32[1,128], index: 8, kind: input, shape index: {}]
  %s9 = inlined_call_operand.hbm [shape: bf16[128,128], index: 9, kind: input, shape index: {}]
  %s10 = inlined_call_operand.hbm [shape: f32[1,128], index: 10, kind: input, shape index: {}]
  %s11 = inlined_call_operand.hbm [shape: f32[1,128], index: 11, kind: input, shape index: {}]
  %s12 = inlined_call_operand.hbm [shape: f32[1,128], index: 12, kind: input, shape index: {}]
  %s13 = inlined_call_operand.hbm [shape: bf16[128,512], index: 13, kind: input, shape index: {}]
  %s14 = inlined_call_operand.hbm [shape: f32[1,512], index: 14, kind: input, shape index: {}]
  %s15 = inlined_call_operand.hbm [shape: bf16[512,128], index: 15, kind: input, shape index: {}]
  %s16 = inlined_call_operand.hbm [shape: f32[1,128], index: 16, kind: input, shape index: {}]
  %s17 = inlined_call_operand.hbm [shape: bf16[2,17,128], index: 17, kind: output, shape index: {}]
  %s18 = sld [smem:[#allocation0]]
  $region146: #{nanovlm_forward.8} parent=0
    _
  %s20 = ssub.s32 1, %s18
  %s21 = scalar_select 0, %s20, %s18
  $region1: #{nanovlm_forward.8} parent=0
    #allocation2 [shape = 'u8[12288]{0}', space=vmem, size = 0x3000, scoped, tag = 'input window, operand 0, single buffered']
    #allocation3 [shape = 's32[1]{0}', space=sflag, size = 0x4, scoped, tag = 'scoped memory for nanovlm_forward.8']
    #allocation4 [shape = 's32[1]{0}', space=sflag, size = 0x4, scoped, tag = 'scoped memory for nanovlm_forward.8']
    #allocation5 [shape = 'u8[512]{0}', space=vmem, size = 0x400, scoped, tag = 'input window, operand 1, single buffered']
    #allocation6 [shape = 's32[1]{0}', space=sflag, size = 0x4, scoped, tag = 'scoped memory for nanovlm_forward.8']
    #allocation7 [shape = 'u8[512]{0}', space=vmem, size = 0x400, scoped, tag = 'input window, operand 2, single buffered']
    #allocation8 [shape = 'u8[32768]{0}', space=vmem, size = 0x8000, scoped, tag = 'input window, operand 3, single buffered']
    #allocation9 [shape = 's32[1]{0}', space=sflag, size = 0x4, scoped, tag = 'scoped memory for nanovlm_forward.8']
    #allocation10 [shape = 'u8[512]{0}', space=vmem, size = 0x400, scoped, tag = 'input window, operand 4, single buffered']
    #allocation11 [shape = 'u8[32768]{0}', space=vmem, size = 0x8000, scoped, tag = 'input window, operand 5, single buffered']
    #allocation12 [shape = 's32[1]{0}', space=sflag, size = 0x4, scoped, tag = 'scoped memory for nanovlm_forward.8']
    #allocation13 [shape = 'u8[512]{0}', space=vmem, size = 0x400, scoped, tag = 'input window, operand 6, single buffered']
    #allocation14 [shape = 'u8[32768]{0}', space=vmem, size = 0x8000, scoped, tag = 'input window, operand 7, single buffered']
    #allocation15 [shape = 's32[1]{0}', space=sflag, size = 0x4, scoped, tag = 'scoped memory for nanovlm_forward.8']
    #allocation16 [shape = 'u8[512]{0}', space=vmem, size = 0x400, scoped, tag = 'input window, operand 8, single buffered']
    #allocation17 [shape = 'u8[32768]{0}', space=vmem, size = 0x8000, scoped, tag = 'input window, operand 9, single buffered']
    #allocation18 [shape = 's32[1]{0}', space=sflag, size = 0x4, scoped, tag = 'scoped memory for nanovlm_forward.8']
    #allocation19 [shape = 'u8[512]{0}', space=vmem, size = 0x400, scoped, tag = 'input window, operand 10, single buffered']
    #allocation20 [shape = 'u8[512]{0}', space=vmem, size = 0x400, scoped, tag = 'input window, operand 11, single buffered']
    #allocation21 [shape = 's32[1]{0}', space=sflag, size = 0x4, scoped, tag = 'scoped memory for nanovlm_forward.8']
    #allocation22 [shape = 'u8[512]{0}', space=vmem, size = 0x400, scoped, tag = 'input window, operand 12, single buffered']
    #allocation23 [shape = 'u8[131072]{0}', space=vmem, size = 0x20000, scoped, tag = 'input window, operand 13, single buffered']
    #allocation24 [shape = 's32[1]{0}', space=sflag, size = 0x4, scoped, tag = 'scoped memory for nanovlm_forward.8']
    #allocation25 [shape = 'u8[2048]{0}', space=vmem, size = 0x800, scoped, tag = 'input window, operand 14, single buffered']
    #allocation26 [shape = 'u8[131072]{0}', space=vmem, size = 0x20000, scoped, tag = 'input window, operand 15, single buffered']
    #allocation27 [shape = 's32[1]{0}', space=sflag, size = 0x4, scoped, tag = 'scoped memory for nanovlm_forward.8']
    #allocation28 [shape = 'u8[512]{0}', space=vmem, size = 0x400, scoped, tag = 'input window, operand 16, single buffered']
    #allocation29 [shape = 'u8[12288]{0}', space=vmem, size = 0x3000, scoped, tag = 'output window, operand 0, single buffered']
    %22 = vsyncpa [#allocation3], 0
    %23 = vsyncpa [#allocation6], 0
    %24 = vsyncpa [#allocation9], 0
    %25 = vsyncpa [#allocation12], 0
    %26 = vsyncpa [#allocation15], 0
    %27 = vsyncpa [#allocation18], 0
    %28 = vsyncpa [#allocation21], 0
    %29 = vsyncpa [#allocation24], 0
    %30 = vsyncpa [#allocation27], 0
    %31 = vsyncpa [#allocation4], 0
    // Predicated region
    $region2: #{nanovlm_forward.8} parent=1 // pred_check
      _
    $region3: #{nanovlm_forward.8} parent=1 // pred_check_branch
      %33 = sbr.rel (0) target = $region5
    $region4: #{nanovlm_forward.8} parent=1 // pred_region
      %s35 = ssub.s32 384, 384
      %36 = vsyncadd [#allocation3], %s35
      %s37 = sshll.u32 [#allocation2], 4
      %s38 = int_to_ptr.vmem [resolvable:$true] %s37
      %43 = dma.hbm_to_vmem [thread:$0]  %s0, 384, %s38, [#allocation3], 64, 64, 4
    $region5: #{nanovlm_forward.8} parent=1 // pred_fallthru
      _
    // Predicated region
    $region6: #{nanovlm_forward.8} parent=1 // pred_check
      _
    $region7: #{nanovlm_forward.8} parent=1 // pred_check_branch
      %45 = sbr.rel (0) target = $region9
    $region8: #{nanovlm_forward.8} parent=1 // pred_region
      %s47 = ssub.s32 16, 16
      %48 = vsyncadd [#allocation6], %s47
      %s50 = sshll.u32 [#allocation5], 4
      %s51 = int_to_ptr.vmem [resolvable:$true] %s50
      %53 = dma.hbm_to_vmem [thread:$0]  %s1, 16, %s51, [#allocation6]
    $region9: #{nanovlm_forward.8} parent=1 // pred_fallthru
      _
    // Predicated region
    $region10: #{nanovlm_forward.8} parent=1 // pred_check
      _
    $region11: #{nanovlm_forward.8} parent=1 // pred_check_branch
      %55 = sbr.rel (0) target = $region13
    $region12: #{nanovlm_forward.8} parent=1 // pred_region
      %s57 = ssub.s32 16, 16
      %58 = vsyncadd [#allocation6], %s57
      %s60 = sshll.u32 [#allocation7], 4
      %s61 = int_to_ptr.vmem [resolvable:$true] %s60
      %63 = dma.hbm_to_vmem [thread:$0]  %s2, 16, %s61, [#allocation6]
    $region13: #{nanovlm_forward.8} parent=1 // pred_fallthru
      _
    // Predicated region
    $region14: #{nanovlm_forward.8} parent=1 // pred_check
      _
    $region15: #{nanovlm_forward.8} parent=1 // pred_check_branch
      %65 = sbr.rel (0) target = $region17
    $region16: #{nanovlm_forward.8} parent=1 // pred_region
      %s67 = ssub.s32 1024, 1024
      %68 = vsyncadd [#allocation9], %s67
      %s69 = sshll.u32 [#allocation8], 4
      %s70 = int_to_ptr.vmem [resolvable:$true] %s69
      %75 = dma.hbm_to_vmem [thread:$0]  %s3, 1024, %s70, [#allocation9], 64, 64, 4
    $region17: #{nanovlm_forward.8} parent=1 // pred_fallthru
      _
    // Predicated region
    $region18: #{nanovlm_forward.8} parent=1 // pred_check
      _
    $region19: #{nanovlm_forward.8} parent=1 // pred_check_branch
      %77 = sbr.rel (0) target = $region21
    $region20: #{nanovlm_forward.8} parent=1 // pred_region
      %s79 = ssub.s32 16, 16
      %80 = vsyncadd [#allocation9], %s79
      %s82 = sshll.u32 [#allocation10], 4
      %s83 = int_to_ptr.vmem [resolvable:$true] %s82
      %85 = dma.hbm_to_vmem [thread:$0]  %s4, 16, %s83, [#allocation9]
    $region21: #{nanovlm_forward.8} parent=1 // pred_fallthru
      _
    // Predicated region
    $region22: #{nanovlm_forward.8} parent=1 // pred_check
      _
    $region23: #{nanovlm_forward.8} parent=1 // pred_check_branch
      %87 = sbr.rel (0) target = $region25
    $region24: #{nanovlm_forward.8} parent=1 // pred_region
      %s89 = ssub.s32 1024, 1024
      %90 = vsyncadd [#allocation12], %s89
      %s91 = sshll.u32 [#allocation11], 4
      %s92 = int_to_ptr.vmem [resolvable:$true] %s91
      %97 = dma.hbm_to_vmem [thread:$0]  %s5, 1024, %s92, [#allocation12], 64, 64, 4
    $region25: #{nanovlm_forward.8} parent=1 // pred_fallthru
      _
    // Predicated region
    $region26: #{nanovlm_forward.8} parent=1 // pred_check
      _
    $region27: #{nanovlm_forward.8} parent=1 // pred_check_branch
      %99 = sbr.rel (0) target = $region29
    $region28: #{nanovlm_forward.8} parent=1 // pred_region
      %s101 = ssub.s32 16, 16
      %102 = vsyncadd [#allocation12], %s101
      %s104 = sshll.u32 [#allocation13], 4
      %s105 = int_to_ptr.vmem [resolvable:$true] %s104
      %107 = dma.hbm_to_vmem [thread:$0]  %s6, 16, %s105, [#allocation12]
    $region29: #{nanovlm_forward.8} parent=1 // pred_fallthru
      _
    // Predicated region
    $region30: #{nanovlm_forward.8} parent=1 // pred_check
      _
    $region31: #{nanovlm_forward.8} parent=1 // pred_check_branch
      %109 = sbr.rel (0) target = $region33
    $region32: #{nanovlm_forward.8} parent=1 // pred_region
      %s111 = ssub.s32 1024, 1024
      %112 = vsyncadd [#allocation15], %s111
      %s113 = sshll.u32 [#allocation14], 4
      %s114 = int_to_ptr.vmem [resolvable:$true] %s113
      %119 = dma.hbm_to_vmem [thread:$0]  %s7, 1024, %s114, [#allocation15], 64, 64, 4
    $region33: #{nanovlm_forward.8} parent=1 // pred_fallthru
      _
    // Predicated region
    $region34: #{nanovlm_forward.8} parent=1 // pred_check
      _
    $region35: #{nanovlm_forward.8} parent=1 // pred_check_branch
      %121 = sbr.rel (0) target = $region37
    $region36: #{nanovlm_forward.8} parent=1 // pred_region
      %s123 = ssub.s32 16, 16
      %124 = vsyncadd [#allocation15], %s123
      %s126 = sshll.u32 [#allocation16], 4
      %s127 = int_to_ptr.vmem [resolvable:$true] %s126
      %129 = dma.hbm_to_vmem [thread:$0]  %s8, 16, %s127, [#allocation15]
    $region37: #{nanovlm_forward.8} parent=1 // pred_fallthru
      _
    // Predicated region
    $region38: #{nanovlm_forward.8} parent=1 // pred_check
      _
    $region39: #{nanovlm_forward.8} parent=1 // pred_check_branch
      %131 = sbr.rel (0) target = $region41
    $region40: #{nanovlm_forward.8} parent=1 // pred_region
      %s133 = ssub.s32 1024, 1024
      %134 = vsyncadd [#allocation18], %s133
      %s135 = sshll.u32 [#allocation17], 4
      %s136 = int_to_ptr.vmem [resolvable:$true] %s135
      %141 = dma.hbm_to_vmem [thread:$0]  %s9, 1024, %s136, [#allocation18], 64, 64, 4
    $region41: #{nanovlm_forward.8} parent=1 // pred_fallthru
      _
    // Predicated region
    $region42: #{nanovlm_forward.8} parent=1 // pred_check
      _
    $region43: #{nanovlm_forward.8} parent=1 // pred_check_branch
      %143 = sbr.rel (0) target = $region45
    $region44: #{nanovlm_forward.8} parent=1 // pred_region
      %s145 = ssub.s32 16, 16
      %146 = vsyncadd [#allocation18], %s145
      %s148 = sshll.u32 [#allocation19], 4
      %s149 = int_to_ptr.vmem [resolvable:$true] %s148
      %151 = dma.hbm_to_vmem [thread:$0]  %s10, 16, %s149, [#allocation18]
    $region45: #{nanovlm_forward.8} parent=1 // pred_fallthru
      _
    // Predicated region
    $region46: #{nanovlm_forward.8} parent=1 // pred_check
      _
    $region47: #{nanovlm_forward.8} parent=1 // pred_check_branch
      %153 = sbr.rel (0) target = $region49
    $region48: #{nanovlm_forward.8} parent=1 // pred_region
      %s155 = ssub.s32 16, 16
      %156 = vsyncadd [#allocation21], %s155
      %s158 = sshll.u32 [#allocation20], 4
      %s159 = int_to_ptr.vmem [resolvable:$true] %s158
      %161 = dma.hbm_to_vmem [thread:$0]  %s11, 16, %s159, [#allocation21]
    $region49: #{nanovlm_forward.8} parent=1 // pred_fallthru
      _
    // Predicated region
    $region50: #{nanovlm_forward.8} parent=1 // pred_check
      _
    $region51: #{nanovlm_forward.8} parent=1 // pred_check_branch
      %163 = sbr.rel (0) target = $region53
    $region52: #{nanovlm_forward.8} parent=1 // pred_region
      %s165 = ssub.s32 16, 16
      %166 = vsyncadd [#allocation21], %s165
      %s168 = sshll.u32 [#allocation22], 4
      %s169 = int_to_ptr.vmem [resolvable:$true] %s168
      %171 = dma.hbm_to_vmem [thread:$0]  %s12, 16, %s169, [#allocation21]
    $region53: #{nanovlm_forward.8} parent=1 // pred_fallthru
      _
    // Predicated region
    $region54: #{nanovlm_forward.8} parent=1 // pred_check
      _
    $region55: #{nanovlm_forward.8} parent=1 // pred_check_branch
      %173 = sbr.rel (0) target = $region57
    $region56: #{nanovlm_forward.8} parent=1 // pred_region
      %s175 = ssub.s32 4096, 4096
      %176 = vsyncadd [#allocation24], %s175
      %s177 = sshll.u32 [#allocation23], 4
      %s178 = int_to_ptr.vmem [resolvable:$true] %s177
      %183 = dma.hbm_to_vmem [thread:$0]  %s13, 4096, %s178, [#allocation24], 256, 256, 16
    $region57: #{nanovlm_forward.8} parent=1 // pred_fallthru
      _
    // Predicated region
    $region58: #{nanovlm_forward.8} parent=1 // pred_check
      _
    $region59: #{nanovlm_forward.8} parent=1 // pred_check_branch
      %185 = sbr.rel (0) target = $region61
    $region60: #{nanovlm_forward.8} parent=1 // pred_region
      %s187 = ssub.s32 64, 64
      %188 = vsyncadd [#allocation24], %s187
      %s190 = sshll.u32 [#allocation25], 4
      %s191 = int_to_ptr.vmem [resolvable:$true] %s190
      %193 = dma.hbm_to_vmem [thread:$0]  %s14, 64, %s191, [#allocation24]
    $region61: #{nanovlm_forward.8} parent=1 // pred_fallthru
      _
    // Predicated region
    $region62: #{nanovlm_forward.8} parent=1 // pred_check
      _
    $region63: #{nanovlm_forward.8} parent=1 // pred_check_branch
      %195 = sbr.rel (0) target = $region65
    $region64: #{nanovlm_forward.8} parent=1 // pred_region
      %s197 = ssub.s32 4096, 4096
      %198 = vsyncadd [#allocation27], %s197
      %s199 = sshll.u32 [#allocation26], 4
      %s200 = int_to_ptr.vmem [resolvable:$true] %s199
      %205 = dma.hbm_to_vmem [thread:$0]  %s15, 4096, %s200, [#allocation27], 64, 64, 4
    $region65: #{nanovlm_forward.8} parent=1 // pred_fallthru
      _
    // Predicated region
    $region66: #{nanovlm_forward.8} parent=1 // pred_check
      _
    $region67: #{nanovlm_forward.8} parent=1 // pred_check_branch
      %207 = sbr.rel (0) target = $region69
    $region68: #{nanovlm_forward.8} parent=1 // pred_region
      %s209 = ssub.s32 16, 16
      %210 = vsyncadd [#allocation27], %s209
      %s212 = sshll.u32 [#allocation28], 4
      %s213 = int_to_ptr.vmem [resolvable:$true] %s212
      %215 = dma.hbm_to_vmem [thread:$0]  %s16, 16, %s213, [#allocation27]
    $region69: #{nanovlm_forward.8} parent=1 // pred_fallthru
      _
    // Predicated region
    $region70: #{nanovlm_forward.8} parent=1 // pred_check
      _
    $region71: #{nanovlm_forward.8} parent=1 // pred_check_branch
      %217 = sbr.rel (0) target = $region73
    $region72: #{nanovlm_forward.8} parent=1 // pred_region
      %218 = dma.done [#allocation3], 384
    $region73: #{nanovlm_forward.8} parent=1 // pred_fallthru
      _
    // Predicated region
    $region74: #{nanovlm_forward.8} parent=1 // pred_check
      _
    $region75: #{nanovlm_forward.8} parent=1 // pred_check_branch
      %220 = sbr.rel (0) target = $region77
    $region76: #{nanovlm_forward.8} parent=1 // pred_region
      %221 = dma.done [#allocation6], 16
    $region77: #{nanovlm_forward.8} parent=1 // pred_fallthru
      _
    // Predicated region
    $region78: #{nanovlm_forward.8} parent=1 // pred_check
      _
    $region79: #{nanovlm_forward.8} parent=1 // pred_check_branch
      %223 = sbr.rel (0) target = $region81
    $region80: #{nanovlm_forward.8} parent=1 // pred_region
      %224 = dma.done [#allocation6], 16
    $region81: #{nanovlm_forward.8} parent=1 // pred_fallthru
      _
    // Predicated region
    $region82: #{nanovlm_forward.8} parent=1 // pred_check
      _
    $region83: #{nanovlm_forward.8} parent=1 // pred_check_branch
      %226 = sbr.rel (0) target = $region85
    $region84: #{nanovlm_forward.8} parent=1 // pred_region
      %227 = dma.done [#allocation9], 1024
    $region85: #{nanovlm_forward.8} parent=1 // pred_fallthru
      _
    // Predicated region
    $region86: #{nanovlm_forward.8} parent=1 // pred_check
      _
    $region87: #{nanovlm_forward.8} parent=1 // pred_check_branch
      %229 = sbr.rel (0) target = $region89
    $region88: #{nanovlm_forward.8} parent=1 // pred_region
      %230 = dma.done [#allocation9], 16
    $region89: #{nanovlm_forward.8} parent=1 // pred_fallthru
      _
    // Predicated region
    $region90: #{nanovlm_forward.8} parent=1 // pred_check
      _
    $region91: #{nanovlm_forward.8} parent=1 // pred_check_branch
      %232 = sbr.rel (0) target = $region93
    $region92: #{nanovlm_forward.8} parent=1 // pred_region
      %233 = dma.done [#allocation12], 1024
    $region93: #{nanovlm_forward.8} parent=1 // pred_fallthru
      _
    // Predicated region
    $region94: #{nanovlm_forward.8} parent=1 // pred_check
      _
    $region95: #{nanovlm_forward.8} parent=1 // pred_check_branch
      %235 = sbr.rel (0) target = $region97
    $region96: #{nanovlm_forward.8} parent=1 // pred_region
      %236 = dma.done [#allocation12], 16
    $region97: #{nanovlm_forward.8} parent=1 // pred_fallthru
      _
    // Predicated region
    $region98: #{nanovlm_forward.8} parent=1 // pred_check
      _
    $region99: #{nanovlm_forward.8} parent=1 // pred_check_branch
      %238 = sbr.rel (0) target = $region101
    $region100: #{nanovlm_forward.8} parent=1 // pred_region
      %239 = dma.done [#allocation15], 1024
    $region101: #{nanovlm_forward.8} parent=1 // pred_fallthru
      _
    // Predicated region
    $region102: #{nanovlm_forward.8} parent=1 // pred_check
      _
    $region103: #{nanovlm_forward.8} parent=1 // pred_check_branch
      %241 = sbr.rel (0) target = $region105
    $region104: #{nanovlm_forward.8} parent=1 // pred_region
      %242 = dma.done [#allocation15], 16
    $region105: #{nanovlm_forward.8} parent=1 // pred_fallthru
      _
    // Predicated region
    $region106: #{nanovlm_forward.8} parent=1 // pred_check
      _
    $region107: #{nanovlm_forward.8} parent=1 // pred_check_branch
      %244 = sbr.rel (0) target = $region109
    $region108: #{nanovlm_forward.8} parent=1 // pred_region
      %245 = dma.done [#allocation18], 1024
    $region109: #{nanovlm_forward.8} parent=1 // pred_fallthru
      _
    // Predicated region
    $region110: #{nanovlm_forward.8} parent=1 // pred_check
      _
    $region111: #{nanovlm_forward.8} parent=1 // pred_check_branch
      %247 = sbr.rel (0) target = $region113
    $region112: #{nanovlm_forward.8} parent=1 // pred_region
      %248 = dma.done [#allocation18], 16
    $region113: #{nanovlm_forward.8} parent=1 // pred_fallthru
      _
    // Predicated region
    $region114: #{nanovlm_forward.8} parent=1 // pred_check
      _
    $region115: #{nanovlm_forward.8} parent=1 // pred_check_branch
      %250 = sbr.rel (0) target = $region117
    $region116: #{nanovlm_forward.8} parent=1 // pred_region
      %251 = dma.done [#allocation21], 16
    $region117: #{nanovlm_forward.8} parent=1 // pred_fallthru
      _
    // Predicated region
    $region118: #{nanovlm_forward.8} parent=1 // pred_check
      _
    $region119: #{nanovlm_forward.8} parent=1 // pred_check_branch
      %253 = sbr.rel (0) target = $region121
    $region120: #{nanovlm_forward.8} parent=1 // pred_region
      %254 = dma.done [#allocation21], 16
    $region121: #{nanovlm_forward.8} parent=1 // pred_fallthru
      _
    // Predicated region
    $region122: #{nanovlm_forward.8} parent=1 // pred_check
      _
    $region123: #{nanovlm_forward.8} parent=1 // pred_check_branch
      %256 = sbr.rel (0) target = $region125
    $region124: #{nanovlm_forward.8} parent=1 // pred_region
      %257 = dma.done [#allocation24], 4096
    $region125: #{nanovlm_forward.8} parent=1 // pred_fallthru
      _
    // Predicated region
    $region126: #{nanovlm_forward.8} parent=1 // pred_check
      _
    $region127: #{nanovlm_forward.8} parent=1 // pred_check_branch
      %259 = sbr.rel (0) target = $region129
    $region128: #{nanovlm_forward.8} parent=1 // pred_region
      %260 = dma.done [#allocation24], 64
    $region129: #{nanovlm_forward.8} parent=1 // pred_fallthru
      _
    // Predicated region
    $region130: #{nanovlm_forward.8} parent=1 // pred_check
      _
    $region131: #{nanovlm_forward.8} parent=1 // pred_check_branch
      %262 = sbr.rel (0) target = $region133
    $region132: #{nanovlm_forward.8} parent=1 // pred_region
      %263 = dma.done [#allocation27], 4096
    $region133: #{nanovlm_forward.8} parent=1 // pred_fallthru
      _
    // Predicated region
    $region134: #{nanovlm_forward.8} parent=1 // pred_check
      _
    $region135: #{nanovlm_forward.8} parent=1 // pred_check_branch
      %265 = sbr.rel (0) target = $region137
    $region136: #{nanovlm_forward.8} parent=1 // pred_region
      %266 = dma.done [#allocation27], 16
    $region137: #{nanovlm_forward.8} parent=1 // pred_fallthru
      _
    %v268 = vlaneseq
    %v269 = vand.u32 %v268, 127
    %vm270 = vcmp.ge.s32.totalorder %v269, 0
    %vm271 = vcmp.lt.s32.totalorder %v269, 32
    %vm272 = vmand %vm270, %vm271
    %v273 = vsel %vm272, 1, 0
    %v274 = vcvt.s32.f32 %v273
    %v275 = vpack.c.bf16 %v274, %v274
    %vm276 = vcmp.ge.s32.totalorder %v269, 32
    %vm277 = vcmp.lt.s32.totalorder %v269, 64
    %vm278 = vmand %vm276, %vm277
    %v279 = vsel %vm278, 1, 0
    %v280 = vcvt.s32.f32 %v279
    %v281 = vpack.c.bf16 %v280, %v280
    %vm282 = vcmp.ge.s32.totalorder %v269, 64
    %vm283 = vcmp.lt.s32.totalorder %v269, 96
    %vm284 = vmand %vm282, %vm283
    %v285 = vsel %vm284, 1, 0
    %v286 = vcvt.s32.f32 %v285
    %v287 = vpack.c.bf16 %v286, %v286
    %vm288 = vcmp.ge.s32.totalorder %v269, 96
    %vm289 = vcmp.lt.s32.totalorder %v269, 128
    %vm290 = vmand %vm288, %vm289
    %v291 = vsel %vm290, 1, 0
    %v292 = vcvt.s32.f32 %v291
    %v293 = vpack.c.bf16 %v292, %v292
    %v294 = vld [vmem:[#allocation2] sm:$0xf]
    %v295 = vld [vmem:[#allocation2 + $0x4] sm:$0xf]
    %v296 = vld [vmem:[#allocation2 + $0x8] sm:$0x1]
    %v297 = vunpack.c.l.bf16 %v294
    %v298 = vunpack.c.l.bf16 %v295
    %v299 = vunpack.c.l.bf16 %v296
    %v300 = vld [vmem:[#allocation5] sm:$0x1]
    %v301 = vld [vmem:[#allocation7] sm:$0x1]
    %302 = vadd.xlane.f32.xlu0 %v297
    %v303 = vpop.xlane.xlu0 %302
    %304 = vadd.xlane.f32.xlu0 %v298
    %v305 = vpop.xlane.xlu0 %304
    %vm306 = vcmask 1040384
    %v307 = vsel %vm306, %v299, 0.0
    %308 = vadd.xlane.f32.xlu0 %v307
    %v309 = vpop.xlane.xlu0 %308
    %v310 = vrcp.pop 128.0
    %v311 = vmul.f32 %v303, %v310
    %v312 = vmul.f32 %v305, %v310
    %v313 = vmul.f32 %v309, %v310
    %v314 = vsub.f32 %v297, %v311
    %v315 = vsub.f32 %v298, %v312
    %v316 = vsub.f32 %v299, %v313
    %v317 = vmul.f32 %v314, %v314
    %v318 = vmul.f32 %v315, %v315
    %v319 = vmul.f32 %v316, %v316
    %320 = vadd.xlane.f32.xlu0 %v317
    %v321 = vpop.xlane.xlu0 %320
    %322 = vadd.xlane.f32.xlu0 %v318
    %v323 = vpop.xlane.xlu0 %322
    %v324 = vsel %vm306, %v319, 0.0
    %325 = vadd.xlane.f32.xlu0 %v324
    %v326 = vpop.xlane.xlu0 %325
    %v327 = vmul.f32 %v321, %v310
    %v328 = vmul.f32 %v323, %v310
    %v329 = vmul.f32 %v326, %v310
    %v330 = vadd.f32 %v327, 1e-05
    %v331 = vadd.f32 %v328, 1e-05
    %v332 = vadd.f32 %v329, 1e-05
    %v333 = vrsqrt.pop %v330
    %v334 = vrsqrt.pop %v331
    %v335 = vrsqrt.pop %v332
    %v336 = vmul.f32 %v314, %v333
    %v337 = vmul.f32 %v315, %v334
    %v338 = vmul.f32 %v316, %v335
    %v340 = vlaneseq
    %v341 = vshrl.u32 %v340, 7
    %v342 = vsub.s32 0, %v341
    %v343 = vrot.slane %v300, %v342
    %v345 = vmul.f32 %v336, %v343
    %v346 = vmul.f32 %v337, %v343
    %v347 = vmul.f32 %v338, %v343
    %v349 = vlaneseq
    %v350 = vshrl.u32 %v349, 7
    %v351 = vsub.s32 0, %v350
    %v352 = vrot.slane %v301, %v351
    %v354 = vadd.f32 %v345, %v352
    %v355 = vadd.f32 %v346, %v352
    %v356 = vadd.f32 %v347, %v352
    %v357 = vpack.c.bf16 %v355, %v354
    %v358 = vpack.c.bf16 %v356, %v356
    %v359 = vld [vmem:[#allocation8] sm:$0xf]
    %v360 = vld [vmem:[#allocation8 + $0x4] sm:$0xf]
    %v361 = vld [vmem:[#allocation8 + $0x8] sm:$0xf]
    %v362 = vld [vmem:[#allocation8 + $0xc] sm:$0xf]
    %v363 = vld [vmem:[#allocation8 + $0x10] sm:$0xf]
    %v364 = vld [vmem:[#allocation8 + $0x14] sm:$0xf]
    %v365 = vld [vmem:[#allocation8 + $0x18] sm:$0xf]
    %v366 = vld [vmem:[#allocation8 + $0x1c] sm:$0xf]
    %v367 = vld [vmem:[#allocation8 + $0x20] sm:$0xf]
    %v368 = vld [vmem:[#allocation8 + $0x24] sm:$0xf]
    %v369 = vld [vmem:[#allocation8 + $0x28] sm:$0xf]
    %v370 = vld [vmem:[#allocation8 + $0x2c] sm:$0xf]
    %v371 = vld [vmem:[#allocation8 + $0x30] sm:$0xf]
    %v372 = vld [vmem:[#allocation8 + $0x34] sm:$0xf]
    %v373 = vld [vmem:[#allocation8 + $0x38] sm:$0xf]
    %v374 = vld [vmem:[#allocation8 + $0x3c] sm:$0xf]
    %v375 = vld [vmem:[#allocation10] sm:$0x1]
    %v377 = vlaneseq
    %v378 = vshrl.u32 %v377, 7
    %v379 = vsub.s32 0, %v378
    %v380 = vrot.slane %v375, %v379
    %v398 = vunpack.c.l.b16 %v359
    %v399 = vunpack.c.l.b16 %v360
    %v400 = vunpack.c.l.b16 %v361
    %v401 = vunpack.c.l.b16 %v362
    %v402 = vunpack.c.l.b16 %v363
    %v403 = vunpack.c.l.b16 %v364
    %v404 = vunpack.c.l.b16 %v365
    %v405 = vunpack.c.l.b16 %v366
    %v406 = vunpack.c.l.b16 %v367
    %v407 = vunpack.c.l.b16 %v368
    %v408 = vunpack.c.l.b16 %v369
    %v409 = vunpack.c.l.b16 %v370
    %v410 = vunpack.c.l.b16 %v371
    %v411 = vunpack.c.l.b16 %v372
    %v412 = vunpack.c.l.b16 %v373
    %v413 = vunpack.c.l.b16 %v374
    %v414 = vpack.c.b16 %v399, %v398
    %v415 = vpack.c.b16 %v401, %v400
    %v416 = vpack.c.b16 %v403, %v402
    %v417 = vpack.c.b16 %v405, %v404
    %v418 = vpack.c.b16 %v407, %v406
    %v419 = vpack.c.b16 %v409, %v408
    %v420 = vpack.c.b16 %v411, %v410
    %v421 = vpack.c.b16 %v413, %v412
    %430 = vmatprep.subr.bf16.mxu0 0
    %431 = vmatpush1.bf16.msra.mxu0 %v414
    %432 = vmatprep.subr.bf16.mxu0 0
    %433 = vmatpush1.bf16.msra.mxu0 %v415
    %434 = vmatprep.subr.bf16.mxu0 0
    %435 = vmatpush1.bf16.msra.mxu0 %v416
    %436 = vmatprep.subr.bf16.mxu0 0
    %437 = vmatpush1.bf16.msra.mxu0 %v417
    %438 = vmatprep.subr.bf16.mxu0 0
    %439 = vmatpush1.bf16.msra.mxu0 %v418
    %440 = vmatprep.subr.bf16.mxu0 0
    %441 = vmatpush1.bf16.msra.mxu0 %v419
    %442 = vmatprep.subr.bf16.mxu0 0
    %443 = vmatpush1.bf16.msra.mxu0 %v420
    %444 = vmatprep.subr.bf16.mxu0 0
    %445 = vmatpush1.bf16.msra.mxu0 %v421
    %446 = vmatprep.subr.bf16.mxu0 0
    %447 = vmatpush1.bf16.msra.mxu0 0
    %448 = vmatprep.subr.bf16.mxu0 0
    %449 = vmatpush1.bf16.msra.mxu0 0
    %450 = vmatprep.subr.bf16.mxu0 0
    %451 = vmatpush1.bf16.msra.mxu0 0
    %452 = vmatprep.subr.bf16.mxu0 0
    %453 = vmatpush1.bf16.msra.mxu0 0
    %454 = vmatprep.subr.bf16.mxu0 0
    %455 = vmatpush1.bf16.msra.mxu0 0
    %456 = vmatprep.subr.bf16.mxu0 0
    %457 = vmatpush1.bf16.msra.mxu0 0
    %458 = vmatprep.subr.bf16.mxu0 0
    %459 = vmatpush1.bf16.msra.mxu0 0
    %460 = vmatprep.subr.bf16.mxu0 0
    %461 = vmatpush1.bf16.msra.mxu0 0
    %462 = vmatprep.mubr.bf16.mxu0 0
    %463 = vmatmul.mubr.bf16.gmra.mrb[0].mxu0 %v357
    %v464 = vpop.f32.mrb[0].mxu0
    %v465 = vadd.f32 %v380, %v464
    %v466 = vpop.f32.mrb[0].mxu0
    %v467 = vpop.f32.mrb[0].mxu0
    %v468 = vadd.f32 %v380, %v467
    %v469 = vpop.f32.mrb[0].mxu0
    %470 = vmatprep.mubr.bf16.mxu0 0
    %471 = vmatmul.mubr.bf16.gmra.mrb[0].mxu0 %v358
    %v472 = vpop.f32.mrb[0].mxu0
    %v473 = vadd.f32 %v380, %v472
    %v474 = vpop.f32.mrb[0].mxu0
    %v475 = vpop.f32.mrb[0].mxu0
    %v476 = vpop.f32.mrb[0].mxu0
    %477 = vdwg.mxu0
    %v478 = vld [vmem:[#allocation11] sm:$0xf]
    %v479 = vld [vmem:[#allocation11 + $0x4] sm:$0xf]
    %v480 = vld [vmem:[#allocation11 + $0x8] sm:$0xf]
    %v481 = vld [vmem:[#allocation11 + $0xc] sm:$0xf]
    %v482 = vld [vmem:[#allocation11 + $0x10] sm:$0xf]
    %v483 = vld [vmem:[#allocation11 + $0x14] sm:$0xf]
    %v484 = vld [vmem:[#allocation11 + $0x18] sm:$0xf]
    %v485 = vld [vmem:[#allocation11 + $0x1c] sm:$0xf]
    %v486 = vld [vmem:[#allocation11 + $0x20] sm:$0xf]
    %v487 = vld [vmem:[#allocation11 + $0x24] sm:$0xf]
    %v488 = vld [vmem:[#allocation11 + $0x28] sm:$0xf]
    %v489 = vld [vmem:[#allocation11 + $0x2c] sm:$0xf]
    %v490 = vld [vmem:[#allocation11 + $0x30] sm:$0xf]
    %v491 = vld [vmem:[#allocation11 + $0x34] sm:$0xf]
    %v492 = vld [vmem:[#allocation11 + $0x38] sm:$0xf]
    %v493 = vld [vmem:[#allocation11 + $0x3c] sm:$0xf]
    %v494 = vld [vmem:[#allocation13] sm:$0x1]
    %v496 = vlaneseq
    %v497 = vshrl.u32 %v496, 7
    %v498 = vsub.s32 0, %v497
    %v499 = vrot.slane %v494, %v498
    %v517 = vunpack.c.l.b16 %v478
    %v518 = vunpack.c.l.b16 %v479
    %v519 = vunpack.c.l.b16 %v480
    %v520 = vunpack.c.l.b16 %v481
    %v521 = vunpack.c.l.b16 %v482
    %v522 = vunpack.c.l.b16 %v483
    %v523 = vunpack.c.l.b16 %v484
    %v524 = vunpack.c.l.b16 %v485
    %v525 = vunpack.c.l.b16 %v486
    %v526 = vunpack.c.l.b16 %v487
    %v527 = vunpack.c.l.b16 %v488
    %v528 = vunpack.c.l.b16 %v489
    %v529 = vunpack.c.l.b16 %v490
    %v530 = vunpack.c.l.b16 %v491
    %v531 = vunpack.c.l.b16 %v492
    %v532 = vunpack.c.l.b16 %v493
    %v533 = vpack.c.b16 %v518, %v517
    %v534 = vpack.c.b16 %v520, %v519
    %v535 = vpack.c.b16 %v522, %v521
    %v536 = vpack.c.b16 %v524, %v523
    %v537 = vpack.c.b16 %v526, %v525
    %v538 = vpack.c.b16 %v528, %v527
    %v539 = vpack.c.b16 %v530, %v529
    %v540 = vpack.c.b16 %v532, %v531
    %549 = vmatprep.subr.bf16.mxu0 0
    %550 = vmatpush1.bf16.msra.mxu0 %v533
    %551 = vmatprep.subr.bf16.mxu0 0
    %552 = vmatpush1.bf16.msra.mxu0 %v534
    %553 = vmatprep.subr.bf16.mxu0 0
    %554 = vmatpush1.bf16.msra.mxu0 %v535
    %555 = vmatprep.subr.bf16.mxu0 0
    %556 = vmatpush1.bf16.msra.mxu0 %v536
    %557 = vmatprep.subr.bf16.mxu0 0
    %558 = vmatpush1.bf16.msra.mxu0 %v537
    %559 = vmatprep.subr.bf16.mxu0 0
    %560 = vmatpush1.bf16.msra.mxu0 %v538
    %561 = vmatprep.subr.bf16.mxu0 0
    %562 = vmatpush1.bf16.msra.mxu0 %v539
    %563 = vmatprep.subr.bf16.mxu0 0
    %564 = vmatpush1.bf16.msra.mxu0 %v540
    %565 = vmatprep.subr.bf16.mxu0 0
    %566 = vmatpush1.bf16.msra.mxu0 0
    %567 = vmatprep.subr.bf16.mxu0 0
    %568 = vmatpush1.bf16.msra.mxu0 0
    %569 = vmatprep.subr.bf16.mxu0 0
    %570 = vmatpush1.bf16.msra.mxu0 0
    %571 = vmatprep.subr.bf16.mxu0 0
    %572 = vmatpush1.bf16.msra.mxu0 0
    %573 = vmatprep.subr.bf16.mxu0 0
    %574 = vmatpush1.bf16.msra.mxu0 0
    %575 = vmatprep.subr.bf16.mxu0 0
    %576 = vmatpush1.bf16.msra.mxu0 0
    %577 = vmatprep.subr.bf16.mxu0 0
    %578 = vmatpush1.bf16.msra.mxu0 0
    %579 = vmatprep.subr.bf16.mxu0 0
    %580 = vmatpush1.bf16.msra.mxu0 0
    %581 = vmatprep.mubr.bf16.mxu0 0
    %582 = vmatmul.mubr.bf16.gmra.mrb[0].mxu0 %v357
    %v583 = vpop.f32.mrb[0].mxu0
    %v584 = vadd.f32 %v499, %v583
    %v585 = vpop.f32.mrb[0].mxu0
    %v586 = vpop.f32.mrb[0].mxu0
    %v587 = vadd.f32 %v499, %v586
    %v588 = vpop.f32.mrb[0].mxu0
    %589 = vmatprep.mubr.bf16.mxu0 0
    %590 = vmatmul.mubr.bf16.gmra.mrb[0].mxu0 %v358
    %v591 = vpop.f32.mrb[0].mxu0
    %v592 = vadd.f32 %v499, %v591
    %v593 = vpop.f32.mrb[0].mxu0
    %v594 = vpop.f32.mrb[0].mxu0
    %v595 = vpop.f32.mrb[0].mxu0
    %596 = vdwg.mxu0
    %v597 = vld [vmem:[#allocation14] sm:$0xf]
    %v598 = vld [vmem:[#allocation14 + $0x4] sm:$0xf]
    %v599 = vld [vmem:[#allocation14 + $0x8] sm:$0xf]
    %v600 = vld [vmem:[#allocation14 + $0xc] sm:$0xf]
    %v601 = vld [vmem:[#allocation14 + $0x10] sm:$0xf]
    %v602 = vld [vmem:[#allocation14 + $0x14] sm:$0xf]
    %v603 = vld [vmem:[#allocation14 + $0x18] sm:$0xf]
    %v604 = vld [vmem:[#allocation14 + $0x1c] sm:$0xf]
    %v605 = vld [vmem:[#allocation14 + $0x20] sm:$0xf]
    %v606 = vld [vmem:[#allocation14 + $0x24] sm:$0xf]
    %v607 = vld [vmem:[#allocation14 + $0x28] sm:$0xf]
    %v608 = vld [vmem:[#allocation14 + $0x2c] sm:$0xf]
    %v609 = vld [vmem:[#allocation14 + $0x30] sm:$0xf]
    %v610 = vld [vmem:[#allocation14 + $0x34] sm:$0xf]
    %v611 = vld [vmem:[#allocation14 + $0x38] sm:$0xf]
    %v612 = vld [vmem:[#allocation14 + $0x3c] sm:$0xf]
    %v613 = vld [vmem:[#allocation16] sm:$0x1]
    %v615 = vlaneseq
    %v616 = vshrl.u32 %v615, 7
    %v617 = vsub.s32 0, %v616
    %v618 = vrot.slane %v613, %v617
    %v636 = vunpack.c.l.b16 %v597
    %v637 = vunpack.c.l.b16 %v598
    %v638 = vunpack.c.l.b16 %v599
    %v639 = vunpack.c.l.b16 %v600
    %v640 = vunpack.c.l.b16 %v601
    %v641 = vunpack.c.l.b16 %v602
    %v642 = vunpack.c.l.b16 %v603
    %v643 = vunpack.c.l.b16 %v604
    %v644 = vunpack.c.l.b16 %v605
    %v645 = vunpack.c.l.b16 %v606
    %v646 = vunpack.c.l.b16 %v607
    %v647 = vunpack.c.l.b16 %v608
    %v648 = vunpack.c.l.b16 %v609
    %v649 = vunpack.c.l.b16 %v610
    %v650 = vunpack.c.l.b16 %v611
    %v651 = vunpack.c.l.b16 %v612
    %v652 = vpack.c.b16 %v637, %v636
    %v653 = vpack.c.b16 %v639, %v638
    %v654 = vpack.c.b16 %v641, %v640
    %v655 = vpack.c.b16 %v643, %v642
    %v656 = vpack.c.b16 %v645, %v644
    %v657 = vpack.c.b16 %v647, %v646
    %v658 = vpack.c.b16 %v649, %v648
    %v659 = vpack.c.b16 %v651, %v650
    %668 = vmatprep.subr.bf16.mxu0 0
    %669 = vmatpush1.bf16.msra.mxu0 %v652
    %670 = vmatprep.subr.bf16.mxu0 0
    %671 = vmatpush1.bf16.msra.mxu0 %v653
    %672 = vmatprep.subr.bf16.mxu0 0
    %673 = vmatpush1.bf16.msra.mxu0 %v654
    %674 = vmatprep.subr.bf16.mxu0 0
    %675 = vmatpush1.bf16.msra.mxu0 %v655
    %676 = vmatprep.subr.bf16.mxu0 0
    %677 = vmatpush1.bf16.msra.mxu0 %v656
    %678 = vmatprep.subr.bf16.mxu0 0
    %679 = vmatpush1.bf16.msra.mxu0 %v657
    %680 = vmatprep.subr.bf16.mxu0 0
    %681 = vmatpush1.bf16.msra.mxu0 %v658
    %682 = vmatprep.subr.bf16.mxu0 0
    %683 = vmatpush1.bf16.msra.mxu0 %v659
    %684 = vmatprep.subr.bf16.mxu0 0
    %685 = vmatpush1.bf16.msra.mxu0 0
    %686 = vmatprep.subr.bf16.mxu0 0
    %687 = vmatpush1.bf16.msra.mxu0 0
    %688 = vmatprep.subr.bf16.mxu0 0
    %689 = vmatpush1.bf16.msra.mxu0 0
    %690 = vmatprep.subr.bf16.mxu0 0
    %691 = vmatpush1.bf16.msra.mxu0 0
    %692 = vmatprep.subr.bf16.mxu0 0
    %693 = vmatpush1.bf16.msra.mxu0 0
    %694 = vmatprep.subr.bf16.mxu0 0
    %695 = vmatpush1.bf16.msra.mxu0 0
    %696 = vmatprep.subr.bf16.mxu0 0
    %697 = vmatpush1.bf16.msra.mxu0 0
    %698 = vmatprep.subr.bf16.mxu0 0
    %699 = vmatpush1.bf16.msra.mxu0 0
    %700 = vmatprep.mubr.bf16.mxu0 0
    %701 = vmatmul.mubr.bf16.gmra.mrb[0].mxu0 %v357
    %v702 = vpop.f32.mrb[0].mxu0
    %v703 = vadd.f32 %v618, %v702
    %v704 = vpop.f32.mrb[0].mxu0
    %v705 = vpop.f32.mrb[0].mxu0
    %v706 = vadd.f32 %v618, %v705
    %v707 = vpop.f32.mrb[0].mxu0
    %708 = vmatprep.mubr.bf16.mxu0 0
    %709 = vmatmul.mubr.bf16.gmra.mrb[0].mxu0 %v358
    %v710 = vpop.f32.mrb[0].mxu0
    %v711 = vadd.f32 %v618, %v710
    %v712 = vpop.f32.mrb[0].mxu0
    %v713 = vpop.f32.mrb[0].mxu0
    %v714 = vpop.f32.mrb[0].mxu0
    %715 = vdwg.mxu0
    %v716 = vmul.f32 %v465, 0.17677669
    %v717 = vmul.f32 %v468, 0.17677669
    %v718 = vmul.f32 %v473, 0.17677669
    %v719 = vpack.c.bf16 %v717, %v716
    %v720 = vpack.c.bf16 %v718, %v718
    %v721 = vpack.c.bf16 %v587, %v584
    %v722 = vpack.c.bf16 %v592, %v592
    %v723 = vpack.c.bf16 %v706, %v703
    %v724 = vpack.c.bf16 %v711, %v711
    %v725 = vmul.bf16 %v719, %v275
    %v726 = vmul.bf16 %v720, %v275
    %727 = vmatprep.subr.bf16.mxu0 0
    %728 = vmatpush1.bf16.xpose.msra.mxu0 %v721
    %729 = vmatprep.subr.bf16.mxu0 0
    %730 = vmatpush1.bf16.xpose.msra.mxu0 %v722
    %731 = vmatprep.subr.bf16.mxu0 0
    %732 = vmatpush1.bf16.xpose.msra.mxu0 0
    %733 = vmatprep.subr.bf16.mxu0 0
    %734 = vmatpush1.bf16.xpose.msra.mxu0 0
    %735 = vmatprep.subr.bf16.mxu0 0
    %736 = vmatpush1.bf16.xpose.msra.mxu0 0
    %737 = vmatprep.subr.bf16.mxu0 0
    %738 = vmatpush1.bf16.xpose.msra.mxu0 0
    %739 = vmatprep.subr.bf16.mxu0 0
    %740 = vmatpush1.bf16.xpose.msra.mxu0 0
    %741 = vmatprep.subr.bf16.mxu0 0
    %742 = vmatpush1.bf16.xpose.msra.mxu0 0
    %743 = vmatprep.subr.bf16.mxu0 0
    %744 = vmatpush1.bf16.xpose.msra.mxu0 0
    %745 = vmatprep.subr.bf16.mxu0 0
    %746 = vmatpush1.bf16.xpose.msra.mxu0 0
    %747 = vmatprep.subr.bf16.mxu0 0
    %748 = vmatpush1.bf16.xpose.msra.mxu0 0
    %749 = vmatprep.subr.bf16.mxu0 0
    %750 = vmatpush1.bf16.xpose.msra.mxu0 0
    %751 = vmatprep.subr.bf16.mxu0 0
    %752 = vmatpush1.bf16.xpose.msra.mxu0 0
    %753 = vmatprep.subr.bf16.mxu0 0
    %754 = vmatpush1.bf16.xpose.msra.mxu0 0
    %755 = vmatprep.subr.bf16.mxu0 0
    %756 = vmatpush1.bf16.xpose.msra.mxu0 0
    %757 = vmatprep.subr.bf16.mxu0 0
    %758 = vmatpush1.bf16.xpose.msra.mxu0 0
    %759 = vmatprep.mubr.bf16.mxu0 0
    %760 = vmatmul.mubr.bf16.gmra.mrb[0].mxu0 %v725
    %v761 = vpop.f32.mrb[0].mxu0
    %v762 = vadd.f32 0.0, %v761
    %v763 = vpop.f32.mrb[0].mxu0
    %v764 = vpop.f32.mrb[0].mxu0
    %v765 = vadd.f32 0.0, %v764
    %v766 = vpop.f32.mrb[0].mxu0
    %767 = vmatprep.mubr.bf16.mxu0 0
    %768 = vmatmul.mubr.bf16.gmra.mrb[0].mxu0 %v726
    %v769 = vpop.f32.mrb[0].mxu0
    %v770 = vadd.f32 0.0, %v769
    %v771 = vpop.f32.mrb[0].mxu0
    %v772 = vpop.f32.mrb[0].mxu0
    %v773 = vpop.f32.mrb[0].mxu0
    %774 = vdwg.mxu0
    %vm775 = vcmask 138240
    %v776 = vsel %vm775, %v762, -inf
    %777 = vmax.xlane.f32.xlu0 %v776
    %v778 = vpop.xlane.xlu0 %777
    %v779 = vsel %vm775, %v765, -inf
    %780 = vmax.xlane.f32.xlu0 %v779
    %v781 = vpop.xlane.xlu0 %780
    %vm782 = vcmask 131072
    %v783 = vsel %vm782, %v770, -inf
    %784 = vmax.xlane.f32.xlu0 %v783
    %v785 = vpop.xlane.xlu0 %784
    %v786 = vsub.f32 %v762, %v778
    %v787 = vsub.f32 %v765, %v781
    %v788 = vsub.f32 %v770, %v785
    %v789 = vmul.f32 %v786, 1.442695
    %v790 = vpow.pop %v789
    %v791 = vmul.f32 %v787, 1.442695
    %v792 = vpow.pop %v791
    %v793 = vmul.f32 %v788, 1.442695
    %v794 = vpow.pop %v793
    %v795 = vsel %vm775, %v790, 0.0
    %796 = vadd.xlane.f32.xlu0 %v795
    %v797 = vpop.xlane.xlu0 %796
    %v798 = vsel %vm775, %v792, 0.0
    %799 = vadd.xlane.f32.xlu0 %v798
    %v800 = vpop.xlane.xlu0 %799
    %v801 = vsel %vm782, %v794, 0.0
    %802 = vadd.xlane.f32.xlu0 %v801
    %v803 = vpop.xlane.xlu0 %802
    %v804 = vrcp.pop %v797
    %v805 = vrcp.pop %v800
    %v806 = vrcp.pop %v803
    %v807 = vmul.f32 %v790, %v804
    %v808 = vmul.f32 %v792, %v805
    %v809 = vmul.f32 %v794, %v806
    %v810 = vpack.c.bf16 %v808, %v807
    %v811 = vpack.c.bf16 %v809, %v809
    %v812 = vmul.bf16 %v723, %v275
    %v813 = vmul.bf16 %v724, %v275
    %v814 = vmul.bf16 %v719, %v281
    %v815 = vmul.bf16 %v720, %v281
    %816 = vmatprep.subr.bf16.mxu0 0
    %817 = vmatpush1.bf16.xpose.msra.mxu0 %v721
    %818 = vmatprep.subr.bf16.mxu0 0
    %819 = vmatpush1.bf16.xpose.msra.mxu0 %v722
    %820 = vmatprep.subr.bf16.mxu0 0
    %821 = vmatpush1.bf16.xpose.msra.mxu0 0
    %822 = vmatprep.subr.bf16.mxu0 0
    %823 = vmatpush1.bf16.xpose.msra.mxu0 0
    %824 = vmatprep.subr.bf16.mxu0 0
    %825 = vmatpush1.bf16.xpose.msra.mxu0 0
    %826 = vmatprep.subr.bf16.mxu0 0
    %827 = vmatpush1.bf16.xpose.msra.mxu0 0
    %828 = vmatprep.subr.bf16.mxu0 0
    %829 = vmatpush1.bf16.xpose.msra.mxu0 0
    %830 = vmatprep.subr.bf16.mxu0 0
    %831 = vmatpush1.bf16.xpose.msra.mxu0 0
    %832 = vmatprep.subr.bf16.mxu0 0
    %833 = vmatpush1.bf16.xpose.msra.mxu0 0
    %834 = vmatprep.subr.bf16.mxu0 0
    %835 = vmatpush1.bf16.xpose.msra.mxu0 0
    %836 = vmatprep.subr.bf16.mxu0 0
    %837 = vmatpush1.bf16.xpose.msra.mxu0 0
    %838 = vmatprep.subr.bf16.mxu0 0
    %839 = vmatpush1.bf16.xpose.msra.mxu0 0
    %840 = vmatprep.subr.bf16.mxu0 0
    %841 = vmatpush1.bf16.xpose.msra.mxu0 0
    %842 = vmatprep.subr.bf16.mxu0 0
    %843 = vmatpush1.bf16.xpose.msra.mxu0 0
    %844 = vmatprep.subr.bf16.mxu0 0
    %845 = vmatpush1.bf16.xpose.msra.mxu0 0
    %846 = vmatprep.subr.bf16.mxu0 0
    %847 = vmatpush1.bf16.xpose.msra.mxu0 0
    %848 = vmatprep.mubr.bf16.mxu0 0
    %849 = vmatmul.mubr.bf16.gmra.mrb[0].mxu0 %v814
    %v850 = vpop.f32.mrb[0].mxu0
    %v851 = vadd.f32 0.0, %v850
    %v852 = vpop.f32.mrb[0].mxu0
    %v853 = vpop.f32.mrb[0].mxu0
    %v854 = vadd.f32 0.0, %v853
    %v855 = vpop.f32.mrb[0].mxu0
    %856 = vmatprep.mubr.bf16.mxu0 0
    %857 = vmatmul.mubr.bf16.gmra.mrb[0].mxu0 %v815
    %v858 = vpop.f32.mrb[0].mxu0
    %v859 = vadd.f32 0.0, %v858
    %v860 = vpop.f32.mrb[0].mxu0
    %v861 = vpop.f32.mrb[0].mxu0
    %v862 = vpop.f32.mrb[0].mxu0
    %863 = vdwg.mxu0
    %v864 = vsel %vm775, %v851, -inf
    %865 = vmax.xlane.f32.xlu0 %v864
    %v866 = vpop.xlane.xlu0 %865
    %v867 = vsel %vm775, %v854, -inf
    %868 = vmax.xlane.f32.xlu0 %v867
    %v869 = vpop.xlane.xlu0 %868
    %v870 = vsel %vm782, %v859, -inf
    %871 = vmax.xlane.f32.xlu0 %v870
    %v872 = vpop.xlane.xlu0 %871
    %v873 = vsub.f32 %v851, %v866
    %v874 = vsub.f32 %v854, %v869
    %v875 = vsub.f32 %v859, %v872
    %v876 = vmul.f32 %v873, 1.442695
    %v877 = vpow.pop %v876
    %v878 = vmul.f32 %v874, 1.442695
    %v879 = vpow.pop %v878
    %v880 = vmul.f32 %v875, 1.442695
    %v881 = vpow.pop %v880
    %v882 = vsel %vm775, %v877, 0.0
    %883 = vadd.xlane.f32.xlu0 %v882
    %v884 = vpop.xlane.xlu0 %883
    %v885 = vsel %vm775, %v879, 0.0
    %886 = vadd.xlane.f32.xlu0 %v885
    %v887 = vpop.xlane.xlu0 %886
    %v888 = vsel %vm782, %v881, 0.0
    %889 = vadd.xlane.f32.xlu0 %v888
    %v890 = vpop.xlane.xlu0 %889
    %v891 = vrcp.pop %v884
    %v892 = vrcp.pop %v887
    %v893 = vrcp.pop %v890
    %v894 = vmul.f32 %v877, %v891
    %v895 = vmul.f32 %v879, %v892
    %v896 = vmul.f32 %v881, %v893
    %v897 = vpack.c.bf16 %v895, %v894
    %v898 = vpack.c.bf16 %v896, %v896
    %v899 = vmul.bf16 %v723, %v281
    %v900 = vmul.bf16 %v724, %v281
    %v902 = vsel %vm775, %v897, 0
    %v905 = vsel %vm775, %v898, 0
    %v907 = vsel 0, 4294967295, 65535
    %v908 = vsel %vm306, %v907, 0
    %v910 = vand.u32 %v900, %v908
    %912 = vmatprep.subr.bf16.mxu0 0
    %913 = vmatpush1.bf16.msra.mxu0 %v899
    %914 = vmatprep.subr.bf16.mxu0 0
    %915 = vmatpush1.bf16.msra.mxu0 %v910
    %916 = vmatprep.subr.bf16.mxu0 0
    %917 = vmatpush1.bf16.msra.mxu0 0
    %918 = vmatprep.subr.bf16.mxu0 0
    %919 = vmatpush1.bf16.msra.mxu0 0
    %920 = vmatprep.subr.bf16.mxu0 0
    %921 = vmatpush1.bf16.msra.mxu0 0
    %922 = vmatprep.subr.bf16.mxu0 0
    %923 = vmatpush1.bf16.msra.mxu0 0
    %924 = vmatprep.subr.bf16.mxu0 0
    %925 = vmatpush1.bf16.msra.mxu0 0
    %926 = vmatprep.subr.bf16.mxu0 0
    %927 = vmatpush1.bf16.msra.mxu0 0
    %928 = vmatprep.subr.bf16.mxu0 0
    %929 = vmatpush1.bf16.msra.mxu0 0
    %930 = vmatprep.subr.bf16.mxu0 0
    %931 = vmatpush1.bf16.msra.mxu0 0
    %932 = vmatprep.subr.bf16.mxu0 0
    %933 = vmatpush1.bf16.msra.mxu0 0
    %934 = vmatprep.subr.bf16.mxu0 0
    %935 = vmatpush1.bf16.msra.mxu0 0
    %936 = vmatprep.subr.bf16.mxu0 0
    %937 = vmatpush1.bf16.msra.mxu0 0
    %938 = vmatprep.subr.bf16.mxu0 0
    %939 = vmatpush1.bf16.msra.mxu0 0
    %940 = vmatprep.subr.bf16.mxu0 0
    %941 = vmatpush1.bf16.msra.mxu0 0
    %942 = vmatprep.subr.bf16.mxu0 0
    %943 = vmatpush1.bf16.msra.mxu0 0
    %944 = vmatprep.mubr.bf16.mxu0 0
    %945 = vmatmul.mubr.bf16.gmra.mrb[0].mxu0 %v902
    %v946 = vpop.f32.mrb[0].mxu0
    %v947 = vadd.f32 0.0, %v946
    %v948 = vpop.f32.mrb[0].mxu0
    %v949 = vpop.f32.mrb[0].mxu0
    %v950 = vadd.f32 0.0, %v949
    %v951 = vpop.f32.mrb[0].mxu0
    %952 = vmatprep.mubr.bf16.mxu0 0
    %953 = vmatmul.mubr.bf16.gmra.mrb[0].mxu0 %v905
    %v954 = vpop.f32.mrb[0].mxu0
    %v955 = vadd.f32 0.0, %v954
    %v956 = vpop.f32.mrb[0].mxu0
    %v957 = vpop.f32.mrb[0].mxu0
    %v958 = vpop.f32.mrb[0].mxu0
    %959 = vdwg.mxu0
    %v961 = vsel %vm775, %v810, 0
    %v964 = vsel %vm775, %v811, 0
    %v967 = vand.u32 %v813, %v908
    %969 = vmatprep.subr.bf16.mxu0 0
    %970 = vmatpush1.bf16.msra.mxu0 %v812
    %971 = vmatprep.subr.bf16.mxu0 0
    %972 = vmatpush1.bf16.msra.mxu0 %v967
    %973 = vmatprep.subr.bf16.mxu0 0
    %974 = vmatpush1.bf16.msra.mxu0 0
    %975 = vmatprep.subr.bf16.mxu0 0
    %976 = vmatpush1.bf16.msra.mxu0 0
    %977 = vmatprep.subr.bf16.mxu0 0
    %978 = vmatpush1.bf16.msra.mxu0 0
    %979 = vmatprep.subr.bf16.mxu0 0
    %980 = vmatpush1.bf16.msra.mxu0 0
    %981 = vmatprep.subr.bf16.mxu0 0
    %982 = vmatpush1.bf16.msra.mxu0 0
    %983 = vmatprep.subr.bf16.mxu0 0
    %984 = vmatpush1.bf16.msra.mxu0 0
    %985 = vmatprep.subr.bf16.mxu0 0
    %986 = vmatpush1.bf16.msra.mxu0 0
    %987 = vmatprep.subr.bf16.mxu0 0
    %988 = vmatpush1.bf16.msra.mxu0 0
    %989 = vmatprep.subr.bf16.mxu0 0
    %990 = vmatpush1.bf16.msra.mxu0 0
    %991 = vmatprep.subr.bf16.mxu0 0
    %992 = vmatpush1.bf16.msra.mxu0 0
    %993 = vmatprep.subr.bf16.mxu0 0
    %994 = vmatpush1.bf16.msra.mxu0 0
    %995 = vmatprep.subr.bf16.mxu0 0
    %996 = vmatpush1.bf16.msra.mxu0 0
    %997 = vmatprep.subr.bf16.mxu0 0
    %998 = vmatpush1.bf16.msra.mxu0 0
    %999 = vmatprep.subr.bf16.mxu0 0
    %1000 = vmatpush1.bf16.msra.mxu0 0
    %1001 = vmatprep.mubr.bf16.mxu0 0
    %1002 = vmatmul.mubr.bf16.gmra.mrb[0].mxu0 %v961
    %v1003 = vpop.f32.mrb[0].mxu0
    %v1004 = vadd.f32 %v947, %v1003
    %v1005 = vpop.f32.mrb[0].mxu0
    %v1006 = vpop.f32.mrb[0].mxu0
    %v1007 = vadd.f32 %v950, %v1006
    %v1008 = vpop.f32.mrb[0].mxu0
    %1009 = vmatprep.mubr.bf16.mxu0 0
    %1010 = vmatmul.mubr.bf16.gmra.mrb[0].mxu0 %v964
    %v1011 = vpop.f32.mrb[0].mxu0
    %v1012 = vadd.f32 %v955, %v1011
    %v1013 = vpop.f32.mrb[0].mxu0
    %v1014 = vpop.f32.mrb[0].mxu0
    %v1015 = vpop.f32.mrb[0].mxu0
    %1016 = vdwg.mxu0
    %v1017 = vmul.bf16 %v719, %v287
    %v1018 = vmul.bf16 %v720, %v287
    %1019 = vmatprep.subr.bf16.mxu0 0
    %1020 = vmatpush1.bf16.xpose.msra.mxu0 %v721
    %1021 = vmatprep.subr.bf16.mxu0 0
    %1022 = vmatpush1.bf16.xpose.msra.mxu0 %v722
    %1023 = vmatprep.subr.bf16.mxu0 0
    %1024 = vmatpush1.bf16.xpose.msra.mxu0 0
    %1025 = vmatprep.subr.bf16.mxu0 0
    %1026 = vmatpush1.bf16.xpose.msra.mxu0 0
    %1027 = vmatprep.subr.bf16.mxu0 0
    %1028 = vmatpush1.bf16.xpose.msra.mxu0 0
    %1029 = vmatprep.subr.bf16.mxu0 0
    %1030 = vmatpush1.bf16.xpose.msra.mxu0 0
    %1031 = vmatprep.subr.bf16.mxu0 0
    %1032 = vmatpush1.bf16.xpose.msra.mxu0 0
    %1033 = vmatprep.subr.bf16.mxu0 0
    %1034 = vmatpush1.bf16.xpose.msra.mxu0 0
    %1035 = vmatprep.subr.bf16.mxu0 0
    %1036 = vmatpush1.bf16.xpose.msra.mxu0 0
    %1037 = vmatprep.subr.bf16.mxu0 0
    %1038 = vmatpush1.bf16.xpose.msra.mxu0 0
    %1039 = vmatprep.subr.bf16.mxu0 0
    %1040 = vmatpush1.bf16.xpose.msra.mxu0 0
    %1041 = vmatprep.subr.bf16.mxu0 0
    %1042 = vmatpush1.bf16.xpose.msra.mxu0 0
    %1043 = vmatprep.subr.bf16.mxu0 0
    %1044 = vmatpush1.bf16.xpose.msra.mxu0 0
    %1045 = vmatprep.subr.bf16.mxu0 0
    %1046 = vmatpush1.bf16.xpose.msra.mxu0 0
    %1047 = vmatprep.subr.bf16.mxu0 0
    %1048 = vmatpush1.bf16.xpose.msra.mxu0 0
    %1049 = vmatprep.subr.bf16.mxu0 0
    %1050 = vmatpush1.bf16.xpose.msra.mxu0 0
    %1051 = vmatprep.mubr.bf16.mxu0 0
    %1052 = vmatmul.mubr.bf16.gmra.mrb[0].mxu0 %v1017
    %v1053 = vpop.f32.mrb[0].mxu0
    %v1054 = vadd.f32 0.0, %v1053
    %v1055 = vpop.f32.mrb[0].mxu0
    %v1056 = vpop.f32.mrb[0].mxu0
    %v1057 = vadd.f32 0.0, %v1056
    %v1058 = vpop.f32.mrb[0].mxu0
    %1059 = vmatprep.mubr.bf16.mxu0 0
    %1060 = vmatmul.mubr.bf16.gmra.mrb[0].mxu0 %v1018
    %v1061 = vpop.f32.mrb[0].mxu0
    %v1062 = vadd.f32 0.0, %v1061
    %v1063 = vpop.f32.mrb[0].mxu0
    %v1064 = vpop.f32.mrb[0].mxu0
    %v1065 = vpop.f32.mrb[0].mxu0
    %1066 = vdwg.mxu0
    %v1067 = vsel %vm775, %v1054, -inf
    %1068 = vmax.xlane.f32.xlu0 %v1067
    %v1069 = vpop.xlane.xlu0 %1068
    %v1070 = vsel %vm775, %v1057, -inf
    %1071 = vmax.xlane.f32.xlu0 %v1070
    %v1072 = vpop.xlane.xlu0 %1071
    %v1073 = vsel %vm782, %v1062, -inf
    %1074 = vmax.xlane.f32.xlu0 %v1073
    %v1075 = vpop.xlane.xlu0 %1074
    %v1076 = vsub.f32 %v1054, %v1069
    %v1077 = vsub.f32 %v1057, %v1072
    %v1078 = vsub.f32 %v1062, %v1075
    %v1079 = vmul.f32 %v1076, 1.442695
    %v1080 = vpow.pop %v1079
    %v1081 = vmul.f32 %v1077, 1.442695
    %v1082 = vpow.pop %v1081
    %v1083 = vmul.f32 %v1078, 1.442695
    %v1084 = vpow.pop %v1083
    %v1085 = vsel %vm775, %v1080, 0.0
    %1086 = vadd.xlane.f32.xlu0 %v1085
    %v1087 = vpop.xlane.xlu0 %1086
    %v1088 = vsel %vm775, %v1082, 0.0
    %1089 = vadd.xlane.f32.xlu0 %v1088
    %v1090 = vpop.xlane.xlu0 %1089
    %v1091 = vsel %vm782, %v1084, 0.0
    %1092 = vadd.xlane.f32.xlu0 %v1091
    %v1093 = vpop.xlane.xlu0 %1092
    %v1094 = vrcp.pop %v1087
    %v1095 = vrcp.pop %v1090
    %v1096 = vrcp.pop %v1093
    %v1097 = vmul.f32 %v1080, %v1094
    %v1098 = vmul.f32 %v1082, %v1095
    %v1099 = vmul.f32 %v1084, %v1096
    %v1100 = vpack.c.bf16 %v1098, %v1097
    %v1101 = vpack.c.bf16 %v1099, %v1099
    %v1102 = vmul.bf16 %v723, %v287
    %v1103 = vmul.bf16 %v724, %v287
    %v1105 = vsel %vm775, %v1100, 0
    %v1108 = vsel %vm775, %v1101, 0
    %v1111 = vand.u32 %v1103, %v908
    %1113 = vmatprep.subr.bf16.mxu0 0
    %1114 = vmatpush1.bf16.msra.mxu0 %v1102
    %1115 = vmatprep.subr.bf16.mxu0 0
    %1116 = vmatpush1.bf16.msra.mxu0 %v1111
    %1117 = vmatprep.subr.bf16.mxu0 0
    %1118 = vmatpush1.bf16.msra.mxu0 0
    %1119 = vmatprep.subr.bf16.mxu0 0
    %1120 = vmatpush1.bf16.msra.mxu0 0
    %1121 = vmatprep.subr.bf16.mxu0 0
    %1122 = vmatpush1.bf16.msra.mxu0 0
    %1123 = vmatprep.subr.bf16.mxu0 0
    %1124 = vmatpush1.bf16.msra.mxu0 0
    %1125 = vmatprep.subr.bf16.mxu0 0
    %1126 = vmatpush1.bf16.msra.mxu0 0
    %1127 = vmatprep.subr.bf16.mxu0 0
    %1128 = vmatpush1.bf16.msra.mxu0 0
    %1129 = vmatprep.subr.bf16.mxu0 0
    %1130 = vmatpush1.bf16.msra.mxu0 0
    %1131 = vmatprep.subr.bf16.mxu0 0
    %1132 = vmatpush1.bf16.msra.mxu0 0
    %1133 = vmatprep.subr.bf16.mxu0 0
    %1134 = vmatpush1.bf16.msra.mxu0 0
    %1135 = vmatprep.subr.bf16.mxu0 0
    %1136 = vmatpush1.bf16.msra.mxu0 0
    %1137 = vmatprep.subr.bf16.mxu0 0
    %1138 = vmatpush1.bf16.msra.mxu0 0
    %1139 = vmatprep.subr.bf16.mxu0 0
    %1140 = vmatpush1.bf16.msra.mxu0 0
    %1141 = vmatprep.subr.bf16.mxu0 0
    %1142 = vmatpush1.bf16.msra.mxu0 0
    %1143 = vmatprep.subr.bf16.mxu0 0
    %1144 = vmatpush1.bf16.msra.mxu0 0
    %1145 = vmatprep.mubr.bf16.mxu0 0
    %1146 = vmatmul.mubr.bf16.gmra.mrb[0].mxu0 %v1105
    %v1147 = vpop.f32.mrb[0].mxu0
    %v1148 = vadd.f32 0.0, %v1147
    %v1149 = vpop.f32.mrb[0].mxu0
    %v1150 = vpop.f32.mrb[0].mxu0
    %v1151 = vadd.f32 0.0, %v1150
    %v1152 = vpop.f32.mrb[0].mxu0
    %1153 = vmatprep.mubr.bf16.mxu0 0
    %1154 = vmatmul.mubr.bf16.gmra.mrb[0].mxu0 %v1108
    %v1155 = vpop.f32.mrb[0].mxu0
    %v1156 = vadd.f32 0.0, %v1155
    %v1157 = vpop.f32.mrb[0].mxu0
    %v1158 = vpop.f32.mrb[0].mxu0
    %v1159 = vpop.f32.mrb[0].mxu0
    %1160 = vdwg.mxu0
    %v1161 = vadd.f32 %v1004, %v1148
    %v1162 = vadd.f32 %v1007, %v1151
    %v1163 = vadd.f32 %v1012, %v1156
    %v1164 = vmul.bf16 %v719, %v293
    %v1165 = vmul.bf16 %v720, %v293
    %1166 = vmatprep.subr.bf16.mxu0 0
    %1167 = vmatpush1.bf16.xpose.msra.mxu0 %v721
    %1168 = vmatprep.subr.bf16.mxu0 0
    %1169 = vmatpush1.bf16.xpose.msra.mxu0 %v722
    %1170 = vmatprep.subr.bf16.mxu0 0
    %1171 = vmatpush1.bf16.xpose.msra.mxu0 0
    %1172 = vmatprep.subr.bf16.mxu0 0
    %1173 = vmatpush1.bf16.xpose.msra.mxu0 0
    %1174 = vmatprep.subr.bf16.mxu0 0
    %1175 = vmatpush1.bf16.xpose.msra.mxu0 0
    %1176 = vmatprep.subr.bf16.mxu0 0
    %1177 = vmatpush1.bf16.xpose.msra.mxu0 0
    %1178 = vmatprep.subr.bf16.mxu0 0
    %1179 = vmatpush1.bf16.xpose.msra.mxu0 0
    %1180 = vmatprep.subr.bf16.mxu0 0
    %1181 = vmatpush1.bf16.xpose.msra.mxu0 0
    %1182 = vmatprep.subr.bf16.mxu0 0
    %1183 = vmatpush1.bf16.xpose.msra.mxu0 0
    %1184 = vmatprep.subr.bf16.mxu0 0
    %1185 = vmatpush1.bf16.xpose.msra.mxu0 0
    %1186 = vmatprep.subr.bf16.mxu0 0
    %1187 = vmatpush1.bf16.xpose.msra.mxu0 0
    %1188 = vmatprep.subr.bf16.mxu0 0
    %1189 = vmatpush1.bf16.xpose.msra.mxu0 0
    %1190 = vmatprep.subr.bf16.mxu0 0
    %1191 = vmatpush1.bf16.xpose.msra.mxu0 0
    %1192 = vmatprep.subr.bf16.mxu0 0
    %1193 = vmatpush1.bf16.xpose.msra.mxu0 0
    %1194 = vmatprep.subr.bf16.mxu0 0
    %1195 = vmatpush1.bf16.xpose.msra.mxu0 0
    %1196 = vmatprep.subr.bf16.mxu0 0
    %1197 = vmatpush1.bf16.xpose.msra.mxu0 0
    %1198 = vmatprep.mubr.bf16.mxu0 0
    %1199 = vmatmul.mubr.bf16.gmra.mrb[0].mxu0 %v1164
    %v1200 = vpop.f32.mrb[0].mxu0
    %v1201 = vadd.f32 0.0, %v1200
    %v1202 = vpop.f32.mrb[0].mxu0
    %v1203 = vpop.f32.mrb[0].mxu0
    %v1204 = vadd.f32 0.0, %v1203
    %v1205 = vpop.f32.mrb[0].mxu0
    %1206 = vmatprep.mubr.bf16.mxu0 0
    %1207 = vmatmul.mubr.bf16.gmra.mrb[0].mxu0 %v1165
    %v1208 = vpop.f32.mrb[0].mxu0
    %v1209 = vadd.f32 0.0, %v1208
    %v1210 = vpop.f32.mrb[0].mxu0
    %v1211 = vpop.f32.mrb[0].mxu0
    %v1212 = vpop.f32.mrb[0].mxu0
    %1213 = vdwg.mxu0
    %v1214 = vsel %vm775, %v1201, -inf
    %1215 = vmax.xlane.f32.xlu0 %v1214
    %v1216 = vpop.xlane.xlu0 %1215
    %v1217 = vsel %vm775, %v1204, -inf
    %1218 = vmax.xlane.f32.xlu0 %v1217
    %v1219 = vpop.xlane.xlu0 %1218
    %v1220 = vsel %vm782, %v1209, -inf
    %1221 = vmax.xlane.f32.xlu0 %v1220
    %v1222 = vpop.xlane.xlu0 %1221
    %v1223 = vsub.f32 %v1201, %v1216
    %v1224 = vsub.f32 %v1204, %v1219
    %v1225 = vsub.f32 %v1209, %v1222
    %v1226 = vmul.f32 %v1223, 1.442695
    %v1227 = vpow.pop %v1226
    %v1228 = vmul.f32 %v1224, 1.442695
    %v1229 = vpow.pop %v1228
    %v1230 = vmul.f32 %v1225, 1.442695
    %v1231 = vpow.pop %v1230
    %v1232 = vsel %vm775, %v1227, 0.0
    %1233 = vadd.xlane.f32.xlu0 %v1232
    %v1234 = vpop.xlane.xlu0 %1233
    %v1235 = vsel %vm775, %v1229, 0.0
    %1236 = vadd.xlane.f32.xlu0 %v1235
    %v1237 = vpop.xlane.xlu0 %1236
    %v1238 = vsel %vm782, %v1231, 0.0
    %1239 = vadd.xlane.f32.xlu0 %v1238
    %v1240 = vpop.xlane.xlu0 %1239
    %v1241 = vrcp.pop %v1234
    %v1242 = vrcp.pop %v1237
    %v1243 = vrcp.pop %v1240
    %v1244 = vmul.f32 %v1227, %v1241
    %v1245 = vmul.f32 %v1229, %v1242
    %v1246 = vmul.f32 %v1231, %v1243
    %v1247 = vpack.c.bf16 %v1245, %v1244
    %v1248 = vpack.c.bf16 %v1246, %v1246
    %v1249 = vmul.bf16 %v723, %v293
    %v1250 = vmul.bf16 %v724, %v293
    %v1252 = vsel %vm775, %v1247, 0
    %v1255 = vsel %vm775, %v1248, 0
    %v1258 = vand.u32 %v1250, %v908
    %1260 = vmatprep.subr.bf16.mxu0 0
    %1261 = vmatpush1.bf16.msra.mxu0 %v1249
    %1262 = vmatprep.subr.bf16.mxu0 0
    %1263 = vmatpush1.bf16.msra.mxu0 %v1258
    %1264 = vmatprep.subr.bf16.mxu0 0
    %1265 = vmatpush1.bf16.msra.mxu0 0
    %1266 = vmatprep.subr.bf16.mxu0 0
    %1267 = vmatpush1.bf16.msra.mxu0 0
    %1268 = vmatprep.subr.bf16.mxu0 0
    %1269 = vmatpush1.bf16.msra.mxu0 0
    %1270 = vmatprep.subr.bf16.mxu0 0
    %1271 = vmatpush1.bf16.msra.mxu0 0
    %1272 = vmatprep.subr.bf16.mxu0 0
    %1273 = vmatpush1.bf16.msra.mxu0 0
    %1274 = vmatprep.subr.bf16.mxu0 0
    %1275 = vmatpush1.bf16.msra.mxu0 0
    %1276 = vmatprep.subr.bf16.mxu0 0
    %1277 = vmatpush1.bf16.msra.mxu0 0
    %1278 = vmatprep.subr.bf16.mxu0 0
    %1279 = vmatpush1.bf16.msra.mxu0 0
    %1280 = vmatprep.subr.bf16.mxu0 0
    %1281 = vmatpush1.bf16.msra.mxu0 0
    %1282 = vmatprep.subr.bf16.mxu0 0
    %1283 = vmatpush1.bf16.msra.mxu0 0
    %1284 = vmatprep.subr.bf16.mxu0 0
    %1285 = vmatpush1.bf16.msra.mxu0 0
    %1286 = vmatprep.subr.bf16.mxu0 0
    %1287 = vmatpush1.bf16.msra.mxu0 0
    %1288 = vmatprep.subr.bf16.mxu0 0
    %1289 = vmatpush1.bf16.msra.mxu0 0
    %1290 = vmatprep.subr.bf16.mxu0 0
    %1291 = vmatpush1.bf16.msra.mxu0 0
    %1292 = vmatprep.mubr.bf16.mxu0 0
    %1293 = vmatmul.mubr.bf16.gmra.mrb[0].mxu0 %v1252
    %v1294 = vpop.f32.mrb[0].mxu0
    %v1295 = vadd.f32 0.0, %v1294
    %v1296 = vpop.f32.mrb[0].mxu0
    %v1297 = vpop.f32.mrb[0].mxu0
    %v1298 = vadd.f32 0.0, %v1297
    %v1299 = vpop.f32.mrb[0].mxu0
    %1300 = vmatprep.mubr.bf16.mxu0 0
    %1301 = vmatmul.mubr.bf16.gmra.mrb[0].mxu0 %v1255
    %v1302 = vpop.f32.mrb[0].mxu0
    %v1303 = vadd.f32 0.0, %v1302
    %v1304 = vpop.f32.mrb[0].mxu0
    %v1305 = vpop.f32.mrb[0].mxu0
    %v1306 = vpop.f32.mrb[0].mxu0
    %1307 = vdwg.mxu0
    %v1308 = vadd.f32 %v1161, %v1295
    %v1309 = vadd.f32 %v1162, %v1298
    %v1310 = vadd.f32 %v1163, %v1303
    %v1311 = vpack.c.bf16 %v1309, %v1308
    %v1312 = vpack.c.bf16 %v1310, %v1310
    %v1313 = vld [vmem:[#allocation17] sm:$0xf]
    %v1314 = vld [vmem:[#allocation17 + $0x4] sm:$0xf]
    %v1315 = vld [vmem:[#allocation17 + $0x8] sm:$0xf]
    %v1316 = vld [vmem:[#allocation17 + $0xc] sm:$0xf]
    %v1317 = vld [vmem:[#allocation17 + $0x10] sm:$0xf]
    %v1318 = vld [vmem:[#allocation17 + $0x14] sm:$0xf]
    %v1319 = vld [vmem:[#allocation17 + $0x18] sm:$0xf]
    %v1320 = vld [vmem:[#allocation17 + $0x1c] sm:$0xf]
    %v1321 = vld [vmem:[#allocation17 + $0x20] sm:$0xf]
    %v1322 = vld [vmem:[#allocation17 + $0x24] sm:$0xf]
    %v1323 = vld [vmem:[#allocation17 + $0x28] sm:$0xf]
    %v1324 = vld [vmem:[#allocation17 + $0x2c] sm:$0xf]
    %v1325 = vld [vmem:[#allocation17 + $0x30] sm:$0xf]
    %v1326 = vld [vmem:[#allocation17 + $0x34] sm:$0xf]
    %v1327 = vld [vmem:[#allocation17 + $0x38] sm:$0xf]
    %v1328 = vld [vmem:[#allocation17 + $0x3c] sm:$0xf]
    %v1329 = vld [vmem:[#allocation19] sm:$0x1]
    %v1331 = vlaneseq
    %v1332 = vshrl.u32 %v1331, 7
    %v1333 = vsub.s32 0, %v1332
    %v1334 = vrot.slane %v1329, %v1333
    %v1352 = vunpack.c.l.b16 %v1313
    %v1353 = vunpack.c.l.b16 %v1314
    %v1354 = vunpack.c.l.b16 %v1315
    %v1355 = vunpack.c.l.b16 %v1316
    %v1356 = vunpack.c.l.b16 %v1317
    %v1357 = vunpack.c.l.b16 %v1318
    %v1358 = vunpack.c.l.b16 %v1319
    %v1359 = vunpack.c.l.b16 %v1320
    %v1360 = vunpack.c.l.b16 %v1321
    %v1361 = vunpack.c.l.b16 %v1322
    %v1362 = vunpack.c.l.b16 %v1323
    %v1363 = vunpack.c.l.b16 %v1324
    %v1364 = vunpack.c.l.b16 %v1325
    %v1365 = vunpack.c.l.b16 %v1326
    %v1366 = vunpack.c.l.b16 %v1327
    %v1367 = vunpack.c.l.b16 %v1328
    %v1368 = vpack.c.b16 %v1353, %v1352
    %v1369 = vpack.c.b16 %v1355, %v1354
    %v1370 = vpack.c.b16 %v1357, %v1356
    %v1371 = vpack.c.b16 %v1359, %v1358
    %v1372 = vpack.c.b16 %v1361, %v1360
    %v1373 = vpack.c.b16 %v1363, %v1362
    %v1374 = vpack.c.b16 %v1365, %v1364
    %v1375 = vpack.c.b16 %v1367, %v1366
    %1384 = vmatprep.subr.bf16.mxu0 0
    %1385 = vmatpush1.bf16.msra.mxu0 %v1368
    %1386 = vmatprep.subr.bf16.mxu0 0
    %1387 = vmatpush1.bf16.msra.mxu0 %v1369
    %1388 = vmatprep.subr.bf16.mxu0 0
    %1389 = vmatpush1.bf16.msra.mxu0 %v1370
    %1390 = vmatprep.subr.bf16.mxu0 0
    %1391 = vmatpush1.bf16.msra.mxu0 %v1371
    %1392 = vmatprep.subr.bf16.mxu0 0
    %1393 = vmatpush1.bf16.msra.mxu0 %v1372
    %1394 = vmatprep.subr.bf16.mxu0 0
    %1395 = vmatpush1.bf16.msra.mxu0 %v1373
    %1396 = vmatprep.subr.bf16.mxu0 0
    %1397 = vmatpush1.bf16.msra.mxu0 %v1374
    %1398 = vmatprep.subr.bf16.mxu0 0
    %1399 = vmatpush1.bf16.msra.mxu0 %v1375
    %1400 = vmatprep.subr.bf16.mxu0 0
    %1401 = vmatpush1.bf16.msra.mxu0 0
    %1402 = vmatprep.subr.bf16.mxu0 0
    %1403 = vmatpush1.bf16.msra.mxu0 0
    %1404 = vmatprep.subr.bf16.mxu0 0
    %1405 = vmatpush1.bf16.msra.mxu0 0
    %1406 = vmatprep.subr.bf16.mxu0 0
    %1407 = vmatpush1.bf16.msra.mxu0 0
    %1408 = vmatprep.subr.bf16.mxu0 0
    %1409 = vmatpush1.bf16.msra.mxu0 0
    %1410 = vmatprep.subr.bf16.mxu0 0
    %1411 = vmatpush1.bf16.msra.mxu0 0
    %1412 = vmatprep.subr.bf16.mxu0 0
    %1413 = vmatpush1.bf16.msra.mxu0 0
    %1414 = vmatprep.subr.bf16.mxu0 0
    %1415 = vmatpush1.bf16.msra.mxu0 0
    %1416 = vmatprep.mubr.bf16.mxu0 0
    %1417 = vmatmul.mubr.bf16.gmra.mrb[0].mxu0 %v1311
    %v1418 = vpop.f32.mrb[0].mxu0
    %v1419 = vadd.f32 %v1334, %v1418
    %v1420 = vpop.f32.mrb[0].mxu0
    %v1421 = vpop.f32.mrb[0].mxu0
    %v1422 = vadd.f32 %v1334, %v1421
    %v1423 = vpop.f32.mrb[0].mxu0
    %1424 = vmatprep.mubr.bf16.mxu0 0
    %1425 = vmatmul.mubr.bf16.gmra.mrb[0].mxu0 %v1312
    %v1426 = vpop.f32.mrb[0].mxu0
    %v1427 = vadd.f32 %v1334, %v1426
    %v1428 = vpop.f32.mrb[0].mxu0
    %v1429 = vpop.f32.mrb[0].mxu0
    %v1430 = vpop.f32.mrb[0].mxu0
    %1431 = vdwg.mxu0
    %v1432 = vadd.f32 %v297, %v1419
    %v1433 = vadd.f32 %v298, %v1422
    %v1434 = vadd.f32 %v299, %v1427
    %v1435 = vld [vmem:[#allocation20] sm:$0x1]
    %v1436 = vld [vmem:[#allocation22] sm:$0x1]
    %1437 = vadd.xlane.f32.xlu0 %v1432
    %v1438 = vpop.xlane.xlu0 %1437
    %1439 = vadd.xlane.f32.xlu0 %v1433
    %v1440 = vpop.xlane.xlu0 %1439
    %v1441 = vsel %vm306, %v1434, 0.0
    %1442 = vadd.xlane.f32.xlu0 %v1441
    %v1443 = vpop.xlane.xlu0 %1442
    %v1444 = vmul.f32 %v1438, %v310
    %v1445 = vmul.f32 %v1440, %v310
    %v1446 = vmul.f32 %v1443, %v310
    %v1447 = vsub.f32 %v1432, %v1444
    %v1448 = vsub.f32 %v1433, %v1445
    %v1449 = vsub.f32 %v1434, %v1446
    %v1450 = vmul.f32 %v1447, %v1447
    %v1451 = vmul.f32 %v1448, %v1448
    %v1452 = vmul.f32 %v1449, %v1449
    %1453 = vadd.xlane.f32.xlu0 %v1450
    %v1454 = vpop.xlane.xlu0 %1453
    %1455 = vadd.xlane.f32.xlu0 %v1451
    %v1456 = vpop.xlane.xlu0 %1455
    %v1457 = vsel %vm306, %v1452, 0.0
    %1458 = vadd.xlane.f32.xlu0 %v1457
    %v1459 = vpop.xlane.xlu0 %1458
    %v1460 = vmul.f32 %v1454, %v310
    %v1461 = vmul.f32 %v1456, %v310
    %v1462 = vmul.f32 %v1459, %v310
    %v1463 = vadd.f32 %v1460, 1e-05
    %v1464 = vadd.f32 %v1461, 1e-05
    %v1465 = vadd.f32 %v1462, 1e-05
    %v1466 = vrsqrt.pop %v1463
    %v1467 = vrsqrt.pop %v1464
    %v1468 = vrsqrt.pop %v1465
    %v1469 = vmul.f32 %v1447, %v1466
    %v1470 = vmul.f32 %v1448, %v1467
    %v1471 = vmul.f32 %v1449, %v1468
    %v1473 = vlaneseq
    %v1474 = vshrl.u32 %v1473, 7
    %v1475 = vsub.s32 0, %v1474
    %v1476 = vrot.slane %v1435, %v1475
    %v1478 = vmul.f32 %v1469, %v1476
    %v1479 = vmul.f32 %v1470, %v1476
    %v1480 = vmul.f32 %v1471, %v1476
    %v1482 = vlaneseq
    %v1483 = vshrl.u32 %v1482, 7
    %v1484 = vsub.s32 0, %v1483
    %v1485 = vrot.slane %v1436, %v1484
    %v1487 = vadd.f32 %v1478, %v1485
    %v1488 = vadd.f32 %v1479, %v1485
    %v1489 = vadd.f32 %v1480, %v1485
    %v1490 = vpack.c.bf16 %v1488, %v1487
    %v1491 = vpack.c.bf16 %v1489, %v1489
    %v1492 = vld [vmem:[#allocation23] sm:$0xff]
    %v1493 = vld [vmem:[#allocation23 + $0x8] sm:$0xff]
    %v1494 = vld [vmem:[#allocation23 + $0x10] sm:$0xff]
    %v1495 = vld [vmem:[#allocation23 + $0x18] sm:$0xff]
    %v1496 = vld [vmem:[#allocation23 + $0x20] sm:$0xff]
    %v1497 = vld [vmem:[#allocation23 + $0x28] sm:$0xff]
    %v1498 = vld [vmem:[#allocation23 + $0x30] sm:$0xff]
    %v1499 = vld [vmem:[#allocation23 + $0x38] sm:$0xff]
    %v1500 = vld [vmem:[#allocation23 + $0x40] sm:$0xff]
    %v1501 = vld [vmem:[#allocation23 + $0x48] sm:$0xff]
    %v1502 = vld [vmem:[#allocation23 + $0x50] sm:$0xff]
    %v1503 = vld [vmem:[#allocation23 + $0x58] sm:$0xff]
    %v1504 = vld [vmem:[#allocation23 + $0x60] sm:$0xff]
    %v1505 = vld [vmem:[#allocation23 + $0x68] sm:$0xff]
    %v1506 = vld [vmem:[#allocation23 + $0x70] sm:$0xff]
    %v1507 = vld [vmem:[#allocation23 + $0x78] sm:$0xff]
    %v1508 = vld [vmem:[#allocation23 + $0x80] sm:$0xff]
    %v1509 = vld [vmem:[#allocation23 + $0x88] sm:$0xff]
    %v1510 = vld [vmem:[#allocation23 + $0x90] sm:$0xff]
    %v1511 = vld [vmem:[#allocation23 + $0x98] sm:$0xff]
    %v1512 = vld [vmem:[#allocation23 + $0xa0] sm:$0xff]
    %v1513 = vld [vmem:[#allocation23 + $0xa8] sm:$0xff]
    %v1514 = vld [vmem:[#allocation23 + $0xb0] sm:$0xff]
    %v1515 = vld [vmem:[#allocation23 + $0xb8] sm:$0xff]
    %v1516 = vld [vmem:[#allocation23 + $0xc0] sm:$0xff]
    %v1517 = vld [vmem:[#allocation23 + $0xc8] sm:$0xff]
    %v1518 = vld [vmem:[#allocation23 + $0xd0] sm:$0xff]
    %v1519 = vld [vmem:[#allocation23 + $0xd8] sm:$0xff]
    %v1520 = vld [vmem:[#allocation23 + $0xe0] sm:$0xff]
    %v1521 = vld [vmem:[#allocation23 + $0xe8] sm:$0xff]
    %v1522 = vld [vmem:[#allocation23 + $0xf0] sm:$0xff]
    %v1523 = vld [vmem:[#allocation23 + $0xf8] sm:$0xff]
    %v1524 = vld [vmem:[#allocation25] sm:$0xf]
    %v1526 = vlaneseq
    %v1527 = vshrl.u32 %v1526, 7
    %v1528 = vsub.s32 0, %v1527
    %v1529 = vrot.slane %v1524, %v1528
    %v1530 = vlaneseq
    %v1531 = vshrl.u32 %v1530, 7
    %v1532 = vsub.s32 1, %v1531
    %v1533 = vrot.slane %v1524, %v1532
    %v1534 = vlaneseq
    %v1535 = vshrl.u32 %v1534, 7
    %v1536 = vsub.s32 2, %v1535
    %v1537 = vrot.slane %v1524, %v1536
    %v1538 = vlaneseq
    %v1539 = vshrl.u32 %v1538, 7
    %v1540 = vsub.s32 3, %v1539
    %v1541 = vrot.slane %v1524, %v1540
    %v1578 = vunpack.c.l.b16 %v1492
    %v1579 = vunpack.c.h.b16 %v1492
    %v1580 = vunpack.c.l.b16 %v1493
    %v1581 = vunpack.c.h.b16 %v1493
    %v1582 = vunpack.c.l.b16 %v1494
    %v1583 = vunpack.c.h.b16 %v1494
    %v1584 = vunpack.c.l.b16 %v1495
    %v1585 = vunpack.c.h.b16 %v1495
    %v1586 = vunpack.c.l.b16 %v1496
    %v1587 = vunpack.c.h.b16 %v1496
    %v1588 = vunpack.c.l.b16 %v1497
    %v1589 = vunpack.c.h.b16 %v1497
    %v1590 = vunpack.c.l.b16 %v1498
    %v1591 = vunpack.c.h.b16 %v1498
    %v1592 = vunpack.c.l.b16 %v1499
    %v1593 = vunpack.c.h.b16 %v1499
    %v1594 = vunpack.c.l.b16 %v1500
    %v1595 = vunpack.c.h.b16 %v1500
    %v1596 = vunpack.c.l.b16 %v1501
    %v1597 = vunpack.c.h.b16 %v1501
    %v1598 = vunpack.c.l.b16 %v1502
    %v1599 = vunpack.c.h.b16 %v1502
    %v1600 = vunpack.c.l.b16 %v1503
    %v1601 = vunpack.c.h.b16 %v1503
    %v1602 = vunpack.c.l.b16 %v1504
    %v1603 = vunpack.c.h.b16 %v1504
    %v1604 = vunpack.c.l.b16 %v1505
    %v1605 = vunpack.c.h.b16 %v1505
    %v1606 = vunpack.c.l.b16 %v1506
    %v1607 = vunpack.c.h.b16 %v1506
    %v1608 = vunpack.c.l.b16 %v1507
    %v1609 = vunpack.c.h.b16 %v1507
    %v1610 = vunpack.c.l.b16 %v1508
    %v1611 = vunpack.c.h.b16 %v1508
    %v1612 = vunpack.c.l.b16 %v1509
    %v1613 = vunpack.c.h.b16 %v1509
    %v1614 = vunpack.c.l.b16 %v1510
    %v1615 = vunpack.c.h.b16 %v1510
    %v1616 = vunpack.c.l.b16 %v1511
    %v1617 = vunpack.c.h.b16 %v1511
    %v1618 = vunpack.c.l.b16 %v1512
    %v1619 = vunpack.c.h.b16 %v1512
    %v1620 = vunpack.c.l.b16 %v1513
    %v1621 = vunpack.c.h.b16 %v1513
    %v1622 = vunpack.c.l.b16 %v1514
    %v1623 = vunpack.c.h.b16 %v1514
    %v1624 = vunpack.c.l.b16 %v1515
    %v1625 = vunpack.c.h.b16 %v1515
    %v1626 = vunpack.c.l.b16 %v1516
    %v1627 = vunpack.c.h.b16 %v1516
    %v1628 = vunpack.c.l.b16 %v1517
    %v1629 = vunpack.c.h.b16 %v1517
    %v1630 = vunpack.c.l.b16 %v1518
    %v1631 = vunpack.c.h.b16 %v1518
    %v1632 = vunpack.c.l.b16 %v1519
    %v1633 = vunpack.c.h.b16 %v1519
    %v1634 = vunpack.c.l.b16 %v1520
    %v1635 = vunpack.c.h.b16 %v1520
    %v1636 = vunpack.c.l.b16 %v1521
    %v1637 = vunpack.c.h.b16 %v1521
    %v1638 = vunpack.c.l.b16 %v1522
    %v1639 = vunpack.c.h.b16 %v1522
    %v1640 = vunpack.c.l.b16 %v1523
    %v1641 = vunpack.c.h.b16 %v1523
    %v1642 = vpack.c.b16 %v1582, %v1578
    %v1643 = vpack.c.b16 %v1583, %v1579
    %v1644 = vpack.c.b16 %v1584, %v1580
    %v1645 = vpack.c.b16 %v1585, %v1581
    %v1646 = vpack.c.b16 %v1590, %v1586
    %v1647 = vpack.c.b16 %v1591, %v1587
    %v1648 = vpack.c.b16 %v1592, %v1588
    %v1649 = vpack.c.b16 %v1593, %v1589
    %v1650 = vpack.c.b16 %v1598, %v1594
    %v1651 = vpack.c.b16 %v1599, %v1595
    %v1652 = vpack.c.b16 %v1600, %v1596
    %v1653 = vpack.c.b16 %v1601, %v1597
    %v1654 = vpack.c.b16 %v1606, %v1602
    %v1655 = vpack.c.b16 %v1607, %v1603
    %v1656 = vpack.c.b16 %v1608, %v1604
    %v1657 = vpack.c.b16 %v1609, %v1605
    %v1658 = vpack.c.b16 %v1614, %v1610
    %v1659 = vpack.c.b16 %v1615, %v1611
    %v1660 = vpack.c.b16 %v1616, %v1612
    %v1661 = vpack.c.b16 %v1617, %v1613
    %v1662 = vpack.c.b16 %v1622, %v1618
    %v1663 = vpack.c.b16 %v1623, %v1619
    %v1664 = vpack.c.b16 %v1624, %v1620
    %v1665 = vpack.c.b16 %v1625, %v1621
    %v1666 = vpack.c.b16 %v1630, %v1626
    %v1667 = vpack.c.b16 %v1631, %v1627
    %v1668 = vpack.c.b16 %v1632, %v1628
    %v1669 = vpack.c.b16 %v1633, %v1629
    %v1670 = vpack.c.b16 %v1638, %v1634
    %v1671 = vpack.c.b16 %v1639, %v1635
    %v1672 = vpack.c.b16 %v1640, %v1636
    %v1673 = vpack.c.b16 %v1641, %v1637
    %1706 = vmatprep.subr.bf16.mxu0 %v1643
    %1707 = vmatpush1.bf16.msra.mxu0 %v1642
    %1708 = vmatprep.subr.bf16.mxu0 %v1647
    %1709 = vmatpush1.bf16.msra.mxu0 %v1646
    %1710 = vmatprep.subr.bf16.mxu0 %v1651
    %1711 = vmatpush1.bf16.msra.mxu0 %v1650
    %1712 = vmatprep.subr.bf16.mxu0 %v1655
    %1713 = vmatpush1.bf16.msra.mxu0 %v1654
    %1714 = vmatprep.subr.bf16.mxu0 %v1659
    %1715 = vmatpush1.bf16.msra.mxu0 %v1658
    %1716 = vmatprep.subr.bf16.mxu0 %v1663
    %1717 = vmatpush1.bf16.msra.mxu0 %v1662
    %1718 = vmatprep.subr.bf16.mxu0 %v1667
    %1719 = vmatpush1.bf16.msra.mxu0 %v1666
    %1720 = vmatprep.subr.bf16.mxu0 %v1671
    %1721 = vmatpush1.bf16.msra.mxu0 %v1670
    %1722 = vmatprep.subr.bf16.mxu0 0
    %1723 = vmatpush1.bf16.msra.mxu0 0
    %1724 = vmatprep.subr.bf16.mxu0 0
    %1725 = vmatpush1.bf16.msra.mxu0 0
    %1726 = vmatprep.subr.bf16.mxu0 0
    %1727 = vmatpush1.bf16.msra.mxu0 0
    %1728 = vmatprep.subr.bf16.mxu0 0
    %1729 = vmatpush1.bf16.msra.mxu0 0
    %1730 = vmatprep.subr.bf16.mxu0 0
    %1731 = vmatpush1.bf16.msra.mxu0 0
    %1732 = vmatprep.subr.bf16.mxu0 0
    %1733 = vmatpush1.bf16.msra.mxu0 0
    %1734 = vmatprep.subr.bf16.mxu0 0
    %1735 = vmatpush1.bf16.msra.mxu0 0
    %1736 = vmatprep.subr.bf16.mxu0 0
    %1737 = vmatpush1.bf16.msra.mxu0 0
    %1738 = vmatprep.mubr.bf16.mxu0 0
    %1739 = vmatmul.mubr.bf16.gmra.mrb[0].mxu0 %v1490
    %v1740 = vpop.f32.mrb[0].mxu0
    %v1741 = vadd.f32 %v1529, %v1740
    %v1742 = vpop.f32.mrb[0].mxu0
    %v1743 = vadd.f32 %v1533, %v1742
    %v1744 = vpop.f32.mrb[0].mxu0
    %v1745 = vadd.f32 %v1529, %v1744
    %v1746 = vpop.f32.mrb[0].mxu0
    %v1747 = vadd.f32 %v1533, %v1746
    %1748 = vmatprep.mubr.bf16.mxu0 0
    %1749 = vmatmul.mubr.bf16.gmra.mrb[0].mxu0 %v1491
    %v1750 = vpop.f32.mrb[0].mxu0
    %v1751 = vadd.f32 %v1529, %v1750
    %v1752 = vpop.f32.mrb[0].mxu0
    %v1753 = vadd.f32 %v1533, %v1752
    %v1754 = vpop.f32.mrb[0].mxu0
    %v1755 = vpop.f32.mrb[0].mxu0
    %1756 = vdwg.mxu0
    %1757 = vmatprep.subr.bf16.mxu0 %v1645
    %1758 = vmatpush1.bf16.msra.mxu0 %v1644
    %1759 = vmatprep.subr.bf16.mxu0 %v1649
    %1760 = vmatpush1.bf16.msra.mxu0 %v1648
    %1761 = vmatprep.subr.bf16.mxu0 %v1653
    %1762 = vmatpush1.bf16.msra.mxu0 %v1652
    %1763 = vmatprep.subr.bf16.mxu0 %v1657
    %1764 = vmatpush1.bf16.msra.mxu0 %v1656
    %1765 = vmatprep.subr.bf16.mxu0 %v1661
    %1766 = vmatpush1.bf16.msra.mxu0 %v1660
    %1767 = vmatprep.subr.bf16.mxu0 %v1665
    %1768 = vmatpush1.bf16.msra.mxu0 %v1664
    %1769 = vmatprep.subr.bf16.mxu0 %v1669
    %1770 = vmatpush1.bf16.msra.mxu0 %v1668
    %1771 = vmatprep.subr.bf16.mxu0 %v1673
    %1772 = vmatpush1.bf16.msra.mxu0 %v1672
    %1773 = vmatprep.subr.bf16.mxu0 0
    %1774 = vmatpush1.bf16.msra.mxu0 0
    %1775 = vmatprep.subr.bf16.mxu0 0
    %1776 = vmatpush1.bf16.msra.mxu0 0
    %1777 = vmatprep.subr.bf16.mxu0 0
    %1778 = vmatpush1.bf16.msra.mxu0 0
    %1779 = vmatprep.subr.bf16.mxu0 0
    %1780 = vmatpush1.bf16.msra.mxu0 0
    %1781 = vmatprep.subr.bf16.mxu0 0
    %1782 = vmatpush1.bf16.msra.mxu0 0
    %1783 = vmatprep.subr.bf16.mxu0 0
    %1784 = vmatpush1.bf16.msra.mxu0 0
    %1785 = vmatprep.subr.bf16.mxu0 0
    %1786 = vmatpush1.bf16.msra.mxu0 0
    %1787 = vmatprep.subr.bf16.mxu0 0
    %1788 = vmatpush1.bf16.msra.mxu0 0
    %1789 = vmatprep.mubr.bf16.mxu0 0
    %1790 = vmatmul.mubr.bf16.gmra.mrb[0].mxu0 %v1490
    %v1791 = vpop.f32.mrb[0].mxu0
    %v1792 = vadd.f32 %v1537, %v1791
    %v1793 = vpop.f32.mrb[0].mxu0
    %v1794 = vadd.f32 %v1541, %v1793
    %v1795 = vpop.f32.mrb[0].mxu0
    %v1796 = vadd.f32 %v1537, %v1795
    %v1797 = vpop.f32.mrb[0].mxu0
    %v1798 = vadd.f32 %v1541, %v1797
    %1799 = vmatprep.mubr.bf16.mxu0 0
    %1800 = vmatmul.mubr.bf16.gmra.mrb[0].mxu0 %v1491
    %v1801 = vpop.f32.mrb[0].mxu0
    %v1802 = vadd.f32 %v1537, %v1801
    %v1803 = vpop.f32.mrb[0].mxu0
    %v1804 = vadd.f32 %v1541, %v1803
    %v1805 = vpop.f32.mrb[0].mxu0
    %v1806 = vpop.f32.mrb[0].mxu0
    %1807 = vdwg.mxu0
    %v1808 = vmul.f32 %v1741, %v1741
    %v1809 = vmul.f32 %v1743, %v1743
    %v1810 = vmul.f32 %v1792, %v1792
    %v1811 = vmul.f32 %v1794, %v1794
    %v1812 = vmul.f32 %v1745, %v1745
    %v1813 = vmul.f32 %v1747, %v1747
    %v1814 = vmul.f32 %v1796, %v1796
    %v1815 = vmul.f32 %v1798, %v1798
    %v1816 = vmul.f32 %v1751, %v1751
    %v1817 = vmul.f32 %v1753, %v1753
    %v1818 = vmul.f32 %v1802, %v1802
    %v1819 = vmul.f32 %v1804, %v1804
    %v1820 = vmul.f32 %v1741, %v1808
    %v1821 = vmul.f32 %v1743, %v1809
    %v1822 = vmul.f32 %v1792, %v1810
    %v1823 = vmul.f32 %v1794, %v1811
    %v1824 = vmul.f32 %v1745, %v1812
    %v1825 = vmul.f32 %v1747, %v1813
    %v1826 = vmul.f32 %v1796, %v1814
    %v1827 = vmul.f32 %v1798, %v1815
    %v1828 = vmul.f32 %v1751, %v1816
    %v1829 = vmul.f32 %v1753, %v1817
    %v1830 = vmul.f32 %v1802, %v1818
    %v1831 = vmul.f32 %v1804, %v1819
    %v1832 = vmul.f32 %v1820, 0.044715
    %v1833 = vmul.f32 %v1821, 0.044715
    %v1834 = vmul.f32 %v1822, 0.044715
    %v1835 = vmul.f32 %v1823, 0.044715
    %v1836 = vmul.f32 %v1824, 0.044715
    %v1837 = vmul.f32 %v1825, 0.044715
    %v1838 = vmul.f32 %v1826, 0.044715
    %v1839 = vmul.f32 %v1827, 0.044715
    %v1840 = vmul.f32 %v1828, 0.044715
    %v1841 = vmul.f32 %v1829, 0.044715
    %v1842 = vmul.f32 %v1830, 0.044715
    %v1843 = vmul.f32 %v1831, 0.044715
    %v1844 = vadd.f32 %v1741, %v1832
    %v1845 = vadd.f32 %v1743, %v1833
    %v1846 = vadd.f32 %v1792, %v1834
    %v1847 = vadd.f32 %v1794, %v1835
    %v1848 = vadd.f32 %v1745, %v1836
    %v1849 = vadd.f32 %v1747, %v1837
    %v1850 = vadd.f32 %v1796, %v1838
    %v1851 = vadd.f32 %v1798, %v1839
    %v1852 = vadd.f32 %v1751, %v1840
    %v1853 = vadd.f32 %v1753, %v1841
    %v1854 = vadd.f32 %v1802, %v1842
    %v1855 = vadd.f32 %v1804, %v1843
    %v1856 = vmul.f32 %v1844, 0.7978846
    %v1857 = vmul.f32 %v1845, 0.7978846
    %v1858 = vmul.f32 %v1846, 0.7978846
    %v1859 = vmul.f32 %v1847, 0.7978846
    %v1860 = vmul.f32 %v1848, 0.7978846
    %v1861 = vmul.f32 %v1849, 0.7978846
    %v1862 = vmul.f32 %v1850, 0.7978846
    %v1863 = vmul.f32 %v1851, 0.7978846
    %v1864 = vmul.f32 %v1852, 0.7978846
    %v1865 = vmul.f32 %v1853, 0.7978846
    %v1866 = vmul.f32 %v1854, 0.7978846
    %v1867 = vmul.f32 %v1855, 0.7978846
    %v1868 = vtanh.pop %v1856
    %v1869 = vtanh.pop %v1857
    %v1870 = vtanh.pop %v1858
    %v1871 = vtanh.pop %v1859
    %v1872 = vtanh.pop %v1860
    %v1873 = vtanh.pop %v1861
    %v1874 = vtanh.pop %v1862
    %v1875 = vtanh.pop %v1863
    %v1876 = vtanh.pop %v1864
    %v1877 = vtanh.pop %v1865
    %v1878 = vtanh.pop %v1866
    %v1879 = vtanh.pop %v1867
    %v1880 = vadd.f32 %v1868, 1.0
    %v1881 = vadd.f32 %v1869, 1.0
    %v1882 = vadd.f32 %v1870, 1.0
    %v1883 = vadd.f32 %v1871, 1.0
    %v1884 = vadd.f32 %v1872, 1.0
    %v1885 = vadd.f32 %v1873, 1.0
    %v1886 = vadd.f32 %v1874, 1.0
    %v1887 = vadd.f32 %v1875, 1.0
    %v1888 = vadd.f32 %v1876, 1.0
    %v1889 = vadd.f32 %v1877, 1.0
    %v1890 = vadd.f32 %v1878, 1.0
    %v1891 = vadd.f32 %v1879, 1.0
    %v1892 = vmul.f32 %v1880, 0.5
    %v1893 = vmul.f32 %v1881, 0.5
    %v1894 = vmul.f32 %v1882, 0.5
    %v1895 = vmul.f32 %v1883, 0.5
    %v1896 = vmul.f32 %v1884, 0.5
    %v1897 = vmul.f32 %v1885, 0.5
    %v1898 = vmul.f32 %v1886, 0.5
    %v1899 = vmul.f32 %v1887, 0.5
    %v1900 = vmul.f32 %v1888, 0.5
    %v1901 = vmul.f32 %v1889, 0.5
    %v1902 = vmul.f32 %v1890, 0.5
    %v1903 = vmul.f32 %v1891, 0.5
    %v1904 = vmul.f32 %v1741, %v1892
    %v1905 = vmul.f32 %v1743, %v1893
    %v1906 = vmul.f32 %v1792, %v1894
    %v1907 = vmul.f32 %v1794, %v1895
    %v1908 = vmul.f32 %v1745, %v1896
    %v1909 = vmul.f32 %v1747, %v1897
    %v1910 = vmul.f32 %v1796, %v1898
    %v1911 = vmul.f32 %v1798, %v1899
    %v1912 = vmul.f32 %v1751, %v1900
    %v1913 = vmul.f32 %v1753, %v1901
    %v1914 = vmul.f32 %v1802, %v1902
    %v1915 = vmul.f32 %v1804, %v1903
    %v1916 = vpack.c.bf16 %v1908, %v1904
    %v1917 = vpack.c.bf16 %v1909, %v1905
    %v1918 = vpack.c.bf16 %v1910, %v1906
    %v1919 = vpack.c.bf16 %v1911, %v1907
    %v1920 = vpack.c.bf16 %v1912, %v1912
    %v1921 = vpack.c.bf16 %v1913, %v1913
    %v1922 = vpack.c.bf16 %v1914, %v1914
    %v1923 = vpack.c.bf16 %v1915, %v1915
    %v1924 = vld [vmem:[#allocation26] sm:$0xf]
    %v1925 = vld [vmem:[#allocation26 + $0x4] sm:$0xf]
    %v1926 = vld [vmem:[#allocation26 + $0x8] sm:$0xf]
    %v1927 = vld [vmem:[#allocation26 + $0xc] sm:$0xf]
    %v1928 = vld [vmem:[#allocation26 + $0x10] sm:$0xf]
    %v1929 = vld [vmem:[#allocation26 + $0x14] sm:$0xf]
    %v1930 = vld [vmem:[#allocation26 + $0x18] sm:$0xf]
    %v1931 = vld [vmem:[#allocation26 + $0x1c] sm:$0xf]
    %v1932 = vld [vmem:[#allocation26 + $0x20] sm:$0xf]
    %v1933 = vld [vmem:[#allocation26 + $0x24] sm:$0xf]
    %v1934 = vld [vmem:[#allocation26 + $0x28] sm:$0xf]
    %v1935 = vld [vmem:[#allocation26 + $0x2c] sm:$0xf]
    %v1936 = vld [vmem:[#allocation26 + $0x30] sm:$0xf]
    %v1937 = vld [vmem:[#allocation26 + $0x34] sm:$0xf]
    %v1938 = vld [vmem:[#allocation26 + $0x38] sm:$0xf]
    %v1939 = vld [vmem:[#allocation26 + $0x3c] sm:$0xf]
    %v1940 = vld [vmem:[#allocation26 + $0x40] sm:$0xf]
    %v1941 = vld [vmem:[#allocation26 + $0x44] sm:$0xf]
    %v1942 = vld [vmem:[#allocation26 + $0x48] sm:$0xf]
    %v1943 = vld [vmem:[#allocation26 + $0x4c] sm:$0xf]
    %v1944 = vld [vmem:[#allocation26 + $0x50] sm:$0xf]
    %v1945 = vld [vmem:[#allocation26 + $0x54] sm:$0xf]
    %v1946 = vld [vmem:[#allocation26 + $0x58] sm:$0xf]
    %v1947 = vld [vmem:[#allocation26 + $0x5c] sm:$0xf]
    %v1948 = vld [vmem:[#allocation26 + $0x60] sm:$0xf]
    %v1949 = vld [vmem:[#allocation26 + $0x64] sm:$0xf]
    %v1950 = vld [vmem:[#allocation26 + $0x68] sm:$0xf]
    %v1951 = vld [vmem:[#allocation26 + $0x6c] sm:$0xf]
    %v1952 = vld [vmem:[#allocation26 + $0x70] sm:$0xf]
    %v1953 = vld [vmem:[#allocation26 + $0x74] sm:$0xf]
    %v1954 = vld [vmem:[#allocation26 + $0x78] sm:$0xf]
    %v1955 = vld [vmem:[#allocation26 + $0x7c] sm:$0xf]
    %v1956 = vld [vmem:[#allocation26 + $0x80] sm:$0xf]
    %v1957 = vld [vmem:[#allocation26 + $0x84] sm:$0xf]
    %v1958 = vld [vmem:[#allocation26 + $0x88] sm:$0xf]
    %v1959 = vld [vmem:[#allocation26 + $0x8c] sm:$0xf]
    %v1960 = vld [vmem:[#allocation26 + $0x90] sm:$0xf]
    %v1961 = vld [vmem:[#allocation26 + $0x94] sm:$0xf]
    %v1962 = vld [vmem:[#allocation26 + $0x98] sm:$0xf]
    %v1963 = vld [vmem:[#allocation26 + $0x9c] sm:$0xf]
    %v1964 = vld [vmem:[#allocation26 + $0xa0] sm:$0xf]
    %v1965 = vld [vmem:[#allocation26 + $0xa4] sm:$0xf]
    %v1966 = vld [vmem:[#allocation26 + $0xa8] sm:$0xf]
    %v1967 = vld [vmem:[#allocation26 + $0xac] sm:$0xf]
    %v1968 = vld [vmem:[#allocation26 + $0xb0] sm:$0xf]
    %v1969 = vld [vmem:[#allocation26 + $0xb4] sm:$0xf]
    %v1970 = vld [vmem:[#allocation26 + $0xb8] sm:$0xf]
    %v1971 = vld [vmem:[#allocation26 + $0xbc] sm:$0xf]
    %v1972 = vld [vmem:[#allocation26 + $0xc0] sm:$0xf]
    %v1973 = vld [vmem:[#allocation26 + $0xc4] sm:$0xf]
    %v1974 = vld [vmem:[#allocation26 + $0xc8] sm:$0xf]
    %v1975 = vld [vmem:[#allocation26 + $0xcc] sm:$0xf]
    %v1976 = vld [vmem:[#allocation26 + $0xd0] sm:$0xf]
    %v1977 = vld [vmem:[#allocation26 + $0xd4] sm:$0xf]
    %v1978 = vld [vmem:[#allocation26 + $0xd8] sm:$0xf]
    %v1979 = vld [vmem:[#allocation26 + $0xdc] sm:$0xf]
    %v1980 = vld [vmem:[#allocation26 + $0xe0] sm:$0xf]
    %v1981 = vld [vmem:[#allocation26 + $0xe4] sm:$0xf]
    %v1982 = vld [vmem:[#allocation26 + $0xe8] sm:$0xf]
    %v1983 = vld [vmem:[#allocation26 + $0xec] sm:$0xf]
    %v1984 = vld [vmem:[#allocation26 + $0xf0] sm:$0xf]
    %v1985 = vld [vmem:[#allocation26 + $0xf4] sm:$0xf]
    %v1986 = vld [vmem:[#allocation26 + $0xf8] sm:$0xf]
    %v1987 = vld [vmem:[#allocation26 + $0xfc] sm:$0xf]
    %v1988 = vld [vmem:[#allocation28] sm:$0x1]
    %v1990 = vlaneseq
    %v1991 = vshrl.u32 %v1990, 7
    %v1992 = vsub.s32 0, %v1991
    %v1993 = vrot.slane %v1988, %v1992
    %v2059 = vunpack.c.l.b16 %v1924
    %v2060 = vunpack.c.l.b16 %v1925
    %v2061 = vunpack.c.l.b16 %v1926
    %v2062 = vunpack.c.l.b16 %v1927
    %v2063 = vunpack.c.l.b16 %v1928
    %v2064 = vunpack.c.l.b16 %v1929
    %v2065 = vunpack.c.l.b16 %v1930
    %v2066 = vunpack.c.l.b16 %v1931
    %v2067 = vunpack.c.l.b16 %v1932
    %v2068 = vunpack.c.l.b16 %v1933
    %v2069 = vunpack.c.l.b16 %v1934
    %v2070 = vunpack.c.l.b16 %v1935
    %v2071 = vunpack.c.l.b16 %v1936
    %v2072 = vunpack.c.l.b16 %v1937
    %v2073 = vunpack.c.l.b16 %v1938
    %v2074 = vunpack.c.l.b16 %v1939
    %v2075 = vunpack.c.l.b16 %v1940
    %v2076 = vunpack.c.l.b16 %v1941
    %v2077 = vunpack.c.l.b16 %v1942
    %v2078 = vunpack.c.l.b16 %v1943
    %v2079 = vunpack.c.l.b16 %v1944
    %v2080 = vunpack.c.l.b16 %v1945
    %v2081 = vunpack.c.l.b16 %v1946
    %v2082 = vunpack.c.l.b16 %v1947
    %v2083 = vunpack.c.l.b16 %v1948
    %v2084 = vunpack.c.l.b16 %v1949
    %v2085 = vunpack.c.l.b16 %v1950
    %v2086 = vunpack.c.l.b16 %v1951
    %v2087 = vunpack.c.l.b16 %v1952
    %v2088 = vunpack.c.l.b16 %v1953
    %v2089 = vunpack.c.l.b16 %v1954
    %v2090 = vunpack.c.l.b16 %v1955
    %v2091 = vunpack.c.l.b16 %v1956
    %v2092 = vunpack.c.l.b16 %v1957
    %v2093 = vunpack.c.l.b16 %v1958
    %v2094 = vunpack.c.l.b16 %v1959
    %v2095 = vunpack.c.l.b16 %v1960
    %v2096 = vunpack.c.l.b16 %v1961
    %v2097 = vunpack.c.l.b16 %v1962
    %v2098 = vunpack.c.l.b16 %v1963
    %v2099 = vunpack.c.l.b16 %v1964
    %v2100 = vunpack.c.l.b16 %v1965
    %v2101 = vunpack.c.l.b16 %v1966
    %v2102 = vunpack.c.l.b16 %v1967
    %v2103 = vunpack.c.l.b16 %v1968
    %v2104 = vunpack.c.l.b16 %v1969
    %v2105 = vunpack.c.l.b16 %v1970
    %v2106 = vunpack.c.l.b16 %v1971
    %v2107 = vunpack.c.l.b16 %v1972
    %v2108 = vunpack.c.l.b16 %v1973
    %v2109 = vunpack.c.l.b16 %v1974
    %v2110 = vunpack.c.l.b16 %v1975
    %v2111 = vunpack.c.l.b16 %v1976
    %v2112 = vunpack.c.l.b16 %v1977
    %v2113 = vunpack.c.l.b16 %v1978
    %v2114 = vunpack.c.l.b16 %v1979
    %v2115 = vunpack.c.l.b16 %v1980
    %v2116 = vunpack.c.l.b16 %v1981
    %v2117 = vunpack.c.l.b16 %v1982
    %v2118 = vunpack.c.l.b16 %v1983
    %v2119 = vunpack.c.l.b16 %v1984
    %v2120 = vunpack.c.l.b16 %v1985
    %v2121 = vunpack.c.l.b16 %v1986
    %v2122 = vunpack.c.l.b16 %v1987
    %v2123 = vpack.c.b16 %v2060, %v2059
    %v2124 = vpack.c.b16 %v2062, %v2061
    %v2125 = vpack.c.b16 %v2064, %v2063
    %v2126 = vpack.c.b16 %v2066, %v2065
    %v2127 = vpack.c.b16 %v2068, %v2067
    %v2128 = vpack.c.b16 %v2070, %v2069
    %v2129 = vpack.c.b16 %v2072, %v2071
    %v2130 = vpack.c.b16 %v2074, %v2073
    %v2131 = vpack.c.b16 %v2076, %v2075
    %v2132 = vpack.c.b16 %v2078, %v2077
    %v2133 = vpack.c.b16 %v2080, %v2079
    %v2134 = vpack.c.b16 %v2082, %v2081
    %v2135 = vpack.c.b16 %v2084, %v2083
    %v2136 = vpack.c.b16 %v2086, %v2085
    %v2137 = vpack.c.b16 %v2088, %v2087
    %v2138 = vpack.c.b16 %v2090, %v2089
    %v2139 = vpack.c.b16 %v2092, %v2091
    %v2140 = vpack.c.b16 %v2094, %v2093
    %v2141 = vpack.c.b16 %v2096, %v2095
    %v2142 = vpack.c.b16 %v2098, %v2097
    %v2143 = vpack.c.b16 %v2100, %v2099
    %v2144 = vpack.c.b16 %v2102, %v2101
    %v2145 = vpack.c.b16 %v2104, %v2103
    %v2146 = vpack.c.b16 %v2106, %v2105
    %v2147 = vpack.c.b16 %v2108, %v2107
    %v2148 = vpack.c.b16 %v2110, %v2109
    %v2149 = vpack.c.b16 %v2112, %v2111
    %v2150 = vpack.c.b16 %v2114, %v2113
    %v2151 = vpack.c.b16 %v2116, %v2115
    %v2152 = vpack.c.b16 %v2118, %v2117
    %v2153 = vpack.c.b16 %v2120, %v2119
    %v2154 = vpack.c.b16 %v2122, %v2121
    %2187 = vmatprep.subr.bf16.mxu0 0
    %2188 = vmatpush1.bf16.msra.mxu0 %v2123
    %2189 = vmatprep.subr.bf16.mxu0 0
    %2190 = vmatpush1.bf16.msra.mxu0 %v2124
    %2191 = vmatprep.subr.bf16.mxu0 0
    %2192 = vmatpush1.bf16.msra.mxu0 %v2125
    %2193 = vmatprep.subr.bf16.mxu0 0
    %2194 = vmatpush1.bf16.msra.mxu0 %v2126
    %2195 = vmatprep.subr.bf16.mxu0 0
    %2196 = vmatpush1.bf16.msra.mxu0 %v2127
    %2197 = vmatprep.subr.bf16.mxu0 0
    %2198 = vmatpush1.bf16.msra.mxu0 %v2128
    %2199 = vmatprep.subr.bf16.mxu0 0
    %2200 = vmatpush1.bf16.msra.mxu0 %v2129
    %2201 = vmatprep.subr.bf16.mxu0 0
    %2202 = vmatpush1.bf16.msra.mxu0 %v2130
    %2203 = vmatprep.subr.bf16.mxu0 0
    %2204 = vmatpush1.bf16.msra.mxu0 %v2131
    %2205 = vmatprep.subr.bf16.mxu0 0
    %2206 = vmatpush1.bf16.msra.mxu0 %v2132
    %2207 = vmatprep.subr.bf16.mxu0 0
    %2208 = vmatpush1.bf16.msra.mxu0 %v2133
    %2209 = vmatprep.subr.bf16.mxu0 0
    %2210 = vmatpush1.bf16.msra.mxu0 %v2134
    %2211 = vmatprep.subr.bf16.mxu0 0
    %2212 = vmatpush1.bf16.msra.mxu0 %v2135
    %2213 = vmatprep.subr.bf16.mxu0 0
    %2214 = vmatpush1.bf16.msra.mxu0 %v2136
    %2215 = vmatprep.subr.bf16.mxu0 0
    %2216 = vmatpush1.bf16.msra.mxu0 %v2137
    %2217 = vmatprep.subr.bf16.mxu0 0
    %2218 = vmatpush1.bf16.msra.mxu0 %v2138
    %2219 = vmatprep.mubr.bf16.mxu0 %v1917
    %2220 = vmatmul.mubr.bf16.gmra.mrb[0].mxu0 %v1916
    %v2221 = vpop.f32.mrb[0].mxu0
    %v2222 = vadd.f32 %v1993, %v2221
    %v2223 = vpop.f32.mrb[0].mxu0
    %v2224 = vpop.f32.mrb[0].mxu0
    %v2225 = vadd.f32 %v1993, %v2224
    %v2226 = vpop.f32.mrb[0].mxu0
    %2227 = vmatprep.mubr.bf16.mxu0 %v1921
    %2228 = vmatmul.mubr.bf16.gmra.mrb[0].mxu0 %v1920
    %v2229 = vpop.f32.mrb[0].mxu0
    %v2230 = vadd.f32 %v1993, %v2229
    %v2231 = vpop.f32.mrb[0].mxu0
    %v2232 = vpop.f32.mrb[0].mxu0
    %v2233 = vpop.f32.mrb[0].mxu0
    %2234 = vdwg.mxu0
    %2235 = vmatprep.subr.bf16.mxu0 0
    %2236 = vmatpush1.bf16.msra.mxu0 %v2139
    %2237 = vmatprep.subr.bf16.mxu0 0
    %2238 = vmatpush1.bf16.msra.mxu0 %v2140
    %2239 = vmatprep.subr.bf16.mxu0 0
    %2240 = vmatpush1.bf16.msra.mxu0 %v2141
    %2241 = vmatprep.subr.bf16.mxu0 0
    %2242 = vmatpush1.bf16.msra.mxu0 %v2142
    %2243 = vmatprep.subr.bf16.mxu0 0
    %2244 = vmatpush1.bf16.msra.mxu0 %v2143
    %2245 = vmatprep.subr.bf16.mxu0 0
    %2246 = vmatpush1.bf16.msra.mxu0 %v2144
    %2247 = vmatprep.subr.bf16.mxu0 0
    %2248 = vmatpush1.bf16.msra.mxu0 %v2145
    %2249 = vmatprep.subr.bf16.mxu0 0
    %2250 = vmatpush1.bf16.msra.mxu0 %v2146
    %2251 = vmatprep.subr.bf16.mxu0 0
    %2252 = vmatpush1.bf16.msra.mxu0 %v2147
    %2253 = vmatprep.subr.bf16.mxu0 0
    %2254 = vmatpush1.bf16.msra.mxu0 %v2148
    %2255 = vmatprep.subr.bf16.mxu0 0
    %2256 = vmatpush1.bf16.msra.mxu0 %v2149
    %2257 = vmatprep.subr.bf16.mxu0 0
    %2258 = vmatpush1.bf16.msra.mxu0 %v2150
    %2259 = vmatprep.subr.bf16.mxu0 0
    %2260 = vmatpush1.bf16.msra.mxu0 %v2151
    %2261 = vmatprep.subr.bf16.mxu0 0
    %2262 = vmatpush1.bf16.msra.mxu0 %v2152
    %2263 = vmatprep.subr.bf16.mxu0 0
    %2264 = vmatpush1.bf16.msra.mxu0 %v2153
    %2265 = vmatprep.subr.bf16.mxu0 0
    %2266 = vmatpush1.bf16.msra.mxu0 %v2154
    %2267 = vmatprep.mubr.bf16.mxu0 %v1919
    %2268 = vmatmul.mubr.bf16.gmra.mrb[0].mxu0 %v1918
    %v2269 = vpop.f32.mrb[0].mxu0
    %v2270 = vadd.f32 %v2222, %v2269
    %v2271 = vpop.f32.mrb[0].mxu0
    %v2272 = vpop.f32.mrb[0].mxu0
    %v2273 = vadd.f32 %v2225, %v2272
    %v2274 = vpop.f32.mrb[0].mxu0
    %2275 = vmatprep.mubr.bf16.mxu0 %v1923
    %2276 = vmatmul.mubr.bf16.gmra.mrb[0].mxu0 %v1922
    %v2277 = vpop.f32.mrb[0].mxu0
    %v2278 = vadd.f32 %v2230, %v2277
    %v2279 = vpop.f32.mrb[0].mxu0
    %v2280 = vpop.f32.mrb[0].mxu0
    %v2281 = vpop.f32.mrb[0].mxu0
    %2282 = vdwg.mxu0
    %v2283 = vadd.f32 %v1432, %v2270
    %v2284 = vadd.f32 %v1433, %v2273
    %v2285 = vadd.f32 %v1434, %v2278
    %v2286 = vpack.c.bf16 %v2284, %v2283
    %v2287 = vpack.c.bf16 %v2285, %v2285
    %v2290 = vunpack.c.l.b16 %v2286
    %v2291 = vunpack.c.h.b16 %v2286
    %v2292 = vunpack.c.l.b16 %v2287
    %v2293 = vpack.c.b16 %v2290, %v2290
    %v2294 = vpack.c.b16 %v2291, %v2291
    %v2295 = vpack.c.b16 %v2292, %v2292
    %2299 = vst [vmem:[#allocation29] sm:$0xf] %v2293
    %2300 = vst [vmem:[#allocation29 + $0x4] sm:$0xf] %v2294
    %vm2301 = vcmask 1040384
    %vm2302 = vsmask.f32 256
    %vm2303 = vmand %vm2301, %vm2302
    %v2304 = vld [vmem:[#allocation29 + $0x8] sm:$0x1]
    %v2305 = vsel %vm2303, %v2295, %v2304
    %2306 = vst [vmem:[#allocation29 + $0x8] sm:$0x1] %v2305
    %s2307 = scalar_lea.vmem [#allocation2], 12
    %v2308 = vld [vmem:[%s2307] sm:$0xf]
    %v2309 = vld [vmem:[%s2307 + $0x4] sm:$0xf]
    %v2310 = vld [vmem:[%s2307 + $0x8] sm:$0x1]
    %v2311 = vunpack.c.l.bf16 %v2308
    %v2312 = vunpack.c.l.bf16 %v2309
    %v2313 = vunpack.c.l.bf16 %v2310
    %v2314 = vld [vmem:[#allocation5] sm:$0x1]
    %v2315 = vld [vmem:[#allocation7] sm:$0x1]
    %2316 = vadd.xlane.f32.xlu0 %v2311
    %v2317 = vpop.xlane.xlu0 %2316
    %2318 = vadd.xlane.f32.xlu0 %v2312
    %v2319 = vpop.xlane.xlu0 %2318
    %v2320 = vsel %vm306, %v2313, 0.0
    %2321 = vadd.xlane.f32.xlu0 %v2320
    %v2322 = vpop.xlane.xlu0 %2321
    %v2323 = vmul.f32 %v2317, %v310
    %v2324 = vmul.f32 %v2319, %v310
    %v2325 = vmul.f32 %v2322, %v310
    %v2326 = vsub.f32 %v2311, %v2323
    %v2327 = vsub.f32 %v2312, %v2324
    %v2328 = vsub.f32 %v2313, %v2325
    %v2329 = vmul.f32 %v2326, %v2326
    %v2330 = vmul.f32 %v2327, %v2327
    %v2331 = vmul.f32 %v2328, %v2328
    %2332 = vadd.xlane.f32.xlu0 %v2329
    %v2333 = vpop.xlane.xlu0 %2332
    %2334 = vadd.xlane.f32.xlu0 %v2330
    %v2335 = vpop.xlane.xlu0 %2334
    %v2336 = vsel %vm306, %v2331, 0.0
    %2337 = vadd.xlane.f32.xlu0 %v2336
    %v2338 = vpop.xlane.xlu0 %2337
    %v2339 = vmul.f32 %v2333, %v310
    %v2340 = vmul.f32 %v2335, %v310
    %v2341 = vmul.f32 %v2338, %v310
    %v2342 = vadd.f32 %v2339, 1e-05
    %v2343 = vadd.f32 %v2340, 1e-05
    %v2344 = vadd.f32 %v2341, 1e-05
    %v2345 = vrsqrt.pop %v2342
    %v2346 = vrsqrt.pop %v2343
    %v2347 = vrsqrt.pop %v2344
    %v2348 = vmul.f32 %v2326, %v2345
    %v2349 = vmul.f32 %v2327, %v2346
    %v2350 = vmul.f32 %v2328, %v2347
    %v2352 = vlaneseq
    %v2353 = vshrl.u32 %v2352, 7
    %v2354 = vsub.s32 0, %v2353
    %v2355 = vrot.slane %v2314, %v2354
    %v2357 = vmul.f32 %v2348, %v2355
    %v2358 = vmul.f32 %v2349, %v2355
    %v2359 = vmul.f32 %v2350, %v2355
    %v2361 = vlaneseq
    %v2362 = vshrl.u32 %v2361, 7
    %v2363 = vsub.s32 0, %v2362
    %v2364 = vrot.slane %v2315, %v2363
    %v2366 = vadd.f32 %v2357, %v2364
    %v2367 = vadd.f32 %v2358, %v2364
    %v2368 = vadd.f32 %v2359, %v2364
    %v2369 = vpack.c.bf16 %v2367, %v2366
    %v2370 = vpack.c.bf16 %v2368, %v2368
    %v2371 = vld [vmem:[#allocation8] sm:$0xf]
    %v2372 = vld [vmem:[#allocation8 + $0x4] sm:$0xf]
    %v2373 = vld [vmem:[#allocation8 + $0x8] sm:$0xf]
    %v2374 = vld [vmem:[#allocation8 + $0xc] sm:$0xf]
    %v2375 = vld [vmem:[#allocation8 + $0x10] sm:$0xf]
    %v2376 = vld [vmem:[#allocation8 + $0x14] sm:$0xf]
    %v2377 = vld [vmem:[#allocation8 + $0x18] sm:$0xf]
    %v2378 = vld [vmem:[#allocation8 + $0x1c] sm:$0xf]
    %v2379 = vld [vmem:[#allocation8 + $0x20] sm:$0xf]
    %v2380 = vld [vmem:[#allocation8 + $0x24] sm:$0xf]
    %v2381 = vld [vmem:[#allocation8 + $0x28] sm:$0xf]
    %v2382 = vld [vmem:[#allocation8 + $0x2c] sm:$0xf]
    %v2383 = vld [vmem:[#allocation8 + $0x30] sm:$0xf]
    %v2384 = vld [vmem:[#allocation8 + $0x34] sm:$0xf]
    %v2385 = vld [vmem:[#allocation8 + $0x38] sm:$0xf]
    %v2386 = vld [vmem:[#allocation8 + $0x3c] sm:$0xf]
    %v2387 = vld [vmem:[#allocation10] sm:$0x1]
    %v2389 = vlaneseq
    %v2390 = vshrl.u32 %v2389, 7
    %v2391 = vsub.s32 0, %v2390
    %v2392 = vrot.slane %v2387, %v2391
    %v2410 = vunpack.c.l.b16 %v2371
    %v2411 = vunpack.c.l.b16 %v2372
    %v2412 = vunpack.c.l.b16 %v2373
    %v2413 = vunpack.c.l.b16 %v2374
    %v2414 = vunpack.c.l.b16 %v2375
    %v2415 = vunpack.c.l.b16 %v2376
    %v2416 = vunpack.c.l.b16 %v2377
    %v2417 = vunpack.c.l.b16 %v2378
    %v2418 = vunpack.c.l.b16 %v2379
    %v2419 = vunpack.c.l.b16 %v2380
    %v2420 = vunpack.c.l.b16 %v2381
    %v2421 = vunpack.c.l.b16 %v2382
    %v2422 = vunpack.c.l.b16 %v2383
    %v2423 = vunpack.c.l.b16 %v2384
    %v2424 = vunpack.c.l.b16 %v2385
    %v2425 = vunpack.c.l.b16 %v2386
    %v2426 = vpack.c.b16 %v2411, %v2410
    %v2427 = vpack.c.b16 %v2413, %v2412
    %v2428 = vpack.c.b16 %v2415, %v2414
    %v2429 = vpack.c.b16 %v2417, %v2416
    %v2430 = vpack.c.b16 %v2419, %v2418
    %v2431 = vpack.c.b16 %v2421, %v2420
    %v2432 = vpack.c.b16 %v2423, %v2422
    %v2433 = vpack.c.b16 %v2425, %v2424
    %2442 = vmatprep.subr.bf16.mxu0 0
    %2443 = vmatpush1.bf16.msra.mxu0 %v2426
    %2444 = vmatprep.subr.bf16.mxu0 0
    %2445 = vmatpush1.bf16.msra.mxu0 %v2427
    %2446 = vmatprep.subr.bf16.mxu0 0
    %2447 = vmatpush1.bf16.msra.mxu0 %v2428
    %2448 = vmatprep.subr.bf16.mxu0 0
    %2449 = vmatpush1.bf16.msra.mxu0 %v2429
    %2450 = vmatprep.subr.bf16.mxu0 0
    %2451 = vmatpush1.bf16.msra.mxu0 %v2430
    %2452 = vmatprep.subr.bf16.mxu0 0
    %2453 = vmatpush1.bf16.msra.mxu0 %v2431
    %2454 = vmatprep.subr.bf16.mxu0 0
    %2455 = vmatpush1.bf16.msra.mxu0 %v2432
    %2456 = vmatprep.subr.bf16.mxu0 0
    %2457 = vmatpush1.bf16.msra.mxu0 %v2433
    %2458 = vmatprep.subr.bf16.mxu0 0
    %2459 = vmatpush1.bf16.msra.mxu0 0
    %2460 = vmatprep.subr.bf16.mxu0 0
    %2461 = vmatpush1.bf16.msra.mxu0 0
    %2462 = vmatprep.subr.bf16.mxu0 0
    %2463 = vmatpush1.bf16.msra.mxu0 0
    %2464 = vmatprep.subr.bf16.mxu0 0
    %2465 = vmatpush1.bf16.msra.mxu0 0
    %2466 = vmatprep.subr.bf16.mxu0 0
    %2467 = vmatpush1.bf16.msra.mxu0 0
    %2468 = vmatprep.subr.bf16.mxu0 0
    %2469 = vmatpush1.bf16.msra.mxu0 0
    %2470 = vmatprep.subr.bf16.mxu0 0
    %2471 = vmatpush1.bf16.msra.mxu0 0
    %2472 = vmatprep.subr.bf16.mxu0 0
    %2473 = vmatpush1.bf16.msra.mxu0 0
    %2474 = vmatprep.mubr.bf16.mxu0 0
    %2475 = vmatmul.mubr.bf16.gmra.mrb[0].mxu0 %v2369
    %v2476 = vpop.f32.mrb[0].mxu0
    %v2477 = vadd.f32 %v2392, %v2476
    %v2478 = vpop.f32.mrb[0].mxu0
    %v2479 = vpop.f32.mrb[0].mxu0
    %v2480 = vadd.f32 %v2392, %v2479
    %v2481 = vpop.f32.mrb[0].mxu0
    %2482 = vmatprep.mubr.bf16.mxu0 0
    %2483 = vmatmul.mubr.bf16.gmra.mrb[0].mxu0 %v2370
    %v2484 = vpop.f32.mrb[0].mxu0
    %v2485 = vadd.f32 %v2392, %v2484
    %v2486 = vpop.f32.mrb[0].mxu0
    %v2487 = vpop.f32.mrb[0].mxu0
    %v2488 = vpop.f32.mrb[0].mxu0
    %2489 = vdwg.mxu0
    %v2490 = vld [vmem:[#allocation11] sm:$0xf]
    %v2491 = vld [vmem:[#allocation11 + $0x4] sm:$0xf]
    %v2492 = vld [vmem:[#allocation11 + $0x8] sm:$0xf]
    %v2493 = vld [vmem:[#allocation11 + $0xc] sm:$0xf]
    %v2494 = vld [vmem:[#allocation11 + $0x10] sm:$0xf]
    %v2495 = vld [vmem:[#allocation11 + $0x14] sm:$0xf]
    %v2496 = vld [vmem:[#allocation11 + $0x18] sm:$0xf]
    %v2497 = vld [vmem:[#allocation11 + $0x1c] sm:$0xf]
    %v2498 = vld [vmem:[#allocation11 + $0x20] sm:$0xf]
    %v2499 = vld [vmem:[#allocation11 + $0x24] sm:$0xf]
    %v2500 = vld [vmem:[#allocation11 + $0x28] sm:$0xf]
    %v2501 = vld [vmem:[#allocation11 + $0x2c] sm:$0xf]
    %v2502 = vld [vmem:[#allocation11 + $0x30] sm:$0xf]
    %v2503 = vld [vmem:[#allocation11 + $0x34] sm:$0xf]
    %v2504 = vld [vmem:[#allocation11 + $0x38] sm:$0xf]
    %v2505 = vld [vmem:[#allocation11 + $0x3c] sm:$0xf]
    %v2506 = vld [vmem:[#allocation13] sm:$0x1]
    %v2508 = vlaneseq
    %v2509 = vshrl.u32 %v2508, 7
    %v2510 = vsub.s32 0, %v2509
    %v2511 = vrot.slane %v2506, %v2510
    %v2529 = vunpack.c.l.b16 %v2490
    %v2530 = vunpack.c.l.b16 %v2491
    %v2531 = vunpack.c.l.b16 %v2492
    %v2532 = vunpack.c.l.b16 %v2493
    %v2533 = vunpack.c.l.b16 %v2494
    %v2534 = vunpack.c.l.b16 %v2495
    %v2535 = vunpack.c.l.b16 %v2496
    %v2536 = vunpack.c.l.b16 %v2497
    %v2537 = vunpack.c.l.b16 %v2498
    %v2538 = vunpack.c.l.b16 %v2499
    %v2539 = vunpack.c.l.b16 %v2500
    %v2540 = vunpack.c.l.b16 %v2501
    %v2541 = vunpack.c.l.b16 %v2502
    %v2542 = vunpack.c.l.b16 %v2503
    %v2543 = vunpack.c.l.b16 %v2504
    %v2544 = vunpack.c.l.b16 %v2505
    %v2545 = vpack.c.b16 %v2530, %v2529
    %v2546 = vpack.c.b16 %v2532, %v2531
    %v2547 = vpack.c.b16 %v2534, %v2533
    %v2548 = vpack.c.b16 %v2536, %v2535
    %v2549 = vpack.c.b16 %v2538, %v2537
    %v2550 = vpack.c.b16 %v2540, %v2539
    %v2551 = vpack.c.b16 %v2542, %v2541
    %v2552 = vpack.c.b16 %v2544, %v2543
    %2561 = vmatprep.subr.bf16.mxu0 0
    %2562 = vmatpush1.bf16.msra.mxu0 %v2545
    %2563 = vmatprep.subr.bf16.mxu0 0
    %2564 = vmatpush1.bf16.msra.mxu0 %v2546
    %2565 = vmatprep.subr.bf16.mxu0 0
    %2566 = vmatpush1.bf16.msra.mxu0 %v2547
    %2567 = vmatprep.subr.bf16.mxu0 0
    %2568 = vmatpush1.bf16.msra.mxu0 %v2548
    %2569 = vmatprep.subr.bf16.mxu0 0
    %2570 = vmatpush1.bf16.msra.mxu0 %v2549
    %2571 = vmatprep.subr.bf16.mxu0 0
    %2572 = vmatpush1.bf16.msra.mxu0 %v2550
    %2573 = vmatprep.subr.bf16.mxu0 0
    %2574 = vmatpush1.bf16.msra.mxu0 %v2551
    %2575 = vmatprep.subr.bf16.mxu0 0
    %2576 = vmatpush1.bf16.msra.mxu0 %v2552
    %2577 = vmatprep.subr.bf16.mxu0 0
    %2578 = vmatpush1.bf16.msra.mxu0 0
    %2579 = vmatprep.subr.bf16.mxu0 0
    %2580 = vmatpush1.bf16.msra.mxu0 0
    %2581 = vmatprep.subr.bf16.mxu0 0
    %2582 = vmatpush1.bf16.msra.mxu0 0
    %2583 = vmatprep.subr.bf16.mxu0 0
    %2584 = vmatpush1.bf16.msra.mxu0 0
    %2585 = vmatprep.subr.bf16.mxu0 0
    %2586 = vmatpush1.bf16.msra.mxu0 0
    %2587 = vmatprep.subr.bf16.mxu0 0
    %2588 = vmatpush1.bf16.msra.mxu0 0
    %2589 = vmatprep.subr.bf16.mxu0 0
    %2590 = vmatpush1.bf16.msra.mxu0 0
    %2591 = vmatprep.subr.bf16.mxu0 0
    %2592 = vmatpush1.bf16.msra.mxu0 0
    %2593 = vmatprep.mubr.bf16.mxu0 0
    %2594 = vmatmul.mubr.bf16.gmra.mrb[0].mxu0 %v2369
    %v2595 = vpop.f32.mrb[0].mxu0
    %v2596 = vadd.f32 %v2511, %v2595
    %v2597 = vpop.f32.mrb[0].mxu0
    %v2598 = vpop.f32.mrb[0].mxu0
    %v2599 = vadd.f32 %v2511, %v2598
    %v2600 = vpop.f32.mrb[0].mxu0
    %2601 = vmatprep.mubr.bf16.mxu0 0
    %2602 = vmatmul.mubr.bf16.gmra.mrb[0].mxu0 %v2370
    %v2603 = vpop.f32.mrb[0].mxu0
    %v2604 = vadd.f32 %v2511, %v2603
    %v2605 = vpop.f32.mrb[0].mxu0
    %v2606 = vpop.f32.mrb[0].mxu0
    %v2607 = vpop.f32.mrb[0].mxu0
    %2608 = vdwg.mxu0
    %v2609 = vld [vmem:[#allocation14] sm:$0xf]
    %v2610 = vld [vmem:[#allocation14 + $0x4] sm:$0xf]
    %v2611 = vld [vmem:[#allocation14 + $0x8] sm:$0xf]
    %v2612 = vld [vmem:[#allocation14 + $0xc] sm:$0xf]
    %v2613 = vld [vmem:[#allocation14 + $0x10] sm:$0xf]
    %v2614 = vld [vmem:[#allocation14 + $0x14] sm:$0xf]
    %v2615 = vld [vmem:[#allocation14 + $0x18] sm:$0xf]
    %v2616 = vld [vmem:[#allocation14 + $0x1c] sm:$0xf]
    %v2617 = vld [vmem:[#allocation14 + $0x20] sm:$0xf]
    %v2618 = vld [vmem:[#allocation14 + $0x24] sm:$0xf]
    %v2619 = vld [vmem:[#allocation14 + $0x28] sm:$0xf]
    %v2620 = vld [vmem:[#allocation14 + $0x2c] sm:$0xf]
    %v2621 = vld [vmem:[#allocation14 + $0x30] sm:$0xf]
    %v2622 = vld [vmem:[#allocation14 + $0x34] sm:$0xf]
    %v2623 = vld [vmem:[#allocation14 + $0x38] sm:$0xf]
    %v2624 = vld [vmem:[#allocation14 + $0x3c] sm:$0xf]
    %v2625 = vld [vmem:[#allocation16] sm:$0x1]
    %v2627 = vlaneseq
    %v2628 = vshrl.u32 %v2627, 7
    %v2629 = vsub.s32 0, %v2628
    %v2630 = vrot.slane %v2625, %v2629
    %v2648 = vunpack.c.l.b16 %v2609
    %v2649 = vunpack.c.l.b16 %v2610
    %v2650 = vunpack.c.l.b16 %v2611
    %v2651 = vunpack.c.l.b16 %v2612
    %v2652 = vunpack.c.l.b16 %v2613
    %v2653 = vunpack.c.l.b16 %v2614
    %v2654 = vunpack.c.l.b16 %v2615
    %v2655 = vunpack.c.l.b16 %v2616
    %v2656 = vunpack.c.l.b16 %v2617
    %v2657 = vunpack.c.l.b16 %v2618
    %v2658 = vunpack.c.l.b16 %v2619
    %v2659 = vunpack.c.l.b16 %v2620
    %v2660 = vunpack.c.l.b16 %v2621
    %v2661 = vunpack.c.l.b16 %v2622
    %v2662 = vunpack.c.l.b16 %v2623
    %v2663 = vunpack.c.l.b16 %v2624
    %v2664 = vpack.c.b16 %v2649, %v2648
    %v2665 = vpack.c.b16 %v2651, %v2650
    %v2666 = vpack.c.b16 %v2653, %v2652
    %v2667 = vpack.c.b16 %v2655, %v2654
    %v2668 = vpack.c.b16 %v2657, %v2656
    %v2669 = vpack.c.b16 %v2659, %v2658
    %v2670 = vpack.c.b16 %v2661, %v2660
    %v2671 = vpack.c.b16 %v2663, %v2662
    %2680 = vmatprep.subr.bf16.mxu0 0
    %2681 = vmatpush1.bf16.msra.mxu0 %v2664
    %2682 = vmatprep.subr.bf16.mxu0 0
    %2683 = vmatpush1.bf16.msra.mxu0 %v2665
    %2684 = vmatprep.subr.bf16.mxu0 0
    %2685 = vmatpush1.bf16.msra.mxu0 %v2666
    %2686 = vmatprep.subr.bf16.mxu0 0
    %2687 = vmatpush1.bf16.msra.mxu0 %v2667
    %2688 = vmatprep.subr.bf16.mxu0 0
    %2689 = vmatpush1.bf16.msra.mxu0 %v2668
    %2690 = vmatprep.subr.bf16.mxu0 0
    %2691 = vmatpush1.bf16.msra.mxu0 %v2669
    %2692 = vmatprep.subr.bf16.mxu0 0
    %2693 = vmatpush1.bf16.msra.mxu0 %v2670
    %2694 = vmatprep.subr.bf16.mxu0 0
    %2695 = vmatpush1.bf16.msra.mxu0 %v2671
    %2696 = vmatprep.subr.bf16.mxu0 0
    %2697 = vmatpush1.bf16.msra.mxu0 0
    %2698 = vmatprep.subr.bf16.mxu0 0
    %2699 = vmatpush1.bf16.msra.mxu0 0
    %2700 = vmatprep.subr.bf16.mxu0 0
    %2701 = vmatpush1.bf16.msra.mxu0 0
    %2702 = vmatprep.subr.bf16.mxu0 0
    %2703 = vmatpush1.bf16.msra.mxu0 0
    %2704 = vmatprep.subr.bf16.mxu0 0
    %2705 = vmatpush1.bf16.msra.mxu0 0
    %2706 = vmatprep.subr.bf16.mxu0 0
    %2707 = vmatpush1.bf16.msra.mxu0 0
    %2708 = vmatprep.subr.bf16.mxu0 0
    %2709 = vmatpush1.bf16.msra.mxu0 0
    %2710 = vmatprep.subr.bf16.mxu0 0
    %2711 = vmatpush1.bf16.msra.mxu0 0
    %2712 = vmatprep.mubr.bf16.mxu0 0
    %2713 = vmatmul.mubr.bf16.gmra.mrb[0].mxu0 %v2369
    %v2714 = vpop.f32.mrb[0].mxu0
    %v2715 = vadd.f32 %v2630, %v2714
    %v2716 = vpop.f32.mrb[0].mxu0
    %v2717 = vpop.f32.mrb[0].mxu0
    %v2718 = vadd.f32 %v2630, %v2717
    %v2719 = vpop.f32.mrb[0].mxu0
    %2720 = vmatprep.mubr.bf16.mxu0 0
    %2721 = vmatmul.mubr.bf16.gmra.mrb[0].mxu0 %v2370
    %v2722 = vpop.f32.mrb[0].mxu0
    %v2723 = vadd.f32 %v2630, %v2722
    %v2724 = vpop.f32.mrb[0].mxu0
    %v2725 = vpop.f32.mrb[0].mxu0
    %v2726 = vpop.f32.mrb[0].mxu0
    %2727 = vdwg.mxu0
    %v2728 = vmul.f32 %v2477, 0.17677669
    %v2729 = vmul.f32 %v2480, 0.17677669
    %v2730 = vmul.f32 %v2485, 0.17677669
    %v2731 = vpack.c.bf16 %v2729, %v2728
    %v2732 = vpack.c.bf16 %v2730, %v2730
    %v2733 = vpack.c.bf16 %v2599, %v2596
    %v2734 = vpack.c.bf16 %v2604, %v2604
    %v2735 = vpack.c.bf16 %v2718, %v2715
    %v2736 = vpack.c.bf16 %v2723, %v2723
    %v2737 = vmul.bf16 %v2731, %v275
    %v2738 = vmul.bf16 %v2732, %v275
    %2739 = vmatprep.subr.bf16.mxu0 0
    %2740 = vmatpush1.bf16.xpose.msra.mxu0 %v2733
    %2741 = vmatprep.subr.bf16.mxu0 0
    %2742 = vmatpush1.bf16.xpose.msra.mxu0 %v2734
    %2743 = vmatprep.subr.bf16.mxu0 0
    %2744 = vmatpush1.bf16.xpose.msra.mxu0 0
    %2745 = vmatprep.subr.bf16.mxu0 0
    %2746 = vmatpush1.bf16.xpose.msra.mxu0 0
    %2747 = vmatprep.subr.bf16.mxu0 0
    %2748 = vmatpush1.bf16.xpose.msra.mxu0 0
    %2749 = vmatprep.subr.bf16.mxu0 0
    %2750 = vmatpush1.bf16.xpose.msra.mxu0 0
    %2751 = vmatprep.subr.bf16.mxu0 0
    %2752 = vmatpush1.bf16.xpose.msra.mxu0 0
    %2753 = vmatprep.subr.bf16.mxu0 0
    %2754 = vmatpush1.bf16.xpose.msra.mxu0 0
    %2755 = vmatprep.subr.bf16.mxu0 0
    %2756 = vmatpush1.bf16.xpose.msra.mxu0 0
    %2757 = vmatprep.subr.bf16.mxu0 0
    %2758 = vmatpush1.bf16.xpose.msra.mxu0 0
    %2759 = vmatprep.subr.bf16.mxu0 0
    %2760 = vmatpush1.bf16.xpose.msra.mxu0 0
    %2761 = vmatprep.subr.bf16.mxu0 0
    %2762 = vmatpush1.bf16.xpose.msra.mxu0 0
    %2763 = vmatprep.subr.bf16.mxu0 0
    %2764 = vmatpush1.bf16.xpose.msra.mxu0 0
    %2765 = vmatprep.subr.bf16.mxu0 0
    %2766 = vmatpush1.bf16.xpose.msra.mxu0 0
    %2767 = vmatprep.subr.bf16.mxu0 0
    %2768 = vmatpush1.bf16.xpose.msra.mxu0 0
    %2769 = vmatprep.subr.bf16.mxu0 0
    %2770 = vmatpush1.bf16.xpose.msra.mxu0 0
    %2771 = vmatprep.mubr.bf16.mxu0 0
    %2772 = vmatmul.mubr.bf16.gmra.mrb[0].mxu0 %v2737
    %v2773 = vpop.f32.mrb[0].mxu0
    %v2774 = vadd.f32 0.0, %v2773
    %v2775 = vpop.f32.mrb[0].mxu0
    %v2776 = vpop.f32.mrb[0].mxu0
    %v2777 = vadd.f32 0.0, %v2776
    %v2778 = vpop.f32.mrb[0].mxu0
    %2779 = vmatprep.mubr.bf16.mxu0 0
    %2780 = vmatmul.mubr.bf16.gmra.mrb[0].mxu0 %v2738
    %v2781 = vpop.f32.mrb[0].mxu0
    %v2782 = vadd.f32 0.0, %v2781
    %v2783 = vpop.f32.mrb[0].mxu0
    %v2784 = vpop.f32.mrb[0].mxu0
    %v2785 = vpop.f32.mrb[0].mxu0
    %2786 = vdwg.mxu0
    %v2787 = vsel %vm775, %v2774, -inf
    %2788 = vmax.xlane.f32.xlu0 %v2787
    %v2789 = vpop.xlane.xlu0 %2788
    %v2790 = vsel %vm775, %v2777, -inf
    %2791 = vmax.xlane.f32.xlu0 %v2790
    %v2792 = vpop.xlane.xlu0 %2791
    %v2793 = vsel %vm782, %v2782, -inf
    %2794 = vmax.xlane.f32.xlu0 %v2793
    %v2795 = vpop.xlane.xlu0 %2794
    %v2796 = vsub.f32 %v2774, %v2789
    %v2797 = vsub.f32 %v2777, %v2792
    %v2798 = vsub.f32 %v2782, %v2795
    %v2799 = vmul.f32 %v2796, 1.442695
    %v2800 = vpow.pop %v2799
    %v2801 = vmul.f32 %v2797, 1.442695
    %v2802 = vpow.pop %v2801
    %v2803 = vmul.f32 %v2798, 1.442695
    %v2804 = vpow.pop %v2803
    %v2805 = vsel %vm775, %v2800, 0.0
    %2806 = vadd.xlane.f32.xlu0 %v2805
    %v2807 = vpop.xlane.xlu0 %2806
    %v2808 = vsel %vm775, %v2802, 0.0
    %2809 = vadd.xlane.f32.xlu0 %v2808
    %v2810 = vpop.xlane.xlu0 %2809
    %v2811 = vsel %vm782, %v2804, 0.0
    %2812 = vadd.xlane.f32.xlu0 %v2811
    %v2813 = vpop.xlane.xlu0 %2812
    %v2814 = vrcp.pop %v2807
    %v2815 = vrcp.pop %v2810
    %v2816 = vrcp.pop %v2813
    %v2817 = vmul.f32 %v2800, %v2814
    %v2818 = vmul.f32 %v2802, %v2815
    %v2819 = vmul.f32 %v2804, %v2816
    %v2820 = vpack.c.bf16 %v2818, %v2817
    %v2821 = vpack.c.bf16 %v2819, %v2819
    %v2822 = vmul.bf16 %v2735, %v275
    %v2823 = vmul.bf16 %v2736, %v275
    %v2824 = vmul.bf16 %v2731, %v281
    %v2825 = vmul.bf16 %v2732, %v281
    %2826 = vmatprep.subr.bf16.mxu0 0
    %2827 = vmatpush1.bf16.xpose.msra.mxu0 %v2733
    %2828 = vmatprep.subr.bf16.mxu0 0
    %2829 = vmatpush1.bf16.xpose.msra.mxu0 %v2734
    %2830 = vmatprep.subr.bf16.mxu0 0
    %2831 = vmatpush1.bf16.xpose.msra.mxu0 0
    %2832 = vmatprep.subr.bf16.mxu0 0
    %2833 = vmatpush1.bf16.xpose.msra.mxu0 0
    %2834 = vmatprep.subr.bf16.mxu0 0
    %2835 = vmatpush1.bf16.xpose.msra.mxu0 0
    %2836 = vmatprep.subr.bf16.mxu0 0
    %2837 = vmatpush1.bf16.xpose.msra.mxu0 0
    %2838 = vmatprep.subr.bf16.mxu0 0
    %2839 = vmatpush1.bf16.xpose.msra.mxu0 0
    %2840 = vmatprep.subr.bf16.mxu0 0
    %2841 = vmatpush1.bf16.xpose.msra.mxu0 0
    %2842 = vmatprep.subr.bf16.mxu0 0
    %2843 = vmatpush1.bf16.xpose.msra.mxu0 0
    %2844 = vmatprep.subr.bf16.mxu0 0
    %2845 = vmatpush1.bf16.xpose.msra.mxu0 0
    %2846 = vmatprep.subr.bf16.mxu0 0
    %2847 = vmatpush1.bf16.xpose.msra.mxu0 0
    %2848 = vmatprep.subr.bf16.mxu0 0
    %2849 = vmatpush1.bf16.xpose.msra.mxu0 0
    %2850 = vmatprep.subr.bf16.mxu0 0
    %2851 = vmatpush1.bf16.xpose.msra.mxu0 0
    %2852 = vmatprep.subr.bf16.mxu0 0
    %2853 = vmatpush1.bf16.xpose.msra.mxu0 0
    %2854 = vmatprep.subr.bf16.mxu0 0
    %2855 = vmatpush1.bf16.xpose.msra.mxu0 0
    %2856 = vmatprep.subr.bf16.mxu0 0
    %2857 = vmatpush1.bf16.xpose.msra.mxu0 0
    %2858 = vmatprep.mubr.bf16.mxu0 0
    %2859 = vmatmul.mubr.bf16.gmra.mrb[0].mxu0 %v2824
    %v2860 = vpop.f32.mrb[0].mxu0
    %v2861 = vadd.f32 0.0, %v2860
    %v2862 = vpop.f32.mrb[0].mxu0
    %v2863 = vpop.f32.mrb[0].mxu0
    %v2864 = vadd.f32 0.0, %v2863
    %v2865 = vpop.f32.mrb[0].mxu0
    %2866 = vmatprep.mubr.bf16.mxu0 0
    %2867 = vmatmul.mubr.bf16.gmra.mrb[0].mxu0 %v2825
    %v2868 = vpop.f32.mrb[0].mxu0
    %v2869 = vadd.f32 0.0, %v2868
    %v2870 = vpop.f32.mrb[0].mxu0
    %v2871 = vpop.f32.mrb[0].mxu0
    %v2872 = vpop.f32.mrb[0].mxu0
    %2873 = vdwg.mxu0
    %v2874 = vsel %vm775, %v2861, -inf
    %2875 = vmax.xlane.f32.xlu0 %v2874
    %v2876 = vpop.xlane.xlu0 %2875
    %v2877 = vsel %vm775, %v2864, -inf
    %2878 = vmax.xlane.f32.xlu0 %v2877
    %v2879 = vpop.xlane.xlu0 %2878
    %v2880 = vsel %vm782, %v2869, -inf
    %2881 = vmax.xlane.f32.xlu0 %v2880
    %v2882 = vpop.xlane.xlu0 %2881
    %v2883 = vsub.f32 %v2861, %v2876
    %v2884 = vsub.f32 %v2864, %v2879
    %v2885 = vsub.f32 %v2869, %v2882
    %v2886 = vmul.f32 %v2883, 1.442695
    %v2887 = vpow.pop %v2886
    %v2888 = vmul.f32 %v2884, 1.442695
    %v2889 = vpow.pop %v2888
    %v2890 = vmul.f32 %v2885, 1.442695
    %v2891 = vpow.pop %v2890
    %v2892 = vsel %vm775, %v2887, 0.0
    %2893 = vadd.xlane.f32.xlu0 %v2892
    %v2894 = vpop.xlane.xlu0 %2893
    %v2895 = vsel %vm775, %v2889, 0.0
    %2896 = vadd.xlane.f32.xlu0 %v2895
    %v2897 = vpop.xlane.xlu0 %2896
    %v2898 = vsel %vm782, %v2891, 0.0
    %2899 = vadd.xlane.f32.xlu0 %v2898
    %v2900 = vpop.xlane.xlu0 %2899
    %v2901 = vrcp.pop %v2894
    %v2902 = vrcp.pop %v2897
    %v2903 = vrcp.pop %v2900
    %v2904 = vmul.f32 %v2887, %v2901
    %v2905 = vmul.f32 %v2889, %v2902
    %v2906 = vmul.f32 %v2891, %v2903
    %v2907 = vpack.c.bf16 %v2905, %v2904
    %v2908 = vpack.c.bf16 %v2906, %v2906
    %v2909 = vmul.bf16 %v2735, %v281
    %v2910 = vmul.bf16 %v2736, %v281
    %v2912 = vsel %vm775, %v2907, 0
    %v2915 = vsel %vm775, %v2908, 0
    %v2918 = vand.u32 %v2910, %v908
    %2920 = vmatprep.subr.bf16.mxu0 0
    %2921 = vmatpush1.bf16.msra.mxu0 %v2909
    %2922 = vmatprep.subr.bf16.mxu0 0
    %2923 = vmatpush1.bf16.msra.mxu0 %v2918
    %2924 = vmatprep.subr.bf16.mxu0 0
    %2925 = vmatpush1.bf16.msra.mxu0 0
    %2926 = vmatprep.subr.bf16.mxu0 0
    %2927 = vmatpush1.bf16.msra.mxu0 0
    %2928 = vmatprep.subr.bf16.mxu0 0
    %2929 = vmatpush1.bf16.msra.mxu0 0
    %2930 = vmatprep.subr.bf16.mxu0 0
    %2931 = vmatpush1.bf16.msra.mxu0 0
    %2932 = vmatprep.subr.bf16.mxu0 0
    %2933 = vmatpush1.bf16.msra.mxu0 0
    %2934 = vmatprep.subr.bf16.mxu0 0
    %2935 = vmatpush1.bf16.msra.mxu0 0
    %2936 = vmatprep.subr.bf16.mxu0 0
    %2937 = vmatpush1.bf16.msra.mxu0 0
    %2938 = vmatprep.subr.bf16.mxu0 0
    %2939 = vmatpush1.bf16.msra.mxu0 0
    %2940 = vmatprep.subr.bf16.mxu0 0
    %2941 = vmatpush1.bf16.msra.mxu0 0
    %2942 = vmatprep.subr.bf16.mxu0 0
    %2943 = vmatpush1.bf16.msra.mxu0 0
    %2944 = vmatprep.subr.bf16.mxu0 0
    %2945 = vmatpush1.bf16.msra.mxu0 0
    %2946 = vmatprep.subr.bf16.mxu0 0
    %2947 = vmatpush1.bf16.msra.mxu0 0
    %2948 = vmatprep.subr.bf16.mxu0 0
    %2949 = vmatpush1.bf16.msra.mxu0 0
    %2950 = vmatprep.subr.bf16.mxu0 0
    %2951 = vmatpush1.bf16.msra.mxu0 0
    %2952 = vmatprep.mubr.bf16.mxu0 0
    %2953 = vmatmul.mubr.bf16.gmra.mrb[0].mxu0 %v2912
    %v2954 = vpop.f32.mrb[0].mxu0
    %v2955 = vadd.f32 0.0, %v2954
    %v2956 = vpop.f32.mrb[0].mxu0
    %v2957 = vpop.f32.mrb[0].mxu0
    %v2958 = vadd.f32 0.0, %v2957
    %v2959 = vpop.f32.mrb[0].mxu0
    %2960 = vmatprep.mubr.bf16.mxu0 0
    %2961 = vmatmul.mubr.bf16.gmra.mrb[0].mxu0 %v2915
    %v2962 = vpop.f32.mrb[0].mxu0
    %v2963 = vadd.f32 0.0, %v2962
    %v2964 = vpop.f32.mrb[0].mxu0
    %v2965 = vpop.f32.mrb[0].mxu0
    %v2966 = vpop.f32.mrb[0].mxu0
    %2967 = vdwg.mxu0
    %v2969 = vsel %vm775, %v2820, 0
    %v2972 = vsel %vm775, %v2821, 0
    %v2975 = vand.u32 %v2823, %v908
    %2977 = vmatprep.subr.bf16.mxu0 0
    %2978 = vmatpush1.bf16.msra.mxu0 %v2822
    %2979 = vmatprep.subr.bf16.mxu0 0
    %2980 = vmatpush1.bf16.msra.mxu0 %v2975
    %2981 = vmatprep.subr.bf16.mxu0 0
    %2982 = vmatpush1.bf16.msra.mxu0 0
    %2983 = vmatprep.subr.bf16.mxu0 0
    %2984 = vmatpush1.bf16.msra.mxu0 0
    %2985 = vmatprep.subr.bf16.mxu0 0
    %2986 = vmatpush1.bf16.msra.mxu0 0
    %2987 = vmatprep.subr.bf16.mxu0 0
    %2988 = vmatpush1.bf16.msra.mxu0 0
    %2989 = vmatprep.subr.bf16.mxu0 0
    %2990 = vmatpush1.bf16.msra.mxu0 0
    %2991 = vmatprep.subr.bf16.mxu0 0
    %2992 = vmatpush1.bf16.msra.mxu0 0
    %2993 = vmatprep.subr.bf16.mxu0 0
    %2994 = vmatpush1.bf16.msra.mxu0 0
    %2995 = vmatprep.subr.bf16.mxu0 0
    %2996 = vmatpush1.bf16.msra.mxu0 0
    %2997 = vmatprep.subr.bf16.mxu0 0
    %2998 = vmatpush1.bf16.msra.mxu0 0
    %2999 = vmatprep.subr.bf16.mxu0 0
    %3000 = vmatpush1.bf16.msra.mxu0 0
    %3001 = vmatprep.subr.bf16.mxu0 0
    %3002 = vmatpush1.bf16.msra.mxu0 0
    %3003 = vmatprep.subr.bf16.mxu0 0
    %3004 = vmatpush1.bf16.msra.mxu0 0
    %3005 = vmatprep.subr.bf16.mxu0 0
    %3006 = vmatpush1.bf16.msra.mxu0 0
    %3007 = vmatprep.subr.bf16.mxu0 0
    %3008 = vmatpush1.bf16.msra.mxu0 0
    %3009 = vmatprep.mubr.bf16.mxu0 0
    %3010 = vmatmul.mubr.bf16.gmra.mrb[0].mxu0 %v2969
    %v3011 = vpop.f32.mrb[0].mxu0
    %v3012 = vadd.f32 %v2955, %v3011
    %v3013 = vpop.f32.mrb[0].mxu0
    %v3014 = vpop.f32.mrb[0].mxu0
    %v3015 = vadd.f32 %v2958, %v3014
    %v3016 = vpop.f32.mrb[0].mxu0
    %3017 = vmatprep.mubr.bf16.mxu0 0
    %3018 = vmatmul.mubr.bf16.gmra.mrb[0].mxu0 %v2972
    %v3019 = vpop.f32.mrb[0].mxu0
    %v3020 = vadd.f32 %v2963, %v3019
    %v3021 = vpop.f32.mrb[0].mxu0
    %v3022 = vpop.f32.mrb[0].mxu0
    %v3023 = vpop.f32.mrb[0].mxu0
    %3024 = vdwg.mxu0
    %v3025 = vmul.bf16 %v2731, %v287
    %v3026 = vmul.bf16 %v2732, %v287
    %3027 = vmatprep.subr.bf16.mxu0 0
    %3028 = vmatpush1.bf16.xpose.msra.mxu0 %v2733
    %3029 = vmatprep.subr.bf16.mxu0 0
    %3030 = vmatpush1.bf16.xpose.msra.mxu0 %v2734
    %3031 = vmatprep.subr.bf16.mxu0 0
    %3032 = vmatpush1.bf16.xpose.msra.mxu0 0
    %3033 = vmatprep.subr.bf16.mxu0 0
    %3034 = vmatpush1.bf16.xpose.msra.mxu0 0
    %3035 = vmatprep.subr.bf16.mxu0 0
    %3036 = vmatpush1.bf16.xpose.msra.mxu0 0
    %3037 = vmatprep.subr.bf16.mxu0 0
    %3038 = vmatpush1.bf16.xpose.msra.mxu0 0
    %3039 = vmatprep.subr.bf16.mxu0 0
    %3040 = vmatpush1.bf16.xpose.msra.mxu0 0
    %3041 = vmatprep.subr.bf16.mxu0 0
    %3042 = vmatpush1.bf16.xpose.msra.mxu0 0
    %3043 = vmatprep.subr.bf16.mxu0 0
    %3044 = vmatpush1.bf16.xpose.msra.mxu0 0
    %3045 = vmatprep.subr.bf16.mxu0 0
    %3046 = vmatpush1.bf16.xpose.msra.mxu0 0
    %3047 = vmatprep.subr.bf16.mxu0 0
    %3048 = vmatpush1.bf16.xpose.msra.mxu0 0
    %3049 = vmatprep.subr.bf16.mxu0 0
    %3050 = vmatpush1.bf16.xpose.msra.mxu0 0
    %3051 = vmatprep.subr.bf16.mxu0 0
    %3052 = vmatpush1.bf16.xpose.msra.mxu0 0
    %3053 = vmatprep.subr.bf16.mxu0 0
    %3054 = vmatpush1.bf16.xpose.msra.mxu0 0
    %3055 = vmatprep.subr.bf16.mxu0 0
    %3056 = vmatpush1.bf16.xpose.msra.mxu0 0
    %3057 = vmatprep.subr.bf16.mxu0 0
    %3058 = vmatpush1.bf16.xpose.msra.mxu0 0
    %3059 = vmatprep.mubr.bf16.mxu0 0
    %3060 = vmatmul.mubr.bf16.gmra.mrb[0].mxu0 %v3025
    %v3061 = vpop.f32.mrb[0].mxu0
    %v3062 = vadd.f32 0.0, %v3061
    %v3063 = vpop.f32.mrb[0].mxu0
    %v3064 = vpop.f32.mrb[0].mxu0
    %v3065 = vadd.f32 0.0, %v3064
    %v3066 = vpop.f32.mrb[0].mxu0
    %3067 = vmatprep.mubr.bf16.mxu0 0
    %3068 = vmatmul.mubr.bf16.gmra.mrb[0].mxu0 %v3026
    %v3069 = vpop.f32.mrb[0].mxu0
    %v3070 = vadd.f32 0.0, %v3069
    %v3071 = vpop.f32.mrb[0].mxu0
    %v3072 = vpop.f32.mrb[0].mxu0
    %v3073 = vpop.f32.mrb[0].mxu0
    %3074 = vdwg.mxu0
    %v3075 = vsel %vm775, %v3062, -inf
    %3076 = vmax.xlane.f32.xlu0 %v3075
    %v3077 = vpop.xlane.xlu0 %3076
    %v3078 = vsel %vm775, %v3065, -inf
    %3079 = vmax.xlane.f32.xlu0 %v3078
    %v3080 = vpop.xlane.xlu0 %3079
    %v3081 = vsel %vm782, %v3070, -inf
    %3082 = vmax.xlane.f32.xlu0 %v3081
    %v3083 = vpop.xlane.xlu0 %3082
    %v3084 = vsub.f32 %v3062, %v3077
    %v3085 = vsub.f32 %v3065, %v3080
    %v3086 = vsub.f32 %v3070, %v3083
    %v3087 = vmul.f32 %v3084, 1.442695
    %v3088 = vpow.pop %v3087
    %v3089 = vmul.f32 %v3085, 1.442695
    %v3090 = vpow.pop %v3089
    %v3091 = vmul.f32 %v3086, 1.442695
    %v3092 = vpow.pop %v3091
    %v3093 = vsel %vm775, %v3088, 0.0
    %3094 = vadd.xlane.f32.xlu0 %v3093
    %v3095 = vpop.xlane.xlu0 %3094
    %v3096 = vsel %vm775, %v3090, 0.0
    %3097 = vadd.xlane.f32.xlu0 %v3096
    %v3098 = vpop.xlane.xlu0 %3097
    %v3099 = vsel %vm782, %v3092, 0.0
    %3100 = vadd.xlane.f32.xlu0 %v3099
    %v3101 = vpop.xlane.xlu0 %3100
    %v3102 = vrcp.pop %v3095
    %v3103 = vrcp.pop %v3098
    %v3104 = vrcp.pop %v3101
    %v3105 = vmul.f32 %v3088, %v3102
    %v3106 = vmul.f32 %v3090, %v3103
    %v3107 = vmul.f32 %v3092, %v3104
    %v3108 = vpack.c.bf16 %v3106, %v3105
    %v3109 = vpack.c.bf16 %v3107, %v3107
    %v3110 = vmul.bf16 %v2735, %v287
    %v3111 = vmul.bf16 %v2736, %v287
    %v3113 = vsel %vm775, %v3108, 0
    %v3116 = vsel %vm775, %v3109, 0
    %v3119 = vand.u32 %v3111, %v908
    %3121 = vmatprep.subr.bf16.mxu0 0
    %3122 = vmatpush1.bf16.msra.mxu0 %v3110
    %3123 = vmatprep.subr.bf16.mxu0 0
    %3124 = vmatpush1.bf16.msra.mxu0 %v3119
    %3125 = vmatprep.subr.bf16.mxu0 0
    %3126 = vmatpush1.bf16.msra.mxu0 0
    %3127 = vmatprep.subr.bf16.mxu0 0
    %3128 = vmatpush1.bf16.msra.mxu0 0
    %3129 = vmatprep.subr.bf16.mxu0 0
    %3130 = vmatpush1.bf16.msra.mxu0 0
    %3131 = vmatprep.subr.bf16.mxu0 0
    %3132 = vmatpush1.bf16.msra.mxu0 0
    %3133 = vmatprep.subr.bf16.mxu0 0
    %3134 = vmatpush1.bf16.msra.mxu0 0
    %3135 = vmatprep.subr.bf16.mxu0 0
    %3136 = vmatpush1.bf16.msra.mxu0 0
    %3137 = vmatprep.subr.bf16.mxu0 0
    %3138 = vmatpush1.bf16.msra.mxu0 0
    %3139 = vmatprep.subr.bf16.mxu0 0
    %3140 = vmatpush1.bf16.msra.mxu0 0
    %3141 = vmatprep.subr.bf16.mxu0 0
    %3142 = vmatpush1.bf16.msra.mxu0 0
    %3143 = vmatprep.subr.bf16.mxu0 0
    %3144 = vmatpush1.bf16.msra.mxu0 0
    %3145 = vmatprep.subr.bf16.mxu0 0
    %3146 = vmatpush1.bf16.msra.mxu0 0
    %3147 = vmatprep.subr.bf16.mxu0 0
    %3148 = vmatpush1.bf16.msra.mxu0 0
    %3149 = vmatprep.subr.bf16.mxu0 0
    %3150 = vmatpush1.bf16.msra.mxu0 0
    %3151 = vmatprep.subr.bf16.mxu0 0
    %3152 = vmatpush1.bf16.msra.mxu0 0
    %3153 = vmatprep.mubr.bf16.mxu0 0
    %3154 = vmatmul.mubr.bf16.gmra.mrb[0].mxu0 %v3113
    %v3155 = vpop.f32.mrb[0].mxu0
    %v3156 = vadd.f32 0.0, %v3155
    %v3157 = vpop.f32.mrb[0].mxu0
    %v3158 = vpop.f32.mrb[0].mxu0
    %v3159 = vadd.f32 0.0, %v3158
    %v3160 = vpop.f32.mrb[0].mxu0
    %3161 = vmatprep.mubr.bf16.mxu0 0
    %3162 = vmatmul.mubr.bf16.gmra.mrb[0].mxu0 %v3116
    %v3163 = vpop.f32.mrb[0].mxu0
    %v3164 = vadd.f32 0.0, %v3163
    %v3165 = vpop.f32.mrb[0].mxu0
    %v3166 = vpop.f32.mrb[0].mxu0
    %v3167 = vpop.f32.mrb[0].mxu0
    %3168 = vdwg.mxu0
    %v3169 = vadd.f32 %v3012, %v3156
    %v3170 = vadd.f32 %v3015, %v3159
    %v3171 = vadd.f32 %v3020, %v3164
    %v3172 = vmul.bf16 %v2731, %v293
    %v3173 = vmul.bf16 %v2732, %v293
    %3174 = vmatprep.subr.bf16.mxu0 0
    %3175 = vmatpush1.bf16.xpose.msra.mxu0 %v2733
    %3176 = vmatprep.subr.bf16.mxu0 0
    %3177 = vmatpush1.bf16.xpose.msra.mxu0 %v2734
    %3178 = vmatprep.subr.bf16.mxu0 0
    %3179 = vmatpush1.bf16.xpose.msra.mxu0 0
    %3180 = vmatprep.subr.bf16.mxu0 0
    %3181 = vmatpush1.bf16.xpose.msra.mxu0 0
    %3182 = vmatprep.subr.bf16.mxu0 0
    %3183 = vmatpush1.bf16.xpose.msra.mxu0 0
    %3184 = vmatprep.subr.bf16.mxu0 0
    %3185 = vmatpush1.bf16.xpose.msra.mxu0 0
    %3186 = vmatprep.subr.bf16.mxu0 0
    %3187 = vmatpush1.bf16.xpose.msra.mxu0 0
    %3188 = vmatprep.subr.bf16.mxu0 0
    %3189 = vmatpush1.bf16.xpose.msra.mxu0 0
    %3190 = vmatprep.subr.bf16.mxu0 0
    %3191 = vmatpush1.bf16.xpose.msra.mxu0 0
    %3192 = vmatprep.subr.bf16.mxu0 0
    %3193 = vmatpush1.bf16.xpose.msra.mxu0 0
    %3194 = vmatprep.subr.bf16.mxu0 0
    %3195 = vmatpush1.bf16.xpose.msra.mxu0 0
    %3196 = vmatprep.subr.bf16.mxu0 0
    %3197 = vmatpush1.bf16.xpose.msra.mxu0 0
    %3198 = vmatprep.subr.bf16.mxu0 0
    %3199 = vmatpush1.bf16.xpose.msra.mxu0 0
    %3200 = vmatprep.subr.bf16.mxu0 0
    %3201 = vmatpush1.bf16.xpose.msra.mxu0 0
    %3202 = vmatprep.subr.bf16.mxu0 0
    %3203 = vmatpush1.bf16.xpose.msra.mxu0 0
    %3204 = vmatprep.subr.bf16.mxu0 0
    %3205 = vmatpush1.bf16.xpose.msra.mxu0 0
    %3206 = vmatprep.mubr.bf16.mxu0 0
    %3207 = vmatmul.mubr.bf16.gmra.mrb[0].mxu0 %v3172
    %v3208 = vpop.f32.mrb[0].mxu0
    %v3209 = vadd.f32 0.0, %v3208
    %v3210 = vpop.f32.mrb[0].mxu0
    %v3211 = vpop.f32.mrb[0].mxu0
    %v3212 = vadd.f32 0.0, %v3211
    %v3213 = vpop.f32.mrb[0].mxu0
    %3214 = vmatprep.mubr.bf16.mxu0 0
    %3215 = vmatmul.mubr.bf16.gmra.mrb[0].mxu0 %v3173
    %v3216 = vpop.f32.mrb[0].mxu0
    %v3217 = vadd.f32 0.0, %v3216
    %v3218 = vpop.f32.mrb[0].mxu0
    %v3219 = vpop.f32.mrb[0].mxu0
    %v3220 = vpop.f32.mrb[0].mxu0
    %3221 = vdwg.mxu0
    %v3222 = vsel %vm775, %v3209, -inf
    %3223 = vmax.xlane.f32.xlu0 %v3222
    %v3224 = vpop.xlane.xlu0 %3223
    %v3225 = vsel %vm775, %v3212, -inf
    %3226 = vmax.xlane.f32.xlu0 %v3225
    %v3227 = vpop.xlane.xlu0 %3226
    %v3228 = vsel %vm782, %v3217, -inf
    %3229 = vmax.xlane.f32.xlu0 %v3228
    %v3230 = vpop.xlane.xlu0 %3229
    %v3231 = vsub.f32 %v3209, %v3224
    %v3232 = vsub.f32 %v3212, %v3227
    %v3233 = vsub.f32 %v3217, %v3230
    %v3234 = vmul.f32 %v3231, 1.442695
    %v3235 = vpow.pop %v3234
    %v3236 = vmul.f32 %v3232, 1.442695
    %v3237 = vpow.pop %v3236
    %v3238 = vmul.f32 %v3233, 1.442695
    %v3239 = vpow.pop %v3238
    %v3240 = vsel %vm775, %v3235, 0.0
    %3241 = vadd.xlane.f32.xlu0 %v3240
    %v3242 = vpop.xlane.xlu0 %3241
    %v3243 = vsel %vm775, %v3237, 0.0
    %3244 = vadd.xlane.f32.xlu0 %v3243
    %v3245 = vpop.xlane.xlu0 %3244
    %v3246 = vsel %vm782, %v3239, 0.0
    %3247 = vadd.xlane.f32.xlu0 %v3246
    %v3248 = vpop.xlane.xlu0 %3247
    %v3249 = vrcp.pop %v3242
    %v3250 = vrcp.pop %v3245
    %v3251 = vrcp.pop %v3248
    %v3252 = vmul.f32 %v3235, %v3249
    %v3253 = vmul.f32 %v3237, %v3250
    %v3254 = vmul.f32 %v3239, %v3251
    %v3255 = vpack.c.bf16 %v3253, %v3252
    %v3256 = vpack.c.bf16 %v3254, %v3254
    %v3257 = vmul.bf16 %v2735, %v293
    %v3258 = vmul.bf16 %v2736, %v293
    %v3260 = vsel %vm775, %v3255, 0
    %v3263 = vsel %vm775, %v3256, 0
    %v3266 = vand.u32 %v3258, %v908
    %3268 = vmatprep.subr.bf16.mxu0 0
    %3269 = vmatpush1.bf16.msra.mxu0 %v3257
    %3270 = vmatprep.subr.bf16.mxu0 0
    %3271 = vmatpush1.bf16.msra.mxu0 %v3266
    %3272 = vmatprep.subr.bf16.mxu0 0
    %3273 = vmatpush1.bf16.msra.mxu0 0
    %3274 = vmatprep.subr.bf16.mxu0 0
    %3275 = vmatpush1.bf16.msra.mxu0 0
    %3276 = vmatprep.subr.bf16.mxu0 0
    %3277 = vmatpush1.bf16.msra.mxu0 0
    %3278 = vmatprep.subr.bf16.mxu0 0
    %3279 = vmatpush1.bf16.msra.mxu0 0
    %3280 = vmatprep.subr.bf16.mxu0 0
    %3281 = vmatpush1.bf16.msra.mxu0 0
    %3282 = vmatprep.subr.bf16.mxu0 0
    %3283 = vmatpush1.bf16.msra.mxu0 0
    %3284 = vmatprep.subr.bf16.mxu0 0
    %3285 = vmatpush1.bf16.msra.mxu0 0
    %3286 = vmatprep.subr.bf16.mxu0 0
    %3287 = vmatpush1.bf16.msra.mxu0 0
    %3288 = vmatprep.subr.bf16.mxu0 0
    %3289 = vmatpush1.bf16.msra.mxu0 0
    %3290 = vmatprep.subr.bf16.mxu0 0
    %3291 = vmatpush1.bf16.msra.mxu0 0
    %3292 = vmatprep.subr.bf16.mxu0 0
    %3293 = vmatpush1.bf16.msra.mxu0 0
    %3294 = vmatprep.subr.bf16.mxu0 0
    %3295 = vmatpush1.bf16.msra.mxu0 0
    %3296 = vmatprep.subr.bf16.mxu0 0
    %3297 = vmatpush1.bf16.msra.mxu0 0
    %3298 = vmatprep.subr.bf16.mxu0 0
    %3299 = vmatpush1.bf16.msra.mxu0 0
    %3300 = vmatprep.mubr.bf16.mxu0 0
    %3301 = vmatmul.mubr.bf16.gmra.mrb[0].mxu0 %v3260
    %v3302 = vpop.f32.mrb[0].mxu0
    %v3303 = vadd.f32 0.0, %v3302
    %v3304 = vpop.f32.mrb[0].mxu0
    %v3305 = vpop.f32.mrb[0].mxu0
    %v3306 = vadd.f32 0.0, %v3305
    %v3307 = vpop.f32.mrb[0].mxu0
    %3308 = vmatprep.mubr.bf16.mxu0 0
    %3309 = vmatmul.mubr.bf16.gmra.mrb[0].mxu0 %v3263
    %v3310 = vpop.f32.mrb[0].mxu0
    %v3311 = vadd.f32 0.0, %v3310
    %v3312 = vpop.f32.mrb[0].mxu0
    %v3313 = vpop.f32.mrb[0].mxu0
    %v3314 = vpop.f32.mrb[0].mxu0
    %3315 = vdwg.mxu0
    %v3316 = vadd.f32 %v3169, %v3303
    %v3317 = vadd.f32 %v3170, %v3306
    %v3318 = vadd.f32 %v3171, %v3311
    %v3319 = vpack.c.bf16 %v3317, %v3316
    %v3320 = vpack.c.bf16 %v3318, %v3318
    %v3321 = vld [vmem:[#allocation17] sm:$0xf]
    %v3322 = vld [vmem:[#allocation17 + $0x4] sm:$0xf]
    %v3323 = vld [vmem:[#allocation17 + $0x8] sm:$0xf]
    %v3324 = vld [vmem:[#allocation17 + $0xc] sm:$0xf]
    %v3325 = vld [vmem:[#allocation17 + $0x10] sm:$0xf]
    %v3326 = vld [vmem:[#allocation17 + $0x14] sm:$0xf]
    %v3327 = vld [vmem:[#allocation17 + $0x18] sm:$0xf]
    %v3328 = vld [vmem:[#allocation17 + $0x1c] sm:$0xf]
    %v3329 = vld [vmem:[#allocation17 + $0x20] sm:$0xf]
    %v3330 = vld [vmem:[#allocation17 + $0x24] sm:$0xf]
    %v3331 = vld [vmem:[#allocation17 + $0x28] sm:$0xf]
    %v3332 = vld [vmem:[#allocation17 + $0x2c] sm:$0xf]
    %v3333 = vld [vmem:[#allocation17 + $0x30] sm:$0xf]
    %v3334 = vld [vmem:[#allocation17 + $0x34] sm:$0xf]
    %v3335 = vld [vmem:[#allocation17 + $0x38] sm:$0xf]
    %v3336 = vld [vmem:[#allocation17 + $0x3c] sm:$0xf]
    %v3337 = vld [vmem:[#allocation19] sm:$0x1]
    %v3339 = vlaneseq
    %v3340 = vshrl.u32 %v3339, 7
    %v3341 = vsub.s32 0, %v3340
    %v3342 = vrot.slane %v3337, %v3341
    %v3360 = vunpack.c.l.b16 %v3321
    %v3361 = vunpack.c.l.b16 %v3322
    %v3362 = vunpack.c.l.b16 %v3323
    %v3363 = vunpack.c.l.b16 %v3324
    %v3364 = vunpack.c.l.b16 %v3325
    %v3365 = vunpack.c.l.b16 %v3326
    %v3366 = vunpack.c.l.b16 %v3327
    %v3367 = vunpack.c.l.b16 %v3328
    %v3368 = vunpack.c.l.b16 %v3329
    %v3369 = vunpack.c.l.b16 %v3330
    %v3370 = vunpack.c.l.b16 %v3331
    %v3371 = vunpack.c.l.b16 %v3332
    %v3372 = vunpack.c.l.b16 %v3333
    %v3373 = vunpack.c.l.b16 %v3334
    %v3374 = vunpack.c.l.b16 %v3335
    %v3375 = vunpack.c.l.b16 %v3336
    %v3376 = vpack.c.b16 %v3361, %v3360
    %v3377 = vpack.c.b16 %v3363, %v3362
    %v3378 = vpack.c.b16 %v3365, %v3364
    %v3379 = vpack.c.b16 %v3367, %v3366
    %v3380 = vpack.c.b16 %v3369, %v3368
    %v3381 = vpack.c.b16 %v3371, %v3370
    %v3382 = vpack.c.b16 %v3373, %v3372
    %v3383 = vpack.c.b16 %v3375, %v3374
    %3392 = vmatprep.subr.bf16.mxu0 0
    %3393 = vmatpush1.bf16.msra.mxu0 %v3376
    %3394 = vmatprep.subr.bf16.mxu0 0
    %3395 = vmatpush1.bf16.msra.mxu0 %v3377
    %3396 = vmatprep.subr.bf16.mxu0 0
    %3397 = vmatpush1.bf16.msra.mxu0 %v3378
    %3398 = vmatprep.subr.bf16.mxu0 0
    %3399 = vmatpush1.bf16.msra.mxu0 %v3379
    %3400 = vmatprep.subr.bf16.mxu0 0
    %3401 = vmatpush1.bf16.msra.mxu0 %v3380
    %3402 = vmatprep.subr.bf16.mxu0 0
    %3403 = vmatpush1.bf16.msra.mxu0 %v3381
    %3404 = vmatprep.subr.bf16.mxu0 0
    %3405 = vmatpush1.bf16.msra.mxu0 %v3382
    %3406 = vmatprep.subr.bf16.mxu0 0
    %3407 = vmatpush1.bf16.msra.mxu0 %v3383
    %3408 = vmatprep.subr.bf16.mxu0 0
    %3409 = vmatpush1.bf16.msra.mxu0 0
    %3410 = vmatprep.subr.bf16.mxu0 0
    %3411 = vmatpush1.bf16.msra.mxu0 0
    %3412 = vmatprep.subr.bf16.mxu0 0
    %3413 = vmatpush1.bf16.msra.mxu0 0
    %3414 = vmatprep.subr.bf16.mxu0 0
    %3415 = vmatpush1.bf16.msra.mxu0 0
    %3416 = vmatprep.subr.bf16.mxu0 0
    %3417 = vmatpush1.bf16.msra.mxu0 0
    %3418 = vmatprep.subr.bf16.mxu0 0
    %3419 = vmatpush1.bf16.msra.mxu0 0
    %3420 = vmatprep.subr.bf16.mxu0 0
    %3421 = vmatpush1.bf16.msra.mxu0 0
    %3422 = vmatprep.subr.bf16.mxu0 0
    %3423 = vmatpush1.bf16.msra.mxu0 0
    %3424 = vmatprep.mubr.bf16.mxu0 0
    %3425 = vmatmul.mubr.bf16.gmra.mrb[0].mxu0 %v3319
    %v3426 = vpop.f32.mrb[0].mxu0
    %v3427 = vadd.f32 %v3342, %v3426
    %v3428 = vpop.f32.mrb[0].mxu0
    %v3429 = vpop.f32.mrb[0].mxu0
    %v3430 = vadd.f32 %v3342, %v3429
    %v3431 = vpop.f32.mrb[0].mxu0
    %3432 = vmatprep.mubr.bf16.mxu0 0
    %3433 = vmatmul.mubr.bf16.gmra.mrb[0].mxu0 %v3320
    %v3434 = vpop.f32.mrb[0].mxu0
    %v3435 = vadd.f32 %v3342, %v3434
    %v3436 = vpop.f32.mrb[0].mxu0
    %v3437 = vpop.f32.mrb[0].mxu0
    %v3438 = vpop.f32.mrb[0].mxu0
    %3439 = vdwg.mxu0
    %v3440 = vadd.f32 %v2311, %v3427
    %v3441 = vadd.f32 %v2312, %v3430
    %v3442 = vadd.f32 %v2313, %v3435
    %v3443 = vld [vmem:[#allocation20] sm:$0x1]
    %v3444 = vld [vmem:[#allocation22] sm:$0x1]
    %3445 = vadd.xlane.f32.xlu0 %v3440
    %v3446 = vpop.xlane.xlu0 %3445
    %3447 = vadd.xlane.f32.xlu0 %v3441
    %v3448 = vpop.xlane.xlu0 %3447
    %v3449 = vsel %vm306, %v3442, 0.0
    %3450 = vadd.xlane.f32.xlu0 %v3449
    %v3451 = vpop.xlane.xlu0 %3450
    %v3452 = vmul.f32 %v3446, %v310
    %v3453 = vmul.f32 %v3448, %v310
    %v3454 = vmul.f32 %v3451, %v310
    %v3455 = vsub.f32 %v3440, %v3452
    %v3456 = vsub.f32 %v3441, %v3453
    %v3457 = vsub.f32 %v3442, %v3454
    %v3458 = vmul.f32 %v3455, %v3455
    %v3459 = vmul.f32 %v3456, %v3456
    %v3460 = vmul.f32 %v3457, %v3457
    %3461 = vadd.xlane.f32.xlu0 %v3458
    %v3462 = vpop.xlane.xlu0 %3461
    %3463 = vadd.xlane.f32.xlu0 %v3459
    %v3464 = vpop.xlane.xlu0 %3463
    %v3465 = vsel %vm306, %v3460, 0.0
    %3466 = vadd.xlane.f32.xlu0 %v3465
    %v3467 = vpop.xlane.xlu0 %3466
    %v3468 = vmul.f32 %v3462, %v310
    %v3469 = vmul.f32 %v3464, %v310
    %v3470 = vmul.f32 %v3467, %v310
    %v3471 = vadd.f32 %v3468, 1e-05
    %v3472 = vadd.f32 %v3469, 1e-05
    %v3473 = vadd.f32 %v3470, 1e-05
    %v3474 = vrsqrt.pop %v3471
    %v3475 = vrsqrt.pop %v3472
    %v3476 = vrsqrt.pop %v3473
    %v3477 = vmul.f32 %v3455, %v3474
    %v3478 = vmul.f32 %v3456, %v3475
    %v3479 = vmul.f32 %v3457, %v3476
    %v3481 = vlaneseq
    %v3482 = vshrl.u32 %v3481, 7
    %v3483 = vsub.s32 0, %v3482
    %v3484 = vrot.slane %v3443, %v3483
    %v3486 = vmul.f32 %v3477, %v3484
    %v3487 = vmul.f32 %v3478, %v3484
    %v3488 = vmul.f32 %v3479, %v3484
    %v3490 = vlaneseq
    %v3491 = vshrl.u32 %v3490, 7
    %v3492 = vsub.s32 0, %v3491
    %v3493 = vrot.slane %v3444, %v3492
    %v3495 = vadd.f32 %v3486, %v3493
    %v3496 = vadd.f32 %v3487, %v3493
    %v3497 = vadd.f32 %v3488, %v3493
    %v3498 = vpack.c.bf16 %v3496, %v3495
    %v3499 = vpack.c.bf16 %v3497, %v3497
    %v3500 = vld [vmem:[#allocation23] sm:$0xff]
    %v3501 = vld [vmem:[#allocation23 + $0x8] sm:$0xff]
    %v3502 = vld [vmem:[#allocation23 + $0x10] sm:$0xff]
    %v3503 = vld [vmem:[#allocation23 + $0x18] sm:$0xff]
    %v3504 = vld [vmem:[#allocation23 + $0x20] sm:$0xff]
    %v3505 = vld [vmem:[#allocation23 + $0x28] sm:$0xff]
    %v3506 = vld [vmem:[#allocation23 + $0x30] sm:$0xff]
    %v3507 = vld [vmem:[#allocation23 + $0x38] sm:$0xff]
    %v3508 = vld [vmem:[#allocation23 + $0x40] sm:$0xff]
    %v3509 = vld [vmem:[#allocation23 + $0x48] sm:$0xff]
    %v3510 = vld [vmem:[#allocation23 + $0x50] sm:$0xff]
    %v3511 = vld [vmem:[#allocation23 + $0x58] sm:$0xff]
    %v3512 = vld [vmem:[#allocation23 + $0x60] sm:$0xff]
    %v3513 = vld [vmem:[#allocation23 + $0x68] sm:$0xff]
    %v3514 = vld [vmem:[#allocation23 + $0x70] sm:$0xff]
    %v3515 = vld [vmem:[#allocation23 + $0x78] sm:$0xff]
    %v3516 = vld [vmem:[#allocation23 + $0x80] sm:$0xff]
    %v3517 = vld [vmem:[#allocation23 + $0x88] sm:$0xff]
    %v3518 = vld [vmem:[#allocation23 + $0x90] sm:$0xff]
    %v3519 = vld [vmem:[#allocation23 + $0x98] sm:$0xff]
    %v3520 = vld [vmem:[#allocation23 + $0xa0] sm:$0xff]
    %v3521 = vld [vmem:[#allocation23 + $0xa8] sm:$0xff]
    %v3522 = vld [vmem:[#allocation23 + $0xb0] sm:$0xff]
    %v3523 = vld [vmem:[#allocation23 + $0xb8] sm:$0xff]
    %v3524 = vld [vmem:[#allocation23 + $0xc0] sm:$0xff]
    %v3525 = vld [vmem:[#allocation23 + $0xc8] sm:$0xff]
    %v3526 = vld [vmem:[#allocation23 + $0xd0] sm:$0xff]
    %v3527 = vld [vmem:[#allocation23 + $0xd8] sm:$0xff]
    %v3528 = vld [vmem:[#allocation23 + $0xe0] sm:$0xff]
    %v3529 = vld [vmem:[#allocation23 + $0xe8] sm:$0xff]
    %v3530 = vld [vmem:[#allocation23 + $0xf0] sm:$0xff]
    %v3531 = vld [vmem:[#allocation23 + $0xf8] sm:$0xff]
    %v3532 = vld [vmem:[#allocation25] sm:$0xf]
    %v3534 = vlaneseq
    %v3535 = vshrl.u32 %v3534, 7
    %v3536 = vsub.s32 0, %v3535
    %v3537 = vrot.slane %v3532, %v3536
    %v3538 = vlaneseq
    %v3539 = vshrl.u32 %v3538, 7
    %v3540 = vsub.s32 1, %v3539
    %v3541 = vrot.slane %v3532, %v3540
    %v3542 = vlaneseq
    %v3543 = vshrl.u32 %v3542, 7
    %v3544 = vsub.s32 2, %v3543
    %v3545 = vrot.slane %v3532, %v3544
    %v3546 = vlaneseq
    %v3547 = vshrl.u32 %v3546, 7
    %v3548 = vsub.s32 3, %v3547
    %v3549 = vrot.slane %v3532, %v3548
    %v3586 = vunpack.c.l.b16 %v3500
    %v3587 = vunpack.c.h.b16 %v3500
    %v3588 = vunpack.c.l.b16 %v3501
    %v3589 = vunpack.c.h.b16 %v3501
    %v3590 = vunpack.c.l.b16 %v3502
    %v3591 = vunpack.c.h.b16 %v3502
    %v3592 = vunpack.c.l.b16 %v3503
    %v3593 = vunpack.c.h.b16 %v3503
    %v3594 = vunpack.c.l.b16 %v3504
    %v3595 = vunpack.c.h.b16 %v3504
    %v3596 = vunpack.c.l.b16 %v3505
    %v3597 = vunpack.c.h.b16 %v3505
    %v3598 = vunpack.c.l.b16 %v3506
    %v3599 = vunpack.c.h.b16 %v3506
    %v3600 = vunpack.c.l.b16 %v3507
    %v3601 = vunpack.c.h.b16 %v3507
    %v3602 = vunpack.c.l.b16 %v3508
    %v3603 = vunpack.c.h.b16 %v3508
    %v3604 = vunpack.c.l.b16 %v3509
    %v3605 = vunpack.c.h.b16 %v3509
    %v3606 = vunpack.c.l.b16 %v3510
    %v3607 = vunpack.c.h.b16 %v3510
    %v3608 = vunpack.c.l.b16 %v3511
    %v3609 = vunpack.c.h.b16 %v3511
    %v3610 = vunpack.c.l.b16 %v3512
    %v3611 = vunpack.c.h.b16 %v3512
    %v3612 = vunpack.c.l.b16 %v3513
    %v3613 = vunpack.c.h.b16 %v3513
    %v3614 = vunpack.c.l.b16 %v3514
    %v3615 = vunpack.c.h.b16 %v3514
    %v3616 = vunpack.c.l.b16 %v3515
    %v3617 = vunpack.c.h.b16 %v3515
    %v3618 = vunpack.c.l.b16 %v3516
    %v3619 = vunpack.c.h.b16 %v3516
    %v3620 = vunpack.c.l.b16 %v3517
    %v3621 = vunpack.c.h.b16 %v3517
    %v3622 = vunpack.c.l.b16 %v3518
    %v3623 = vunpack.c.h.b16 %v3518
    %v3624 = vunpack.c.l.b16 %v3519
    %v3625 = vunpack.c.h.b16 %v3519
    %v3626 = vunpack.c.l.b16 %v3520
    %v3627 = vunpack.c.h.b16 %v3520
    %v3628 = vunpack.c.l.b16 %v3521
    %v3629 = vunpack.c.h.b16 %v3521
    %v3630 = vunpack.c.l.b16 %v3522
    %v3631 = vunpack.c.h.b16 %v3522
    %v3632 = vunpack.c.l.b16 %v3523
    %v3633 = vunpack.c.h.b16 %v3523
    %v3634 = vunpack.c.l.b16 %v3524
    %v3635 = vunpack.c.h.b16 %v3524
    %v3636 = vunpack.c.l.b16 %v3525
    %v3637 = vunpack.c.h.b16 %v3525
    %v3638 = vunpack.c.l.b16 %v3526
    %v3639 = vunpack.c.h.b16 %v3526
    %v3640 = vunpack.c.l.b16 %v3527
    %v3641 = vunpack.c.h.b16 %v3527
    %v3642 = vunpack.c.l.b16 %v3528
    %v3643 = vunpack.c.h.b16 %v3528
    %v3644 = vunpack.c.l.b16 %v3529
    %v3645 = vunpack.c.h.b16 %v3529
    %v3646 = vunpack.c.l.b16 %v3530
    %v3647 = vunpack.c.h.b16 %v3530
    %v3648 = vunpack.c.l.b16 %v3531
    %v3649 = vunpack.c.h.b16 %v3531
    %v3650 = vpack.c.b16 %v3590, %v3586
    %v3651 = vpack.c.b16 %v3591, %v3587
    %v3652 = vpack.c.b16 %v3592, %v3588
    %v3653 = vpack.c.b16 %v3593, %v3589
    %v3654 = vpack.c.b16 %v3598, %v3594
    %v3655 = vpack.c.b16 %v3599, %v3595
    %v3656 = vpack.c.b16 %v3600, %v3596
    %v3657 = vpack.c.b16 %v3601, %v3597
    %v3658 = vpack.c.b16 %v3606, %v3602
    %v3659 = vpack.c.b16 %v3607, %v3603
    %v3660 = vpack.c.b16 %v3608, %v3604
    %v3661 = vpack.c.b16 %v3609, %v3605
    %v3662 = vpack.c.b16 %v3614, %v3610
    %v3663 = vpack.c.b16 %v3615, %v3611
    %v3664 = vpack.c.b16 %v3616, %v3612
    %v3665 = vpack.c.b16 %v3617, %v3613
    %v3666 = vpack.c.b16 %v3622, %v3618
    %v3667 = vpack.c.b16 %v3623, %v3619
    %v3668 = vpack.c.b16 %v3624, %v3620
    %v3669 = vpack.c.b16 %v3625, %v3621
    %v3670 = vpack.c.b16 %v3630, %v3626
    %v3671 = vpack.c.b16 %v3631, %v3627
    %v3672 = vpack.c.b16 %v3632, %v3628
    %v3673 = vpack.c.b16 %v3633, %v3629
    %v3674 = vpack.c.b16 %v3638, %v3634
    %v3675 = vpack.c.b16 %v3639, %v3635
    %v3676 = vpack.c.b16 %v3640, %v3636
    %v3677 = vpack.c.b16 %v3641, %v3637
    %v3678 = vpack.c.b16 %v3646, %v3642
    %v3679 = vpack.c.b16 %v3647, %v3643
    %v3680 = vpack.c.b16 %v3648, %v3644
    %v3681 = vpack.c.b16 %v3649, %v3645
    %3714 = vmatprep.subr.bf16.mxu0 %v3651
    %3715 = vmatpush1.bf16.msra.mxu0 %v3650
    %3716 = vmatprep.subr.bf16.mxu0 %v3655
    %3717 = vmatpush1.bf16.msra.mxu0 %v3654
    %3718 = vmatprep.subr.bf16.mxu0 %v3659
    %3719 = vmatpush1.bf16.msra.mxu0 %v3658
    %3720 = vmatprep.subr.bf16.mxu0 %v3663
    %3721 = vmatpush1.bf16.msra.mxu0 %v3662
    %3722 = vmatprep.subr.bf16.mxu0 %v3667
    %3723 = vmatpush1.bf16.msra.mxu0 %v3666
    %3724 = vmatprep.subr.bf16.mxu0 %v3671
    %3725 = vmatpush1.bf16.msra.mxu0 %v3670
    %3726 = vmatprep.subr.bf16.mxu0 %v3675
    %3727 = vmatpush1.bf16.msra.mxu0 %v3674
    %3728 = vmatprep.subr.bf16.mxu0 %v3679
    %3729 = vmatpush1.bf16.msra.mxu0 %v3678
    %3730 = vmatprep.subr.bf16.mxu0 0
    %3731 = vmatpush1.bf16.msra.mxu0 0
    %3732 = vmatprep.subr.bf16.mxu0 0
    %3733 = vmatpush1.bf16.msra.mxu0 0
    %3734 = vmatprep.subr.bf16.mxu0 0
    %3735 = vmatpush1.bf16.msra.mxu0 0
    %3736 = vmatprep.subr.bf16.mxu0 0
    %3737 = vmatpush1.bf16.msra.mxu0 0
    %3738 = vmatprep.subr.bf16.mxu0 0
    %3739 = vmatpush1.bf16.msra.mxu0 0
    %3740 = vmatprep.subr.bf16.mxu0 0
    %3741 = vmatpush1.bf16.msra.mxu0 0
    %3742 = vmatprep.subr.bf16.mxu0 0
    %3743 = vmatpush1.bf16.msra.mxu0 0
    %3744 = vmatprep.subr.bf16.mxu0 0
    %3745 = vmatpush1.bf16.msra.mxu0 0
    %3746 = vmatprep.mubr.bf16.mxu0 0
    %3747 = vmatmul.mubr.bf16.gmra.mrb[0].mxu0 %v3498
    %v3748 = vpop.f32.mrb[0].mxu0
    %v3749 = vadd.f32 %v3537, %v3748
    %v3750 = vpop.f32.mrb[0].mxu0
    %v3751 = vadd.f32 %v3541, %v3750
    %v3752 = vpop.f32.mrb[0].mxu0
    %v3753 = vadd.f32 %v3537, %v3752
    %v3754 = vpop.f32.mrb[0].mxu0
    %v3755 = vadd.f32 %v3541, %v3754
    %3756 = vmatprep.mubr.bf16.mxu0 0
    %3757 = vmatmul.mubr.bf16.gmra.mrb[0].mxu0 %v3499
    %v3758 = vpop.f32.mrb[0].mxu0
    %v3759 = vadd.f32 %v3537, %v3758
    %v3760 = vpop.f32.mrb[0].mxu0
    %v3761 = vadd.f32 %v3541, %v3760
    %v3762 = vpop.f32.mrb[0].mxu0
    %v3763 = vpop.f32.mrb[0].mxu0
    %3764 = vdwg.mxu0
    %3765 = vmatprep.subr.bf16.mxu0 %v3653
    %3766 = vmatpush1.bf16.msra.mxu0 %v3652
    %3767 = vmatprep.subr.bf16.mxu0 %v3657
    %3768 = vmatpush1.bf16.msra.mxu0 %v3656
    %3769 = vmatprep.subr.bf16.mxu0 %v3661
    %3770 = vmatpush1.bf16.msra.mxu0 %v3660
    %3771 = vmatprep.subr.bf16.mxu0 %v3665
    %3772 = vmatpush1.bf16.msra.mxu0 %v3664
    %3773 = vmatprep.subr.bf16.mxu0 %v3669
    %3774 = vmatpush1.bf16.msra.mxu0 %v3668
    %3775 = vmatprep.subr.bf16.mxu0 %v3673
    %3776 = vmatpush1.bf16.msra.mxu0 %v3672
    %3777 = vmatprep.subr.bf16.mxu0 %v3677
    %3778 = vmatpush1.bf16.msra.mxu0 %v3676
    %3779 = vmatprep.subr.bf16.mxu0 %v3681
    %3780 = vmatpush1.bf16.msra.mxu0 %v3680
    %3781 = vmatprep.subr.bf16.mxu0 0
    %3782 = vmatpush1.bf16.msra.mxu0 0
    %3783 = vmatprep.subr.bf16.mxu0 0
    %3784 = vmatpush1.bf16.msra.mxu0 0
    %3785 = vmatprep.subr.bf16.mxu0 0
    %3786 = vmatpush1.bf16.msra.mxu0 0
    %3787 = vmatprep.subr.bf16.mxu0 0
    %3788 = vmatpush1.bf16.msra.mxu0 0
    %3789 = vmatprep.subr.bf16.mxu0 0
    %3790 = vmatpush1.bf16.msra.mxu0 0
    %3791 = vmatprep.subr.bf16.mxu0 0
    %3792 = vmatpush1.bf16.msra.mxu0 0
    %3793 = vmatprep.subr.bf16.mxu0 0
    %3794 = vmatpush1.bf16.msra.mxu0 0
    %3795 = vmatprep.subr.bf16.mxu0 0
    %3796 = vmatpush1.bf16.msra.mxu0 0
    %3797 = vmatprep.mubr.bf16.mxu0 0
    %3798 = vmatmul.mubr.bf16.gmra.mrb[0].mxu0 %v3498
    %v3799 = vpop.f32.mrb[0].mxu0
    %v3800 = vadd.f32 %v3545, %v3799
    %v3801 = vpop.f32.mrb[0].mxu0
    %v3802 = vadd.f32 %v3549, %v3801
    %v3803 = vpop.f32.mrb[0].mxu0
    %v3804 = vadd.f32 %v3545, %v3803
    %v3805 = vpop.f32.mrb[0].mxu0
    %v3806 = vadd.f32 %v3549, %v3805
    %3807 = vmatprep.mubr.bf16.mxu0 0
    %3808 = vmatmul.mubr.bf16.gmra.mrb[0].mxu0 %v3499
    %v3809 = vpop.f32.mrb[0].mxu0
    %v3810 = vadd.f32 %v3545, %v3809
    %v3811 = vpop.f32.mrb[0].mxu0
    %v3812 = vadd.f32 %v3549, %v3811
    %v3813 = vpop.f32.mrb[0].mxu0
    %v3814 = vpop.f32.mrb[0].mxu0
    %3815 = vdwg.mxu0
    %v3816 = vmul.f32 %v3749, %v3749
    %v3817 = vmul.f32 %v3751, %v3751
    %v3818 = vmul.f32 %v3800, %v3800
    %v3819 = vmul.f32 %v3802, %v3802
    %v3820 = vmul.f32 %v3753, %v3753
    %v3821 = vmul.f32 %v3755, %v3755
    %v3822 = vmul.f32 %v3804, %v3804
    %v3823 = vmul.f32 %v3806, %v3806
    %v3824 = vmul.f32 %v3759, %v3759
    %v3825 = vmul.f32 %v3761, %v3761
    %v3826 = vmul.f32 %v3810, %v3810
    %v3827 = vmul.f32 %v3812, %v3812
    %v3828 = vmul.f32 %v3749, %v3816
    %v3829 = vmul.f32 %v3751, %v3817
    %v3830 = vmul.f32 %v3800, %v3818
    %v3831 = vmul.f32 %v3802, %v3819
    %v3832 = vmul.f32 %v3753, %v3820
    %v3833 = vmul.f32 %v3755, %v3821
    %v3834 = vmul.f32 %v3804, %v3822
    %v3835 = vmul.f32 %v3806, %v3823
    %v3836 = vmul.f32 %v3759, %v3824
    %v3837 = vmul.f32 %v3761, %v3825
    %v3838 = vmul.f32 %v3810, %v3826
    %v3839 = vmul.f32 %v3812, %v3827
    %v3840 = vmul.f32 %v3828, 0.044715
    %v3841 = vmul.f32 %v3829, 0.044715
    %v3842 = vmul.f32 %v3830, 0.044715
    %v3843 = vmul.f32 %v3831, 0.044715
    %v3844 = vmul.f32 %v3832, 0.044715
    %v3845 = vmul.f32 %v3833, 0.044715
    %v3846 = vmul.f32 %v3834, 0.044715
    %v3847 = vmul.f32 %v3835, 0.044715
    %v3848 = vmul.f32 %v3836, 0.044715
    %v3849 = vmul.f32 %v3837, 0.044715
    %v3850 = vmul.f32 %v3838, 0.044715
    %v3851 = vmul.f32 %v3839, 0.044715
    %v3852 = vadd.f32 %v3749, %v3840
    %v3853 = vadd.f32 %v3751, %v3841
    %v3854 = vadd.f32 %v3800, %v3842
    %v3855 = vadd.f32 %v3802, %v3843
    %v3856 = vadd.f32 %v3753, %v3844
    %v3857 = vadd.f32 %v3755, %v3845
    %v3858 = vadd.f32 %v3804, %v3846
    %v3859 = vadd.f32 %v3806, %v3847
    %v3860 = vadd.f32 %v3759, %v3848
    %v3861 = vadd.f32 %v3761, %v3849
    %v3862 = vadd.f32 %v3810, %v3850
    %v3863 = vadd.f32 %v3812, %v3851
    %v3864 = vmul.f32 %v3852, 0.7978846
    %v3865 = vmul.f32 %v3853, 0.7978846
    %v3866 = vmul.f32 %v3854, 0.7978846
    %v3867 = vmul.f32 %v3855, 0.7978846
    %v3868 = vmul.f32 %v3856, 0.7978846
    %v3869 = vmul.f32 %v3857, 0.7978846
    %v3870 = vmul.f32 %v3858, 0.7978846
    %v3871 = vmul.f32 %v3859, 0.7978846
    %v3872 = vmul.f32 %v3860, 0.7978846
    %v3873 = vmul.f32 %v3861, 0.7978846
    %v3874 = vmul.f32 %v3862, 0.7978846
    %v3875 = vmul.f32 %v3863, 0.7978846
    %v3876 = vtanh.pop %v3864
    %v3877 = vtanh.pop %v3865
    %v3878 = vtanh.pop %v3866
    %v3879 = vtanh.pop %v3867
    %v3880 = vtanh.pop %v3868
    %v3881 = vtanh.pop %v3869
    %v3882 = vtanh.pop %v3870
    %v3883 = vtanh.pop %v3871
    %v3884 = vtanh.pop %v3872
    %v3885 = vtanh.pop %v3873
    %v3886 = vtanh.pop %v3874
    %v3887 = vtanh.pop %v3875
    %v3888 = vadd.f32 %v3876, 1.0
    %v3889 = vadd.f32 %v3877, 1.0
    %v3890 = vadd.f32 %v3878, 1.0
    %v3891 = vadd.f32 %v3879, 1.0
    %v3892 = vadd.f32 %v3880, 1.0
    %v3893 = vadd.f32 %v3881, 1.0
    %v3894 = vadd.f32 %v3882, 1.0
    %v3895 = vadd.f32 %v3883, 1.0
    %v3896 = vadd.f32 %v3884, 1.0
    %v3897 = vadd.f32 %v3885, 1.0
    %v3898 = vadd.f32 %v3886, 1.0
    %v3899 = vadd.f32 %v3887, 1.0
    %v3900 = vmul.f32 %v3888, 0.5
    %v3901 = vmul.f32 %v3889, 0.5
    %v3902 = vmul.f32 %v3890, 0.5
    %v3903 = vmul.f32 %v3891, 0.5
    %v3904 = vmul.f32 %v3892, 0.5
    %v3905 = vmul.f32 %v3893, 0.5
    %v3906 = vmul.f32 %v3894, 0.5
    %v3907 = vmul.f32 %v3895, 0.5
    %v3908 = vmul.f32 %v3896, 0.5
    %v3909 = vmul.f32 %v3897, 0.5
    %v3910 = vmul.f32 %v3898, 0.5
    %v3911 = vmul.f32 %v3899, 0.5
    %v3912 = vmul.f32 %v3749, %v3900
    %v3913 = vmul.f32 %v3751, %v3901
    %v3914 = vmul.f32 %v3800, %v3902
    %v3915 = vmul.f32 %v3802, %v3903
    %v3916 = vmul.f32 %v3753, %v3904
    %v3917 = vmul.f32 %v3755, %v3905
    %v3918 = vmul.f32 %v3804, %v3906
    %v3919 = vmul.f32 %v3806, %v3907
    %v3920 = vmul.f32 %v3759, %v3908
    %v3921 = vmul.f32 %v3761, %v3909
    %v3922 = vmul.f32 %v3810, %v3910
    %v3923 = vmul.f32 %v3812, %v3911
    %v3924 = vpack.c.bf16 %v3916, %v3912
    %v3925 = vpack.c.bf16 %v3917, %v3913
    %v3926 = vpack.c.bf16 %v3918, %v3914
    %v3927 = vpack.c.bf16 %v3919, %v3915
    %v3928 = vpack.c.bf16 %v3920, %v3920
    %v3929 = vpack.c.bf16 %v3921, %v3921
    %v3930 = vpack.c.bf16 %v3922, %v3922
    %v3931 = vpack.c.bf16 %v3923, %v3923
    %v3932 = vld [vmem:[#allocation26] sm:$0xf]
    %v3933 = vld [vmem:[#allocation26 + $0x4] sm:$0xf]
    %v3934 = vld [vmem:[#allocation26 + $0x8] sm:$0xf]
    %v3935 = vld [vmem:[#allocation26 + $0xc] sm:$0xf]
    %v3936 = vld [vmem:[#allocation26 + $0x10] sm:$0xf]
    %v3937 = vld [vmem:[#allocation26 + $0x14] sm:$0xf]
    %v3938 = vld [vmem:[#allocation26 + $0x18] sm:$0xf]
    %v3939 = vld [vmem:[#allocation26 + $0x1c] sm:$0xf]
    %v3940 = vld [vmem:[#allocation26 + $0x20] sm:$0xf]
    %v3941 = vld [vmem:[#allocation26 + $0x24] sm:$0xf]
    %v3942 = vld [vmem:[#allocation26 + $0x28] sm:$0xf]
    %v3943 = vld [vmem:[#allocation26 + $0x2c] sm:$0xf]
    %v3944 = vld [vmem:[#allocation26 + $0x30] sm:$0xf]
    %v3945 = vld [vmem:[#allocation26 + $0x34] sm:$0xf]
    %v3946 = vld [vmem:[#allocation26 + $0x38] sm:$0xf]
    %v3947 = vld [vmem:[#allocation26 + $0x3c] sm:$0xf]
    %v3948 = vld [vmem:[#allocation26 + $0x40] sm:$0xf]
    %v3949 = vld [vmem:[#allocation26 + $0x44] sm:$0xf]
    %v3950 = vld [vmem:[#allocation26 + $0x48] sm:$0xf]
    %v3951 = vld [vmem:[#allocation26 + $0x4c] sm:$0xf]
    %v3952 = vld [vmem:[#allocation26 + $0x50] sm:$0xf]
    %v3953 = vld [vmem:[#allocation26 + $0x54] sm:$0xf]
    %v3954 = vld [vmem:[#allocation26 + $0x58] sm:$0xf]
    %v3955 = vld [vmem:[#allocation26 + $0x5c] sm:$0xf]
    %v3956 = vld [vmem:[#allocation26 + $0x60] sm:$0xf]
    %v3957 = vld [vmem:[#allocation26 + $0x64] sm:$0xf]
    %v3958 = vld [vmem:[#allocation26 + $0x68] sm:$0xf]
    %v3959 = vld [vmem:[#allocation26 + $0x6c] sm:$0xf]
    %v3960 = vld [vmem:[#allocation26 + $0x70] sm:$0xf]
    %v3961 = vld [vmem:[#allocation26 + $0x74] sm:$0xf]
    %v3962 = vld [vmem:[#allocation26 + $0x78] sm:$0xf]
    %v3963 = vld [vmem:[#allocation26 + $0x7c] sm:$0xf]
    %v3964 = vld [vmem:[#allocation26 + $0x80] sm:$0xf]
    %v3965 = vld [vmem:[#allocation26 + $0x84] sm:$0xf]
    %v3966 = vld [vmem:[#allocation26 + $0x88] sm:$0xf]
    %v3967 = vld [vmem:[#allocation26 + $0x8c] sm:$0xf]
    %v3968 = vld [vmem:[#allocation26 + $0x90] sm:$0xf]
    %v3969 = vld [vmem:[#allocation26 + $0x94] sm:$0xf]
    %v3970 = vld [vmem:[#allocation26 + $0x98] sm:$0xf]
    %v3971 = vld [vmem:[#allocation26 + $0x9c] sm:$0xf]
    %v3972 = vld [vmem:[#allocation26 + $0xa0] sm:$0xf]
    %v3973 = vld [vmem:[#allocation26 + $0xa4] sm:$0xf]
    %v3974 = vld [vmem:[#allocation26 + $0xa8] sm:$0xf]
    %v3975 = vld [vmem:[#allocation26 + $0xac] sm:$0xf]
    %v3976 = vld [vmem:[#allocation26 + $0xb0] sm:$0xf]
    %v3977 = vld [vmem:[#allocation26 + $0xb4] sm:$0xf]
    %v3978 = vld [vmem:[#allocation26 + $0xb8] sm:$0xf]
    %v3979 = vld [vmem:[#allocation26 + $0xbc] sm:$0xf]
    %v3980 = vld [vmem:[#allocation26 + $0xc0] sm:$0xf]
    %v3981 = vld [vmem:[#allocation26 + $0xc4] sm:$0xf]
    %v3982 = vld [vmem:[#allocation26 + $0xc8] sm:$0xf]
    %v3983 = vld [vmem:[#allocation26 + $0xcc] sm:$0xf]
    %v3984 = vld [vmem:[#allocation26 + $0xd0] sm:$0xf]
    %v3985 = vld [vmem:[#allocation26 + $0xd4] sm:$0xf]
    %v3986 = vld [vmem:[#allocation26 + $0xd8] sm:$0xf]
    %v3987 = vld [vmem:[#allocation26 + $0xdc] sm:$0xf]
    %v3988 = vld [vmem:[#allocation26 + $0xe0] sm:$0xf]
    %v3989 = vld [vmem:[#allocation26 + $0xe4] sm:$0xf]
    %v3990 = vld [vmem:[#allocation26 + $0xe8] sm:$0xf]
    %v3991 = vld [vmem:[#allocation26 + $0xec] sm:$0xf]
    %v3992 = vld [vmem:[#allocation26 + $0xf0] sm:$0xf]
    %v3993 = vld [vmem:[#allocation26 + $0xf4] sm:$0xf]
    %v3994 = vld [vmem:[#allocation26 + $0xf8] sm:$0xf]
    %v3995 = vld [vmem:[#allocation26 + $0xfc] sm:$0xf]
    %v3996 = vld [vmem:[#allocation28] sm:$0x1]
    %v3998 = vlaneseq
    %v3999 = vshrl.u32 %v3998, 7
    %v4000 = vsub.s32 0, %v3999
    %v4001 = vrot.slane %v3996, %v4000
    %v4067 = vunpack.c.l.b16 %v3932
    %v4068 = vunpack.c.l.b16 %v3933
    %v4069 = vunpack.c.l.b16 %v3934
    %v4070 = vunpack.c.l.b16 %v3935
    %v4071 = vunpack.c.l.b16 %v3936
    %v4072 = vunpack.c.l.b16 %v3937
    %v4073 = vunpack.c.l.b16 %v3938
    %v4074 = vunpack.c.l.b16 %v3939
    %v4075 = vunpack.c.l.b16 %v3940
    %v4076 = vunpack.c.l.b16 %v3941
    %v4077 = vunpack.c.l.b16 %v3942
    %v4078 = vunpack.c.l.b16 %v3943
    %v4079 = vunpack.c.l.b16 %v3944
    %v4080 = vunpack.c.l.b16 %v3945
    %v4081 = vunpack.c.l.b16 %v3946
    %v4082 = vunpack.c.l.b16 %v3947
    %v4083 = vunpack.c.l.b16 %v3948
    %v4084 = vunpack.c.l.b16 %v3949
    %v4085 = vunpack.c.l.b16 %v3950
    %v4086 = vunpack.c.l.b16 %v3951
    %v4087 = vunpack.c.l.b16 %v3952
    %v4088 = vunpack.c.l.b16 %v3953
    %v4089 = vunpack.c.l.b16 %v3954
    %v4090 = vunpack.c.l.b16 %v3955
    %v4091 = vunpack.c.l.b16 %v3956
    %v4092 = vunpack.c.l.b16 %v3957
    %v4093 = vunpack.c.l.b16 %v3958
    %v4094 = vunpack.c.l.b16 %v3959
    %v4095 = vunpack.c.l.b16 %v3960
    %v4096 = vunpack.c.l.b16 %v3961
    %v4097 = vunpack.c.l.b16 %v3962
    %v4098 = vunpack.c.l.b16 %v3963
    %v4099 = vunpack.c.l.b16 %v3964
    %v4100 = vunpack.c.l.b16 %v3965
    %v4101 = vunpack.c.l.b16 %v3966
    %v4102 = vunpack.c.l.b16 %v3967
    %v4103 = vunpack.c.l.b16 %v3968
    %v4104 = vunpack.c.l.b16 %v3969
    %v4105 = vunpack.c.l.b16 %v3970
    %v4106 = vunpack.c.l.b16 %v3971
    %v4107 = vunpack.c.l.b16 %v3972
    %v4108 = vunpack.c.l.b16 %v3973
    %v4109 = vunpack.c.l.b16 %v3974
    %v4110 = vunpack.c.l.b16 %v3975
    %v4111 = vunpack.c.l.b16 %v3976
    %v4112 = vunpack.c.l.b16 %v3977
    %v4113 = vunpack.c.l.b16 %v3978
    %v4114 = vunpack.c.l.b16 %v3979
    %v4115 = vunpack.c.l.b16 %v3980
    %v4116 = vunpack.c.l.b16 %v3981
    %v4117 = vunpack.c.l.b16 %v3982
    %v4118 = vunpack.c.l.b16 %v3983
    %v4119 = vunpack.c.l.b16 %v3984
    %v4120 = vunpack.c.l.b16 %v3985
    %v4121 = vunpack.c.l.b16 %v3986
    %v4122 = vunpack.c.l.b16 %v3987
    %v4123 = vunpack.c.l.b16 %v3988
    %v4124 = vunpack.c.l.b16 %v3989
    %v4125 = vunpack.c.l.b16 %v3990
    %v4126 = vunpack.c.l.b16 %v3991
    %v4127 = vunpack.c.l.b16 %v3992
    %v4128 = vunpack.c.l.b16 %v3993
    %v4129 = vunpack.c.l.b16 %v3994
    %v4130 = vunpack.c.l.b16 %v3995
    %v4131 = vpack.c.b16 %v4068, %v4067
    %v4132 = vpack.c.b16 %v4070, %v4069
    %v4133 = vpack.c.b16 %v4072, %v4071
    %v4134 = vpack.c.b16 %v4074, %v4073
    %v4135 = vpack.c.b16 %v4076, %v4075
    %v4136 = vpack.c.b16 %v4078, %v4077
    %v4137 = vpack.c.b16 %v4080, %v4079
    %v4138 = vpack.c.b16 %v4082, %v4081
    %v4139 = vpack.c.b16 %v4084, %v4083
    %v4140 = vpack.c.b16 %v4086, %v4085
    %v4141 = vpack.c.b16 %v4088, %v4087
    %v4142 = vpack.c.b16 %v4090, %v4089
    %v4143 = vpack.c.b16 %v4092, %v4091
    %v4144 = vpack.c.b16 %v4094, %v4093
    %v4145 = vpack.c.b16 %v4096, %v4095
    %v4146 = vpack.c.b16 %v4098, %v4097
    %v4147 = vpack.c.b16 %v4100, %v4099
    %v4148 = vpack.c.b16 %v4102, %v4101
    %v4149 = vpack.c.b16 %v4104, %v4103
    %v4150 = vpack.c.b16 %v4106, %v4105
    %v4151 = vpack.c.b16 %v4108, %v4107
    %v4152 = vpack.c.b16 %v4110, %v4109
    %v4153 = vpack.c.b16 %v4112, %v4111
    %v4154 = vpack.c.b16 %v4114, %v4113
    %v4155 = vpack.c.b16 %v4116, %v4115
    %v4156 = vpack.c.b16 %v4118, %v4117
    %v4157 = vpack.c.b16 %v4120, %v4119
    %v4158 = vpack.c.b16 %v4122, %v4121
    %v4159 = vpack.c.b16 %v4124, %v4123
    %v4160 = vpack.c.b16 %v4126, %v4125
    %v4161 = vpack.c.b16 %v4128, %v4127
    %v4162 = vpack.c.b16 %v4130, %v4129
    %4195 = vmatprep.subr.bf16.mxu0 0
    %4196 = vmatpush1.bf16.msra.mxu0 %v4131
    %4197 = vmatprep.subr.bf16.mxu0 0
    %4198 = vmatpush1.bf16.msra.mxu0 %v4132
    %4199 = vmatprep.subr.bf16.mxu0 0
    %4200 = vmatpush1.bf16.msra.mxu0 %v4133
    %4201 = vmatprep.subr.bf16.mxu0 0
    %4202 = vmatpush1.bf16.msra.mxu0 %v4134
    %4203 = vmatprep.subr.bf16.mxu0 0
    %4204 = vmatpush1.bf16.msra.mxu0 %v4135
    %4205 = vmatprep.subr.bf16.mxu0 0
    %4206 = vmatpush1.bf16.msra.mxu0 %v4136
    %4207 = vmatprep.subr.bf16.mxu0 0
    %4208 = vmatpush1.bf16.msra.mxu0 %v4137
    %4209 = vmatprep.subr.bf16.mxu0 0
    %4210 = vmatpush1.bf16.msra.mxu0 %v4138
    %4211 = vmatprep.subr.bf16.mxu0 0
    %4212 = vmatpush1.bf16.msra.mxu0 %v4139
    %4213 = vmatprep.subr.bf16.mxu0 0
    %4214 = vmatpush1.bf16.msra.mxu0 %v4140
    %4215 = vmatprep.subr.bf16.mxu0 0
    %4216 = vmatpush1.bf16.msra.mxu0 %v4141
    %4217 = vmatprep.subr.bf16.mxu0 0
    %4218 = vmatpush1.bf16.msra.mxu0 %v4142
    %4219 = vmatprep.subr.bf16.mxu0 0
    %4220 = vmatpush1.bf16.msra.mxu0 %v4143
    %4221 = vmatprep.subr.bf16.mxu0 0
    %4222 = vmatpush1.bf16.msra.mxu0 %v4144
    %4223 = vmatprep.subr.bf16.mxu0 0
    %4224 = vmatpush1.bf16.msra.mxu0 %v4145
    %4225 = vmatprep.subr.bf16.mxu0 0
    %4226 = vmatpush1.bf16.msra.mxu0 %v4146
    %4227 = vmatprep.mubr.bf16.mxu0 %v3925
    %4228 = vmatmul.mubr.bf16.gmra.mrb[0].mxu0 %v3924
    %v4229 = vpop.f32.mrb[0].mxu0
    %v4230 = vadd.f32 %v4001, %v4229
    %v4231 = vpop.f32.mrb[0].mxu0
    %v4232 = vpop.f32.mrb[0].mxu0
    %v4233 = vadd.f32 %v4001, %v4232
    %v4234 = vpop.f32.mrb[0].mxu0
    %4235 = vmatprep.mubr.bf16.mxu0 %v3929
    %4236 = vmatmul.mubr.bf16.gmra.mrb[0].mxu0 %v3928
    %v4237 = vpop.f32.mrb[0].mxu0
    %v4238 = vadd.f32 %v4001, %v4237
    %v4239 = vpop.f32.mrb[0].mxu0
    %v4240 = vpop.f32.mrb[0].mxu0
    %v4241 = vpop.f32.mrb[0].mxu0
    %4242 = vdwg.mxu0
    %4243 = vmatprep.subr.bf16.mxu0 0
    %4244 = vmatpush1.bf16.msra.mxu0 %v4147
    %4245 = vmatprep.subr.bf16.mxu0 0
    %4246 = vmatpush1.bf16.msra.mxu0 %v4148
    %4247 = vmatprep.subr.bf16.mxu0 0
    %4248 = vmatpush1.bf16.msra.mxu0 %v4149
    %4249 = vmatprep.subr.bf16.mxu0 0
    %4250 = vmatpush1.bf16.msra.mxu0 %v4150
    %4251 = vmatprep.subr.bf16.mxu0 0
    %4252 = vmatpush1.bf16.msra.mxu0 %v4151
    %4253 = vmatprep.subr.bf16.mxu0 0
    %4254 = vmatpush1.bf16.msra.mxu0 %v4152
    %4255 = vmatprep.subr.bf16.mxu0 0
    %4256 = vmatpush1.bf16.msra.mxu0 %v4153
    %4257 = vmatprep.subr.bf16.mxu0 0
    %4258 = vmatpush1.bf16.msra.mxu0 %v4154
    %4259 = vmatprep.subr.bf16.mxu0 0
    %4260 = vmatpush1.bf16.msra.mxu0 %v4155
    %4261 = vmatprep.subr.bf16.mxu0 0
    %4262 = vmatpush1.bf16.msra.mxu0 %v4156
    %4263 = vmatprep.subr.bf16.mxu0 0
    %4264 = vmatpush1.bf16.msra.mxu0 %v4157
    %4265 = vmatprep.subr.bf16.mxu0 0
    %4266 = vmatpush1.bf16.msra.mxu0 %v4158
    %4267 = vmatprep.subr.bf16.mxu0 0
    %4268 = vmatpush1.bf16.msra.mxu0 %v4159
    %4269 = vmatprep.subr.bf16.mxu0 0
    %4270 = vmatpush1.bf16.msra.mxu0 %v4160
    %4271 = vmatprep.subr.bf16.mxu0 0
    %4272 = vmatpush1.bf16.msra.mxu0 %v4161
    %4273 = vmatprep.subr.bf16.mxu0 0
    %4274 = vmatpush1.bf16.msra.mxu0 %v4162
    %4275 = vmatprep.mubr.bf16.mxu0 %v3927
    %4276 = vmatmul.mubr.bf16.gmra.mrb[0].mxu0 %v3926
    %v4277 = vpop.f32.mrb[0].mxu0
    %v4278 = vadd.f32 %v4230, %v4277
    %v4279 = vpop.f32.mrb[0].mxu0
    %v4280 = vpop.f32.mrb[0].mxu0
    %v4281 = vadd.f32 %v4233, %v4280
    %v4282 = vpop.f32.mrb[0].mxu0
    %4283 = vmatprep.mubr.bf16.mxu0 %v3931
    %4284 = vmatmul.mubr.bf16.gmra.mrb[0].mxu0 %v3930
    %v4285 = vpop.f32.mrb[0].mxu0
    %v4286 = vadd.f32 %v4238, %v4285
    %v4287 = vpop.f32.mrb[0].mxu0
    %v4288 = vpop.f32.mrb[0].mxu0
    %v4289 = vpop.f32.mrb[0].mxu0
    %4290 = vdwg.mxu0
    %v4291 = vadd.f32 %v3440, %v4278
    %v4292 = vadd.f32 %v3441, %v4281
    %v4293 = vadd.f32 %v3442, %v4286
    %v4294 = vpack.c.bf16 %v4292, %v4291
    %v4295 = vpack.c.bf16 %v4293, %v4293
    %v4298 = vunpack.c.l.b16 %v4294
    %v4299 = vunpack.c.h.b16 %v4294
    %v4300 = vunpack.c.l.b16 %v4295
    %v4301 = vpack.c.b16 %v4298, %v4298
    %v4302 = vpack.c.b16 %v4299, %v4299
    %v4303 = vpack.c.b16 %v4300, %v4300
    %s4307 = scalar_lea.vmem [#allocation29], 12
    %4308 = vst [vmem:[%s4307] sm:$0xf] %v4301
    %4309 = vst [vmem:[%s4307 + $0x4] sm:$0xf] %v4302
    %v4310 = vld [vmem:[%s4307 + $0x8] sm:$0x1]
    %v4311 = vsel %vm2303, %v4303, %v4310
    %4312 = vst [vmem:[%s4307 + $0x8] sm:$0x1] %v4311
    // Predicated region
    $region138: #{nanovlm_forward.8} parent=1 // pred_check
      _
    $region139: #{nanovlm_forward.8} parent=1 // pred_check_branch
      %4314 = sbr.rel (0) target = $region141
    $region140: #{nanovlm_forward.8} parent=1 // pred_region
      %s4316 = ssub.s32 384, 384
      %4317 = vsyncadd [#allocation4], %s4316
      %s4318 = sshll.u32 [#allocation29], 4
      %s4319 = int_to_ptr.vmem [resolvable:$true] %s4318
      %4324 = dma.vmem_to_hbm [thread:$0]  %s4319, 384, %s17, [#allocation4], 64, 64, 4
    $region141: #{nanovlm_forward.8} parent=1 // pred_fallthru
      _
    // Predicated region
    $region142: #{nanovlm_forward.8} parent=1 // pred_check
      _
    $region143: #{nanovlm_forward.8} parent=1 // pred_check_branch
      %4326 = sbr.rel (0) target = $region145
    $region144: #{nanovlm_forward.8} parent=1 // pred_region
      %4327 = dma.done [#allocation4], 384
    $region145: #{nanovlm_forward.8} parent=1 // pred_fallthru
      _
    %4328 = vsyncpa [#allocation3], 1
    %4329 = vsyncpa [#allocation6], 1
    %4330 = vsyncpa [#allocation9], 1
    %4331 = vsyncpa [#allocation12], 1
    %4332 = vsyncpa [#allocation15], 1
    %4333 = vsyncpa [#allocation18], 1
    %4334 = vsyncpa [#allocation21], 1
    %4335 = vsyncpa [#allocation24], 1
    %4336 = vsyncpa [#allocation27], 1
    %4337 = vsyncpa [#allocation4], 1

</llo_original>
